<compile_context>
chip_gen: v5e
topology: v5e:2x2
jax: 0.10.0
libtpu: 0.0.40
codegen_flags: <defaults>
</compile_context>

<pallas_src>
import math
from functools import partial

import numpy as np
import jax
import jax.numpy as jnp
from jax.experimental import pallas as pl
from jax.experimental.pallas import tpu as pltpu

MATMUL_DTYPE = jnp.bfloat16   # MXU input dtype (f32 accumulate); jnp.float32 to disable


# ------------------------------- fused kernel ------------------------------- #

def decoder_kernel(zx_ref, a_ref,
                   w1_ref, u1_ref, g1_ref, b1_ref,
                   w2_ref, u2_ref, g2_ref, b2_ref,
                   w3_ref, u3_ref, g3_ref, b3_ref,
                   o_ref, *, eps):
    # ---- Linear + ReLU (bias folded into the augmented operands) ----
    # a_ref : (latent, (latent+1)*hw0)  packed linear weight + bias rows (bf16)
    # zx_ref: ((latent+1)*hw0, B*hw0)   kron-expanded latent (bf16)
    x = jnp.dot(a_ref[...], zx_ref[...], preferred_element_type=jnp.float32)
    x = jnp.maximum(x, 0.0)            # (latent, B*h0*h0): channel-major slab, cols=(b,y,x)

    layers = ((w1_ref, u1_ref, g1_ref, b1_ref, False),
              (w2_ref, u2_ref, g2_ref, b2_ref, False),
              (w3_ref, u3_ref, g3_ref, b3_ref, True))
    for w_ref, u_ref, g_ref, be_ref, is_last in layers:
        xb = x.astype(MATMUL_DTYPE)
        c_out = w_ref.shape[1]         # w_ref: (16, C_out, C_in)
        n_out = u_ref.shape[2]         # u_ref: (16, B*H*W, B*2H*2W)
        acc = jnp.zeros((c_out, n_out), jnp.float32)

        # ConvTranspose2d(k=4, s=2, p=1), direct tap-scatter form.  U_k is 0/1 so
        # (xb @ U_k) holds exact bf16 copies of xb's columns -> the astype below is
        # lossless.  Conv bias omitted: training-mode BN cancels a per-channel constant.
        for k in range(16):
            sc = jnp.dot(xb, u_ref[k], preferred_element_type=jnp.float32)     # (C_in, N_out)
            acc = acc + jnp.dot(w_ref[k], sc.astype(MATMUL_DTYPE),
                                preferred_element_type=jnp.float32)            # (C_out, N_out)

        # BatchNorm2d (training mode, biased stats over B*Ho*Wo) fused affine + ReLU.
        inv_n = 1.0 / float(n_out)
        mean = jnp.sum(acc, axis=1, keepdims=True) * inv_n
        ex2 = jnp.sum(acc * acc, axis=1, keepdims=True) * inv_n
        var = jnp.maximum(ex2 - mean * mean, 0.0)
        scale = g_ref[...] * jax.lax.rsqrt(var + eps)
        shift = be_ref[...] - mean * scale
        x = jnp.maximum(acc * scale + shift, 0.0)
        if is_last:
            x = jax.nn.sigmoid(x)      # last layer only (BN + ReLU + Sigmoid per the spec)

    o_ref[...] = x                     # (no_channels, B*n*n): lane-dense final store


def _zero_map(ndim):
    def index_map(i):
        return (0,) * ndim
    return index_map


# ------------------------- host-side operand packing ------------------------ #

def _scatter_matrices(batch, h, w):
    """Per-tap 0/1 scatter matrices of ConvTranspose2d(k=4, s=2, p=1):
    U[ky*4+kx][(b,iy,ix), (b,oy,ox)] = 1  iff  oy = 2*iy-1+ky, ox = 2*ix-1+kx in range."""
    ho, wo = 2 * h, 2 * w
    u = np.zeros((4, 4, batch * h * w, batch * ho * wo), np.float32)
    for ky in range(4):
        for kx in range(4):
            for b in range(batch):
                for iy in range(h):
                    oy = 2 * iy - 1 + ky
                    if oy < 0 or oy >= ho:
                        continue
                    for ix in range(w):
                        ox = 2 * ix - 1 + kx
                        if ox < 0 or ox >= wo:
                            continue
                        u[ky, kx, (b * h + iy) * w + ix, (b * ho + oy) * wo + ox] = 1.0
    return jnp.asarray(u.reshape(16, batch * h * w, batch * ho * wo), MATMUL_DTYPE)


def prepare_params(p, batch):
    """One-time repacking of weights for the fused kernel (per batch size)."""
    n, latent = p["n_dims"], p["latent_dims"]
    h0 = n // 8
    hw0 = h0 * h0
    # Linear weight packed so one in-kernel matmul against the kron-expanded latent
    # (see _expand_latent) directly yields the channel-major (latent, B*h0*h0) slab,
    # with the bias carried by the trailing hw0 identity rows of the expanded latent.
    a = p["lin_w"].reshape(latent, hw0, latent).transpose(0, 2, 1).reshape(latent, latent * hw0)
    a_aug = jnp.concatenate([a, p["lin_b"].reshape(latent, hw0)], axis=1).astype(MATMUL_DTYPE)

    def layer(w, g, be, h):
        c_in, c_out = w.shape[0], w.shape[1]
        return dict(
            w=jnp.transpose(w, (2, 3, 1, 0)).reshape(16, c_out, c_in).astype(MATMUL_DTYPE),
            u=_scatter_matrices(batch, h, h),
            gamma=g.reshape(-1, 1).astype(jnp.float32),
            beta=be.reshape(-1, 1).astype(jnp.float32))

    return dict(
        a_aug=a_aug,
        l1=layer(p["w1"], p["g1"], p["be1"], h0),
        l2=layer(p["w2"], p["g2"], p["be2"], 2 * h0),
        l3=layer(p["w3"], p["g3"], p["be3"], 4 * h0),
    )


# --------------------------------- forward ---------------------------------- #

def _expand_latent(z2, hw0):
    """(B, L) latent -> ((L+1)*hw0, B*hw0) operand for the in-kernel linear matmul."""
    b = z2.shape[0]
    eye = jnp.eye(hw0, dtype=z2.dtype)
    zk = jnp.kron(z2.T, eye)                                   # (L*hw0, B*hw0)
    bias_rows = jnp.kron(jnp.ones((1, b), z2.dtype), eye)      # (hw0,  B*hw0)
    return jnp.concatenate([zk, bias_rows], axis=0).astype(MATMUL_DTYPE)


def cnn_decoder_forward(packed, z):
    b = z.shape[0]
    latent = packed["a_aug"].shape[0]
    hw0 = packed["a_aug"].shape[1] // (latent + 1)
    c_last = packed["l3"]["w"].shape[1]
    b_prep = packed["l1"]["u"].shape[1] // hw0
    assert b == b_prep, "prepare_params() was packed for a different batch size"
    n = math.isqrt(packed["l3"]["u"].shape[2] // b)

    z2 = z.reshape(b, -1).astype(jnp.float32)     # z.squeeze() equivalent, batch-1 safe
    zx = _expand_latent(z2, hw0)

    args = [zx, packed["a_aug"]]
    for name in ("l1", "l2", "l3"):
        l = packed[name]
        args += [l["w"], l["u"], l["gamma"], l["beta"]]

    out_shape = jax.ShapeDtypeStruct((c_last, b * n * n), jnp.float32)
    total_bytes = sum(int(np.prod(a.shape)) * a.dtype.itemsize for a in args)
    total_bytes += int(np.prod(out_shape.shape)) * 4
    vmem_limit = int(min(64 * 2**20, max(16 * 2**20, 2 * total_bytes + 8 * 2**20)))

    out = pl.pallas_call(
        partial(decoder_kernel, eps=1e-5),
        grid=(1,),
        in_specs=[pl.BlockSpec(a.shape, _zero_map(a.ndim)) for a in args],
        out_specs=pl.BlockSpec(out_shape.shape, _zero_map(2)),
        out_shape=out_shape,
        compiler_params=pltpu.CompilerParams(
            dimension_semantics=("arbitrary",),
            vmem_limit_bytes=vmem_limit),
    )(*args)

    # (C, B*n*n) lane-dense slab -> NCHW, done exactly once at the very end.
    return out.reshape(c_last, b, n, n).transpose(1, 0, 2, 3)


# ------------------------------ parameter init ------------------------------ #

def init_params(key, n_dims, no_channels, latent_dims):
    """Parameters in the PyTorch layout (as CNNDecoder would hold them)."""
    li = latent_dims * (n_dims // 8) ** 2
    c2, c4 = latent_dims // 2, latent_dims // 4
    ks = jax.random.split(key, 11)

    def u(k, shape, fan_in):
        bound = 1.0 / jnp.sqrt(jnp.float32(fan_in))
        return jax.random.uniform(k, shape, jnp.float32, -bound, bound)

    def bn(kg, kb, c):
        return (1.0 + 0.1 * jax.random.normal(kg, (c,), jnp.float32),
                0.1 * jax.random.normal(kb, (c,), jnp.float32))

    g1, be1 = bn(ks[3], ks[4], c2)
    g2, be2 = bn(ks[6], ks[7], c4)
    g3, be3 = bn(ks[9], ks[10], no_channels)
    return dict(
        n_dims=n_dims, latent_dims=latent_dims, no_channels=no_channels,
        # nn.Linear(latent_dims, latent_dims * (n//8)^2)
        lin_w=u(ks[0], (li, latent_dims), latent_dims),
        lin_b=u(ks[1], (li,), latent_dims),
        # ConvTranspose2d weights in PyTorch layout (C_in, C_out, 4, 4).  Conv biases are
        # omitted: under training-mode BatchNorm they are exactly cancelled by the mean
        # subtraction (mathematical no-op).
        w1=u(ks[2], (latent_dims, c2, 4, 4), latent_dims * 16), g1=g1, be1=be1,
        w2=u(ks[5], (c2, c4, 4, 4), c2 * 16), g2=g2, be2=be2,
        w3=u(ks[8], (c4, no_channels, 4, 4), c4 * 16), g3=g3, be3=be3,
    )


# ----------------------------------- main ----------------------------------- #

if __name__ == "__main__":
    key = jax.random.PRNGKey(0)
    n_dims, no_channels, latent_dims, batch = 16, 3, 16, 2

    pkey, zkey = jax.random.split(key)
    params = init_params(pkey, n_dims, no_channels, latent_dims)
    packed = prepare_params(params, batch)
    z = jax.random.normal(zkey, (batch, latent_dims, 1, 1), jnp.float32)

    fwd = jax.jit(cnn_decoder_forward)
    recon = jax.block_until_ready(fwd(packed, z))

    assert recon.shape == (batch, no_channels, n_dims, n_dims), recon.shape
    assert bool(jnp.all(jnp.isfinite(recon)))
    assert bool(jnp.all((recon >= 0.0) & (recon <= 1.0)))  # sigmoid(relu(x)) in [0.5, 1]
    print("KERNEL_OK")
</pallas_src>

<mosaic_0001>
module attributes {stable_mosaic.version = 11 : i64} {
  func.func @decoder_kernel(%arg0: i32, %arg1: memref<68x8xbf16, #tpu.memory_space<vmem>>, %arg2: memref<16x68xbf16, #tpu.memory_space<vmem>>, %arg3: memref<16x8x16xbf16, #tpu.memory_space<vmem>>, %arg4: memref<16x8x32xbf16, #tpu.memory_space<vmem>>, %arg5: memref<8x1xf32, #tpu.memory_space<vmem>>, %arg6: memref<8x1xf32, #tpu.memory_space<vmem>>, %arg7: memref<16x4x8xbf16, #tpu.memory_space<vmem>>, %arg8: memref<16x32x128xbf16, #tpu.memory_space<vmem>>, %arg9: memref<4x1xf32, #tpu.memory_space<vmem>>, %arg10: memref<4x1xf32, #tpu.memory_space<vmem>>, %arg11: memref<16x3x4xbf16, #tpu.memory_space<vmem>>, %arg12: memref<16x128x512xbf16, #tpu.memory_space<vmem>>, %arg13: memref<3x1xf32, #tpu.memory_space<vmem>>, %arg14: memref<3x1xf32, #tpu.memory_space<vmem>>, %arg15: memref<3x512xf32, #tpu.memory_space<vmem>>) attributes {dimension_semantics = [#tpu.dimension_semantics<arbitrary>], iteration_bounds = array<i64: 1>, scalar_prefetch = 0 : i64, scratch_operands = 0 : i64, tpu.core_type = #tpu.core_type<tc>, window_params = [{pipeline_mode = #tpu.pipeline_mode<synchronous>, transform_indices = @transform_0, window_bounds = array<i64: 68, 8>}, {pipeline_mode = #tpu.pipeline_mode<synchronous>, transform_indices = @transform_1, window_bounds = array<i64: 16, 68>}, {pipeline_mode = #tpu.pipeline_mode<synchronous>, transform_indices = @transform_2, window_bounds = array<i64: 16, 8, 16>}, {pipeline_mode = #tpu.pipeline_mode<synchronous>, transform_indices = @transform_3, window_bounds = array<i64: 16, 8, 32>}, {pipeline_mode = #tpu.pipeline_mode<synchronous>, transform_indices = @transform_4, window_bounds = array<i64: 8, 1>}, {pipeline_mode = #tpu.pipeline_mode<synchronous>, transform_indices = @transform_5, window_bounds = array<i64: 8, 1>}, {pipeline_mode = #tpu.pipeline_mode<synchronous>, transform_indices = @transform_6, window_bounds = array<i64: 16, 4, 8>}, {pipeline_mode = #tpu.pipeline_mode<synchronous>, transform_indices = @transform_7, window_bounds = array<i64: 16, 32, 128>}, {pipeline_mode = #tpu.pipeline_mode<synchronous>, transform_indices = @transform_8, window_bounds = array<i64: 4, 1>}, {pipeline_mode = #tpu.pipeline_mode<synchronous>, transform_indices = @transform_9, window_bounds = array<i64: 4, 1>}, {pipeline_mode = #tpu.pipeline_mode<synchronous>, transform_indices = @transform_10, window_bounds = array<i64: 16, 3, 4>}, {pipeline_mode = #tpu.pipeline_mode<synchronous>, transform_indices = @transform_11, window_bounds = array<i64: 16, 128, 512>}, {pipeline_mode = #tpu.pipeline_mode<synchronous>, transform_indices = @transform_12, window_bounds = array<i64: 3, 1>}, {pipeline_mode = #tpu.pipeline_mode<synchronous>, transform_indices = @transform_13, window_bounds = array<i64: 3, 1>}, {pipeline_mode = #tpu.pipeline_mode<synchronous>, transform_indices = @transform_14, window_bounds = array<i64: 3, 512>}]} {
    %c0 = arith.constant 0 : index
    %c0_0 = arith.constant 0 : index
    %0 = vector.load %arg2[%c0, %c0_0] : memref<16x68xbf16, #tpu.memory_space<vmem>>, vector<16x68xbf16>
    %c0_1 = arith.constant 0 : index
    %c0_2 = arith.constant 0 : index
    %1 = vector.load %arg1[%c0_1, %c0_2] : memref<68x8xbf16, #tpu.memory_space<vmem>>, vector<68x8xbf16>
    %cst = arith.constant dense<0.000000e+00> : vector<16x8xf32>
    %2 = tpu.matmul %0, %1, %cst {dimension_numbers = #tpu.dot_dimension_numbers<[1], [0], [0], [1], [0, 0, 1, 1], [], []>} : vector<16x68xbf16>, vector<68x8xbf16>, vector<16x8xf32> -> vector<16x8xf32>
    %cst_3 = arith.constant 0.000000e+00 : f32
    %3 = vector.broadcast %cst_3 : f32 to vector<16x8xf32>
    %4 = arith.maximumf %2, %3 : vector<16x8xf32>
    %5 = arith.truncf %4 : vector<16x8xf32> to vector<16x8xbf16>
    %cst_4 = arith.constant 0.000000e+00 : f32
    %6 = vector.broadcast %cst_4 : f32 to vector<8x32xf32>
    %c0_5 = arith.constant 0 : index
    %c0_6 = arith.constant 0 : index
    %c0_7 = arith.constant 0 : index
    %7 = vector.load %arg4[%c0_5, %c0_6, %c0_7] : memref<16x8x32xbf16, #tpu.memory_space<vmem>>, vector<1x8x32xbf16>
    %8 = vector.shape_cast %7 : vector<1x8x32xbf16> to vector<8x32xbf16>
    %cst_8 = arith.constant dense<0.000000e+00> : vector<16x32xf32>
    %9 = tpu.matmul %5, %8, %cst_8 {dimension_numbers = #tpu.dot_dimension_numbers<[1], [0], [0], [1], [0, 0, 1, 1], [], []>} : vector<16x8xbf16>, vector<8x32xbf16>, vector<16x32xf32> -> vector<16x32xf32>
    %c0_9 = arith.constant 0 : index
    %c0_10 = arith.constant 0 : index
    %c0_11 = arith.constant 0 : index
    %10 = vector.load %arg3[%c0_9, %c0_10, %c0_11] : memref<16x8x16xbf16, #tpu.memory_space<vmem>>, vector<1x8x16xbf16>
    %11 = vector.shape_cast %10 : vector<1x8x16xbf16> to vector<8x16xbf16>
    %12 = arith.truncf %9 : vector<16x32xf32> to vector<16x32xbf16>
    %cst_12 = arith.constant dense<0.000000e+00> : vector<8x32xf32>
    %13 = tpu.matmul %11, %12, %cst_12 {dimension_numbers = #tpu.dot_dimension_numbers<[1], [0], [0], [1], [0, 0, 1, 1], [], []>} : vector<8x16xbf16>, vector<16x32xbf16>, vector<8x32xf32> -> vector<8x32xf32>
    %14 = arith.addf %6, %13 : vector<8x32xf32>
    %c1 = arith.constant 1 : index
    %c0_13 = arith.constant 0 : index
    %c0_14 = arith.constant 0 : index
    %15 = vector.load %arg4[%c1, %c0_13, %c0_14] : memref<16x8x32xbf16, #tpu.memory_space<vmem>>, vector<1x8x32xbf16>
    %16 = vector.shape_cast %15 : vector<1x8x32xbf16> to vector<8x32xbf16>
    %cst_15 = arith.constant dense<0.000000e+00> : vector<16x32xf32>
    %17 = tpu.matmul %5, %16, %cst_15 {dimension_numbers = #tpu.dot_dimension_numbers<[1], [0], [0], [1], [0, 0, 1, 1], [], []>} : vector<16x8xbf16>, vector<8x32xbf16>, vector<16x32xf32> -> vector<16x32xf32>
    %c1_16 = arith.constant 1 : index
    %c0_17 = arith.constant 0 : index
    %c0_18 = arith.constant 0 : index
    %18 = vector.load %arg3[%c1_16, %c0_17, %c0_18] : memref<16x8x16xbf16, #tpu.memory_space<vmem>>, vector<1x8x16xbf16>
    %19 = vector.shape_cast %18 : vector<1x8x16xbf16> to vector<8x16xbf16>
    %20 = arith.truncf %17 : vector<16x32xf32> to vector<16x32xbf16>
    %cst_19 = arith.constant dense<0.000000e+00> : vector<8x32xf32>
    %21 = tpu.matmul %19, %20, %cst_19 {dimension_numbers = #tpu.dot_dimension_numbers<[1], [0], [0], [1], [0, 0, 1, 1], [], []>} : vector<8x16xbf16>, vector<16x32xbf16>, vector<8x32xf32> -> vector<8x32xf32>
    %22 = arith.addf %14, %21 : vector<8x32xf32>
    %c2 = arith.constant 2 : index
    %c0_20 = arith.constant 0 : index
    %c0_21 = arith.constant 0 : index
    %23 = vector.load %arg4[%c2, %c0_20, %c0_21] : memref<16x8x32xbf16, #tpu.memory_space<vmem>>, vector<1x8x32xbf16>
    %24 = vector.shape_cast %23 : vector<1x8x32xbf16> to vector<8x32xbf16>
    %cst_22 = arith.constant dense<0.000000e+00> : vector<16x32xf32>
    %25 = tpu.matmul %5, %24, %cst_22 {dimension_numbers = #tpu.dot_dimension_numbers<[1], [0], [0], [1], [0, 0, 1, 1], [], []>} : vector<16x8xbf16>, vector<8x32xbf16>, vector<16x32xf32> -> vector<16x32xf32>
    %c2_23 = arith.constant 2 : index
    %c0_24 = arith.constant 0 : index
    %c0_25 = arith.constant 0 : index
    %26 = vector.load %arg3[%c2_23, %c0_24, %c0_25] : memref<16x8x16xbf16, #tpu.memory_space<vmem>>, vector<1x8x16xbf16>
    %27 = vector.shape_cast %26 : vector<1x8x16xbf16> to vector<8x16xbf16>
    %28 = arith.truncf %25 : vector<16x32xf32> to vector<16x32xbf16>
    %cst_26 = arith.constant dense<0.000000e+00> : vector<8x32xf32>
    %29 = tpu.matmul %27, %28, %cst_26 {dimension_numbers = #tpu.dot_dimension_numbers<[1], [0], [0], [1], [0, 0, 1, 1], [], []>} : vector<8x16xbf16>, vector<16x32xbf16>, vector<8x32xf32> -> vector<8x32xf32>
    %30 = arith.addf %22, %29 : vector<8x32xf32>
    %c3 = arith.constant 3 : index
    %c0_27 = arith.constant 0 : index
    %c0_28 = arith.constant 0 : index
    %31 = vector.load %arg4[%c3, %c0_27, %c0_28] : memref<16x8x32xbf16, #tpu.memory_space<vmem>>, vector<1x8x32xbf16>
    %32 = vector.shape_cast %31 : vector<1x8x32xbf16> to vector<8x32xbf16>
    %cst_29 = arith.constant dense<0.000000e+00> : vector<16x32xf32>
    %33 = tpu.matmul %5, %32, %cst_29 {dimension_numbers = #tpu.dot_dimension_numbers<[1], [0], [0], [1], [0, 0, 1, 1], [], []>} : vector<16x8xbf16>, vector<8x32xbf16>, vector<16x32xf32> -> vector<16x32xf32>
    %c3_30 = arith.constant 3 : index
    %c0_31 = arith.constant 0 : index
    %c0_32 = arith.constant 0 : index
    %34 = vector.load %arg3[%c3_30, %c0_31, %c0_32] : memref<16x8x16xbf16, #tpu.memory_space<vmem>>, vector<1x8x16xbf16>
    %35 = vector.shape_cast %34 : vector<1x8x16xbf16> to vector<8x16xbf16>
    %36 = arith.truncf %33 : vector<16x32xf32> to vector<16x32xbf16>
    %cst_33 = arith.constant dense<0.000000e+00> : vector<8x32xf32>
    %37 = tpu.matmul %35, %36, %cst_33 {dimension_numbers = #tpu.dot_dimension_numbers<[1], [0], [0], [1], [0, 0, 1, 1], [], []>} : vector<8x16xbf16>, vector<16x32xbf16>, vector<8x32xf32> -> vector<8x32xf32>
    %38 = arith.addf %30, %37 : vector<8x32xf32>
    %c4 = arith.constant 4 : index
    %c0_34 = arith.constant 0 : index
    %c0_35 = arith.constant 0 : index
    %39 = vector.load %arg4[%c4, %c0_34, %c0_35] : memref<16x8x32xbf16, #tpu.memory_space<vmem>>, vector<1x8x32xbf16>
    %40 = vector.shape_cast %39 : vector<1x8x32xbf16> to vector<8x32xbf16>
    %cst_36 = arith.constant dense<0.000000e+00> : vector<16x32xf32>
    %41 = tpu.matmul %5, %40, %cst_36 {dimension_numbers = #tpu.dot_dimension_numbers<[1], [0], [0], [1], [0, 0, 1, 1], [], []>} : vector<16x8xbf16>, vector<8x32xbf16>, vector<16x32xf32> -> vector<16x32xf32>
    %c4_37 = arith.constant 4 : index
    %c0_38 = arith.constant 0 : index
    %c0_39 = arith.constant 0 : index
    %42 = vector.load %arg3[%c4_37, %c0_38, %c0_39] : memref<16x8x16xbf16, #tpu.memory_space<vmem>>, vector<1x8x16xbf16>
    %43 = vector.shape_cast %42 : vector<1x8x16xbf16> to vector<8x16xbf16>
    %44 = arith.truncf %41 : vector<16x32xf32> to vector<16x32xbf16>
    %cst_40 = arith.constant dense<0.000000e+00> : vector<8x32xf32>
    %45 = tpu.matmul %43, %44, %cst_40 {dimension_numbers = #tpu.dot_dimension_numbers<[1], [0], [0], [1], [0, 0, 1, 1], [], []>} : vector<8x16xbf16>, vector<16x32xbf16>, vector<8x32xf32> -> vector<8x32xf32>
    %46 = arith.addf %38, %45 : vector<8x32xf32>
    %c5 = arith.constant 5 : index
    %c0_41 = arith.constant 0 : index
    %c0_42 = arith.constant 0 : index
    %47 = vector.load %arg4[%c5, %c0_41, %c0_42] : memref<16x8x32xbf16, #tpu.memory_space<vmem>>, vector<1x8x32xbf16>
    %48 = vector.shape_cast %47 : vector<1x8x32xbf16> to vector<8x32xbf16>
    %cst_43 = arith.constant dense<0.000000e+00> : vector<16x32xf32>
    %49 = tpu.matmul %5, %48, %cst_43 {dimension_numbers = #tpu.dot_dimension_numbers<[1], [0], [0], [1], [0, 0, 1, 1], [], []>} : vector<16x8xbf16>, vector<8x32xbf16>, vector<16x32xf32> -> vector<16x32xf32>
    %c5_44 = arith.constant 5 : index
    %c0_45 = arith.constant 0 : index
    %c0_46 = arith.constant 0 : index
    %50 = vector.load %arg3[%c5_44, %c0_45, %c0_46] : memref<16x8x16xbf16, #tpu.memory_space<vmem>>, vector<1x8x16xbf16>
    %51 = vector.shape_cast %50 : vector<1x8x16xbf16> to vector<8x16xbf16>
    %52 = arith.truncf %49 : vector<16x32xf32> to vector<16x32xbf16>
    %cst_47 = arith.constant dense<0.000000e+00> : vector<8x32xf32>
    %53 = tpu.matmul %51, %52, %cst_47 {dimension_numbers = #tpu.dot_dimension_numbers<[1], [0], [0], [1], [0, 0, 1, 1], [], []>} : vector<8x16xbf16>, vector<16x32xbf16>, vector<8x32xf32> -> vector<8x32xf32>
    %54 = arith.addf %46, %53 : vector<8x32xf32>
    %c6 = arith.constant 6 : index
    %c0_48 = arith.constant 0 : index
    %c0_49 = arith.constant 0 : index
    %55 = vector.load %arg4[%c6, %c0_48, %c0_49] : memref<16x8x32xbf16, #tpu.memory_space<vmem>>, vector<1x8x32xbf16>
    %56 = vector.shape_cast %55 : vector<1x8x32xbf16> to vector<8x32xbf16>
    %cst_50 = arith.constant dense<0.000000e+00> : vector<16x32xf32>
    %57 = tpu.matmul %5, %56, %cst_50 {dimension_numbers = #tpu.dot_dimension_numbers<[1], [0], [0], [1], [0, 0, 1, 1], [], []>} : vector<16x8xbf16>, vector<8x32xbf16>, vector<16x32xf32> -> vector<16x32xf32>
    %c6_51 = arith.constant 6 : index
    %c0_52 = arith.constant 0 : index
    %c0_53 = arith.constant 0 : index
    %58 = vector.load %arg3[%c6_51, %c0_52, %c0_53] : memref<16x8x16xbf16, #tpu.memory_space<vmem>>, vector<1x8x16xbf16>
    %59 = vector.shape_cast %58 : vector<1x8x16xbf16> to vector<8x16xbf16>
    %60 = arith.truncf %57 : vector<16x32xf32> to vector<16x32xbf16>
    %cst_54 = arith.constant dense<0.000000e+00> : vector<8x32xf32>
    %61 = tpu.matmul %59, %60, %cst_54 {dimension_numbers = #tpu.dot_dimension_numbers<[1], [0], [0], [1], [0, 0, 1, 1], [], []>} : vector<8x16xbf16>, vector<16x32xbf16>, vector<8x32xf32> -> vector<8x32xf32>
    %62 = arith.addf %54, %61 : vector<8x32xf32>
    %c7 = arith.constant 7 : index
    %c0_55 = arith.constant 0 : index
    %c0_56 = arith.constant 0 : index
    %63 = vector.load %arg4[%c7, %c0_55, %c0_56] : memref<16x8x32xbf16, #tpu.memory_space<vmem>>, vector<1x8x32xbf16>
    %64 = vector.shape_cast %63 : vector<1x8x32xbf16> to vector<8x32xbf16>
    %cst_57 = arith.constant dense<0.000000e+00> : vector<16x32xf32>
    %65 = tpu.matmul %5, %64, %cst_57 {dimension_numbers = #tpu.dot_dimension_numbers<[1], [0], [0], [1], [0, 0, 1, 1], [], []>} : vector<16x8xbf16>, vector<8x32xbf16>, vector<16x32xf32> -> vector<16x32xf32>
    %c7_58 = arith.constant 7 : index
    %c0_59 = arith.constant 0 : index
    %c0_60 = arith.constant 0 : index
    %66 = vector.load %arg3[%c7_58, %c0_59, %c0_60] : memref<16x8x16xbf16, #tpu.memory_space<vmem>>, vector<1x8x16xbf16>
    %67 = vector.shape_cast %66 : vector<1x8x16xbf16> to vector<8x16xbf16>
    %68 = arith.truncf %65 : vector<16x32xf32> to vector<16x32xbf16>
    %cst_61 = arith.constant dense<0.000000e+00> : vector<8x32xf32>
    %69 = tpu.matmul %67, %68, %cst_61 {dimension_numbers = #tpu.dot_dimension_numbers<[1], [0], [0], [1], [0, 0, 1, 1], [], []>} : vector<8x16xbf16>, vector<16x32xbf16>, vector<8x32xf32> -> vector<8x32xf32>
    %70 = arith.addf %62, %69 : vector<8x32xf32>
    %c8 = arith.constant 8 : index
    %c0_62 = arith.constant 0 : index
    %c0_63 = arith.constant 0 : index
    %71 = vector.load %arg4[%c8, %c0_62, %c0_63] : memref<16x8x32xbf16, #tpu.memory_space<vmem>>, vector<1x8x32xbf16>
    %72 = vector.shape_cast %71 : vector<1x8x32xbf16> to vector<8x32xbf16>
    %cst_64 = arith.constant dense<0.000000e+00> : vector<16x32xf32>
    %73 = tpu.matmul %5, %72, %cst_64 {dimension_numbers = #tpu.dot_dimension_numbers<[1], [0], [0], [1], [0, 0, 1, 1], [], []>} : vector<16x8xbf16>, vector<8x32xbf16>, vector<16x32xf32> -> vector<16x32xf32>
    %c8_65 = arith.constant 8 : index
    %c0_66 = arith.constant 0 : index
    %c0_67 = arith.constant 0 : index
    %74 = vector.load %arg3[%c8_65, %c0_66, %c0_67] : memref<16x8x16xbf16, #tpu.memory_space<vmem>>, vector<1x8x16xbf16>
    %75 = vector.shape_cast %74 : vector<1x8x16xbf16> to vector<8x16xbf16>
    %76 = arith.truncf %73 : vector<16x32xf32> to vector<16x32xbf16>
    %cst_68 = arith.constant dense<0.000000e+00> : vector<8x32xf32>
    %77 = tpu.matmul %75, %76, %cst_68 {dimension_numbers = #tpu.dot_dimension_numbers<[1], [0], [0], [1], [0, 0, 1, 1], [], []>} : vector<8x16xbf16>, vector<16x32xbf16>, vector<8x32xf32> -> vector<8x32xf32>
    %78 = arith.addf %70, %77 : vector<8x32xf32>
    %c9 = arith.constant 9 : index
    %c0_69 = arith.constant 0 : index
    %c0_70 = arith.constant 0 : index
    %79 = vector.load %arg4[%c9, %c0_69, %c0_70] : memref<16x8x32xbf16, #tpu.memory_space<vmem>>, vector<1x8x32xbf16>
    %80 = vector.shape_cast %79 : vector<1x8x32xbf16> to vector<8x32xbf16>
    %cst_71 = arith.constant dense<0.000000e+00> : vector<16x32xf32>
    %81 = tpu.matmul %5, %80, %cst_71 {dimension_numbers = #tpu.dot_dimension_numbers<[1], [0], [0], [1], [0, 0, 1, 1], [], []>} : vector<16x8xbf16>, vector<8x32xbf16>, vector<16x32xf32> -> vector<16x32xf32>
    %c9_72 = arith.constant 9 : index
    %c0_73 = arith.constant 0 : index
    %c0_74 = arith.constant 0 : index
    %82 = vector.load %arg3[%c9_72, %c0_73, %c0_74] : memref<16x8x16xbf16, #tpu.memory_space<vmem>>, vector<1x8x16xbf16>
    %83 = vector.shape_cast %82 : vector<1x8x16xbf16> to vector<8x16xbf16>
    %84 = arith.truncf %81 : vector<16x32xf32> to vector<16x32xbf16>
    %cst_75 = arith.constant dense<0.000000e+00> : vector<8x32xf32>
    %85 = tpu.matmul %83, %84, %cst_75 {dimension_numbers = #tpu.dot_dimension_numbers<[1], [0], [0], [1], [0, 0, 1, 1], [], []>} : vector<8x16xbf16>, vector<16x32xbf16>, vector<8x32xf32> -> vector<8x32xf32>
    %86 = arith.addf %78, %85 : vector<8x32xf32>
    %c10 = arith.constant 10 : index
    %c0_76 = arith.constant 0 : index
    %c0_77 = arith.constant 0 : index
    %87 = vector.load %arg4[%c10, %c0_76, %c0_77] : memref<16x8x32xbf16, #tpu.memory_space<vmem>>, vector<1x8x32xbf16>
    %88 = vector.shape_cast %87 : vector<1x8x32xbf16> to vector<8x32xbf16>
    %cst_78 = arith.constant dense<0.000000e+00> : vector<16x32xf32>
    %89 = tpu.matmul %5, %88, %cst_78 {dimension_numbers = #tpu.dot_dimension_numbers<[1], [0], [0], [1], [0, 0, 1, 1], [], []>} : vector<16x8xbf16>, vector<8x32xbf16>, vector<16x32xf32> -> vector<16x32xf32>
    %c10_79 = arith.constant 10 : index
    %c0_80 = arith.constant 0 : index
    %c0_81 = arith.constant 0 : index
    %90 = vector.load %arg3[%c10_79, %c0_80, %c0_81] : memref<16x8x16xbf16, #tpu.memory_space<vmem>>, vector<1x8x16xbf16>
    %91 = vector.shape_cast %90 : vector<1x8x16xbf16> to vector<8x16xbf16>
    %92 = arith.truncf %89 : vector<16x32xf32> to vector<16x32xbf16>
    %cst_82 = arith.constant dense<0.000000e+00> : vector<8x32xf32>
    %93 = tpu.matmul %91, %92, %cst_82 {dimension_numbers = #tpu.dot_dimension_numbers<[1], [0], [0], [1], [0, 0, 1, 1], [], []>} : vector<8x16xbf16>, vector<16x32xbf16>, vector<8x32xf32> -> vector<8x32xf32>
    %94 = arith.addf %86, %93 : vector<8x32xf32>
    %c11 = arith.constant 11 : index
    %c0_83 = arith.constant 0 : index
    %c0_84 = arith.constant 0 : index
    %95 = vector.load %arg4[%c11, %c0_83, %c0_84] : memref<16x8x32xbf16, #tpu.memory_space<vmem>>, vector<1x8x32xbf16>
    %96 = vector.shape_cast %95 : vector<1x8x32xbf16> to vector<8x32xbf16>
    %cst_85 = arith.constant dense<0.000000e+00> : vector<16x32xf32>
    %97 = tpu.matmul %5, %96, %cst_85 {dimension_numbers = #tpu.dot_dimension_numbers<[1], [0], [0], [1], [0, 0, 1, 1], [], []>} : vector<16x8xbf16>, vector<8x32xbf16>, vector<16x32xf32> -> vector<16x32xf32>
    %c11_86 = arith.constant 11 : index
    %c0_87 = arith.constant 0 : index
    %c0_88 = arith.constant 0 : index
    %98 = vector.load %arg3[%c11_86, %c0_87, %c0_88] : memref<16x8x16xbf16, #tpu.memory_space<vmem>>, vector<1x8x16xbf16>
    %99 = vector.shape_cast %98 : vector<1x8x16xbf16> to vector<8x16xbf16>
    %100 = arith.truncf %97 : vector<16x32xf32> to vector<16x32xbf16>
    %cst_89 = arith.constant dense<0.000000e+00> : vector<8x32xf32>
    %101 = tpu.matmul %99, %100, %cst_89 {dimension_numbers = #tpu.dot_dimension_numbers<[1], [0], [0], [1], [0, 0, 1, 1], [], []>} : vector<8x16xbf16>, vector<16x32xbf16>, vector<8x32xf32> -> vector<8x32xf32>
    %102 = arith.addf %94, %101 : vector<8x32xf32>
    %c12 = arith.constant 12 : index
    %c0_90 = arith.constant 0 : index
    %c0_91 = arith.constant 0 : index
    %103 = vector.load %arg4[%c12, %c0_90, %c0_91] : memref<16x8x32xbf16, #tpu.memory_space<vmem>>, vector<1x8x32xbf16>
    %104 = vector.shape_cast %103 : vector<1x8x32xbf16> to vector<8x32xbf16>
    %cst_92 = arith.constant dense<0.000000e+00> : vector<16x32xf32>
    %105 = tpu.matmul %5, %104, %cst_92 {dimension_numbers = #tpu.dot_dimension_numbers<[1], [0], [0], [1], [0, 0, 1, 1], [], []>} : vector<16x8xbf16>, vector<8x32xbf16>, vector<16x32xf32> -> vector<16x32xf32>
    %c12_93 = arith.constant 12 : index
    %c0_94 = arith.constant 0 : index
    %c0_95 = arith.constant 0 : index
    %106 = vector.load %arg3[%c12_93, %c0_94, %c0_95] : memref<16x8x16xbf16, #tpu.memory_space<vmem>>, vector<1x8x16xbf16>
    %107 = vector.shape_cast %106 : vector<1x8x16xbf16> to vector<8x16xbf16>
    %108 = arith.truncf %105 : vector<16x32xf32> to vector<16x32xbf16>
    %cst_96 = arith.constant dense<0.000000e+00> : vector<8x32xf32>
    %109 = tpu.matmul %107, %108, %cst_96 {dimension_numbers = #tpu.dot_dimension_numbers<[1], [0], [0], [1], [0, 0, 1, 1], [], []>} : vector<8x16xbf16>, vector<16x32xbf16>, vector<8x32xf32> -> vector<8x32xf32>
    %110 = arith.addf %102, %109 : vector<8x32xf32>
    %c13 = arith.constant 13 : index
    %c0_97 = arith.constant 0 : index
    %c0_98 = arith.constant 0 : index
    %111 = vector.load %arg4[%c13, %c0_97, %c0_98] : memref<16x8x32xbf16, #tpu.memory_space<vmem>>, vector<1x8x32xbf16>
    %112 = vector.shape_cast %111 : vector<1x8x32xbf16> to vector<8x32xbf16>
    %cst_99 = arith.constant dense<0.000000e+00> : vector<16x32xf32>
    %113 = tpu.matmul %5, %112, %cst_99 {dimension_numbers = #tpu.dot_dimension_numbers<[1], [0], [0], [1], [0, 0, 1, 1], [], []>} : vector<16x8xbf16>, vector<8x32xbf16>, vector<16x32xf32> -> vector<16x32xf32>
    %c13_100 = arith.constant 13 : index
    %c0_101 = arith.constant 0 : index
    %c0_102 = arith.constant 0 : index
    %114 = vector.load %arg3[%c13_100, %c0_101, %c0_102] : memref<16x8x16xbf16, #tpu.memory_space<vmem>>, vector<1x8x16xbf16>
    %115 = vector.shape_cast %114 : vector<1x8x16xbf16> to vector<8x16xbf16>
    %116 = arith.truncf %113 : vector<16x32xf32> to vector<16x32xbf16>
    %cst_103 = arith.constant dense<0.000000e+00> : vector<8x32xf32>
    %117 = tpu.matmul %115, %116, %cst_103 {dimension_numbers = #tpu.dot_dimension_numbers<[1], [0], [0], [1], [0, 0, 1, 1], [], []>} : vector<8x16xbf16>, vector<16x32xbf16>, vector<8x32xf32> -> vector<8x32xf32>
    %118 = arith.addf %110, %117 : vector<8x32xf32>
    %c14 = arith.constant 14 : index
    %c0_104 = arith.constant 0 : index
    %c0_105 = arith.constant 0 : index
    %119 = vector.load %arg4[%c14, %c0_104, %c0_105] : memref<16x8x32xbf16, #tpu.memory_space<vmem>>, vector<1x8x32xbf16>
    %120 = vector.shape_cast %119 : vector<1x8x32xbf16> to vector<8x32xbf16>
    %cst_106 = arith.constant dense<0.000000e+00> : vector<16x32xf32>
    %121 = tpu.matmul %5, %120, %cst_106 {dimension_numbers = #tpu.dot_dimension_numbers<[1], [0], [0], [1], [0, 0, 1, 1], [], []>} : vector<16x8xbf16>, vector<8x32xbf16>, vector<16x32xf32> -> vector<16x32xf32>
    %c14_107 = arith.constant 14 : index
    %c0_108 = arith.constant 0 : index
    %c0_109 = arith.constant 0 : index
    %122 = vector.load %arg3[%c14_107, %c0_108, %c0_109] : memref<16x8x16xbf16, #tpu.memory_space<vmem>>, vector<1x8x16xbf16>
    %123 = vector.shape_cast %122 : vector<1x8x16xbf16> to vector<8x16xbf16>
    %124 = arith.truncf %121 : vector<16x32xf32> to vector<16x32xbf16>
    %cst_110 = arith.constant dense<0.000000e+00> : vector<8x32xf32>
    %125 = tpu.matmul %123, %124, %cst_110 {dimension_numbers = #tpu.dot_dimension_numbers<[1], [0], [0], [1], [0, 0, 1, 1], [], []>} : vector<8x16xbf16>, vector<16x32xbf16>, vector<8x32xf32> -> vector<8x32xf32>
    %126 = arith.addf %118, %125 : vector<8x32xf32>
    %c15 = arith.constant 15 : index
    %c0_111 = arith.constant 0 : index
    %c0_112 = arith.constant 0 : index
    %127 = vector.load %arg4[%c15, %c0_111, %c0_112] : memref<16x8x32xbf16, #tpu.memory_space<vmem>>, vector<1x8x32xbf16>
    %128 = vector.shape_cast %127 : vector<1x8x32xbf16> to vector<8x32xbf16>
    %cst_113 = arith.constant dense<0.000000e+00> : vector<16x32xf32>
    %129 = tpu.matmul %5, %128, %cst_113 {dimension_numbers = #tpu.dot_dimension_numbers<[1], [0], [0], [1], [0, 0, 1, 1], [], []>} : vector<16x8xbf16>, vector<8x32xbf16>, vector<16x32xf32> -> vector<16x32xf32>
    %c15_114 = arith.constant 15 : index
    %c0_115 = arith.constant 0 : index
    %c0_116 = arith.constant 0 : index
    %130 = vector.load %arg3[%c15_114, %c0_115, %c0_116] : memref<16x8x16xbf16, #tpu.memory_space<vmem>>, vector<1x8x16xbf16>
    %131 = vector.shape_cast %130 : vector<1x8x16xbf16> to vector<8x16xbf16>
    %132 = arith.truncf %129 : vector<16x32xf32> to vector<16x32xbf16>
    %cst_117 = arith.constant dense<0.000000e+00> : vector<8x32xf32>
    %133 = tpu.matmul %131, %132, %cst_117 {dimension_numbers = #tpu.dot_dimension_numbers<[1], [0], [0], [1], [0, 0, 1, 1], [], []>} : vector<8x16xbf16>, vector<16x32xbf16>, vector<8x32xf32> -> vector<8x32xf32>
    %134 = arith.addf %126, %133 : vector<8x32xf32>
    %cst_118 = arith.constant dense<0.000000e+00> : vector<8xf32>
    %135 = vector.multi_reduction <add>, %134, %cst_118 [1] : vector<8x32xf32> to vector<8xf32>
    %136 = vector.shape_cast %135 : vector<8xf32> to vector<8x1xf32>
    %cst_119 = arith.constant 3.125000e-02 : f32
    %137 = vector.broadcast %cst_119 : f32 to vector<8x1xf32>
    %138 = arith.mulf %136, %137 : vector<8x1xf32>
    %139 = arith.mulf %134, %134 : vector<8x32xf32>
    %cst_120 = arith.constant dense<0.000000e+00> : vector<8xf32>
    %140 = vector.multi_reduction <add>, %139, %cst_120 [1] : vector<8x32xf32> to vector<8xf32>
    %141 = vector.shape_cast %140 : vector<8xf32> to vector<8x1xf32>
    %cst_121 = arith.constant 3.125000e-02 : f32
    %142 = vector.broadcast %cst_121 : f32 to vector<8x1xf32>
    %143 = arith.mulf %141, %142 : vector<8x1xf32>
    %144 = arith.mulf %138, %138 : vector<8x1xf32>
    %145 = arith.subf %143, %144 : vector<8x1xf32>
    %cst_122 = arith.constant 0.000000e+00 : f32
    %146 = vector.broadcast %cst_122 : f32 to vector<8x1xf32>
    %147 = arith.maximumf %145, %146 : vector<8x1xf32>
    %c0_123 = arith.constant 0 : index
    %c0_124 = arith.constant 0 : index
    %148 = vector.load %arg5[%c0_123, %c0_124] : memref<8x1xf32, #tpu.memory_space<vmem>>, vector<8x1xf32>
    %cst_125 = arith.constant 9.99999974E-6 : f32
    %149 = vector.broadcast %cst_125 : f32 to vector<8x1xf32>
    %150 = arith.addf %147, %149 : vector<8x1xf32>
    %151 = math.rsqrt %150 : vector<8x1xf32>
    %152 = arith.mulf %148, %151 : vector<8x1xf32>
    %c0_126 = arith.constant 0 : index
    %c0_127 = arith.constant 0 : index
    %153 = vector.load %arg6[%c0_126, %c0_127] : memref<8x1xf32, #tpu.memory_space<vmem>>, vector<8x1xf32>
    %154 = arith.mulf %138, %152 : vector<8x1xf32>
    %155 = arith.subf %153, %154 : vector<8x1xf32>
    %156 = vector.broadcast %152 : vector<8x1xf32> to vector<8x32xf32>
    %157 = arith.mulf %134, %156 : vector<8x32xf32>
    %158 = vector.broadcast %155 : vector<8x1xf32> to vector<8x32xf32>
    %159 = arith.addf %157, %158 : vector<8x32xf32>
    %cst_128 = arith.constant 0.000000e+00 : f32
    %160 = vector.broadcast %cst_128 : f32 to vector<8x32xf32>
    %161 = arith.maximumf %159, %160 : vector<8x32xf32>
    %162 = arith.truncf %161 : vector<8x32xf32> to vector<8x32xbf16>
    %cst_129 = arith.constant 0.000000e+00 : f32
    %163 = vector.broadcast %cst_129 : f32 to vector<4x128xf32>
    %c0_130 = arith.constant 0 : index
    %c0_131 = arith.constant 0 : index
    %c0_132 = arith.constant 0 : index
    %164 = vector.load %arg8[%c0_130, %c0_131, %c0_132] : memref<16x32x128xbf16, #tpu.memory_space<vmem>>, vector<1x32x128xbf16>
    %165 = vector.shape_cast %164 : vector<1x32x128xbf16> to vector<32x128xbf16>
    %cst_133 = arith.constant dense<0.000000e+00> : vector<8x128xf32>
    %166 = tpu.matmul %162, %165, %cst_133 {dimension_numbers = #tpu.dot_dimension_numbers<[1], [0], [0], [1], [0, 0, 1, 1], [], []>} : vector<8x32xbf16>, vector<32x128xbf16>, vector<8x128xf32> -> vector<8x128xf32>
    %c0_134 = arith.constant 0 : index
    %c0_135 = arith.constant 0 : index
    %c0_136 = arith.constant 0 : index
    %167 = vector.load %arg7[%c0_134, %c0_135, %c0_136] : memref<16x4x8xbf16, #tpu.memory_space<vmem>>, vector<1x4x8xbf16>
    %168 = vector.shape_cast %167 : vector<1x4x8xbf16> to vector<4x8xbf16>
    %169 = arith.truncf %166 : vector<8x128xf32> to vector<8x128xbf16>
    %cst_137 = arith.constant dense<0.000000e+00> : vector<4x128xf32>
    %170 = tpu.matmul %168, %169, %cst_137 {dimension_numbers = #tpu.dot_dimension_numbers<[1], [0], [0], [1], [0, 0, 1, 1], [], []>} : vector<4x8xbf16>, vector<8x128xbf16>, vector<4x128xf32> -> vector<4x128xf32>
    %171 = arith.addf %163, %170 : vector<4x128xf32>
    %c1_138 = arith.constant 1 : index
    %c0_139 = arith.constant 0 : index
    %c0_140 = arith.constant 0 : index
    %172 = vector.load %arg8[%c1_138, %c0_139, %c0_140] : memref<16x32x128xbf16, #tpu.memory_space<vmem>>, vector<1x32x128xbf16>
    %173 = vector.shape_cast %172 : vector<1x32x128xbf16> to vector<32x128xbf16>
    %cst_141 = arith.constant dense<0.000000e+00> : vector<8x128xf32>
    %174 = tpu.matmul %162, %173, %cst_141 {dimension_numbers = #tpu.dot_dimension_numbers<[1], [0], [0], [1], [0, 0, 1, 1], [], []>} : vector<8x32xbf16>, vector<32x128xbf16>, vector<8x128xf32> -> vector<8x128xf32>
    %c1_142 = arith.constant 1 : index
    %c0_143 = arith.constant 0 : index
    %c0_144 = arith.constant 0 : index
    %175 = vector.load %arg7[%c1_142, %c0_143, %c0_144] : memref<16x4x8xbf16, #tpu.memory_space<vmem>>, vector<1x4x8xbf16>
    %176 = vector.shape_cast %175 : vector<1x4x8xbf16> to vector<4x8xbf16>
    %177 = arith.truncf %174 : vector<8x128xf32> to vector<8x128xbf16>
    %cst_145 = arith.constant dense<0.000000e+00> : vector<4x128xf32>
    %178 = tpu.matmul %176, %177, %cst_145 {dimension_numbers = #tpu.dot_dimension_numbers<[1], [0], [0], [1], [0, 0, 1, 1], [], []>} : vector<4x8xbf16>, vector<8x128xbf16>, vector<4x128xf32> -> vector<4x128xf32>
    %179 = arith.addf %171, %178 : vector<4x128xf32>
    %c2_146 = arith.constant 2 : index
    %c0_147 = arith.constant 0 : index
    %c0_148 = arith.constant 0 : index
    %180 = vector.load %arg8[%c2_146, %c0_147, %c0_148] : memref<16x32x128xbf16, #tpu.memory_space<vmem>>, vector<1x32x128xbf16>
    %181 = vector.shape_cast %180 : vector<1x32x128xbf16> to vector<32x128xbf16>
    %cst_149 = arith.constant dense<0.000000e+00> : vector<8x128xf32>
    %182 = tpu.matmul %162, %181, %cst_149 {dimension_numbers = #tpu.dot_dimension_numbers<[1], [0], [0], [1], [0, 0, 1, 1], [], []>} : vector<8x32xbf16>, vector<32x128xbf16>, vector<8x128xf32> -> vector<8x128xf32>
    %c2_150 = arith.constant 2 : index
    %c0_151 = arith.constant 0 : index
    %c0_152 = arith.constant 0 : index
    %183 = vector.load %arg7[%c2_150, %c0_151, %c0_152] : memref<16x4x8xbf16, #tpu.memory_space<vmem>>, vector<1x4x8xbf16>
    %184 = vector.shape_cast %183 : vector<1x4x8xbf16> to vector<4x8xbf16>
    %185 = arith.truncf %182 : vector<8x128xf32> to vector<8x128xbf16>
    %cst_153 = arith.constant dense<0.000000e+00> : vector<4x128xf32>
    %186 = tpu.matmul %184, %185, %cst_153 {dimension_numbers = #tpu.dot_dimension_numbers<[1], [0], [0], [1], [0, 0, 1, 1], [], []>} : vector<4x8xbf16>, vector<8x128xbf16>, vector<4x128xf32> -> vector<4x128xf32>
    %187 = arith.addf %179, %186 : vector<4x128xf32>
    %c3_154 = arith.constant 3 : index
    %c0_155 = arith.constant 0 : index
    %c0_156 = arith.constant 0 : index
    %188 = vector.load %arg8[%c3_154, %c0_155, %c0_156] : memref<16x32x128xbf16, #tpu.memory_space<vmem>>, vector<1x32x128xbf16>
    %189 = vector.shape_cast %188 : vector<1x32x128xbf16> to vector<32x128xbf16>
    %cst_157 = arith.constant dense<0.000000e+00> : vector<8x128xf32>
    %190 = tpu.matmul %162, %189, %cst_157 {dimension_numbers = #tpu.dot_dimension_numbers<[1], [0], [0], [1], [0, 0, 1, 1], [], []>} : vector<8x32xbf16>, vector<32x128xbf16>, vector<8x128xf32> -> vector<8x128xf32>
    %c3_158 = arith.constant 3 : index
    %c0_159 = arith.constant 0 : index
    %c0_160 = arith.constant 0 : index
    %191 = vector.load %arg7[%c3_158, %c0_159, %c0_160] : memref<16x4x8xbf16, #tpu.memory_space<vmem>>, vector<1x4x8xbf16>
    %192 = vector.shape_cast %191 : vector<1x4x8xbf16> to vector<4x8xbf16>
    %193 = arith.truncf %190 : vector<8x128xf32> to vector<8x128xbf16>
    %cst_161 = arith.constant dense<0.000000e+00> : vector<4x128xf32>
    %194 = tpu.matmul %192, %193, %cst_161 {dimension_numbers = #tpu.dot_dimension_numbers<[1], [0], [0], [1], [0, 0, 1, 1], [], []>} : vector<4x8xbf16>, vector<8x128xbf16>, vector<4x128xf32> -> vector<4x128xf32>
    %195 = arith.addf %187, %194 : vector<4x128xf32>
    %c4_162 = arith.constant 4 : index
    %c0_163 = arith.constant 0 : index
    %c0_164 = arith.constant 0 : index
    %196 = vector.load %arg8[%c4_162, %c0_163, %c0_164] : memref<16x32x128xbf16, #tpu.memory_space<vmem>>, vector<1x32x128xbf16>
    %197 = vector.shape_cast %196 : vector<1x32x128xbf16> to vector<32x128xbf16>
    %cst_165 = arith.constant dense<0.000000e+00> : vector<8x128xf32>
    %198 = tpu.matmul %162, %197, %cst_165 {dimension_numbers = #tpu.dot_dimension_numbers<[1], [0], [0], [1], [0, 0, 1, 1], [], []>} : vector<8x32xbf16>, vector<32x128xbf16>, vector<8x128xf32> -> vector<8x128xf32>
    %c4_166 = arith.constant 4 : index
    %c0_167 = arith.constant 0 : index
    %c0_168 = arith.constant 0 : index
    %199 = vector.load %arg7[%c4_166, %c0_167, %c0_168] : memref<16x4x8xbf16, #tpu.memory_space<vmem>>, vector<1x4x8xbf16>
    %200 = vector.shape_cast %199 : vector<1x4x8xbf16> to vector<4x8xbf16>
    %201 = arith.truncf %198 : vector<8x128xf32> to vector<8x128xbf16>
    %cst_169 = arith.constant dense<0.000000e+00> : vector<4x128xf32>
    %202 = tpu.matmul %200, %201, %cst_169 {dimension_numbers = #tpu.dot_dimension_numbers<[1], [0], [0], [1], [0, 0, 1, 1], [], []>} : vector<4x8xbf16>, vector<8x128xbf16>, vector<4x128xf32> -> vector<4x128xf32>
    %203 = arith.addf %195, %202 : vector<4x128xf32>
    %c5_170 = arith.constant 5 : index
    %c0_171 = arith.constant 0 : index
    %c0_172 = arith.constant 0 : index
    %204 = vector.load %arg8[%c5_170, %c0_171, %c0_172] : memref<16x32x128xbf16, #tpu.memory_space<vmem>>, vector<1x32x128xbf16>
    %205 = vector.shape_cast %204 : vector<1x32x128xbf16> to vector<32x128xbf16>
    %cst_173 = arith.constant dense<0.000000e+00> : vector<8x128xf32>
    %206 = tpu.matmul %162, %205, %cst_173 {dimension_numbers = #tpu.dot_dimension_numbers<[1], [0], [0], [1], [0, 0, 1, 1], [], []>} : vector<8x32xbf16>, vector<32x128xbf16>, vector<8x128xf32> -> vector<8x128xf32>
    %c5_174 = arith.constant 5 : index
    %c0_175 = arith.constant 0 : index
    %c0_176 = arith.constant 0 : index
    %207 = vector.load %arg7[%c5_174, %c0_175, %c0_176] : memref<16x4x8xbf16, #tpu.memory_space<vmem>>, vector<1x4x8xbf16>
    %208 = vector.shape_cast %207 : vector<1x4x8xbf16> to vector<4x8xbf16>
    %209 = arith.truncf %206 : vector<8x128xf32> to vector<8x128xbf16>
    %cst_177 = arith.constant dense<0.000000e+00> : vector<4x128xf32>
    %210 = tpu.matmul %208, %209, %cst_177 {dimension_numbers = #tpu.dot_dimension_numbers<[1], [0], [0], [1], [0, 0, 1, 1], [], []>} : vector<4x8xbf16>, vector<8x128xbf16>, vector<4x128xf32> -> vector<4x128xf32>
    %211 = arith.addf %203, %210 : vector<4x128xf32>
    %c6_178 = arith.constant 6 : index
    %c0_179 = arith.constant 0 : index
    %c0_180 = arith.constant 0 : index
    %212 = vector.load %arg8[%c6_178, %c0_179, %c0_180] : memref<16x32x128xbf16, #tpu.memory_space<vmem>>, vector<1x32x128xbf16>
    %213 = vector.shape_cast %212 : vector<1x32x128xbf16> to vector<32x128xbf16>
    %cst_181 = arith.constant dense<0.000000e+00> : vector<8x128xf32>
    %214 = tpu.matmul %162, %213, %cst_181 {dimension_numbers = #tpu.dot_dimension_numbers<[1], [0], [0], [1], [0, 0, 1, 1], [], []>} : vector<8x32xbf16>, vector<32x128xbf16>, vector<8x128xf32> -> vector<8x128xf32>
    %c6_182 = arith.constant 6 : index
    %c0_183 = arith.constant 0 : index
    %c0_184 = arith.constant 0 : index
    %215 = vector.load %arg7[%c6_182, %c0_183, %c0_184] : memref<16x4x8xbf16, #tpu.memory_space<vmem>>, vector<1x4x8xbf16>
    %216 = vector.shape_cast %215 : vector<1x4x8xbf16> to vector<4x8xbf16>
    %217 = arith.truncf %214 : vector<8x128xf32> to vector<8x128xbf16>
    %cst_185 = arith.constant dense<0.000000e+00> : vector<4x128xf32>
    %218 = tpu.matmul %216, %217, %cst_185 {dimension_numbers = #tpu.dot_dimension_numbers<[1], [0], [0], [1], [0, 0, 1, 1], [], []>} : vector<4x8xbf16>, vector<8x128xbf16>, vector<4x128xf32> -> vector<4x128xf32>
    %219 = arith.addf %211, %218 : vector<4x128xf32>
    %c7_186 = arith.constant 7 : index
    %c0_187 = arith.constant 0 : index
    %c0_188 = arith.constant 0 : index
    %220 = vector.load %arg8[%c7_186, %c0_187, %c0_188] : memref<16x32x128xbf16, #tpu.memory_space<vmem>>, vector<1x32x128xbf16>
    %221 = vector.shape_cast %220 : vector<1x32x128xbf16> to vector<32x128xbf16>
    %cst_189 = arith.constant dense<0.000000e+00> : vector<8x128xf32>
    %222 = tpu.matmul %162, %221, %cst_189 {dimension_numbers = #tpu.dot_dimension_numbers<[1], [0], [0], [1], [0, 0, 1, 1], [], []>} : vector<8x32xbf16>, vector<32x128xbf16>, vector<8x128xf32> -> vector<8x128xf32>
    %c7_190 = arith.constant 7 : index
    %c0_191 = arith.constant 0 : index
    %c0_192 = arith.constant 0 : index
    %223 = vector.load %arg7[%c7_190, %c0_191, %c0_192] : memref<16x4x8xbf16, #tpu.memory_space<vmem>>, vector<1x4x8xbf16>
    %224 = vector.shape_cast %223 : vector<1x4x8xbf16> to vector<4x8xbf16>
    %225 = arith.truncf %222 : vector<8x128xf32> to vector<8x128xbf16>
    %cst_193 = arith.constant dense<0.000000e+00> : vector<4x128xf32>
    %226 = tpu.matmul %224, %225, %cst_193 {dimension_numbers = #tpu.dot_dimension_numbers<[1], [0], [0], [1], [0, 0, 1, 1], [], []>} : vector<4x8xbf16>, vector<8x128xbf16>, vector<4x128xf32> -> vector<4x128xf32>
    %227 = arith.addf %219, %226 : vector<4x128xf32>
    %c8_194 = arith.constant 8 : index
    %c0_195 = arith.constant 0 : index
    %c0_196 = arith.constant 0 : index
    %228 = vector.load %arg8[%c8_194, %c0_195, %c0_196] : memref<16x32x128xbf16, #tpu.memory_space<vmem>>, vector<1x32x128xbf16>
    %229 = vector.shape_cast %228 : vector<1x32x128xbf16> to vector<32x128xbf16>
    %cst_197 = arith.constant dense<0.000000e+00> : vector<8x128xf32>
    %230 = tpu.matmul %162, %229, %cst_197 {dimension_numbers = #tpu.dot_dimension_numbers<[1], [0], [0], [1], [0, 0, 1, 1], [], []>} : vector<8x32xbf16>, vector<32x128xbf16>, vector<8x128xf32> -> vector<8x128xf32>
    %c8_198 = arith.constant 8 : index
    %c0_199 = arith.constant 0 : index
    %c0_200 = arith.constant 0 : index
    %231 = vector.load %arg7[%c8_198, %c0_199, %c0_200] : memref<16x4x8xbf16, #tpu.memory_space<vmem>>, vector<1x4x8xbf16>
    %232 = vector.shape_cast %231 : vector<1x4x8xbf16> to vector<4x8xbf16>
    %233 = arith.truncf %230 : vector<8x128xf32> to vector<8x128xbf16>
    %cst_201 = arith.constant dense<0.000000e+00> : vector<4x128xf32>
    %234 = tpu.matmul %232, %233, %cst_201 {dimension_numbers = #tpu.dot_dimension_numbers<[1], [0], [0], [1], [0, 0, 1, 1], [], []>} : vector<4x8xbf16>, vector<8x128xbf16>, vector<4x128xf32> -> vector<4x128xf32>
    %235 = arith.addf %227, %234 : vector<4x128xf32>
    %c9_202 = arith.constant 9 : index
    %c0_203 = arith.constant 0 : index
    %c0_204 = arith.constant 0 : index
    %236 = vector.load %arg8[%c9_202, %c0_203, %c0_204] : memref<16x32x128xbf16, #tpu.memory_space<vmem>>, vector<1x32x128xbf16>
    %237 = vector.shape_cast %236 : vector<1x32x128xbf16> to vector<32x128xbf16>
    %cst_205 = arith.constant dense<0.000000e+00> : vector<8x128xf32>
    %238 = tpu.matmul %162, %237, %cst_205 {dimension_numbers = #tpu.dot_dimension_numbers<[1], [0], [0], [1], [0, 0, 1, 1], [], []>} : vector<8x32xbf16>, vector<32x128xbf16>, vector<8x128xf32> -> vector<8x128xf32>
    %c9_206 = arith.constant 9 : index
    %c0_207 = arith.constant 0 : index
    %c0_208 = arith.constant 0 : index
    %239 = vector.load %arg7[%c9_206, %c0_207, %c0_208] : memref<16x4x8xbf16, #tpu.memory_space<vmem>>, vector<1x4x8xbf16>
    %240 = vector.shape_cast %239 : vector<1x4x8xbf16> to vector<4x8xbf16>
    %241 = arith.truncf %238 : vector<8x128xf32> to vector<8x128xbf16>
    %cst_209 = arith.constant dense<0.000000e+00> : vector<4x128xf32>
    %242 = tpu.matmul %240, %241, %cst_209 {dimension_numbers = #tpu.dot_dimension_numbers<[1], [0], [0], [1], [0, 0, 1, 1], [], []>} : vector<4x8xbf16>, vector<8x128xbf16>, vector<4x128xf32> -> vector<4x128xf32>
    %243 = arith.addf %235, %242 : vector<4x128xf32>
    %c10_210 = arith.constant 10 : index
    %c0_211 = arith.constant 0 : index
    %c0_212 = arith.constant 0 : index
    %244 = vector.load %arg8[%c10_210, %c0_211, %c0_212] : memref<16x32x128xbf16, #tpu.memory_space<vmem>>, vector<1x32x128xbf16>
    %245 = vector.shape_cast %244 : vector<1x32x128xbf16> to vector<32x128xbf16>
    %cst_213 = arith.constant dense<0.000000e+00> : vector<8x128xf32>
    %246 = tpu.matmul %162, %245, %cst_213 {dimension_numbers = #tpu.dot_dimension_numbers<[1], [0], [0], [1], [0, 0, 1, 1], [], []>} : vector<8x32xbf16>, vector<32x128xbf16>, vector<8x128xf32> -> vector<8x128xf32>
    %c10_214 = arith.constant 10 : index
    %c0_215 = arith.constant 0 : index
    %c0_216 = arith.constant 0 : index
    %247 = vector.load %arg7[%c10_214, %c0_215, %c0_216] : memref<16x4x8xbf16, #tpu.memory_space<vmem>>, vector<1x4x8xbf16>
    %248 = vector.shape_cast %247 : vector<1x4x8xbf16> to vector<4x8xbf16>
    %249 = arith.truncf %246 : vector<8x128xf32> to vector<8x128xbf16>
    %cst_217 = arith.constant dense<0.000000e+00> : vector<4x128xf32>
    %250 = tpu.matmul %248, %249, %cst_217 {dimension_numbers = #tpu.dot_dimension_numbers<[1], [0], [0], [1], [0, 0, 1, 1], [], []>} : vector<4x8xbf16>, vector<8x128xbf16>, vector<4x128xf32> -> vector<4x128xf32>
    %251 = arith.addf %243, %250 : vector<4x128xf32>
    %c11_218 = arith.constant 11 : index
    %c0_219 = arith.constant 0 : index
    %c0_220 = arith.constant 0 : index
    %252 = vector.load %arg8[%c11_218, %c0_219, %c0_220] : memref<16x32x128xbf16, #tpu.memory_space<vmem>>, vector<1x32x128xbf16>
    %253 = vector.shape_cast %252 : vector<1x32x128xbf16> to vector<32x128xbf16>
    %cst_221 = arith.constant dense<0.000000e+00> : vector<8x128xf32>
    %254 = tpu.matmul %162, %253, %cst_221 {dimension_numbers = #tpu.dot_dimension_numbers<[1], [0], [0], [1], [0, 0, 1, 1], [], []>} : vector<8x32xbf16>, vector<32x128xbf16>, vector<8x128xf32> -> vector<8x128xf32>
    %c11_222 = arith.constant 11 : index
    %c0_223 = arith.constant 0 : index
    %c0_224 = arith.constant 0 : index
    %255 = vector.load %arg7[%c11_222, %c0_223, %c0_224] : memref<16x4x8xbf16, #tpu.memory_space<vmem>>, vector<1x4x8xbf16>
    %256 = vector.shape_cast %255 : vector<1x4x8xbf16> to vector<4x8xbf16>
    %257 = arith.truncf %254 : vector<8x128xf32> to vector<8x128xbf16>
    %cst_225 = arith.constant dense<0.000000e+00> : vector<4x128xf32>
    %258 = tpu.matmul %256, %257, %cst_225 {dimension_numbers = #tpu.dot_dimension_numbers<[1], [0], [0], [1], [0, 0, 1, 1], [], []>} : vector<4x8xbf16>, vector<8x128xbf16>, vector<4x128xf32> -> vector<4x128xf32>
    %259 = arith.addf %251, %258 : vector<4x128xf32>
    %c12_226 = arith.constant 12 : index
    %c0_227 = arith.constant 0 : index
    %c0_228 = arith.constant 0 : index
    %260 = vector.load %arg8[%c12_226, %c0_227, %c0_228] : memref<16x32x128xbf16, #tpu.memory_space<vmem>>, vector<1x32x128xbf16>
    %261 = vector.shape_cast %260 : vector<1x32x128xbf16> to vector<32x128xbf16>
    %cst_229 = arith.constant dense<0.000000e+00> : vector<8x128xf32>
    %262 = tpu.matmul %162, %261, %cst_229 {dimension_numbers = #tpu.dot_dimension_numbers<[1], [0], [0], [1], [0, 0, 1, 1], [], []>} : vector<8x32xbf16>, vector<32x128xbf16>, vector<8x128xf32> -> vector<8x128xf32>
    %c12_230 = arith.constant 12 : index
    %c0_231 = arith.constant 0 : index
    %c0_232 = arith.constant 0 : index
    %263 = vector.load %arg7[%c12_230, %c0_231, %c0_232] : memref<16x4x8xbf16, #tpu.memory_space<vmem>>, vector<1x4x8xbf16>
    %264 = vector.shape_cast %263 : vector<1x4x8xbf16> to vector<4x8xbf16>
    %265 = arith.truncf %262 : vector<8x128xf32> to vector<8x128xbf16>
    %cst_233 = arith.constant dense<0.000000e+00> : vector<4x128xf32>
    %266 = tpu.matmul %264, %265, %cst_233 {dimension_numbers = #tpu.dot_dimension_numbers<[1], [0], [0], [1], [0, 0, 1, 1], [], []>} : vector<4x8xbf16>, vector<8x128xbf16>, vector<4x128xf32> -> vector<4x128xf32>
    %267 = arith.addf %259, %266 : vector<4x128xf32>
    %c13_234 = arith.constant 13 : index
    %c0_235 = arith.constant 0 : index
    %c0_236 = arith.constant 0 : index
    %268 = vector.load %arg8[%c13_234, %c0_235, %c0_236] : memref<16x32x128xbf16, #tpu.memory_space<vmem>>, vector<1x32x128xbf16>
    %269 = vector.shape_cast %268 : vector<1x32x128xbf16> to vector<32x128xbf16>
    %cst_237 = arith.constant dense<0.000000e+00> : vector<8x128xf32>
    %270 = tpu.matmul %162, %269, %cst_237 {dimension_numbers = #tpu.dot_dimension_numbers<[1], [0], [0], [1], [0, 0, 1, 1], [], []>} : vector<8x32xbf16>, vector<32x128xbf16>, vector<8x128xf32> -> vector<8x128xf32>
    %c13_238 = arith.constant 13 : index
    %c0_239 = arith.constant 0 : index
    %c0_240 = arith.constant 0 : index
    %271 = vector.load %arg7[%c13_238, %c0_239, %c0_240] : memref<16x4x8xbf16, #tpu.memory_space<vmem>>, vector<1x4x8xbf16>
    %272 = vector.shape_cast %271 : vector<1x4x8xbf16> to vector<4x8xbf16>
    %273 = arith.truncf %270 : vector<8x128xf32> to vector<8x128xbf16>
    %cst_241 = arith.constant dense<0.000000e+00> : vector<4x128xf32>
    %274 = tpu.matmul %272, %273, %cst_241 {dimension_numbers = #tpu.dot_dimension_numbers<[1], [0], [0], [1], [0, 0, 1, 1], [], []>} : vector<4x8xbf16>, vector<8x128xbf16>, vector<4x128xf32> -> vector<4x128xf32>
    %275 = arith.addf %267, %274 : vector<4x128xf32>
    %c14_242 = arith.constant 14 : index
    %c0_243 = arith.constant 0 : index
    %c0_244 = arith.constant 0 : index
    %276 = vector.load %arg8[%c14_242, %c0_243, %c0_244] : memref<16x32x128xbf16, #tpu.memory_space<vmem>>, vector<1x32x128xbf16>
    %277 = vector.shape_cast %276 : vector<1x32x128xbf16> to vector<32x128xbf16>
    %cst_245 = arith.constant dense<0.000000e+00> : vector<8x128xf32>
    %278 = tpu.matmul %162, %277, %cst_245 {dimension_numbers = #tpu.dot_dimension_numbers<[1], [0], [0], [1], [0, 0, 1, 1], [], []>} : vector<8x32xbf16>, vector<32x128xbf16>, vector<8x128xf32> -> vector<8x128xf32>
    %c14_246 = arith.constant 14 : index
    %c0_247 = arith.constant 0 : index
    %c0_248 = arith.constant 0 : index
    %279 = vector.load %arg7[%c14_246, %c0_247, %c0_248] : memref<16x4x8xbf16, #tpu.memory_space<vmem>>, vector<1x4x8xbf16>
    %280 = vector.shape_cast %279 : vector<1x4x8xbf16> to vector<4x8xbf16>
    %281 = arith.truncf %278 : vector<8x128xf32> to vector<8x128xbf16>
    %cst_249 = arith.constant dense<0.000000e+00> : vector<4x128xf32>
    %282 = tpu.matmul %280, %281, %cst_249 {dimension_numbers = #tpu.dot_dimension_numbers<[1], [0], [0], [1], [0, 0, 1, 1], [], []>} : vector<4x8xbf16>, vector<8x128xbf16>, vector<4x128xf32> -> vector<4x128xf32>
    %283 = arith.addf %275, %282 : vector<4x128xf32>
    %c15_250 = arith.constant 15 : index
    %c0_251 = arith.constant 0 : index
    %c0_252 = arith.constant 0 : index
    %284 = vector.load %arg8[%c15_250, %c0_251, %c0_252] : memref<16x32x128xbf16, #tpu.memory_space<vmem>>, vector<1x32x128xbf16>
    %285 = vector.shape_cast %284 : vector<1x32x128xbf16> to vector<32x128xbf16>
    %cst_253 = arith.constant dense<0.000000e+00> : vector<8x128xf32>
    %286 = tpu.matmul %162, %285, %cst_253 {dimension_numbers = #tpu.dot_dimension_numbers<[1], [0], [0], [1], [0, 0, 1, 1], [], []>} : vector<8x32xbf16>, vector<32x128xbf16>, vector<8x128xf32> -> vector<8x128xf32>
    %c15_254 = arith.constant 15 : index
    %c0_255 = arith.constant 0 : index
    %c0_256 = arith.constant 0 : index
    %287 = vector.load %arg7[%c15_254, %c0_255, %c0_256] : memref<16x4x8xbf16, #tpu.memory_space<vmem>>, vector<1x4x8xbf16>
    %288 = vector.shape_cast %287 : vector<1x4x8xbf16> to vector<4x8xbf16>
    %289 = arith.truncf %286 : vector<8x128xf32> to vector<8x128xbf16>
    %cst_257 = arith.constant dense<0.000000e+00> : vector<4x128xf32>
    %290 = tpu.matmul %288, %289, %cst_257 {dimension_numbers = #tpu.dot_dimension_numbers<[1], [0], [0], [1], [0, 0, 1, 1], [], []>} : vector<4x8xbf16>, vector<8x128xbf16>, vector<4x128xf32> -> vector<4x128xf32>
    %291 = arith.addf %283, %290 : vector<4x128xf32>
    %cst_258 = arith.constant dense<0.000000e+00> : vector<4xf32>
    %292 = vector.multi_reduction <add>, %291, %cst_258 [1] : vector<4x128xf32> to vector<4xf32>
    %293 = vector.shape_cast %292 : vector<4xf32> to vector<4x1xf32>
    %cst_259 = arith.constant 7.812500e-03 : f32
    %294 = vector.broadcast %cst_259 : f32 to vector<4x1xf32>
    %295 = arith.mulf %293, %294 : vector<4x1xf32>
    %296 = arith.mulf %291, %291 : vector<4x128xf32>
    %cst_260 = arith.constant dense<0.000000e+00> : vector<4xf32>
    %297 = vector.multi_reduction <add>, %296, %cst_260 [1] : vector<4x128xf32> to vector<4xf32>
    %298 = vector.shape_cast %297 : vector<4xf32> to vector<4x1xf32>
    %cst_261 = arith.constant 7.812500e-03 : f32
    %299 = vector.broadcast %cst_261 : f32 to vector<4x1xf32>
    %300 = arith.mulf %298, %299 : vector<4x1xf32>
    %301 = arith.mulf %295, %295 : vector<4x1xf32>
    %302 = arith.subf %300, %301 : vector<4x1xf32>
    %cst_262 = arith.constant 0.000000e+00 : f32
    %303 = vector.broadcast %cst_262 : f32 to vector<4x1xf32>
    %304 = arith.maximumf %302, %303 : vector<4x1xf32>
    %c0_263 = arith.constant 0 : index
    %c0_264 = arith.constant 0 : index
    %305 = vector.load %arg9[%c0_263, %c0_264] : memref<4x1xf32, #tpu.memory_space<vmem>>, vector<4x1xf32>
    %cst_265 = arith.constant 9.99999974E-6 : f32
    %306 = vector.broadcast %cst_265 : f32 to vector<4x1xf32>
    %307 = arith.addf %304, %306 : vector<4x1xf32>
    %308 = math.rsqrt %307 : vector<4x1xf32>
    %309 = arith.mulf %305, %308 : vector<4x1xf32>
    %c0_266 = arith.constant 0 : index
    %c0_267 = arith.constant 0 : index
    %310 = vector.load %arg10[%c0_266, %c0_267] : memref<4x1xf32, #tpu.memory_space<vmem>>, vector<4x1xf32>
    %311 = arith.mulf %295, %309 : vector<4x1xf32>
    %312 = arith.subf %310, %311 : vector<4x1xf32>
    %313 = vector.broadcast %309 : vector<4x1xf32> to vector<4x128xf32>
    %314 = arith.mulf %291, %313 : vector<4x128xf32>
    %315 = vector.broadcast %312 : vector<4x1xf32> to vector<4x128xf32>
    %316 = arith.addf %314, %315 : vector<4x128xf32>
    %cst_268 = arith.constant 0.000000e+00 : f32
    %317 = vector.broadcast %cst_268 : f32 to vector<4x128xf32>
    %318 = arith.maximumf %316, %317 : vector<4x128xf32>
    %319 = arith.truncf %318 : vector<4x128xf32> to vector<4x128xbf16>
    %cst_269 = arith.constant 0.000000e+00 : f32
    %320 = vector.broadcast %cst_269 : f32 to vector<3x512xf32>
    %c0_270 = arith.constant 0 : index
    %c0_271 = arith.constant 0 : index
    %c0_272 = arith.constant 0 : index
    %321 = vector.load %arg12[%c0_270, %c0_271, %c0_272] : memref<16x128x512xbf16, #tpu.memory_space<vmem>>, vector<1x128x512xbf16>
    %322 = vector.shape_cast %321 : vector<1x128x512xbf16> to vector<128x512xbf16>
    %cst_273 = arith.constant dense<0.000000e+00> : vector<4x512xf32>
    %323 = tpu.matmul %319, %322, %cst_273 {dimension_numbers = #tpu.dot_dimension_numbers<[1], [0], [0], [1], [0, 0, 1, 1], [], []>} : vector<4x128xbf16>, vector<128x512xbf16>, vector<4x512xf32> -> vector<4x512xf32>
    %c0_274 = arith.constant 0 : index
    %c0_275 = arith.constant 0 : index
    %c0_276 = arith.constant 0 : index
    %324 = vector.load %arg11[%c0_274, %c0_275, %c0_276] : memref<16x3x4xbf16, #tpu.memory_space<vmem>>, vector<1x3x4xbf16>
    %325 = vector.shape_cast %324 : vector<1x3x4xbf16> to vector<3x4xbf16>
    %326 = arith.truncf %323 : vector<4x512xf32> to vector<4x512xbf16>
    %cst_277 = arith.constant dense<0.000000e+00> : vector<3x512xf32>
    %327 = tpu.matmul %325, %326, %cst_277 {dimension_numbers = #tpu.dot_dimension_numbers<[1], [0], [0], [1], [0, 0, 1, 1], [], []>} : vector<3x4xbf16>, vector<4x512xbf16>, vector<3x512xf32> -> vector<3x512xf32>
    %328 = arith.addf %320, %327 : vector<3x512xf32>
    %c1_278 = arith.constant 1 : index
    %c0_279 = arith.constant 0 : index
    %c0_280 = arith.constant 0 : index
    %329 = vector.load %arg12[%c1_278, %c0_279, %c0_280] : memref<16x128x512xbf16, #tpu.memory_space<vmem>>, vector<1x128x512xbf16>
    %330 = vector.shape_cast %329 : vector<1x128x512xbf16> to vector<128x512xbf16>
    %cst_281 = arith.constant dense<0.000000e+00> : vector<4x512xf32>
    %331 = tpu.matmul %319, %330, %cst_281 {dimension_numbers = #tpu.dot_dimension_numbers<[1], [0], [0], [1], [0, 0, 1, 1], [], []>} : vector<4x128xbf16>, vector<128x512xbf16>, vector<4x512xf32> -> vector<4x512xf32>
    %c1_282 = arith.constant 1 : index
    %c0_283 = arith.constant 0 : index
    %c0_284 = arith.constant 0 : index
    %332 = vector.load %arg11[%c1_282, %c0_283, %c0_284] : memref<16x3x4xbf16, #tpu.memory_space<vmem>>, vector<1x3x4xbf16>
    %333 = vector.shape_cast %332 : vector<1x3x4xbf16> to vector<3x4xbf16>
    %334 = arith.truncf %331 : vector<4x512xf32> to vector<4x512xbf16>
    %cst_285 = arith.constant dense<0.000000e+00> : vector<3x512xf32>
    %335 = tpu.matmul %333, %334, %cst_285 {dimension_numbers = #tpu.dot_dimension_numbers<[1], [0], [0], [1], [0, 0, 1, 1], [], []>} : vector<3x4xbf16>, vector<4x512xbf16>, vector<3x512xf32> -> vector<3x512xf32>
    %336 = arith.addf %328, %335 : vector<3x512xf32>
    %c2_286 = arith.constant 2 : index
    %c0_287 = arith.constant 0 : index
    %c0_288 = arith.constant 0 : index
    %337 = vector.load %arg12[%c2_286, %c0_287, %c0_288] : memref<16x128x512xbf16, #tpu.memory_space<vmem>>, vector<1x128x512xbf16>
    %338 = vector.shape_cast %337 : vector<1x128x512xbf16> to vector<128x512xbf16>
    %cst_289 = arith.constant dense<0.000000e+00> : vector<4x512xf32>
    %339 = tpu.matmul %319, %338, %cst_289 {dimension_numbers = #tpu.dot_dimension_numbers<[1], [0], [0], [1], [0, 0, 1, 1], [], []>} : vector<4x128xbf16>, vector<128x512xbf16>, vector<4x512xf32> -> vector<4x512xf32>
    %c2_290 = arith.constant 2 : index
    %c0_291 = arith.constant 0 : index
    %c0_292 = arith.constant 0 : index
    %340 = vector.load %arg11[%c2_290, %c0_291, %c0_292] : memref<16x3x4xbf16, #tpu.memory_space<vmem>>, vector<1x3x4xbf16>
    %341 = vector.shape_cast %340 : vector<1x3x4xbf16> to vector<3x4xbf16>
    %342 = arith.truncf %339 : vector<4x512xf32> to vector<4x512xbf16>
    %cst_293 = arith.constant dense<0.000000e+00> : vector<3x512xf32>
    %343 = tpu.matmul %341, %342, %cst_293 {dimension_numbers = #tpu.dot_dimension_numbers<[1], [0], [0], [1], [0, 0, 1, 1], [], []>} : vector<3x4xbf16>, vector<4x512xbf16>, vector<3x512xf32> -> vector<3x512xf32>
    %344 = arith.addf %336, %343 : vector<3x512xf32>
    %c3_294 = arith.constant 3 : index
    %c0_295 = arith.constant 0 : index
    %c0_296 = arith.constant 0 : index
    %345 = vector.load %arg12[%c3_294, %c0_295, %c0_296] : memref<16x128x512xbf16, #tpu.memory_space<vmem>>, vector<1x128x512xbf16>
    %346 = vector.shape_cast %345 : vector<1x128x512xbf16> to vector<128x512xbf16>
    %cst_297 = arith.constant dense<0.000000e+00> : vector<4x512xf32>
    %347 = tpu.matmul %319, %346, %cst_297 {dimension_numbers = #tpu.dot_dimension_numbers<[1], [0], [0], [1], [0, 0, 1, 1], [], []>} : vector<4x128xbf16>, vector<128x512xbf16>, vector<4x512xf32> -> vector<4x512xf32>
    %c3_298 = arith.constant 3 : index
    %c0_299 = arith.constant 0 : index
    %c0_300 = arith.constant 0 : index
    %348 = vector.load %arg11[%c3_298, %c0_299, %c0_300] : memref<16x3x4xbf16, #tpu.memory_space<vmem>>, vector<1x3x4xbf16>
    %349 = vector.shape_cast %348 : vector<1x3x4xbf16> to vector<3x4xbf16>
    %350 = arith.truncf %347 : vector<4x512xf32> to vector<4x512xbf16>
    %cst_301 = arith.constant dense<0.000000e+00> : vector<3x512xf32>
    %351 = tpu.matmul %349, %350, %cst_301 {dimension_numbers = #tpu.dot_dimension_numbers<[1], [0], [0], [1], [0, 0, 1, 1], [], []>} : vector<3x4xbf16>, vector<4x512xbf16>, vector<3x512xf32> -> vector<3x512xf32>
    %352 = arith.addf %344, %351 : vector<3x512xf32>
    %c4_302 = arith.constant 4 : index
    %c0_303 = arith.constant 0 : index
    %c0_304 = arith.constant 0 : index
    %353 = vector.load %arg12[%c4_302, %c0_303, %c0_304] : memref<16x128x512xbf16, #tpu.memory_space<vmem>>, vector<1x128x512xbf16>
    %354 = vector.shape_cast %353 : vector<1x128x512xbf16> to vector<128x512xbf16>
    %cst_305 = arith.constant dense<0.000000e+00> : vector<4x512xf32>
    %355 = tpu.matmul %319, %354, %cst_305 {dimension_numbers = #tpu.dot_dimension_numbers<[1], [0], [0], [1], [0, 0, 1, 1], [], []>} : vector<4x128xbf16>, vector<128x512xbf16>, vector<4x512xf32> -> vector<4x512xf32>
    %c4_306 = arith.constant 4 : index
    %c0_307 = arith.constant 0 : index
    %c0_308 = arith.constant 0 : index
    %356 = vector.load %arg11[%c4_306, %c0_307, %c0_308] : memref<16x3x4xbf16, #tpu.memory_space<vmem>>, vector<1x3x4xbf16>
    %357 = vector.shape_cast %356 : vector<1x3x4xbf16> to vector<3x4xbf16>
    %358 = arith.truncf %355 : vector<4x512xf32> to vector<4x512xbf16>
    %cst_309 = arith.constant dense<0.000000e+00> : vector<3x512xf32>
    %359 = tpu.matmul %357, %358, %cst_309 {dimension_numbers = #tpu.dot_dimension_numbers<[1], [0], [0], [1], [0, 0, 1, 1], [], []>} : vector<3x4xbf16>, vector<4x512xbf16>, vector<3x512xf32> -> vector<3x512xf32>
    %360 = arith.addf %352, %359 : vector<3x512xf32>
    %c5_310 = arith.constant 5 : index
    %c0_311 = arith.constant 0 : index
    %c0_312 = arith.constant 0 : index
    %361 = vector.load %arg12[%c5_310, %c0_311, %c0_312] : memref<16x128x512xbf16, #tpu.memory_space<vmem>>, vector<1x128x512xbf16>
    %362 = vector.shape_cast %361 : vector<1x128x512xbf16> to vector<128x512xbf16>
    %cst_313 = arith.constant dense<0.000000e+00> : vector<4x512xf32>
    %363 = tpu.matmul %319, %362, %cst_313 {dimension_numbers = #tpu.dot_dimension_numbers<[1], [0], [0], [1], [0, 0, 1, 1], [], []>} : vector<4x128xbf16>, vector<128x512xbf16>, vector<4x512xf32> -> vector<4x512xf32>
    %c5_314 = arith.constant 5 : index
    %c0_315 = arith.constant 0 : index
    %c0_316 = arith.constant 0 : index
    %364 = vector.load %arg11[%c5_314, %c0_315, %c0_316] : memref<16x3x4xbf16, #tpu.memory_space<vmem>>, vector<1x3x4xbf16>
    %365 = vector.shape_cast %364 : vector<1x3x4xbf16> to vector<3x4xbf16>
    %366 = arith.truncf %363 : vector<4x512xf32> to vector<4x512xbf16>
    %cst_317 = arith.constant dense<0.000000e+00> : vector<3x512xf32>
    %367 = tpu.matmul %365, %366, %cst_317 {dimension_numbers = #tpu.dot_dimension_numbers<[1], [0], [0], [1], [0, 0, 1, 1], [], []>} : vector<3x4xbf16>, vector<4x512xbf16>, vector<3x512xf32> -> vector<3x512xf32>
    %368 = arith.addf %360, %367 : vector<3x512xf32>
    %c6_318 = arith.constant 6 : index
    %c0_319 = arith.constant 0 : index
    %c0_320 = arith.constant 0 : index
    %369 = vector.load %arg12[%c6_318, %c0_319, %c0_320] : memref<16x128x512xbf16, #tpu.memory_space<vmem>>, vector<1x128x512xbf16>
    %370 = vector.shape_cast %369 : vector<1x128x512xbf16> to vector<128x512xbf16>
    %cst_321 = arith.constant dense<0.000000e+00> : vector<4x512xf32>
    %371 = tpu.matmul %319, %370, %cst_321 {dimension_numbers = #tpu.dot_dimension_numbers<[1], [0], [0], [1], [0, 0, 1, 1], [], []>} : vector<4x128xbf16>, vector<128x512xbf16>, vector<4x512xf32> -> vector<4x512xf32>
    %c6_322 = arith.constant 6 : index
    %c0_323 = arith.constant 0 : index
    %c0_324 = arith.constant 0 : index
    %372 = vector.load %arg11[%c6_322, %c0_323, %c0_324] : memref<16x3x4xbf16, #tpu.memory_space<vmem>>, vector<1x3x4xbf16>
    %373 = vector.shape_cast %372 : vector<1x3x4xbf16> to vector<3x4xbf16>
    %374 = arith.truncf %371 : vector<4x512xf32> to vector<4x512xbf16>
    %cst_325 = arith.constant dense<0.000000e+00> : vector<3x512xf32>
    %375 = tpu.matmul %373, %374, %cst_325 {dimension_numbers = #tpu.dot_dimension_numbers<[1], [0], [0], [1], [0, 0, 1, 1], [], []>} : vector<3x4xbf16>, vector<4x512xbf16>, vector<3x512xf32> -> vector<3x512xf32>
    %376 = arith.addf %368, %375 : vector<3x512xf32>
    %c7_326 = arith.constant 7 : index
    %c0_327 = arith.constant 0 : index
    %c0_328 = arith.constant 0 : index
    %377 = vector.load %arg12[%c7_326, %c0_327, %c0_328] : memref<16x128x512xbf16, #tpu.memory_space<vmem>>, vector<1x128x512xbf16>
    %378 = vector.shape_cast %377 : vector<1x128x512xbf16> to vector<128x512xbf16>
    %cst_329 = arith.constant dense<0.000000e+00> : vector<4x512xf32>
    %379 = tpu.matmul %319, %378, %cst_329 {dimension_numbers = #tpu.dot_dimension_numbers<[1], [0], [0], [1], [0, 0, 1, 1], [], []>} : vector<4x128xbf16>, vector<128x512xbf16>, vector<4x512xf32> -> vector<4x512xf32>
    %c7_330 = arith.constant 7 : index
    %c0_331 = arith.constant 0 : index
    %c0_332 = arith.constant 0 : index
    %380 = vector.load %arg11[%c7_330, %c0_331, %c0_332] : memref<16x3x4xbf16, #tpu.memory_space<vmem>>, vector<1x3x4xbf16>
    %381 = vector.shape_cast %380 : vector<1x3x4xbf16> to vector<3x4xbf16>
    %382 = arith.truncf %379 : vector<4x512xf32> to vector<4x512xbf16>
    %cst_333 = arith.constant dense<0.000000e+00> : vector<3x512xf32>
    %383 = tpu.matmul %381, %382, %cst_333 {dimension_numbers = #tpu.dot_dimension_numbers<[1], [0], [0], [1], [0, 0, 1, 1], [], []>} : vector<3x4xbf16>, vector<4x512xbf16>, vector<3x512xf32> -> vector<3x512xf32>
    %384 = arith.addf %376, %383 : vector<3x512xf32>
    %c8_334 = arith.constant 8 : index
    %c0_335 = arith.constant 0 : index
    %c0_336 = arith.constant 0 : index
    %385 = vector.load %arg12[%c8_334, %c0_335, %c0_336] : memref<16x128x512xbf16, #tpu.memory_space<vmem>>, vector<1x128x512xbf16>
    %386 = vector.shape_cast %385 : vector<1x128x512xbf16> to vector<128x512xbf16>
    %cst_337 = arith.constant dense<0.000000e+00> : vector<4x512xf32>
    %387 = tpu.matmul %319, %386, %cst_337 {dimension_numbers = #tpu.dot_dimension_numbers<[1], [0], [0], [1], [0, 0, 1, 1], [], []>} : vector<4x128xbf16>, vector<128x512xbf16>, vector<4x512xf32> -> vector<4x512xf32>
    %c8_338 = arith.constant 8 : index
    %c0_339 = arith.constant 0 : index
    %c0_340 = arith.constant 0 : index
    %388 = vector.load %arg11[%c8_338, %c0_339, %c0_340] : memref<16x3x4xbf16, #tpu.memory_space<vmem>>, vector<1x3x4xbf16>
    %389 = vector.shape_cast %388 : vector<1x3x4xbf16> to vector<3x4xbf16>
    %390 = arith.truncf %387 : vector<4x512xf32> to vector<4x512xbf16>
    %cst_341 = arith.constant dense<0.000000e+00> : vector<3x512xf32>
    %391 = tpu.matmul %389, %390, %cst_341 {dimension_numbers = #tpu.dot_dimension_numbers<[1], [0], [0], [1], [0, 0, 1, 1], [], []>} : vector<3x4xbf16>, vector<4x512xbf16>, vector<3x512xf32> -> vector<3x512xf32>
    %392 = arith.addf %384, %391 : vector<3x512xf32>
    %c9_342 = arith.constant 9 : index
    %c0_343 = arith.constant 0 : index
    %c0_344 = arith.constant 0 : index
    %393 = vector.load %arg12[%c9_342, %c0_343, %c0_344] : memref<16x128x512xbf16, #tpu.memory_space<vmem>>, vector<1x128x512xbf16>
    %394 = vector.shape_cast %393 : vector<1x128x512xbf16> to vector<128x512xbf16>
    %cst_345 = arith.constant dense<0.000000e+00> : vector<4x512xf32>
    %395 = tpu.matmul %319, %394, %cst_345 {dimension_numbers = #tpu.dot_dimension_numbers<[1], [0], [0], [1], [0, 0, 1, 1], [], []>} : vector<4x128xbf16>, vector<128x512xbf16>, vector<4x512xf32> -> vector<4x512xf32>
    %c9_346 = arith.constant 9 : index
    %c0_347 = arith.constant 0 : index
    %c0_348 = arith.constant 0 : index
    %396 = vector.load %arg11[%c9_346, %c0_347, %c0_348] : memref<16x3x4xbf16, #tpu.memory_space<vmem>>, vector<1x3x4xbf16>
    %397 = vector.shape_cast %396 : vector<1x3x4xbf16> to vector<3x4xbf16>
    %398 = arith.truncf %395 : vector<4x512xf32> to vector<4x512xbf16>
    %cst_349 = arith.constant dense<0.000000e+00> : vector<3x512xf32>
    %399 = tpu.matmul %397, %398, %cst_349 {dimension_numbers = #tpu.dot_dimension_numbers<[1], [0], [0], [1], [0, 0, 1, 1], [], []>} : vector<3x4xbf16>, vector<4x512xbf16>, vector<3x512xf32> -> vector<3x512xf32>
    %400 = arith.addf %392, %399 : vector<3x512xf32>
    %c10_350 = arith.constant 10 : index
    %c0_351 = arith.constant 0 : index
    %c0_352 = arith.constant 0 : index
    %401 = vector.load %arg12[%c10_350, %c0_351, %c0_352] : memref<16x128x512xbf16, #tpu.memory_space<vmem>>, vector<1x128x512xbf16>
    %402 = vector.shape_cast %401 : vector<1x128x512xbf16> to vector<128x512xbf16>
    %cst_353 = arith.constant dense<0.000000e+00> : vector<4x512xf32>
    %403 = tpu.matmul %319, %402, %cst_353 {dimension_numbers = #tpu.dot_dimension_numbers<[1], [0], [0], [1], [0, 0, 1, 1], [], []>} : vector<4x128xbf16>, vector<128x512xbf16>, vector<4x512xf32> -> vector<4x512xf32>
    %c10_354 = arith.constant 10 : index
    %c0_355 = arith.constant 0 : index
    %c0_356 = arith.constant 0 : index
    %404 = vector.load %arg11[%c10_354, %c0_355, %c0_356] : memref<16x3x4xbf16, #tpu.memory_space<vmem>>, vector<1x3x4xbf16>
    %405 = vector.shape_cast %404 : vector<1x3x4xbf16> to vector<3x4xbf16>
    %406 = arith.truncf %403 : vector<4x512xf32> to vector<4x512xbf16>
    %cst_357 = arith.constant dense<0.000000e+00> : vector<3x512xf32>
    %407 = tpu.matmul %405, %406, %cst_357 {dimension_numbers = #tpu.dot_dimension_numbers<[1], [0], [0], [1], [0, 0, 1, 1], [], []>} : vector<3x4xbf16>, vector<4x512xbf16>, vector<3x512xf32> -> vector<3x512xf32>
    %408 = arith.addf %400, %407 : vector<3x512xf32>
    %c11_358 = arith.constant 11 : index
    %c0_359 = arith.constant 0 : index
    %c0_360 = arith.constant 0 : index
    %409 = vector.load %arg12[%c11_358, %c0_359, %c0_360] : memref<16x128x512xbf16, #tpu.memory_space<vmem>>, vector<1x128x512xbf16>
    %410 = vector.shape_cast %409 : vector<1x128x512xbf16> to vector<128x512xbf16>
    %cst_361 = arith.constant dense<0.000000e+00> : vector<4x512xf32>
    %411 = tpu.matmul %319, %410, %cst_361 {dimension_numbers = #tpu.dot_dimension_numbers<[1], [0], [0], [1], [0, 0, 1, 1], [], []>} : vector<4x128xbf16>, vector<128x512xbf16>, vector<4x512xf32> -> vector<4x512xf32>
    %c11_362 = arith.constant 11 : index
    %c0_363 = arith.constant 0 : index
    %c0_364 = arith.constant 0 : index
    %412 = vector.load %arg11[%c11_362, %c0_363, %c0_364] : memref<16x3x4xbf16, #tpu.memory_space<vmem>>, vector<1x3x4xbf16>
    %413 = vector.shape_cast %412 : vector<1x3x4xbf16> to vector<3x4xbf16>
    %414 = arith.truncf %411 : vector<4x512xf32> to vector<4x512xbf16>
    %cst_365 = arith.constant dense<0.000000e+00> : vector<3x512xf32>
    %415 = tpu.matmul %413, %414, %cst_365 {dimension_numbers = #tpu.dot_dimension_numbers<[1], [0], [0], [1], [0, 0, 1, 1], [], []>} : vector<3x4xbf16>, vector<4x512xbf16>, vector<3x512xf32> -> vector<3x512xf32>
    %416 = arith.addf %408, %415 : vector<3x512xf32>
    %c12_366 = arith.constant 12 : index
    %c0_367 = arith.constant 0 : index
    %c0_368 = arith.constant 0 : index
    %417 = vector.load %arg12[%c12_366, %c0_367, %c0_368] : memref<16x128x512xbf16, #tpu.memory_space<vmem>>, vector<1x128x512xbf16>
    %418 = vector.shape_cast %417 : vector<1x128x512xbf16> to vector<128x512xbf16>
    %cst_369 = arith.constant dense<0.000000e+00> : vector<4x512xf32>
    %419 = tpu.matmul %319, %418, %cst_369 {dimension_numbers = #tpu.dot_dimension_numbers<[1], [0], [0], [1], [0, 0, 1, 1], [], []>} : vector<4x128xbf16>, vector<128x512xbf16>, vector<4x512xf32> -> vector<4x512xf32>
    %c12_370 = arith.constant 12 : index
    %c0_371 = arith.constant 0 : index
    %c0_372 = arith.constant 0 : index
    %420 = vector.load %arg11[%c12_370, %c0_371, %c0_372] : memref<16x3x4xbf16, #tpu.memory_space<vmem>>, vector<1x3x4xbf16>
    %421 = vector.shape_cast %420 : vector<1x3x4xbf16> to vector<3x4xbf16>
    %422 = arith.truncf %419 : vector<4x512xf32> to vector<4x512xbf16>
    %cst_373 = arith.constant dense<0.000000e+00> : vector<3x512xf32>
    %423 = tpu.matmul %421, %422, %cst_373 {dimension_numbers = #tpu.dot_dimension_numbers<[1], [0], [0], [1], [0, 0, 1, 1], [], []>} : vector<3x4xbf16>, vector<4x512xbf16>, vector<3x512xf32> -> vector<3x512xf32>
    %424 = arith.addf %416, %423 : vector<3x512xf32>
    %c13_374 = arith.constant 13 : index
    %c0_375 = arith.constant 0 : index
    %c0_376 = arith.constant 0 : index
    %425 = vector.load %arg12[%c13_374, %c0_375, %c0_376] : memref<16x128x512xbf16, #tpu.memory_space<vmem>>, vector<1x128x512xbf16>
    %426 = vector.shape_cast %425 : vector<1x128x512xbf16> to vector<128x512xbf16>
    %cst_377 = arith.constant dense<0.000000e+00> : vector<4x512xf32>
    %427 = tpu.matmul %319, %426, %cst_377 {dimension_numbers = #tpu.dot_dimension_numbers<[1], [0], [0], [1], [0, 0, 1, 1], [], []>} : vector<4x128xbf16>, vector<128x512xbf16>, vector<4x512xf32> -> vector<4x512xf32>
    %c13_378 = arith.constant 13 : index
    %c0_379 = arith.constant 0 : index
    %c0_380 = arith.constant 0 : index
    %428 = vector.load %arg11[%c13_378, %c0_379, %c0_380] : memref<16x3x4xbf16, #tpu.memory_space<vmem>>, vector<1x3x4xbf16>
    %429 = vector.shape_cast %428 : vector<1x3x4xbf16> to vector<3x4xbf16>
    %430 = arith.truncf %427 : vector<4x512xf32> to vector<4x512xbf16>
    %cst_381 = arith.constant dense<0.000000e+00> : vector<3x512xf32>
    %431 = tpu.matmul %429, %430, %cst_381 {dimension_numbers = #tpu.dot_dimension_numbers<[1], [0], [0], [1], [0, 0, 1, 1], [], []>} : vector<3x4xbf16>, vector<4x512xbf16>, vector<3x512xf32> -> vector<3x512xf32>
    %432 = arith.addf %424, %431 : vector<3x512xf32>
    %c14_382 = arith.constant 14 : index
    %c0_383 = arith.constant 0 : index
    %c0_384 = arith.constant 0 : index
    %433 = vector.load %arg12[%c14_382, %c0_383, %c0_384] : memref<16x128x512xbf16, #tpu.memory_space<vmem>>, vector<1x128x512xbf16>
    %434 = vector.shape_cast %433 : vector<1x128x512xbf16> to vector<128x512xbf16>
    %cst_385 = arith.constant dense<0.000000e+00> : vector<4x512xf32>
    %435 = tpu.matmul %319, %434, %cst_385 {dimension_numbers = #tpu.dot_dimension_numbers<[1], [0], [0], [1], [0, 0, 1, 1], [], []>} : vector<4x128xbf16>, vector<128x512xbf16>, vector<4x512xf32> -> vector<4x512xf32>
    %c14_386 = arith.constant 14 : index
    %c0_387 = arith.constant 0 : index
    %c0_388 = arith.constant 0 : index
    %436 = vector.load %arg11[%c14_386, %c0_387, %c0_388] : memref<16x3x4xbf16, #tpu.memory_space<vmem>>, vector<1x3x4xbf16>
    %437 = vector.shape_cast %436 : vector<1x3x4xbf16> to vector<3x4xbf16>
    %438 = arith.truncf %435 : vector<4x512xf32> to vector<4x512xbf16>
    %cst_389 = arith.constant dense<0.000000e+00> : vector<3x512xf32>
    %439 = tpu.matmul %437, %438, %cst_389 {dimension_numbers = #tpu.dot_dimension_numbers<[1], [0], [0], [1], [0, 0, 1, 1], [], []>} : vector<3x4xbf16>, vector<4x512xbf16>, vector<3x512xf32> -> vector<3x512xf32>
    %440 = arith.addf %432, %439 : vector<3x512xf32>
    %c15_390 = arith.constant 15 : index
    %c0_391 = arith.constant 0 : index
    %c0_392 = arith.constant 0 : index
    %441 = vector.load %arg12[%c15_390, %c0_391, %c0_392] : memref<16x128x512xbf16, #tpu.memory_space<vmem>>, vector<1x128x512xbf16>
    %442 = vector.shape_cast %441 : vector<1x128x512xbf16> to vector<128x512xbf16>
    %cst_393 = arith.constant dense<0.000000e+00> : vector<4x512xf32>
    %443 = tpu.matmul %319, %442, %cst_393 {dimension_numbers = #tpu.dot_dimension_numbers<[1], [0], [0], [1], [0, 0, 1, 1], [], []>} : vector<4x128xbf16>, vector<128x512xbf16>, vector<4x512xf32> -> vector<4x512xf32>
    %c15_394 = arith.constant 15 : index
    %c0_395 = arith.constant 0 : index
    %c0_396 = arith.constant 0 : index
    %444 = vector.load %arg11[%c15_394, %c0_395, %c0_396] : memref<16x3x4xbf16, #tpu.memory_space<vmem>>, vector<1x3x4xbf16>
    %445 = vector.shape_cast %444 : vector<1x3x4xbf16> to vector<3x4xbf16>
    %446 = arith.truncf %443 : vector<4x512xf32> to vector<4x512xbf16>
    %cst_397 = arith.constant dense<0.000000e+00> : vector<3x512xf32>
    %447 = tpu.matmul %445, %446, %cst_397 {dimension_numbers = #tpu.dot_dimension_numbers<[1], [0], [0], [1], [0, 0, 1, 1], [], []>} : vector<3x4xbf16>, vector<4x512xbf16>, vector<3x512xf32> -> vector<3x512xf32>
    %448 = arith.addf %440, %447 : vector<3x512xf32>
    %cst_398 = arith.constant dense<0.000000e+00> : vector<3xf32>
    %449 = vector.multi_reduction <add>, %448, %cst_398 [1] : vector<3x512xf32> to vector<3xf32>
    %450 = vector.shape_cast %449 : vector<3xf32> to vector<3x1xf32>
    %cst_399 = arith.constant 0.001953125 : f32
    %451 = vector.broadcast %cst_399 : f32 to vector<3x1xf32>
    %452 = arith.mulf %450, %451 : vector<3x1xf32>
    %453 = arith.mulf %448, %448 : vector<3x512xf32>
    %cst_400 = arith.constant dense<0.000000e+00> : vector<3xf32>
    %454 = vector.multi_reduction <add>, %453, %cst_400 [1] : vector<3x512xf32> to vector<3xf32>
    %455 = vector.shape_cast %454 : vector<3xf32> to vector<3x1xf32>
    %cst_401 = arith.constant 0.001953125 : f32
    %456 = vector.broadcast %cst_401 : f32 to vector<3x1xf32>
    %457 = arith.mulf %455, %456 : vector<3x1xf32>
    %458 = arith.mulf %452, %452 : vector<3x1xf32>
    %459 = arith.subf %457, %458 : vector<3x1xf32>
    %cst_402 = arith.constant 0.000000e+00 : f32
    %460 = vector.broadcast %cst_402 : f32 to vector<3x1xf32>
    %461 = arith.maximumf %459, %460 : vector<3x1xf32>
    %c0_403 = arith.constant 0 : index
    %c0_404 = arith.constant 0 : index
    %462 = vector.load %arg13[%c0_403, %c0_404] : memref<3x1xf32, #tpu.memory_space<vmem>>, vector<3x1xf32>
    %cst_405 = arith.constant 9.99999974E-6 : f32
    %463 = vector.broadcast %cst_405 : f32 to vector<3x1xf32>
    %464 = arith.addf %461, %463 : vector<3x1xf32>
    %465 = math.rsqrt %464 : vector<3x1xf32>
    %466 = arith.mulf %462, %465 : vector<3x1xf32>
    %c0_406 = arith.constant 0 : index
    %c0_407 = arith.constant 0 : index
    %467 = vector.load %arg14[%c0_406, %c0_407] : memref<3x1xf32, #tpu.memory_space<vmem>>, vector<3x1xf32>
    %468 = arith.mulf %452, %466 : vector<3x1xf32>
    %469 = arith.subf %467, %468 : vector<3x1xf32>
    %470 = vector.broadcast %466 : vector<3x1xf32> to vector<3x512xf32>
    %471 = arith.mulf %448, %470 : vector<3x512xf32>
    %472 = vector.broadcast %469 : vector<3x1xf32> to vector<3x512xf32>
    %473 = arith.addf %471, %472 : vector<3x512xf32>
    %cst_408 = arith.constant 0.000000e+00 : f32
    %474 = vector.broadcast %cst_408 : f32 to vector<3x512xf32>
    %475 = arith.maximumf %473, %474 : vector<3x512xf32>
    %476 = arith.negf %475 : vector<3x512xf32>
    %477 = math.exp %476 : vector<3x512xf32>
    %cst_409 = arith.constant 1.000000e+00 : f32
    %478 = vector.broadcast %cst_409 : f32 to vector<3x512xf32>
    %479 = arith.addf %478, %477 : vector<3x512xf32>
    %480 = arith.divf %478, %479 : vector<3x512xf32>
    %c0_410 = arith.constant 0 : index
    %c0_411 = arith.constant 0 : index
    %481 = vector.load %arg15[%c0_410, %c0_411] : memref<3x512xf32, #tpu.memory_space<vmem>>, vector<3x512xf32>
    tpu.vector_store %arg15[%c0_410, %c0_411], %480 {strides = array<i32>} : memref<3x512xf32, #tpu.memory_space<vmem>>, vector<3x512xf32>,
    return
  }
  func.func @transform_0(%arg0: i32) -> (i32, i32) {
    %c0_i32 = arith.constant 0 : i32
    %c0_i32_0 = arith.constant 0 : i32
    %c0_i32_1 = arith.constant 0 : i32
    return %c0_i32, %c0_i32_0 : i32, i32
  }
  func.func @transform_1(%arg0: i32) -> (i32, i32) {
    %c0_i32 = arith.constant 0 : i32
    %c0_i32_0 = arith.constant 0 : i32
    %c0_i32_1 = arith.constant 0 : i32
    return %c0_i32, %c0_i32_0 : i32, i32
  }
  func.func @transform_2(%arg0: i32) -> (i32, i32, i32) {
    %c0_i32 = arith.constant 0 : i32
    %c0_i32_0 = arith.constant 0 : i32
    %c0_i32_1 = arith.constant 0 : i32
    %c0_i32_2 = arith.constant 0 : i32
    return %c0_i32, %c0_i32_0, %c0_i32_1 : i32, i32, i32
  }
  func.func @transform_3(%arg0: i32) -> (i32, i32, i32) {
    %c0_i32 = arith.constant 0 : i32
    %c0_i32_0 = arith.constant 0 : i32
    %c0_i32_1 = arith.constant 0 : i32
    %c0_i32_2 = arith.constant 0 : i32
    return %c0_i32, %c0_i32_0, %c0_i32_1 : i32, i32, i32
  }
  func.func @transform_4(%arg0: i32) -> (i32, i32) {
    %c0_i32 = arith.constant 0 : i32
    %c0_i32_0 = arith.constant 0 : i32
    %c0_i32_1 = arith.constant 0 : i32
    return %c0_i32, %c0_i32_0 : i32, i32
  }
  func.func @transform_5(%arg0: i32) -> (i32, i32) {
    %c0_i32 = arith.constant 0 : i32
    %c0_i32_0 = arith.constant 0 : i32
    %c0_i32_1 = arith.constant 0 : i32
    return %c0_i32, %c0_i32_0 : i32, i32
  }
  func.func @transform_6(%arg0: i32) -> (i32, i32, i32) {
    %c0_i32 = arith.constant 0 : i32
    %c0_i32_0 = arith.constant 0 : i32
    %c0_i32_1 = arith.constant 0 : i32
    %c0_i32_2 = arith.constant 0 : i32
    return %c0_i32, %c0_i32_0, %c0_i32_1 : i32, i32, i32
  }
  func.func @transform_7(%arg0: i32) -> (i32, i32, i32) {
    %c0_i32 = arith.constant 0 : i32
    %c0_i32_0 = arith.constant 0 : i32
    %c0_i32_1 = arith.constant 0 : i32
    %c0_i32_2 = arith.constant 0 : i32
    return %c0_i32, %c0_i32_0, %c0_i32_1 : i32, i32, i32
  }
  func.func @transform_8(%arg0: i32) -> (i32, i32) {
    %c0_i32 = arith.constant 0 : i32
    %c0_i32_0 = arith.constant 0 : i32
    %c0_i32_1 = arith.constant 0 : i32
    return %c0_i32, %c0_i32_0 : i32, i32
  }
  func.func @transform_9(%arg0: i32) -> (i32, i32) {
    %c0_i32 = arith.constant 0 : i32
    %c0_i32_0 = arith.constant 0 : i32
    %c0_i32_1 = arith.constant 0 : i32
    return %c0_i32, %c0_i32_0 : i32, i32
  }
  func.func @transform_10(%arg0: i32) -> (i32, i32, i32) {
    %c0_i32 = arith.constant 0 : i32
    %c0_i32_0 = arith.constant 0 : i32
    %c0_i32_1 = arith.constant 0 : i32
    %c0_i32_2 = arith.constant 0 : i32
    return %c0_i32, %c0_i32_0, %c0_i32_1 : i32, i32, i32
  }
  func.func @transform_11(%arg0: i32) -> (i32, i32, i32) {
    %c0_i32 = arith.constant 0 : i32
    %c0_i32_0 = arith.constant 0 : i32
    %c0_i32_1 = arith.constant 0 : i32
    %c0_i32_2 = arith.constant 0 : i32
    return %c0_i32, %c0_i32_0, %c0_i32_1 : i32, i32, i32
  }
  func.func @transform_12(%arg0: i32) -> (i32, i32) {
    %c0_i32 = arith.constant 0 : i32
    %c0_i32_0 = arith.constant 0 : i32
    %c0_i32_1 = arith.constant 0 : i32
    return %c0_i32, %c0_i32_0 : i32, i32
  }
  func.func @transform_13(%arg0: i32) -> (i32, i32) {
    %c0_i32 = arith.constant 0 : i32
    %c0_i32_0 = arith.constant 0 : i32
    %c0_i32_1 = arith.constant 0 : i32
    return %c0_i32, %c0_i32_0 : i32, i32
  }
  func.func @transform_14(%arg0: i32) -> (i32, i32) {
    %c0_i32 = arith.constant 0 : i32
    %c0_i32_0 = arith.constant 0 : i32
    %c0_i32_1 = arith.constant 0 : i32
    return %c0_i32, %c0_i32_0 : i32, i32
  }
}

</mosaic_0001>

<llo_original>
// kernel: cnn_decoder_forward.1
$region0: #{cnn_decoder_forward.1}
  #allocation0 [shape = 'u32[]', space=smem, size = 0x4, offset = 0x4, fixed_abs, tag = 'smem constant byte address 0x4 - core index']
  #allocation1 [shape = 'u32[72,128]{1,0:T(1,128)}', space=vmem, size = 0x9000, scoped, tag = 'internal scratch']
  %s0 = inlined_call_operand.vmem [shape: bf16[68,8], index: 0, kind: input, shape index: {}]
  %s1 = inlined_call_operand.hbm [shape: bf16[16,68], index: 1, kind: input, shape index: {}]
  %s2 = inlined_call_operand.hbm [shape: bf16[16,8,16], index: 2, kind: input, shape index: {}]
  %s3 = inlined_call_operand.hbm [shape: bf16[16,8,32], index: 3, kind: input, shape index: {}]
  %s4 = inlined_call_operand.vmem [shape: f32[8,1], index: 4, kind: input, shape index: {}]
  %s5 = inlined_call_operand.vmem [shape: f32[8,1], index: 5, kind: input, shape index: {}]
  %s6 = inlined_call_operand.vmem [shape: bf16[16,4,8], index: 6, kind: input, shape index: {}]
  %s7 = inlined_call_operand.hbm [shape: bf16[16,32,128], index: 7, kind: input, shape index: {}]
  %s8 = inlined_call_operand.vmem [shape: f32[4,1], index: 8, kind: input, shape index: {}]
  %s9 = inlined_call_operand.vmem [shape: f32[4,1], index: 9, kind: input, shape index: {}]
  %s10 = inlined_call_operand.vmem [shape: bf16[16,3,4], index: 10, kind: input, shape index: {}]
  %s11 = inlined_call_operand.hbm [shape: bf16[16,128,512], index: 11, kind: input, shape index: {}]
  %s12 = inlined_call_operand.vmem [shape: f32[3,1], index: 12, kind: input, shape index: {}]
  %s13 = inlined_call_operand.vmem [shape: f32[3,1], index: 13, kind: input, shape index: {}]
  %s14 = inlined_call_operand.vmem [shape: f32[3,512], index: 14, kind: output, shape index: {}]
  %s15 = sld [smem:[#allocation0]]
  $region86: #{cnn_decoder_forward.1} parent=0
    _
  %s17 = ssub.s32 1, %s15
  %s18 = scalar_select 0, %s17, %s15
  $region1: #{cnn_decoder_forward.1} parent=0
    #allocation2 [shape = 'u8[4096]{0}', space=vmem, size = 0x1000, scoped, tag = 'input window, operand 1, single buffered']
    #allocation3 [shape = 's32[1]{0}', space=sflag, size = 0x4, scoped, tag = 'scoped memory for cnn_decoder_forward.1']
    #allocation4 [shape = 'u8[32768]{0}', space=vmem, size = 0x8000, scoped, tag = 'input window, operand 2, single buffered']
    #allocation5 [shape = 's32[1]{0}', space=sflag, size = 0x4, scoped, tag = 'scoped memory for cnn_decoder_forward.1']
    #allocation6 [shape = 'u8[32768]{0}', space=vmem, size = 0x8000, scoped, tag = 'input window, operand 3, single buffered']
    #allocation7 [shape = 'u8[131072]{0}', space=vmem, size = 0x20000, scoped, tag = 'input window, operand 7, single buffered']
    #allocation8 [shape = 's32[1]{0}', space=sflag, size = 0x4, scoped, tag = 'scoped memory for cnn_decoder_forward.1']
    #allocation9 [shape = 'u8[2097152]{0}', space=vmem, size = 0x200000, scoped, tag = 'input window, operand 11, single buffered']
    %19 = vsyncpa [#allocation3], 0
    %20 = vsyncpa [#allocation5], 0
    %21 = vsyncpa [#allocation8], 0
    // Predicated region
    $region2: #{cnn_decoder_forward.1} parent=1 // pred_check
      _
    $region3: #{cnn_decoder_forward.1} parent=1 // pred_check_branch
      %23 = sbr.rel (0) target = $region5
    $region4: #{cnn_decoder_forward.1} parent=1 // pred_region
      _
    $region5: #{cnn_decoder_forward.1} parent=1 // pred_fallthru
      _
    // Predicated region
    $region6: #{cnn_decoder_forward.1} parent=1 // pred_check
      _
    $region7: #{cnn_decoder_forward.1} parent=1 // pred_check_branch
      %25 = sbr.rel (0) target = $region9
    $region8: #{cnn_decoder_forward.1} parent=1 // pred_region
      %27 = vsyncadd [#allocation3], 0
      %s28 = sshll.u32 %s1, 4
      %s29 = int_to_ptr.hbm [resolvable:$true] %s28
      %s30 = sshll.u32 [#allocation2], 4
      %s31 = int_to_ptr.vmem [resolvable:$true] %s30
      %36 = dma.hbm_to_vmem [thread:$0]  %s29, 128, %s31, [#allocation3], 64, 64, 4
    $region9: #{cnn_decoder_forward.1} parent=1 // pred_fallthru
      _
    // Predicated region
    $region10: #{cnn_decoder_forward.1} parent=1 // pred_check
      _
    $region11: #{cnn_decoder_forward.1} parent=1 // pred_check_branch
      %38 = sbr.rel (0) target = $region13
    $region12: #{cnn_decoder_forward.1} parent=1 // pred_region
      %40 = vsyncadd [#allocation5], 0
      %s41 = sshll.u32 %s2, 4
      %s42 = int_to_ptr.hbm [resolvable:$true] %s41
      %s43 = sshll.u32 [#allocation4], 4
      %s44 = int_to_ptr.vmem [resolvable:$true] %s43
      %49 = dma.hbm_to_vmem [thread:$0]  %s42, 1024, %s44, [#allocation5], 64, 64, 4
    $region13: #{cnn_decoder_forward.1} parent=1 // pred_fallthru
      _
    // Predicated region
    $region14: #{cnn_decoder_forward.1} parent=1 // pred_check
      _
    $region15: #{cnn_decoder_forward.1} parent=1 // pred_check_branch
      %51 = sbr.rel (0) target = $region17
    $region16: #{cnn_decoder_forward.1} parent=1 // pred_region
      %53 = vsyncadd [#allocation5], 0
      %s54 = sshll.u32 %s3, 4
      %s55 = int_to_ptr.hbm [resolvable:$true] %s54
      %s56 = sshll.u32 [#allocation6], 4
      %s57 = int_to_ptr.vmem [resolvable:$true] %s56
      %62 = dma.hbm_to_vmem [thread:$0]  %s55, 1024, %s57, [#allocation5], 64, 64, 4
    $region17: #{cnn_decoder_forward.1} parent=1 // pred_fallthru
      _
    // Predicated region
    $region18: #{cnn_decoder_forward.1} parent=1 // pred_check
      _
    $region19: #{cnn_decoder_forward.1} parent=1 // pred_check_branch
      %64 = sbr.rel (0) target = $region21
    $region20: #{cnn_decoder_forward.1} parent=1 // pred_region
      _
    $region21: #{cnn_decoder_forward.1} parent=1 // pred_fallthru
      _
    // Predicated region
    $region22: #{cnn_decoder_forward.1} parent=1 // pred_check
      _
    $region23: #{cnn_decoder_forward.1} parent=1 // pred_check_branch
      %66 = sbr.rel (0) target = $region25
    $region24: #{cnn_decoder_forward.1} parent=1 // pred_region
      _
    $region25: #{cnn_decoder_forward.1} parent=1 // pred_fallthru
      _
    // Predicated region
    $region26: #{cnn_decoder_forward.1} parent=1 // pred_check
      _
    $region27: #{cnn_decoder_forward.1} parent=1 // pred_check_branch
      %68 = sbr.rel (0) target = $region29
    $region28: #{cnn_decoder_forward.1} parent=1 // pred_region
      _
    $region29: #{cnn_decoder_forward.1} parent=1 // pred_fallthru
      _
    // Predicated region
    $region30: #{cnn_decoder_forward.1} parent=1 // pred_check
      _
    $region31: #{cnn_decoder_forward.1} parent=1 // pred_check_branch
      %70 = sbr.rel (0) target = $region33
    $region32: #{cnn_decoder_forward.1} parent=1 // pred_region
      %72 = vsyncadd [#allocation8], 0
      %s73 = sshll.u32 %s7, 4
      %s74 = int_to_ptr.hbm [resolvable:$true] %s73
      %s75 = sshll.u32 [#allocation7], 4
      %s76 = int_to_ptr.vmem [resolvable:$true] %s75
      %81 = dma.hbm_to_vmem [thread:$0]  %s74, 4096, %s76, [#allocation8], 64, 64, 4
    $region33: #{cnn_decoder_forward.1} parent=1 // pred_fallthru
      _
    // Predicated region
    $region34: #{cnn_decoder_forward.1} parent=1 // pred_check
      _
    $region35: #{cnn_decoder_forward.1} parent=1 // pred_check_branch
      %83 = sbr.rel (0) target = $region37
    $region36: #{cnn_decoder_forward.1} parent=1 // pred_region
      _
    $region37: #{cnn_decoder_forward.1} parent=1 // pred_fallthru
      _
    // Predicated region
    $region38: #{cnn_decoder_forward.1} parent=1 // pred_check
      _
    $region39: #{cnn_decoder_forward.1} parent=1 // pred_check_branch
      %85 = sbr.rel (0) target = $region41
    $region40: #{cnn_decoder_forward.1} parent=1 // pred_region
      _
    $region41: #{cnn_decoder_forward.1} parent=1 // pred_fallthru
      _
    // Predicated region
    $region42: #{cnn_decoder_forward.1} parent=1 // pred_check
      _
    $region43: #{cnn_decoder_forward.1} parent=1 // pred_check_branch
      %87 = sbr.rel (0) target = $region45
    $region44: #{cnn_decoder_forward.1} parent=1 // pred_region
      _
    $region45: #{cnn_decoder_forward.1} parent=1 // pred_fallthru
      _
    // Predicated region
    $region46: #{cnn_decoder_forward.1} parent=1 // pred_check
      _
    $region47: #{cnn_decoder_forward.1} parent=1 // pred_check_branch
      %89 = sbr.rel (0) target = $region49
    $region48: #{cnn_decoder_forward.1} parent=1 // pred_region
      %91 = vsyncadd [#allocation8], 0
      %s92 = sshll.u32 %s11, 4
      %s93 = int_to_ptr.hbm [resolvable:$true] %s92
      %s94 = sshll.u32 [#allocation9], 4
      %s95 = int_to_ptr.vmem [resolvable:$true] %s94
      %100 = dma.hbm_to_vmem [thread:$0]  %s93, 65536, %s95, [#allocation8], 256, 256, 16
    $region49: #{cnn_decoder_forward.1} parent=1 // pred_fallthru
      _
    // Predicated region
    $region50: #{cnn_decoder_forward.1} parent=1 // pred_check
      _
    $region51: #{cnn_decoder_forward.1} parent=1 // pred_check_branch
      %102 = sbr.rel (0) target = $region53
    $region52: #{cnn_decoder_forward.1} parent=1 // pred_region
      _
    $region53: #{cnn_decoder_forward.1} parent=1 // pred_fallthru
      _
    // Predicated region
    $region54: #{cnn_decoder_forward.1} parent=1 // pred_check
      _
    $region55: #{cnn_decoder_forward.1} parent=1 // pred_check_branch
      %104 = sbr.rel (0) target = $region57
    $region56: #{cnn_decoder_forward.1} parent=1 // pred_region
      _
    $region57: #{cnn_decoder_forward.1} parent=1 // pred_fallthru
      _
    // Predicated region
    $region58: #{cnn_decoder_forward.1} parent=1 // pred_check
      _
    $region59: #{cnn_decoder_forward.1} parent=1 // pred_check_branch
      %106 = sbr.rel (0) target = $region61
    $region60: #{cnn_decoder_forward.1} parent=1 // pred_region
      %108 = dma.done [#allocation3], 128
    $region61: #{cnn_decoder_forward.1} parent=1 // pred_fallthru
      _
    // Predicated region
    $region62: #{cnn_decoder_forward.1} parent=1 // pred_check
      _
    $region63: #{cnn_decoder_forward.1} parent=1 // pred_check_branch
      %110 = sbr.rel (0) target = $region65
    $region64: #{cnn_decoder_forward.1} parent=1 // pred_region
      %112 = dma.done [#allocation5], 1024
    $region65: #{cnn_decoder_forward.1} parent=1 // pred_fallthru
      _
    // Predicated region
    $region66: #{cnn_decoder_forward.1} parent=1 // pred_check
      _
    $region67: #{cnn_decoder_forward.1} parent=1 // pred_check_branch
      %114 = sbr.rel (0) target = $region69
    $region68: #{cnn_decoder_forward.1} parent=1 // pred_region
      %116 = dma.done [#allocation5], 1024
    $region69: #{cnn_decoder_forward.1} parent=1 // pred_fallthru
      _
    // Predicated region
    $region70: #{cnn_decoder_forward.1} parent=1 // pred_check
      _
    $region71: #{cnn_decoder_forward.1} parent=1 // pred_check_branch
      %118 = sbr.rel (0) target = $region73
    $region72: #{cnn_decoder_forward.1} parent=1 // pred_region
      %120 = dma.done [#allocation8], 4096
    $region73: #{cnn_decoder_forward.1} parent=1 // pred_fallthru
      _
    // Predicated region
    $region74: #{cnn_decoder_forward.1} parent=1 // pred_check
      _
    $region75: #{cnn_decoder_forward.1} parent=1 // pred_check_branch
      %122 = sbr.rel (0) target = $region77
    $region76: #{cnn_decoder_forward.1} parent=1 // pred_region
      %124 = dma.done [#allocation8], 65536
    $region77: #{cnn_decoder_forward.1} parent=1 // pred_fallthru
      _
    %v126 = vld [vmem:[#allocation2] sm:$0xf]
    %v127 = vld [vmem:[#allocation2 + $0x4] sm:$0xf]
    %v128 = vld [vmem:[%s0] sm:$0xf]
    %v129 = vld [vmem:[%s0 + $0x4] sm:$0xf]
    %v130 = vld [vmem:[%s0 + $0x8] sm:$0xf]
    %v131 = vld [vmem:[%s0 + $0xc] sm:$0xf]
    %v132 = vld [vmem:[%s0 + $0x10] sm:$0xf]
    %v133 = vld [vmem:[%s0 + $0x14] sm:$0xf]
    %v134 = vld [vmem:[%s0 + $0x18] sm:$0xf]
    %v135 = vld [vmem:[%s0 + $0x1c] sm:$0xf]
    %v136 = vld [vmem:[%s0 + $0x20] sm:$0x3]
    %v139 = vunpack.c.l.b16 %v126
    %v140 = vunpack.c.l.b16 %v127
    %v141 = vpack.c.b16 %v140, %v139
    %v151 = vunpack.c.l.b16 %v128
    %v152 = vunpack.c.l.b16 %v129
    %v153 = vunpack.c.l.b16 %v130
    %v154 = vunpack.c.l.b16 %v131
    %v155 = vunpack.c.l.b16 %v132
    %v156 = vunpack.c.l.b16 %v133
    %v157 = vunpack.c.l.b16 %v134
    %v158 = vunpack.c.l.b16 %v135
    %v159 = vunpack.c.l.b16 %v136
    %v160 = vpack.c.b16 %v152, %v151
    %v161 = vpack.c.b16 %v154, %v153
    %v162 = vpack.c.b16 %v156, %v155
    %v163 = vpack.c.b16 %v158, %v157
    %v164 = vpack.c.b16 %v159, %v159
    %vm169 = vcmask 556032
    %v171 = vsel %vm169, %v141, 0
    %vm173 = vcmask 1041408
    %v175 = vsel %vm173, %v164, 0
    %177 = vmatpush.bf16.msra.mxu0 0
    %178 = vmatpush.bf16.msra.mxu0 0
    %179 = vmatpush.bf16.msra.mxu0 0
    %180 = vmatpush.bf16.msra.mxu0 %v175
    %181 = vmatpush.bf16.msra.mxu0 %v163
    %182 = vmatpush.bf16.msra.mxu0 %v162
    %183 = vmatpush.bf16.msra.mxu0 %v161
    %184 = vmatpush.bf16.msra.mxu0 %v160
    %185 = vmatmul.bf16.gmra.mxu0 %v171
    %v186 = vpop.f32.mrf.mxu0
    %v187 = vadd.f32 0.0, %v186
    %v188 = vpop.f32.mrf.mxu0
    %v189 = vadd.f32 0.0, %v188
    %190 = vdwg.mxu0
    %v191 = vmax.f32 %v187, 0.0
    %v192 = vmax.f32 %v189, 0.0
    %v193 = vpack.c.bf16 %v192, %v191
    %v194 = vld [vmem:[#allocation6] sm:$0xf]
    %vm195 = vcmask 64512
    %v197 = vsel %vm195, %v193, 0
    %vm199 = vcmask 1043456
    %v201 = vsel %vm199, %v194, 0
    %203 = vmatpush.bf16.msra.mxu0 0
    %204 = vmatpush.bf16.msra.mxu0 0
    %205 = vmatpush.bf16.msra.mxu0 0
    %206 = vmatpush.bf16.msra.mxu0 0
    %207 = vmatpush.bf16.msra.mxu0 0
    %208 = vmatpush.bf16.msra.mxu0 0
    %209 = vmatpush.bf16.msra.mxu0 0
    %210 = vmatpush.bf16.msra.mxu0 %v201
    %211 = vmatmul.bf16.gmra.mxu0 %v197
    %v212 = vpop.f32.mrf.mxu0
    %v213 = vadd.f32 0.0, %v212
    %v214 = vpop.f32.mrf.mxu0
    %v215 = vadd.f32 0.0, %v214
    %216 = vdwg.mxu0
    %v217 = vld [vmem:[#allocation4] sm:$0xf]
    %v218 = vpack.c.bf16 %v215, %v213
    %s219 = scalar_lea.vmem [#allocation6], 4
    %v220 = vld [vmem:[%s219] sm:$0xf]
    %v222 = vsel %vm199, %v220, 0
    %224 = vmatpush.bf16.msra.mxu0 0
    %225 = vmatpush.bf16.msra.mxu0 0
    %226 = vmatpush.bf16.msra.mxu0 0
    %227 = vmatpush.bf16.msra.mxu0 0
    %228 = vmatpush.bf16.msra.mxu0 0
    %229 = vmatpush.bf16.msra.mxu0 0
    %230 = vmatpush.bf16.msra.mxu0 0
    %231 = vmatpush.bf16.msra.mxu0 %v222
    %232 = vmatmul.bf16.gmra.mxu0 %v197
    %v233 = vpop.f32.mrf.mxu0
    %v234 = vadd.f32 0.0, %v233
    %v235 = vpop.f32.mrf.mxu0
    %v236 = vadd.f32 0.0, %v235
    %237 = vdwg.mxu0
    %s238 = scalar_lea.vmem [#allocation4], 4
    %v239 = vld [vmem:[%s238] sm:$0xf]
    %v240 = vpack.c.bf16 %v236, %v234
    %vm241 = vcmask 130048
    %v243 = vsel %vm241, %v239, 0
    %245 = vmatpush.bf16.msra.mxu0 0
    %246 = vmatpush.bf16.msra.mxu0 0
    %247 = vmatpush.bf16.msra.mxu0 0
    %248 = vmatpush.bf16.msra.mxu0 0
    %249 = vmatpush.bf16.msra.mxu0 0
    %250 = vmatpush.bf16.msra.mxu0 0
    %251 = vmatpush.bf16.msra.mxu0 0
    %252 = vmatpush.bf16.msra.mxu0 %v240
    %253 = vmatmul.bf16.gmra.mxu0 %v243
    %v254 = vpop.f32.mrf.mxu0
    %v255 = vadd.f32 0.0, %v254
    %v256 = vpop.f32.mrf.mxu0
    %257 = vdwg.mxu0
    %v259 = vsel %vm241, %v217, 0
    %261 = vmatpush.bf16.msra.mxu0 0
    %262 = vmatpush.bf16.msra.mxu0 0
    %263 = vmatpush.bf16.msra.mxu0 0
    %264 = vmatpush.bf16.msra.mxu0 0
    %265 = vmatpush.bf16.msra.mxu0 0
    %266 = vmatpush.bf16.msra.mxu0 0
    %267 = vmatpush.bf16.msra.mxu0 0
    %268 = vmatpush.bf16.msra.mxu0 %v218
    %269 = vmatmul.bf16.gmra.mxu0 %v259
    %v270 = vpop.f32.mrf.mxu0
    %v271 = vadd.f32 %v255, %v270
    %v272 = vpop.f32.mrf.mxu0
    %273 = vdwg.mxu0
    %s274 = scalar_lea.vmem [#allocation6], 8
    %v275 = vld [vmem:[%s274] sm:$0xf]
    %v277 = vsel %vm199, %v275, 0
    %279 = vmatpush.bf16.msra.mxu0 0
    %280 = vmatpush.bf16.msra.mxu0 0
    %281 = vmatpush.bf16.msra.mxu0 0
    %282 = vmatpush.bf16.msra.mxu0 0
    %283 = vmatpush.bf16.msra.mxu0 0
    %284 = vmatpush.bf16.msra.mxu0 0
    %285 = vmatpush.bf16.msra.mxu0 0
    %286 = vmatpush.bf16.msra.mxu0 %v277
    %287 = vmatmul.bf16.gmra.mxu0 %v197
    %v288 = vpop.f32.mrf.mxu0
    %v289 = vadd.f32 0.0, %v288
    %v290 = vpop.f32.mrf.mxu0
    %v291 = vadd.f32 0.0, %v290
    %292 = vdwg.mxu0
    %s293 = scalar_lea.vmem [#allocation4], 8
    %v294 = vld [vmem:[%s293] sm:$0xf]
    %v295 = vpack.c.bf16 %v291, %v289
    %v297 = vsel %vm241, %v294, 0
    %299 = vmatpush.bf16.msra.mxu0 0
    %300 = vmatpush.bf16.msra.mxu0 0
    %301 = vmatpush.bf16.msra.mxu0 0
    %302 = vmatpush.bf16.msra.mxu0 0
    %303 = vmatpush.bf16.msra.mxu0 0
    %304 = vmatpush.bf16.msra.mxu0 0
    %305 = vmatpush.bf16.msra.mxu0 0
    %306 = vmatpush.bf16.msra.mxu0 %v295
    %307 = vmatmul.bf16.gmra.mxu0 %v297
    %v308 = vpop.f32.mrf.mxu0
    %v309 = vadd.f32 0.0, %v308
    %v310 = vpop.f32.mrf.mxu0
    %311 = vdwg.mxu0
    %v312 = vadd.f32 %v271, %v309
    %s313 = scalar_lea.vmem [#allocation6], 12
    %v314 = vld [vmem:[%s313] sm:$0xf]
    %v316 = vsel %vm199, %v314, 0
    %318 = vmatpush.bf16.msra.mxu0 0
    %319 = vmatpush.bf16.msra.mxu0 0
    %320 = vmatpush.bf16.msra.mxu0 0
    %321 = vmatpush.bf16.msra.mxu0 0
    %322 = vmatpush.bf16.msra.mxu0 0
    %323 = vmatpush.bf16.msra.mxu0 0
    %324 = vmatpush.bf16.msra.mxu0 0
    %325 = vmatpush.bf16.msra.mxu0 %v316
    %326 = vmatmul.bf16.gmra.mxu0 %v197
    %v327 = vpop.f32.mrf.mxu0
    %v328 = vadd.f32 0.0, %v327
    %v329 = vpop.f32.mrf.mxu0
    %v330 = vadd.f32 0.0, %v329
    %331 = vdwg.mxu0
    %s332 = scalar_lea.vmem [#allocation4], 12
    %v333 = vld [vmem:[%s332] sm:$0xf]
    %v334 = vpack.c.bf16 %v330, %v328
    %v336 = vsel %vm241, %v333, 0
    %338 = vmatpush.bf16.msra.mxu0 0
    %339 = vmatpush.bf16.msra.mxu0 0
    %340 = vmatpush.bf16.msra.mxu0 0
    %341 = vmatpush.bf16.msra.mxu0 0
    %342 = vmatpush.bf16.msra.mxu0 0
    %343 = vmatpush.bf16.msra.mxu0 0
    %344 = vmatpush.bf16.msra.mxu0 0
    %345 = vmatpush.bf16.msra.mxu0 %v334
    %346 = vmatmul.bf16.gmra.mxu0 %v336
    %v347 = vpop.f32.mrf.mxu0
    %v348 = vadd.f32 0.0, %v347
    %v349 = vpop.f32.mrf.mxu0
    %350 = vdwg.mxu0
    %v351 = vadd.f32 %v312, %v348
    %s352 = scalar_lea.vmem [#allocation6], 16
    %v353 = vld [vmem:[%s352] sm:$0xf]
    %v355 = vsel %vm199, %v353, 0
    %357 = vmatpush.bf16.msra.mxu0 0
    %358 = vmatpush.bf16.msra.mxu0 0
    %359 = vmatpush.bf16.msra.mxu0 0
    %360 = vmatpush.bf16.msra.mxu0 0
    %361 = vmatpush.bf16.msra.mxu0 0
    %362 = vmatpush.bf16.msra.mxu0 0
    %363 = vmatpush.bf16.msra.mxu0 0
    %364 = vmatpush.bf16.msra.mxu0 %v355
    %365 = vmatmul.bf16.gmra.mxu0 %v197
    %v366 = vpop.f32.mrf.mxu0
    %v367 = vadd.f32 0.0, %v366
    %v368 = vpop.f32.mrf.mxu0
    %v369 = vadd.f32 0.0, %v368
    %370 = vdwg.mxu0
    %s371 = scalar_lea.vmem [#allocation4], 16
    %v372 = vld [vmem:[%s371] sm:$0xf]
    %v373 = vpack.c.bf16 %v369, %v367
    %v375 = vsel %vm241, %v372, 0
    %377 = vmatpush.bf16.msra.mxu0 0
    %378 = vmatpush.bf16.msra.mxu0 0
    %379 = vmatpush.bf16.msra.mxu0 0
    %380 = vmatpush.bf16.msra.mxu0 0
    %381 = vmatpush.bf16.msra.mxu0 0
    %382 = vmatpush.bf16.msra.mxu0 0
    %383 = vmatpush.bf16.msra.mxu0 0
    %384 = vmatpush.bf16.msra.mxu0 %v373
    %385 = vmatmul.bf16.gmra.mxu0 %v375
    %v386 = vpop.f32.mrf.mxu0
    %v387 = vadd.f32 0.0, %v386
    %v388 = vpop.f32.mrf.mxu0
    %389 = vdwg.mxu0
    %v390 = vadd.f32 %v351, %v387
    %s391 = scalar_lea.vmem [#allocation6], 20
    %v392 = vld [vmem:[%s391] sm:$0xf]
    %v394 = vsel %vm199, %v392, 0
    %396 = vmatpush.bf16.msra.mxu0 0
    %397 = vmatpush.bf16.msra.mxu0 0
    %398 = vmatpush.bf16.msra.mxu0 0
    %399 = vmatpush.bf16.msra.mxu0 0
    %400 = vmatpush.bf16.msra.mxu0 0
    %401 = vmatpush.bf16.msra.mxu0 0
    %402 = vmatpush.bf16.msra.mxu0 0
    %403 = vmatpush.bf16.msra.mxu0 %v394
    %404 = vmatmul.bf16.gmra.mxu0 %v197
    %v405 = vpop.f32.mrf.mxu0
    %v406 = vadd.f32 0.0, %v405
    %v407 = vpop.f32.mrf.mxu0
    %v408 = vadd.f32 0.0, %v407
    %409 = vdwg.mxu0
    %s410 = scalar_lea.vmem [#allocation4], 20
    %v411 = vld [vmem:[%s410] sm:$0xf]
    %v412 = vpack.c.bf16 %v408, %v406
    %v414 = vsel %vm241, %v411, 0
    %416 = vmatpush.bf16.msra.mxu0 0
    %417 = vmatpush.bf16.msra.mxu0 0
    %418 = vmatpush.bf16.msra.mxu0 0
    %419 = vmatpush.bf16.msra.mxu0 0
    %420 = vmatpush.bf16.msra.mxu0 0
    %421 = vmatpush.bf16.msra.mxu0 0
    %422 = vmatpush.bf16.msra.mxu0 0
    %423 = vmatpush.bf16.msra.mxu0 %v412
    %424 = vmatmul.bf16.gmra.mxu0 %v414
    %v425 = vpop.f32.mrf.mxu0
    %v426 = vadd.f32 0.0, %v425
    %v427 = vpop.f32.mrf.mxu0
    %428 = vdwg.mxu0
    %v429 = vadd.f32 %v390, %v426
    %s430 = scalar_lea.vmem [#allocation6], 24
    %v431 = vld [vmem:[%s430] sm:$0xf]
    %v433 = vsel %vm199, %v431, 0
    %435 = vmatpush.bf16.msra.mxu0 0
    %436 = vmatpush.bf16.msra.mxu0 0
    %437 = vmatpush.bf16.msra.mxu0 0
    %438 = vmatpush.bf16.msra.mxu0 0
    %439 = vmatpush.bf16.msra.mxu0 0
    %440 = vmatpush.bf16.msra.mxu0 0
    %441 = vmatpush.bf16.msra.mxu0 0
    %442 = vmatpush.bf16.msra.mxu0 %v433
    %443 = vmatmul.bf16.gmra.mxu0 %v197
    %v444 = vpop.f32.mrf.mxu0
    %v445 = vadd.f32 0.0, %v444
    %v446 = vpop.f32.mrf.mxu0
    %v447 = vadd.f32 0.0, %v446
    %448 = vdwg.mxu0
    %s449 = scalar_lea.vmem [#allocation4], 24
    %v450 = vld [vmem:[%s449] sm:$0xf]
    %v451 = vpack.c.bf16 %v447, %v445
    %v453 = vsel %vm241, %v450, 0
    %455 = vmatpush.bf16.msra.mxu0 0
    %456 = vmatpush.bf16.msra.mxu0 0
    %457 = vmatpush.bf16.msra.mxu0 0
    %458 = vmatpush.bf16.msra.mxu0 0
    %459 = vmatpush.bf16.msra.mxu0 0
    %460 = vmatpush.bf16.msra.mxu0 0
    %461 = vmatpush.bf16.msra.mxu0 0
    %462 = vmatpush.bf16.msra.mxu0 %v451
    %463 = vmatmul.bf16.gmra.mxu0 %v453
    %v464 = vpop.f32.mrf.mxu0
    %v465 = vadd.f32 0.0, %v464
    %v466 = vpop.f32.mrf.mxu0
    %467 = vdwg.mxu0
    %v468 = vadd.f32 %v429, %v465
    %s469 = scalar_lea.vmem [#allocation6], 28
    %v470 = vld [vmem:[%s469] sm:$0xf]
    %v472 = vsel %vm199, %v470, 0
    %474 = vmatpush.bf16.msra.mxu0 0
    %475 = vmatpush.bf16.msra.mxu0 0
    %476 = vmatpush.bf16.msra.mxu0 0
    %477 = vmatpush.bf16.msra.mxu0 0
    %478 = vmatpush.bf16.msra.mxu0 0
    %479 = vmatpush.bf16.msra.mxu0 0
    %480 = vmatpush.bf16.msra.mxu0 0
    %481 = vmatpush.bf16.msra.mxu0 %v472
    %482 = vmatmul.bf16.gmra.mxu0 %v197
    %v483 = vpop.f32.mrf.mxu0
    %v484 = vadd.f32 0.0, %v483
    %v485 = vpop.f32.mrf.mxu0
    %v486 = vadd.f32 0.0, %v485
    %487 = vdwg.mxu0
    %s488 = scalar_lea.vmem [#allocation4], 28
    %v489 = vld [vmem:[%s488] sm:$0xf]
    %v490 = vpack.c.bf16 %v486, %v484
    %v492 = vsel %vm241, %v489, 0
    %494 = vmatpush.bf16.msra.mxu0 0
    %495 = vmatpush.bf16.msra.mxu0 0
    %496 = vmatpush.bf16.msra.mxu0 0
    %497 = vmatpush.bf16.msra.mxu0 0
    %498 = vmatpush.bf16.msra.mxu0 0
    %499 = vmatpush.bf16.msra.mxu0 0
    %500 = vmatpush.bf16.msra.mxu0 0
    %501 = vmatpush.bf16.msra.mxu0 %v490
    %502 = vmatmul.bf16.gmra.mxu0 %v492
    %v503 = vpop.f32.mrf.mxu0
    %v504 = vadd.f32 0.0, %v503
    %v505 = vpop.f32.mrf.mxu0
    %506 = vdwg.mxu0
    %v507 = vadd.f32 %v468, %v504
    %s508 = scalar_lea.vmem [#allocation6], 32
    %v509 = vld [vmem:[%s508] sm:$0xf]
    %v511 = vsel %vm199, %v509, 0
    %513 = vmatpush.bf16.msra.mxu0 0
    %514 = vmatpush.bf16.msra.mxu0 0
    %515 = vmatpush.bf16.msra.mxu0 0
    %516 = vmatpush.bf16.msra.mxu0 0
    %517 = vmatpush.bf16.msra.mxu0 0
    %518 = vmatpush.bf16.msra.mxu0 0
    %519 = vmatpush.bf16.msra.mxu0 0
    %520 = vmatpush.bf16.msra.mxu0 %v511
    %521 = vmatmul.bf16.gmra.mxu0 %v197
    %v522 = vpop.f32.mrf.mxu0
    %v523 = vadd.f32 0.0, %v522
    %v524 = vpop.f32.mrf.mxu0
    %v525 = vadd.f32 0.0, %v524
    %526 = vdwg.mxu0
    %s527 = scalar_lea.vmem [#allocation4], 32
    %v528 = vld [vmem:[%s527] sm:$0xf]
    %v529 = vpack.c.bf16 %v525, %v523
    %v531 = vsel %vm241, %v528, 0
    %533 = vmatpush.bf16.msra.mxu0 0
    %534 = vmatpush.bf16.msra.mxu0 0
    %535 = vmatpush.bf16.msra.mxu0 0
    %536 = vmatpush.bf16.msra.mxu0 0
    %537 = vmatpush.bf16.msra.mxu0 0
    %538 = vmatpush.bf16.msra.mxu0 0
    %539 = vmatpush.bf16.msra.mxu0 0
    %540 = vmatpush.bf16.msra.mxu0 %v529
    %541 = vmatmul.bf16.gmra.mxu0 %v531
    %v542 = vpop.f32.mrf.mxu0
    %v543 = vadd.f32 0.0, %v542
    %v544 = vpop.f32.mrf.mxu0
    %545 = vdwg.mxu0
    %v546 = vadd.f32 %v507, %v543
    %s547 = scalar_lea.vmem [#allocation6], 36
    %v548 = vld [vmem:[%s547] sm:$0xf]
    %v550 = vsel %vm199, %v548, 0
    %552 = vmatpush.bf16.msra.mxu0 0
    %553 = vmatpush.bf16.msra.mxu0 0
    %554 = vmatpush.bf16.msra.mxu0 0
    %555 = vmatpush.bf16.msra.mxu0 0
    %556 = vmatpush.bf16.msra.mxu0 0
    %557 = vmatpush.bf16.msra.mxu0 0
    %558 = vmatpush.bf16.msra.mxu0 0
    %559 = vmatpush.bf16.msra.mxu0 %v550
    %560 = vmatmul.bf16.gmra.mxu0 %v197
    %v561 = vpop.f32.mrf.mxu0
    %v562 = vadd.f32 0.0, %v561
    %v563 = vpop.f32.mrf.mxu0
    %v564 = vadd.f32 0.0, %v563
    %565 = vdwg.mxu0
    %s566 = scalar_lea.vmem [#allocation4], 36
    %v567 = vld [vmem:[%s566] sm:$0xf]
    %v568 = vpack.c.bf16 %v564, %v562
    %v570 = vsel %vm241, %v567, 0
    %572 = vmatpush.bf16.msra.mxu0 0
    %573 = vmatpush.bf16.msra.mxu0 0
    %574 = vmatpush.bf16.msra.mxu0 0
    %575 = vmatpush.bf16.msra.mxu0 0
    %576 = vmatpush.bf16.msra.mxu0 0
    %577 = vmatpush.bf16.msra.mxu0 0
    %578 = vmatpush.bf16.msra.mxu0 0
    %579 = vmatpush.bf16.msra.mxu0 %v568
    %580 = vmatmul.bf16.gmra.mxu0 %v570
    %v581 = vpop.f32.mrf.mxu0
    %v582 = vadd.f32 0.0, %v581
    %v583 = vpop.f32.mrf.mxu0
    %584 = vdwg.mxu0
    %v585 = vadd.f32 %v546, %v582
    %s586 = scalar_lea.vmem [#allocation6], 40
    %v587 = vld [vmem:[%s586] sm:$0xf]
    %v589 = vsel %vm199, %v587, 0
    %591 = vmatpush.bf16.msra.mxu0 0
    %592 = vmatpush.bf16.msra.mxu0 0
    %593 = vmatpush.bf16.msra.mxu0 0
    %594 = vmatpush.bf16.msra.mxu0 0
    %595 = vmatpush.bf16.msra.mxu0 0
    %596 = vmatpush.bf16.msra.mxu0 0
    %597 = vmatpush.bf16.msra.mxu0 0
    %598 = vmatpush.bf16.msra.mxu0 %v589
    %599 = vmatmul.bf16.gmra.mxu0 %v197
    %v600 = vpop.f32.mrf.mxu0
    %v601 = vadd.f32 0.0, %v600
    %v602 = vpop.f32.mrf.mxu0
    %v603 = vadd.f32 0.0, %v602
    %604 = vdwg.mxu0
    %s605 = scalar_lea.vmem [#allocation4], 40
    %v606 = vld [vmem:[%s605] sm:$0xf]
    %v607 = vpack.c.bf16 %v603, %v601
    %v609 = vsel %vm241, %v606, 0
    %611 = vmatpush.bf16.msra.mxu0 0
    %612 = vmatpush.bf16.msra.mxu0 0
    %613 = vmatpush.bf16.msra.mxu0 0
    %614 = vmatpush.bf16.msra.mxu0 0
    %615 = vmatpush.bf16.msra.mxu0 0
    %616 = vmatpush.bf16.msra.mxu0 0
    %617 = vmatpush.bf16.msra.mxu0 0
    %618 = vmatpush.bf16.msra.mxu0 %v607
    %619 = vmatmul.bf16.gmra.mxu0 %v609
    %v620 = vpop.f32.mrf.mxu0
    %v621 = vadd.f32 0.0, %v620
    %v622 = vpop.f32.mrf.mxu0
    %623 = vdwg.mxu0
    %v624 = vadd.f32 %v585, %v621
    %s625 = scalar_lea.vmem [#allocation6], 44
    %v626 = vld [vmem:[%s625] sm:$0xf]
    %v628 = vsel %vm199, %v626, 0
    %630 = vmatpush.bf16.msra.mxu0 0
    %631 = vmatpush.bf16.msra.mxu0 0
    %632 = vmatpush.bf16.msra.mxu0 0
    %633 = vmatpush.bf16.msra.mxu0 0
    %634 = vmatpush.bf16.msra.mxu0 0
    %635 = vmatpush.bf16.msra.mxu0 0
    %636 = vmatpush.bf16.msra.mxu0 0
    %637 = vmatpush.bf16.msra.mxu0 %v628
    %638 = vmatmul.bf16.gmra.mxu0 %v197
    %v639 = vpop.f32.mrf.mxu0
    %v640 = vadd.f32 0.0, %v639
    %v641 = vpop.f32.mrf.mxu0
    %v642 = vadd.f32 0.0, %v641
    %643 = vdwg.mxu0
    %s644 = scalar_lea.vmem [#allocation4], 44
    %v645 = vld [vmem:[%s644] sm:$0xf]
    %v646 = vpack.c.bf16 %v642, %v640
    %v648 = vsel %vm241, %v645, 0
    %650 = vmatpush.bf16.msra.mxu0 0
    %651 = vmatpush.bf16.msra.mxu0 0
    %652 = vmatpush.bf16.msra.mxu0 0
    %653 = vmatpush.bf16.msra.mxu0 0
    %654 = vmatpush.bf16.msra.mxu0 0
    %655 = vmatpush.bf16.msra.mxu0 0
    %656 = vmatpush.bf16.msra.mxu0 0
    %657 = vmatpush.bf16.msra.mxu0 %v646
    %658 = vmatmul.bf16.gmra.mxu0 %v648
    %v659 = vpop.f32.mrf.mxu0
    %v660 = vadd.f32 0.0, %v659
    %v661 = vpop.f32.mrf.mxu0
    %662 = vdwg.mxu0
    %v663 = vadd.f32 %v624, %v660
    %s664 = scalar_lea.vmem [#allocation6], 48
    %v665 = vld [vmem:[%s664] sm:$0xf]
    %v667 = vsel %vm199, %v665, 0
    %669 = vmatpush.bf16.msra.mxu0 0
    %670 = vmatpush.bf16.msra.mxu0 0
    %671 = vmatpush.bf16.msra.mxu0 0
    %672 = vmatpush.bf16.msra.mxu0 0
    %673 = vmatpush.bf16.msra.mxu0 0
    %674 = vmatpush.bf16.msra.mxu0 0
    %675 = vmatpush.bf16.msra.mxu0 0
    %676 = vmatpush.bf16.msra.mxu0 %v667
    %677 = vmatmul.bf16.gmra.mxu0 %v197
    %v678 = vpop.f32.mrf.mxu0
    %v679 = vadd.f32 0.0, %v678
    %v680 = vpop.f32.mrf.mxu0
    %v681 = vadd.f32 0.0, %v680
    %682 = vdwg.mxu0
    %s683 = scalar_lea.vmem [#allocation4], 48
    %v684 = vld [vmem:[%s683] sm:$0xf]
    %v685 = vpack.c.bf16 %v681, %v679
    %v687 = vsel %vm241, %v684, 0
    %689 = vmatpush.bf16.msra.mxu0 0
    %690 = vmatpush.bf16.msra.mxu0 0
    %691 = vmatpush.bf16.msra.mxu0 0
    %692 = vmatpush.bf16.msra.mxu0 0
    %693 = vmatpush.bf16.msra.mxu0 0
    %694 = vmatpush.bf16.msra.mxu0 0
    %695 = vmatpush.bf16.msra.mxu0 0
    %696 = vmatpush.bf16.msra.mxu0 %v685
    %697 = vmatmul.bf16.gmra.mxu0 %v687
    %v698 = vpop.f32.mrf.mxu0
    %v699 = vadd.f32 0.0, %v698
    %v700 = vpop.f32.mrf.mxu0
    %701 = vdwg.mxu0
    %v702 = vadd.f32 %v663, %v699
    %s703 = scalar_lea.vmem [#allocation6], 52
    %v704 = vld [vmem:[%s703] sm:$0xf]
    %v706 = vsel %vm199, %v704, 0
    %708 = vmatpush.bf16.msra.mxu0 0
    %709 = vmatpush.bf16.msra.mxu0 0
    %710 = vmatpush.bf16.msra.mxu0 0
    %711 = vmatpush.bf16.msra.mxu0 0
    %712 = vmatpush.bf16.msra.mxu0 0
    %713 = vmatpush.bf16.msra.mxu0 0
    %714 = vmatpush.bf16.msra.mxu0 0
    %715 = vmatpush.bf16.msra.mxu0 %v706
    %716 = vmatmul.bf16.gmra.mxu0 %v197
    %v717 = vpop.f32.mrf.mxu0
    %v718 = vadd.f32 0.0, %v717
    %v719 = vpop.f32.mrf.mxu0
    %v720 = vadd.f32 0.0, %v719
    %721 = vdwg.mxu0
    %s722 = scalar_lea.vmem [#allocation4], 52
    %v723 = vld [vmem:[%s722] sm:$0xf]
    %v724 = vpack.c.bf16 %v720, %v718
    %v726 = vsel %vm241, %v723, 0
    %728 = vmatpush.bf16.msra.mxu0 0
    %729 = vmatpush.bf16.msra.mxu0 0
    %730 = vmatpush.bf16.msra.mxu0 0
    %731 = vmatpush.bf16.msra.mxu0 0
    %732 = vmatpush.bf16.msra.mxu0 0
    %733 = vmatpush.bf16.msra.mxu0 0
    %734 = vmatpush.bf16.msra.mxu0 0
    %735 = vmatpush.bf16.msra.mxu0 %v724
    %736 = vmatmul.bf16.gmra.mxu0 %v726
    %v737 = vpop.f32.mrf.mxu0
    %v738 = vadd.f32 0.0, %v737
    %v739 = vpop.f32.mrf.mxu0
    %740 = vdwg.mxu0
    %v741 = vadd.f32 %v702, %v738
    %s742 = scalar_lea.vmem [#allocation6], 56
    %v743 = vld [vmem:[%s742] sm:$0xf]
    %v745 = vsel %vm199, %v743, 0
    %747 = vmatpush.bf16.msra.mxu0 0
    %748 = vmatpush.bf16.msra.mxu0 0
    %749 = vmatpush.bf16.msra.mxu0 0
    %750 = vmatpush.bf16.msra.mxu0 0
    %751 = vmatpush.bf16.msra.mxu0 0
    %752 = vmatpush.bf16.msra.mxu0 0
    %753 = vmatpush.bf16.msra.mxu0 0
    %754 = vmatpush.bf16.msra.mxu0 %v745
    %755 = vmatmul.bf16.gmra.mxu0 %v197
    %v756 = vpop.f32.mrf.mxu0
    %v757 = vadd.f32 0.0, %v756
    %v758 = vpop.f32.mrf.mxu0
    %v759 = vadd.f32 0.0, %v758
    %760 = vdwg.mxu0
    %s761 = scalar_lea.vmem [#allocation4], 56
    %v762 = vld [vmem:[%s761] sm:$0xf]
    %v763 = vpack.c.bf16 %v759, %v757
    %v765 = vsel %vm241, %v762, 0
    %767 = vmatpush.bf16.msra.mxu0 0
    %768 = vmatpush.bf16.msra.mxu0 0
    %769 = vmatpush.bf16.msra.mxu0 0
    %770 = vmatpush.bf16.msra.mxu0 0
    %771 = vmatpush.bf16.msra.mxu0 0
    %772 = vmatpush.bf16.msra.mxu0 0
    %773 = vmatpush.bf16.msra.mxu0 0
    %774 = vmatpush.bf16.msra.mxu0 %v763
    %775 = vmatmul.bf16.gmra.mxu0 %v765
    %v776 = vpop.f32.mrf.mxu0
    %v777 = vadd.f32 0.0, %v776
    %v778 = vpop.f32.mrf.mxu0
    %779 = vdwg.mxu0
    %v780 = vadd.f32 %v741, %v777
    %s781 = scalar_lea.vmem [#allocation6], 60
    %v782 = vld [vmem:[%s781] sm:$0xf]
    %v784 = vsel %vm199, %v782, 0
    %786 = vmatpush.bf16.msra.mxu0 0
    %787 = vmatpush.bf16.msra.mxu0 0
    %788 = vmatpush.bf16.msra.mxu0 0
    %789 = vmatpush.bf16.msra.mxu0 0
    %790 = vmatpush.bf16.msra.mxu0 0
    %791 = vmatpush.bf16.msra.mxu0 0
    %792 = vmatpush.bf16.msra.mxu0 0
    %793 = vmatpush.bf16.msra.mxu0 %v784
    %794 = vmatmul.bf16.gmra.mxu0 %v197
    %v795 = vpop.f32.mrf.mxu0
    %v796 = vadd.f32 0.0, %v795
    %v797 = vpop.f32.mrf.mxu0
    %v798 = vadd.f32 0.0, %v797
    %799 = vdwg.mxu0
    %s800 = scalar_lea.vmem [#allocation4], 60
    %v801 = vld [vmem:[%s800] sm:$0xf]
    %v802 = vpack.c.bf16 %v798, %v796
    %v804 = vsel %vm241, %v801, 0
    %806 = vmatpush.bf16.msra.mxu0 0
    %807 = vmatpush.bf16.msra.mxu0 0
    %808 = vmatpush.bf16.msra.mxu0 0
    %809 = vmatpush.bf16.msra.mxu0 0
    %810 = vmatpush.bf16.msra.mxu0 0
    %811 = vmatpush.bf16.msra.mxu0 0
    %812 = vmatpush.bf16.msra.mxu0 0
    %813 = vmatpush.bf16.msra.mxu0 %v802
    %814 = vmatmul.bf16.gmra.mxu0 %v804
    %v815 = vpop.f32.mrf.mxu0
    %v816 = vadd.f32 0.0, %v815
    %v817 = vpop.f32.mrf.mxu0
    %818 = vdwg.mxu0
    %v819 = vadd.f32 %v780, %v816
    %vm820 = vcmask 261120
    %v821 = vsel %vm820, %v819, 0.0
    %822 = vadd.xlane.f32.xlu0 %v821
    %v823 = vpop.xlane.xlu0 %822
    %v824 = vmul.f32 %v823, 0.03125
    %v825 = vmul.f32 %v819, %v819
    %v826 = vsel %vm820, %v825, 0.0
    %827 = vadd.xlane.f32.xlu0 %v826
    %v828 = vpop.xlane.xlu0 %827
    %v829 = vmul.f32 %v828, 0.03125
    %v830 = vmul.f32 %v824, %v824
    %v831 = vsub.f32 %v829, %v830
    %v832 = vmax.f32 %v831, 0.0
    %v833 = vld [vmem:[%s4] sm:$0xff]
    %v834 = vadd.f32 %v832, 1e-05
    %v835 = vrsqrt.pop %v834
    %v836 = vmul.f32 %v835, %v834
    %v837 = vmul.f32 %v836, %v835
    %v838 = vmul.f32 0.5, %v837
    %v839 = vsub.f32 1.5, %v838
    %v840 = vmul.f32 %v835, %v839
    %vm841 = vweird.f32 %v834
    %vm842 = vweird.f32 %v835
    %vm843 = vmor %vm841, %vm842
    %v844 = vsel %vm843, %v835, %v840
    %v845 = vmul.f32 %v833, %v844
    %v846 = vld [vmem:[%s5] sm:$0xff]
    %v847 = vmul.f32 %v824, %v845
    %v848 = vsub.f32 %v846, %v847
    %850 = vset.pattern.permute.xlu0 0
    %851 = vperm.xlu0 %850, %v845
    %v852 = vpop.permute.xlu0 %851
    %v854 = vmul.f32 %v819, %v852
    %856 = vset.pattern.permute.xlu0 0
    %857 = vperm.xlu0 %856, %v848
    %v858 = vpop.permute.xlu0 %857
    %v860 = vadd.f32 %v854, %v858
    %v861 = vmax.f32 %v860, 0.0
    %v862 = vpack.c.bf16 %v861, %v861
    %v863 = vld [vmem:[#allocation7] sm:$0xf]
    %v864 = vld [vmem:[#allocation7 + $0x4] sm:$0xf]
    %v865 = vld [vmem:[#allocation7 + $0x8] sm:$0xf]
    %v866 = vld [vmem:[#allocation7 + $0xc] sm:$0xf]
    %v871 = vunpack.c.l.b16 %v863
    %v872 = vunpack.c.l.b16 %v864
    %v873 = vunpack.c.l.b16 %v865
    %v874 = vunpack.c.l.b16 %v866
    %v875 = vpack.c.b16 %v872, %v871
    %v876 = vpack.c.b16 %v874, %v873
    %v880 = vsel %vm820, %v862, 0
    %882 = vmatpush.bf16.msra.mxu0 0
    %883 = vmatpush.bf16.msra.mxu0 0
    %884 = vmatpush.bf16.msra.mxu0 0
    %885 = vmatpush.bf16.msra.mxu0 0
    %886 = vmatpush.bf16.msra.mxu0 0
    %887 = vmatpush.bf16.msra.mxu0 0
    %888 = vmatpush.bf16.msra.mxu0 %v876
    %889 = vmatpush.bf16.msra.mxu0 %v875
    %890 = vmatmul.bf16.gmra.mxu0 %v880
    %v891 = vpop.f32.mrf.mxu0
    %v892 = vadd.f32 0.0, %v891
    %v893 = vpop.f32.mrf.mxu0
    %894 = vdwg.mxu0
    %v895 = vld [vmem:[%s6] sm:$0x3]
    %v896 = vpack.c.bf16 %v892, %v892
    %s897 = scalar_lea.vmem [#allocation7], 16
    %v898 = vld [vmem:[%s897] sm:$0xf]
    %v899 = vld [vmem:[%s897 + $0x4] sm:$0xf]
    %v900 = vld [vmem:[%s897 + $0x8] sm:$0xf]
    %v901 = vld [vmem:[%s897 + $0xc] sm:$0xf]
    %v906 = vunpack.c.l.b16 %v898
    %v907 = vunpack.c.l.b16 %v899
    %v908 = vunpack.c.l.b16 %v900
    %v909 = vunpack.c.l.b16 %v901
    %v910 = vpack.c.b16 %v907, %v906
    %v911 = vpack.c.b16 %v909, %v908
    %914 = vmatpush.bf16.msra.mxu0 0
    %915 = vmatpush.bf16.msra.mxu0 0
    %916 = vmatpush.bf16.msra.mxu0 0
    %917 = vmatpush.bf16.msra.mxu0 0
    %918 = vmatpush.bf16.msra.mxu0 0
    %919 = vmatpush.bf16.msra.mxu0 0
    %920 = vmatpush.bf16.msra.mxu0 %v911
    %921 = vmatpush.bf16.msra.mxu0 %v910
    %922 = vmatmul.bf16.gmra.mxu0 %v880
    %v923 = vpop.f32.mrf.mxu0
    %v924 = vadd.f32 0.0, %v923
    %v925 = vpop.f32.mrf.mxu0
    %926 = vdwg.mxu0
    %s927 = scalar_lea.vmem %s6, 2
    %v928 = vld [vmem:[%s927] sm:$0x3]
    %v929 = vpack.c.bf16 %v924, %v924
    %v931 = vsel %vm195, %v928, 0
    %v934 = vsel %vm199, %v929, 0
    %936 = vmatpush.bf16.msra.mxu0 0
    %937 = vmatpush.bf16.msra.mxu0 0
    %938 = vmatpush.bf16.msra.mxu0 0
    %939 = vmatpush.bf16.msra.mxu0 0
    %940 = vmatpush.bf16.msra.mxu0 0
    %941 = vmatpush.bf16.msra.mxu0 0
    %942 = vmatpush.bf16.msra.mxu0 0
    %943 = vmatpush.bf16.msra.mxu0 %v934
    %944 = vmatmul.bf16.gmra.mxu0 %v931
    %v945 = vpop.f32.mrf.mxu0
    %v946 = vadd.f32 0.0, %v945
    %v947 = vpop.f32.mrf.mxu0
    %948 = vdwg.mxu0
    %v950 = vsel %vm195, %v895, 0
    %v953 = vsel %vm199, %v896, 0
    %955 = vmatpush.bf16.msra.mxu0 0
    %956 = vmatpush.bf16.msra.mxu0 0
    %957 = vmatpush.bf16.msra.mxu0 0
    %958 = vmatpush.bf16.msra.mxu0 0
    %959 = vmatpush.bf16.msra.mxu0 0
    %960 = vmatpush.bf16.msra.mxu0 0
    %961 = vmatpush.bf16.msra.mxu0 0
    %962 = vmatpush.bf16.msra.mxu0 %v953
    %963 = vmatmul.bf16.gmra.mxu0 %v950
    %v964 = vpop.f32.mrf.mxu0
    %v965 = vadd.f32 %v946, %v964
    %v966 = vpop.f32.mrf.mxu0
    %967 = vdwg.mxu0
    %s968 = scalar_lea.vmem [#allocation7], 32
    %v969 = vld [vmem:[%s968] sm:$0xf]
    %v970 = vld [vmem:[%s968 + $0x4] sm:$0xf]
    %v971 = vld [vmem:[%s968 + $0x8] sm:$0xf]
    %v972 = vld [vmem:[%s968 + $0xc] sm:$0xf]
    %v977 = vunpack.c.l.b16 %v969
    %v978 = vunpack.c.l.b16 %v970
    %v979 = vunpack.c.l.b16 %v971
    %v980 = vunpack.c.l.b16 %v972
    %v981 = vpack.c.b16 %v978, %v977
    %v982 = vpack.c.b16 %v980, %v979
    %985 = vmatpush.bf16.msra.mxu0 0
    %986 = vmatpush.bf16.msra.mxu0 0
    %987 = vmatpush.bf16.msra.mxu0 0
    %988 = vmatpush.bf16.msra.mxu0 0
    %989 = vmatpush.bf16.msra.mxu0 0
    %990 = vmatpush.bf16.msra.mxu0 0
    %991 = vmatpush.bf16.msra.mxu0 %v982
    %992 = vmatpush.bf16.msra.mxu0 %v981
    %993 = vmatmul.bf16.gmra.mxu0 %v880
    %v994 = vpop.f32.mrf.mxu0
    %v995 = vadd.f32 0.0, %v994
    %v996 = vpop.f32.mrf.mxu0
    %997 = vdwg.mxu0
    %s998 = scalar_lea.vmem %s6, 4
    %v999 = vld [vmem:[%s998] sm:$0x3]
    %v1000 = vpack.c.bf16 %v995, %v995
    %v1002 = vsel %vm195, %v999, 0
    %v1005 = vsel %vm199, %v1000, 0
    %1007 = vmatpush.bf16.msra.mxu0 0
    %1008 = vmatpush.bf16.msra.mxu0 0
    %1009 = vmatpush.bf16.msra.mxu0 0
    %1010 = vmatpush.bf16.msra.mxu0 0
    %1011 = vmatpush.bf16.msra.mxu0 0
    %1012 = vmatpush.bf16.msra.mxu0 0
    %1013 = vmatpush.bf16.msra.mxu0 0
    %1014 = vmatpush.bf16.msra.mxu0 %v1005
    %1015 = vmatmul.bf16.gmra.mxu0 %v1002
    %v1016 = vpop.f32.mrf.mxu0
    %v1017 = vadd.f32 0.0, %v1016
    %v1018 = vpop.f32.mrf.mxu0
    %1019 = vdwg.mxu0
    %v1020 = vadd.f32 %v965, %v1017
    %s1021 = scalar_lea.vmem [#allocation7], 48
    %v1022 = vld [vmem:[%s1021] sm:$0xf]
    %v1023 = vld [vmem:[%s1021 + $0x4] sm:$0xf]
    %v1024 = vld [vmem:[%s1021 + $0x8] sm:$0xf]
    %v1025 = vld [vmem:[%s1021 + $0xc] sm:$0xf]
    %v1030 = vunpack.c.l.b16 %v1022
    %v1031 = vunpack.c.l.b16 %v1023
    %v1032 = vunpack.c.l.b16 %v1024
    %v1033 = vunpack.c.l.b16 %v1025
    %v1034 = vpack.c.b16 %v1031, %v1030
    %v1035 = vpack.c.b16 %v1033, %v1032
    %1038 = vmatpush.bf16.msra.mxu0 0
    %1039 = vmatpush.bf16.msra.mxu0 0
    %1040 = vmatpush.bf16.msra.mxu0 0
    %1041 = vmatpush.bf16.msra.mxu0 0
    %1042 = vmatpush.bf16.msra.mxu0 0
    %1043 = vmatpush.bf16.msra.mxu0 0
    %1044 = vmatpush.bf16.msra.mxu0 %v1035
    %1045 = vmatpush.bf16.msra.mxu0 %v1034
    %1046 = vmatmul.bf16.gmra.mxu0 %v880
    %v1047 = vpop.f32.mrf.mxu0
    %v1048 = vadd.f32 0.0, %v1047
    %v1049 = vpop.f32.mrf.mxu0
    %1050 = vdwg.mxu0
    %s1051 = scalar_lea.vmem %s6, 6
    %v1052 = vld [vmem:[%s1051] sm:$0x3]
    %v1053 = vpack.c.bf16 %v1048, %v1048
    %v1055 = vsel %vm195, %v1052, 0
    %v1058 = vsel %vm199, %v1053, 0
    %1060 = vmatpush.bf16.msra.mxu0 0
    %1061 = vmatpush.bf16.msra.mxu0 0
    %1062 = vmatpush.bf16.msra.mxu0 0
    %1063 = vmatpush.bf16.msra.mxu0 0
    %1064 = vmatpush.bf16.msra.mxu0 0
    %1065 = vmatpush.bf16.msra.mxu0 0
    %1066 = vmatpush.bf16.msra.mxu0 0
    %1067 = vmatpush.bf16.msra.mxu0 %v1058
    %1068 = vmatmul.bf16.gmra.mxu0 %v1055
    %v1069 = vpop.f32.mrf.mxu0
    %v1070 = vadd.f32 0.0, %v1069
    %v1071 = vpop.f32.mrf.mxu0
    %1072 = vdwg.mxu0
    %v1073 = vadd.f32 %v1020, %v1070
    %s1074 = scalar_lea.vmem [#allocation7], 64
    %v1075 = vld [vmem:[%s1074] sm:$0xf]
    %v1076 = vld [vmem:[%s1074 + $0x4] sm:$0xf]
    %v1077 = vld [vmem:[%s1074 + $0x8] sm:$0xf]
    %v1078 = vld [vmem:[%s1074 + $0xc] sm:$0xf]
    %v1083 = vunpack.c.l.b16 %v1075
    %v1084 = vunpack.c.l.b16 %v1076
    %v1085 = vunpack.c.l.b16 %v1077
    %v1086 = vunpack.c.l.b16 %v1078
    %v1087 = vpack.c.b16 %v1084, %v1083
    %v1088 = vpack.c.b16 %v1086, %v1085
    %1091 = vmatpush.bf16.msra.mxu0 0
    %1092 = vmatpush.bf16.msra.mxu0 0
    %1093 = vmatpush.bf16.msra.mxu0 0
    %1094 = vmatpush.bf16.msra.mxu0 0
    %1095 = vmatpush.bf16.msra.mxu0 0
    %1096 = vmatpush.bf16.msra.mxu0 0
    %1097 = vmatpush.bf16.msra.mxu0 %v1088
    %1098 = vmatpush.bf16.msra.mxu0 %v1087
    %1099 = vmatmul.bf16.gmra.mxu0 %v880
    %v1100 = vpop.f32.mrf.mxu0
    %v1101 = vadd.f32 0.0, %v1100
    %v1102 = vpop.f32.mrf.mxu0
    %1103 = vdwg.mxu0
    %s1104 = scalar_lea.vmem %s6, 8
    %v1105 = vld [vmem:[%s1104] sm:$0x3]
    %v1106 = vpack.c.bf16 %v1101, %v1101
    %v1108 = vsel %vm195, %v1105, 0
    %v1111 = vsel %vm199, %v1106, 0
    %1113 = vmatpush.bf16.msra.mxu0 0
    %1114 = vmatpush.bf16.msra.mxu0 0
    %1115 = vmatpush.bf16.msra.mxu0 0
    %1116 = vmatpush.bf16.msra.mxu0 0
    %1117 = vmatpush.bf16.msra.mxu0 0
    %1118 = vmatpush.bf16.msra.mxu0 0
    %1119 = vmatpush.bf16.msra.mxu0 0
    %1120 = vmatpush.bf16.msra.mxu0 %v1111
    %1121 = vmatmul.bf16.gmra.mxu0 %v1108
    %v1122 = vpop.f32.mrf.mxu0
    %v1123 = vadd.f32 0.0, %v1122
    %v1124 = vpop.f32.mrf.mxu0
    %1125 = vdwg.mxu0
    %v1126 = vadd.f32 %v1073, %v1123
    %s1127 = scalar_lea.vmem [#allocation7], 80
    %v1128 = vld [vmem:[%s1127] sm:$0xf]
    %v1129 = vld [vmem:[%s1127 + $0x4] sm:$0xf]
    %v1130 = vld [vmem:[%s1127 + $0x8] sm:$0xf]
    %v1131 = vld [vmem:[%s1127 + $0xc] sm:$0xf]
    %v1136 = vunpack.c.l.b16 %v1128
    %v1137 = vunpack.c.l.b16 %v1129
    %v1138 = vunpack.c.l.b16 %v1130
    %v1139 = vunpack.c.l.b16 %v1131
    %v1140 = vpack.c.b16 %v1137, %v1136
    %v1141 = vpack.c.b16 %v1139, %v1138
    %1144 = vmatpush.bf16.msra.mxu0 0
    %1145 = vmatpush.bf16.msra.mxu0 0
    %1146 = vmatpush.bf16.msra.mxu0 0
    %1147 = vmatpush.bf16.msra.mxu0 0
    %1148 = vmatpush.bf16.msra.mxu0 0
    %1149 = vmatpush.bf16.msra.mxu0 0
    %1150 = vmatpush.bf16.msra.mxu0 %v1141
    %1151 = vmatpush.bf16.msra.mxu0 %v1140
    %1152 = vmatmul.bf16.gmra.mxu0 %v880
    %v1153 = vpop.f32.mrf.mxu0
    %v1154 = vadd.f32 0.0, %v1153
    %v1155 = vpop.f32.mrf.mxu0
    %1156 = vdwg.mxu0
    %s1157 = scalar_lea.vmem %s6, 10
    %v1158 = vld [vmem:[%s1157] sm:$0x3]
    %v1159 = vpack.c.bf16 %v1154, %v1154
    %v1161 = vsel %vm195, %v1158, 0
    %v1164 = vsel %vm199, %v1159, 0
    %1166 = vmatpush.bf16.msra.mxu0 0
    %1167 = vmatpush.bf16.msra.mxu0 0
    %1168 = vmatpush.bf16.msra.mxu0 0
    %1169 = vmatpush.bf16.msra.mxu0 0
    %1170 = vmatpush.bf16.msra.mxu0 0
    %1171 = vmatpush.bf16.msra.mxu0 0
    %1172 = vmatpush.bf16.msra.mxu0 0
    %1173 = vmatpush.bf16.msra.mxu0 %v1164
    %1174 = vmatmul.bf16.gmra.mxu0 %v1161
    %v1175 = vpop.f32.mrf.mxu0
    %v1176 = vadd.f32 0.0, %v1175
    %v1177 = vpop.f32.mrf.mxu0
    %1178 = vdwg.mxu0
    %v1179 = vadd.f32 %v1126, %v1176
    %s1180 = scalar_lea.vmem [#allocation7], 96
    %v1181 = vld [vmem:[%s1180] sm:$0xf]
    %v1182 = vld [vmem:[%s1180 + $0x4] sm:$0xf]
    %v1183 = vld [vmem:[%s1180 + $0x8] sm:$0xf]
    %v1184 = vld [vmem:[%s1180 + $0xc] sm:$0xf]
    %v1189 = vunpack.c.l.b16 %v1181
    %v1190 = vunpack.c.l.b16 %v1182
    %v1191 = vunpack.c.l.b16 %v1183
    %v1192 = vunpack.c.l.b16 %v1184
    %v1193 = vpack.c.b16 %v1190, %v1189
    %v1194 = vpack.c.b16 %v1192, %v1191
    %1197 = vmatpush.bf16.msra.mxu0 0
    %1198 = vmatpush.bf16.msra.mxu0 0
    %1199 = vmatpush.bf16.msra.mxu0 0
    %1200 = vmatpush.bf16.msra.mxu0 0
    %1201 = vmatpush.bf16.msra.mxu0 0
    %1202 = vmatpush.bf16.msra.mxu0 0
    %1203 = vmatpush.bf16.msra.mxu0 %v1194
    %1204 = vmatpush.bf16.msra.mxu0 %v1193
    %1205 = vmatmul.bf16.gmra.mxu0 %v880
    %v1206 = vpop.f32.mrf.mxu0
    %v1207 = vadd.f32 0.0, %v1206
    %v1208 = vpop.f32.mrf.mxu0
    %1209 = vdwg.mxu0
    %s1210 = scalar_lea.vmem %s6, 12
    %v1211 = vld [vmem:[%s1210] sm:$0x3]
    %v1212 = vpack.c.bf16 %v1207, %v1207
    %v1214 = vsel %vm195, %v1211, 0
    %v1217 = vsel %vm199, %v1212, 0
    %1219 = vmatpush.bf16.msra.mxu0 0
    %1220 = vmatpush.bf16.msra.mxu0 0
    %1221 = vmatpush.bf16.msra.mxu0 0
    %1222 = vmatpush.bf16.msra.mxu0 0
    %1223 = vmatpush.bf16.msra.mxu0 0
    %1224 = vmatpush.bf16.msra.mxu0 0
    %1225 = vmatpush.bf16.msra.mxu0 0
    %1226 = vmatpush.bf16.msra.mxu0 %v1217
    %1227 = vmatmul.bf16.gmra.mxu0 %v1214
    %v1228 = vpop.f32.mrf.mxu0
    %v1229 = vadd.f32 0.0, %v1228
    %v1230 = vpop.f32.mrf.mxu0
    %1231 = vdwg.mxu0
    %v1232 = vadd.f32 %v1179, %v1229
    %s1233 = scalar_lea.vmem [#allocation7], 112
    %v1234 = vld [vmem:[%s1233] sm:$0xf]
    %v1235 = vld [vmem:[%s1233 + $0x4] sm:$0xf]
    %v1236 = vld [vmem:[%s1233 + $0x8] sm:$0xf]
    %v1237 = vld [vmem:[%s1233 + $0xc] sm:$0xf]
    %v1242 = vunpack.c.l.b16 %v1234
    %v1243 = vunpack.c.l.b16 %v1235
    %v1244 = vunpack.c.l.b16 %v1236
    %v1245 = vunpack.c.l.b16 %v1237
    %v1246 = vpack.c.b16 %v1243, %v1242
    %v1247 = vpack.c.b16 %v1245, %v1244
    %1250 = vmatpush.bf16.msra.mxu0 0
    %1251 = vmatpush.bf16.msra.mxu0 0
    %1252 = vmatpush.bf16.msra.mxu0 0
    %1253 = vmatpush.bf16.msra.mxu0 0
    %1254 = vmatpush.bf16.msra.mxu0 0
    %1255 = vmatpush.bf16.msra.mxu0 0
    %1256 = vmatpush.bf16.msra.mxu0 %v1247
    %1257 = vmatpush.bf16.msra.mxu0 %v1246
    %1258 = vmatmul.bf16.gmra.mxu0 %v880
    %v1259 = vpop.f32.mrf.mxu0
    %v1260 = vadd.f32 0.0, %v1259
    %v1261 = vpop.f32.mrf.mxu0
    %1262 = vdwg.mxu0
    %s1263 = scalar_lea.vmem %s6, 14
    %v1264 = vld [vmem:[%s1263] sm:$0x3]
    %v1265 = vpack.c.bf16 %v1260, %v1260
    %v1267 = vsel %vm195, %v1264, 0
    %v1270 = vsel %vm199, %v1265, 0
    %1272 = vmatpush.bf16.msra.mxu0 0
    %1273 = vmatpush.bf16.msra.mxu0 0
    %1274 = vmatpush.bf16.msra.mxu0 0
    %1275 = vmatpush.bf16.msra.mxu0 0
    %1276 = vmatpush.bf16.msra.mxu0 0
    %1277 = vmatpush.bf16.msra.mxu0 0
    %1278 = vmatpush.bf16.msra.mxu0 0
    %1279 = vmatpush.bf16.msra.mxu0 %v1270
    %1280 = vmatmul.bf16.gmra.mxu0 %v1267
    %v1281 = vpop.f32.mrf.mxu0
    %v1282 = vadd.f32 0.0, %v1281
    %v1283 = vpop.f32.mrf.mxu0
    %1284 = vdwg.mxu0
    %v1285 = vadd.f32 %v1232, %v1282
    %s1286 = scalar_lea.vmem [#allocation7], 128
    %v1287 = vld [vmem:[%s1286] sm:$0xf]
    %v1288 = vld [vmem:[%s1286 + $0x4] sm:$0xf]
    %v1289 = vld [vmem:[%s1286 + $0x8] sm:$0xf]
    %v1290 = vld [vmem:[%s1286 + $0xc] sm:$0xf]
    %v1295 = vunpack.c.l.b16 %v1287
    %v1296 = vunpack.c.l.b16 %v1288
    %v1297 = vunpack.c.l.b16 %v1289
    %v1298 = vunpack.c.l.b16 %v1290
    %v1299 = vpack.c.b16 %v1296, %v1295
    %v1300 = vpack.c.b16 %v1298, %v1297
    %1303 = vmatpush.bf16.msra.mxu0 0
    %1304 = vmatpush.bf16.msra.mxu0 0
    %1305 = vmatpush.bf16.msra.mxu0 0
    %1306 = vmatpush.bf16.msra.mxu0 0
    %1307 = vmatpush.bf16.msra.mxu0 0
    %1308 = vmatpush.bf16.msra.mxu0 0
    %1309 = vmatpush.bf16.msra.mxu0 %v1300
    %1310 = vmatpush.bf16.msra.mxu0 %v1299
    %1311 = vmatmul.bf16.gmra.mxu0 %v880
    %v1312 = vpop.f32.mrf.mxu0
    %v1313 = vadd.f32 0.0, %v1312
    %v1314 = vpop.f32.mrf.mxu0
    %1315 = vdwg.mxu0
    %s1316 = scalar_lea.vmem %s6, 16
    %v1317 = vld [vmem:[%s1316] sm:$0x3]
    %v1318 = vpack.c.bf16 %v1313, %v1313
    %v1320 = vsel %vm195, %v1317, 0
    %v1323 = vsel %vm199, %v1318, 0
    %1325 = vmatpush.bf16.msra.mxu0 0
    %1326 = vmatpush.bf16.msra.mxu0 0
    %1327 = vmatpush.bf16.msra.mxu0 0
    %1328 = vmatpush.bf16.msra.mxu0 0
    %1329 = vmatpush.bf16.msra.mxu0 0
    %1330 = vmatpush.bf16.msra.mxu0 0
    %1331 = vmatpush.bf16.msra.mxu0 0
    %1332 = vmatpush.bf16.msra.mxu0 %v1323
    %1333 = vmatmul.bf16.gmra.mxu0 %v1320
    %v1334 = vpop.f32.mrf.mxu0
    %v1335 = vadd.f32 0.0, %v1334
    %v1336 = vpop.f32.mrf.mxu0
    %1337 = vdwg.mxu0
    %v1338 = vadd.f32 %v1285, %v1335
    %s1339 = scalar_lea.vmem [#allocation7], 144
    %v1340 = vld [vmem:[%s1339] sm:$0xf]
    %v1341 = vld [vmem:[%s1339 + $0x4] sm:$0xf]
    %v1342 = vld [vmem:[%s1339 + $0x8] sm:$0xf]
    %v1343 = vld [vmem:[%s1339 + $0xc] sm:$0xf]
    %v1348 = vunpack.c.l.b16 %v1340
    %v1349 = vunpack.c.l.b16 %v1341
    %v1350 = vunpack.c.l.b16 %v1342
    %v1351 = vunpack.c.l.b16 %v1343
    %v1352 = vpack.c.b16 %v1349, %v1348
    %v1353 = vpack.c.b16 %v1351, %v1350
    %1356 = vmatpush.bf16.msra.mxu0 0
    %1357 = vmatpush.bf16.msra.mxu0 0
    %1358 = vmatpush.bf16.msra.mxu0 0
    %1359 = vmatpush.bf16.msra.mxu0 0
    %1360 = vmatpush.bf16.msra.mxu0 0
    %1361 = vmatpush.bf16.msra.mxu0 0
    %1362 = vmatpush.bf16.msra.mxu0 %v1353
    %1363 = vmatpush.bf16.msra.mxu0 %v1352
    %1364 = vmatmul.bf16.gmra.mxu0 %v880
    %v1365 = vpop.f32.mrf.mxu0
    %v1366 = vadd.f32 0.0, %v1365
    %v1367 = vpop.f32.mrf.mxu0
    %1368 = vdwg.mxu0
    %s1369 = scalar_lea.vmem %s6, 18
    %v1370 = vld [vmem:[%s1369] sm:$0x3]
    %v1371 = vpack.c.bf16 %v1366, %v1366
    %v1373 = vsel %vm195, %v1370, 0
    %v1376 = vsel %vm199, %v1371, 0
    %1378 = vmatpush.bf16.msra.mxu0 0
    %1379 = vmatpush.bf16.msra.mxu0 0
    %1380 = vmatpush.bf16.msra.mxu0 0
    %1381 = vmatpush.bf16.msra.mxu0 0
    %1382 = vmatpush.bf16.msra.mxu0 0
    %1383 = vmatpush.bf16.msra.mxu0 0
    %1384 = vmatpush.bf16.msra.mxu0 0
    %1385 = vmatpush.bf16.msra.mxu0 %v1376
    %1386 = vmatmul.bf16.gmra.mxu0 %v1373
    %v1387 = vpop.f32.mrf.mxu0
    %v1388 = vadd.f32 0.0, %v1387
    %v1389 = vpop.f32.mrf.mxu0
    %1390 = vdwg.mxu0
    %v1391 = vadd.f32 %v1338, %v1388
    %s1392 = scalar_lea.vmem [#allocation7], 160
    %v1393 = vld [vmem:[%s1392] sm:$0xf]
    %v1394 = vld [vmem:[%s1392 + $0x4] sm:$0xf]
    %v1395 = vld [vmem:[%s1392 + $0x8] sm:$0xf]
    %v1396 = vld [vmem:[%s1392 + $0xc] sm:$0xf]
    %v1401 = vunpack.c.l.b16 %v1393
    %v1402 = vunpack.c.l.b16 %v1394
    %v1403 = vunpack.c.l.b16 %v1395
    %v1404 = vunpack.c.l.b16 %v1396
    %v1405 = vpack.c.b16 %v1402, %v1401
    %v1406 = vpack.c.b16 %v1404, %v1403
    %1409 = vmatpush.bf16.msra.mxu0 0
    %1410 = vmatpush.bf16.msra.mxu0 0
    %1411 = vmatpush.bf16.msra.mxu0 0
    %1412 = vmatpush.bf16.msra.mxu0 0
    %1413 = vmatpush.bf16.msra.mxu0 0
    %1414 = vmatpush.bf16.msra.mxu0 0
    %1415 = vmatpush.bf16.msra.mxu0 %v1406
    %1416 = vmatpush.bf16.msra.mxu0 %v1405
    %1417 = vmatmul.bf16.gmra.mxu0 %v880
    %v1418 = vpop.f32.mrf.mxu0
    %v1419 = vadd.f32 0.0, %v1418
    %v1420 = vpop.f32.mrf.mxu0
    %1421 = vdwg.mxu0
    %s1422 = scalar_lea.vmem %s6, 20
    %v1423 = vld [vmem:[%s1422] sm:$0x3]
    %v1424 = vpack.c.bf16 %v1419, %v1419
    %v1426 = vsel %vm195, %v1423, 0
    %v1429 = vsel %vm199, %v1424, 0
    %1431 = vmatpush.bf16.msra.mxu0 0
    %1432 = vmatpush.bf16.msra.mxu0 0
    %1433 = vmatpush.bf16.msra.mxu0 0
    %1434 = vmatpush.bf16.msra.mxu0 0
    %1435 = vmatpush.bf16.msra.mxu0 0
    %1436 = vmatpush.bf16.msra.mxu0 0
    %1437 = vmatpush.bf16.msra.mxu0 0
    %1438 = vmatpush.bf16.msra.mxu0 %v1429
    %1439 = vmatmul.bf16.gmra.mxu0 %v1426
    %v1440 = vpop.f32.mrf.mxu0
    %v1441 = vadd.f32 0.0, %v1440
    %v1442 = vpop.f32.mrf.mxu0
    %1443 = vdwg.mxu0
    %v1444 = vadd.f32 %v1391, %v1441
    %s1445 = scalar_lea.vmem [#allocation7], 176
    %v1446 = vld [vmem:[%s1445] sm:$0xf]
    %v1447 = vld [vmem:[%s1445 + $0x4] sm:$0xf]
    %v1448 = vld [vmem:[%s1445 + $0x8] sm:$0xf]
    %v1449 = vld [vmem:[%s1445 + $0xc] sm:$0xf]
    %v1454 = vunpack.c.l.b16 %v1446
    %v1455 = vunpack.c.l.b16 %v1447
    %v1456 = vunpack.c.l.b16 %v1448
    %v1457 = vunpack.c.l.b16 %v1449
    %v1458 = vpack.c.b16 %v1455, %v1454
    %v1459 = vpack.c.b16 %v1457, %v1456
    %1462 = vmatpush.bf16.msra.mxu0 0
    %1463 = vmatpush.bf16.msra.mxu0 0
    %1464 = vmatpush.bf16.msra.mxu0 0
    %1465 = vmatpush.bf16.msra.mxu0 0
    %1466 = vmatpush.bf16.msra.mxu0 0
    %1467 = vmatpush.bf16.msra.mxu0 0
    %1468 = vmatpush.bf16.msra.mxu0 %v1459
    %1469 = vmatpush.bf16.msra.mxu0 %v1458
    %1470 = vmatmul.bf16.gmra.mxu0 %v880
    %v1471 = vpop.f32.mrf.mxu0
    %v1472 = vadd.f32 0.0, %v1471
    %v1473 = vpop.f32.mrf.mxu0
    %1474 = vdwg.mxu0
    %s1475 = scalar_lea.vmem %s6, 22
    %v1476 = vld [vmem:[%s1475] sm:$0x3]
    %v1477 = vpack.c.bf16 %v1472, %v1472
    %v1479 = vsel %vm195, %v1476, 0
    %v1482 = vsel %vm199, %v1477, 0
    %1484 = vmatpush.bf16.msra.mxu0 0
    %1485 = vmatpush.bf16.msra.mxu0 0
    %1486 = vmatpush.bf16.msra.mxu0 0
    %1487 = vmatpush.bf16.msra.mxu0 0
    %1488 = vmatpush.bf16.msra.mxu0 0
    %1489 = vmatpush.bf16.msra.mxu0 0
    %1490 = vmatpush.bf16.msra.mxu0 0
    %1491 = vmatpush.bf16.msra.mxu0 %v1482
    %1492 = vmatmul.bf16.gmra.mxu0 %v1479
    %v1493 = vpop.f32.mrf.mxu0
    %v1494 = vadd.f32 0.0, %v1493
    %v1495 = vpop.f32.mrf.mxu0
    %1496 = vdwg.mxu0
    %v1497 = vadd.f32 %v1444, %v1494
    %s1498 = scalar_lea.vmem [#allocation7], 192
    %v1499 = vld [vmem:[%s1498] sm:$0xf]
    %v1500 = vld [vmem:[%s1498 + $0x4] sm:$0xf]
    %v1501 = vld [vmem:[%s1498 + $0x8] sm:$0xf]
    %v1502 = vld [vmem:[%s1498 + $0xc] sm:$0xf]
    %v1507 = vunpack.c.l.b16 %v1499
    %v1508 = vunpack.c.l.b16 %v1500
    %v1509 = vunpack.c.l.b16 %v1501
    %v1510 = vunpack.c.l.b16 %v1502
    %v1511 = vpack.c.b16 %v1508, %v1507
    %v1512 = vpack.c.b16 %v1510, %v1509
    %1515 = vmatpush.bf16.msra.mxu0 0
    %1516 = vmatpush.bf16.msra.mxu0 0
    %1517 = vmatpush.bf16.msra.mxu0 0
    %1518 = vmatpush.bf16.msra.mxu0 0
    %1519 = vmatpush.bf16.msra.mxu0 0
    %1520 = vmatpush.bf16.msra.mxu0 0
    %1521 = vmatpush.bf16.msra.mxu0 %v1512
    %1522 = vmatpush.bf16.msra.mxu0 %v1511
    %1523 = vmatmul.bf16.gmra.mxu0 %v880
    %v1524 = vpop.f32.mrf.mxu0
    %v1525 = vadd.f32 0.0, %v1524
    %v1526 = vpop.f32.mrf.mxu0
    %1527 = vdwg.mxu0
    %s1528 = scalar_lea.vmem %s6, 24
    %v1529 = vld [vmem:[%s1528] sm:$0x3]
    %v1530 = vpack.c.bf16 %v1525, %v1525
    %v1532 = vsel %vm195, %v1529, 0
    %v1535 = vsel %vm199, %v1530, 0
    %1537 = vmatpush.bf16.msra.mxu0 0
    %1538 = vmatpush.bf16.msra.mxu0 0
    %1539 = vmatpush.bf16.msra.mxu0 0
    %1540 = vmatpush.bf16.msra.mxu0 0
    %1541 = vmatpush.bf16.msra.mxu0 0
    %1542 = vmatpush.bf16.msra.mxu0 0
    %1543 = vmatpush.bf16.msra.mxu0 0
    %1544 = vmatpush.bf16.msra.mxu0 %v1535
    %1545 = vmatmul.bf16.gmra.mxu0 %v1532
    %v1546 = vpop.f32.mrf.mxu0
    %v1547 = vadd.f32 0.0, %v1546
    %v1548 = vpop.f32.mrf.mxu0
    %1549 = vdwg.mxu0
    %v1550 = vadd.f32 %v1497, %v1547
    %s1551 = scalar_lea.vmem [#allocation7], 208
    %v1552 = vld [vmem:[%s1551] sm:$0xf]
    %v1553 = vld [vmem:[%s1551 + $0x4] sm:$0xf]
    %v1554 = vld [vmem:[%s1551 + $0x8] sm:$0xf]
    %v1555 = vld [vmem:[%s1551 + $0xc] sm:$0xf]
    %v1560 = vunpack.c.l.b16 %v1552
    %v1561 = vunpack.c.l.b16 %v1553
    %v1562 = vunpack.c.l.b16 %v1554
    %v1563 = vunpack.c.l.b16 %v1555
    %v1564 = vpack.c.b16 %v1561, %v1560
    %v1565 = vpack.c.b16 %v1563, %v1562
    %1568 = vmatpush.bf16.msra.mxu0 0
    %1569 = vmatpush.bf16.msra.mxu0 0
    %1570 = vmatpush.bf16.msra.mxu0 0
    %1571 = vmatpush.bf16.msra.mxu0 0
    %1572 = vmatpush.bf16.msra.mxu0 0
    %1573 = vmatpush.bf16.msra.mxu0 0
    %1574 = vmatpush.bf16.msra.mxu0 %v1565
    %1575 = vmatpush.bf16.msra.mxu0 %v1564
    %1576 = vmatmul.bf16.gmra.mxu0 %v880
    %v1577 = vpop.f32.mrf.mxu0
    %v1578 = vadd.f32 0.0, %v1577
    %v1579 = vpop.f32.mrf.mxu0
    %1580 = vdwg.mxu0
    %s1581 = scalar_lea.vmem %s6, 26
    %v1582 = vld [vmem:[%s1581] sm:$0x3]
    %v1583 = vpack.c.bf16 %v1578, %v1578
    %v1585 = vsel %vm195, %v1582, 0
    %v1588 = vsel %vm199, %v1583, 0
    %1590 = vmatpush.bf16.msra.mxu0 0
    %1591 = vmatpush.bf16.msra.mxu0 0
    %1592 = vmatpush.bf16.msra.mxu0 0
    %1593 = vmatpush.bf16.msra.mxu0 0
    %1594 = vmatpush.bf16.msra.mxu0 0
    %1595 = vmatpush.bf16.msra.mxu0 0
    %1596 = vmatpush.bf16.msra.mxu0 0
    %1597 = vmatpush.bf16.msra.mxu0 %v1588
    %1598 = vmatmul.bf16.gmra.mxu0 %v1585
    %v1599 = vpop.f32.mrf.mxu0
    %v1600 = vadd.f32 0.0, %v1599
    %v1601 = vpop.f32.mrf.mxu0
    %1602 = vdwg.mxu0
    %v1603 = vadd.f32 %v1550, %v1600
    %s1604 = scalar_lea.vmem [#allocation7], 224
    %v1605 = vld [vmem:[%s1604] sm:$0xf]
    %v1606 = vld [vmem:[%s1604 + $0x4] sm:$0xf]
    %v1607 = vld [vmem:[%s1604 + $0x8] sm:$0xf]
    %v1608 = vld [vmem:[%s1604 + $0xc] sm:$0xf]
    %v1613 = vunpack.c.l.b16 %v1605
    %v1614 = vunpack.c.l.b16 %v1606
    %v1615 = vunpack.c.l.b16 %v1607
    %v1616 = vunpack.c.l.b16 %v1608
    %v1617 = vpack.c.b16 %v1614, %v1613
    %v1618 = vpack.c.b16 %v1616, %v1615
    %1621 = vmatpush.bf16.msra.mxu0 0
    %1622 = vmatpush.bf16.msra.mxu0 0
    %1623 = vmatpush.bf16.msra.mxu0 0
    %1624 = vmatpush.bf16.msra.mxu0 0
    %1625 = vmatpush.bf16.msra.mxu0 0
    %1626 = vmatpush.bf16.msra.mxu0 0
    %1627 = vmatpush.bf16.msra.mxu0 %v1618
    %1628 = vmatpush.bf16.msra.mxu0 %v1617
    %1629 = vmatmul.bf16.gmra.mxu0 %v880
    %v1630 = vpop.f32.mrf.mxu0
    %v1631 = vadd.f32 0.0, %v1630
    %v1632 = vpop.f32.mrf.mxu0
    %1633 = vdwg.mxu0
    %s1634 = scalar_lea.vmem %s6, 28
    %v1635 = vld [vmem:[%s1634] sm:$0x3]
    %v1636 = vpack.c.bf16 %v1631, %v1631
    %v1638 = vsel %vm195, %v1635, 0
    %v1641 = vsel %vm199, %v1636, 0
    %1643 = vmatpush.bf16.msra.mxu0 0
    %1644 = vmatpush.bf16.msra.mxu0 0
    %1645 = vmatpush.bf16.msra.mxu0 0
    %1646 = vmatpush.bf16.msra.mxu0 0
    %1647 = vmatpush.bf16.msra.mxu0 0
    %1648 = vmatpush.bf16.msra.mxu0 0
    %1649 = vmatpush.bf16.msra.mxu0 0
    %1650 = vmatpush.bf16.msra.mxu0 %v1641
    %1651 = vmatmul.bf16.gmra.mxu0 %v1638
    %v1652 = vpop.f32.mrf.mxu0
    %v1653 = vadd.f32 0.0, %v1652
    %v1654 = vpop.f32.mrf.mxu0
    %1655 = vdwg.mxu0
    %v1656 = vadd.f32 %v1603, %v1653
    %s1657 = scalar_lea.vmem [#allocation7], 240
    %v1658 = vld [vmem:[%s1657] sm:$0xf]
    %v1659 = vld [vmem:[%s1657 + $0x4] sm:$0xf]
    %v1660 = vld [vmem:[%s1657 + $0x8] sm:$0xf]
    %v1661 = vld [vmem:[%s1657 + $0xc] sm:$0xf]
    %v1666 = vunpack.c.l.b16 %v1658
    %v1667 = vunpack.c.l.b16 %v1659
    %v1668 = vunpack.c.l.b16 %v1660
    %v1669 = vunpack.c.l.b16 %v1661
    %v1670 = vpack.c.b16 %v1667, %v1666
    %v1671 = vpack.c.b16 %v1669, %v1668
    %1674 = vmatpush.bf16.msra.mxu0 0
    %1675 = vmatpush.bf16.msra.mxu0 0
    %1676 = vmatpush.bf16.msra.mxu0 0
    %1677 = vmatpush.bf16.msra.mxu0 0
    %1678 = vmatpush.bf16.msra.mxu0 0
    %1679 = vmatpush.bf16.msra.mxu0 0
    %1680 = vmatpush.bf16.msra.mxu0 %v1671
    %1681 = vmatpush.bf16.msra.mxu0 %v1670
    %1682 = vmatmul.bf16.gmra.mxu0 %v880
    %v1683 = vpop.f32.mrf.mxu0
    %v1684 = vadd.f32 0.0, %v1683
    %v1685 = vpop.f32.mrf.mxu0
    %1686 = vdwg.mxu0
    %s1687 = scalar_lea.vmem %s6, 30
    %v1688 = vld [vmem:[%s1687] sm:$0x3]
    %v1689 = vpack.c.bf16 %v1684, %v1684
    %v1691 = vsel %vm195, %v1688, 0
    %v1694 = vsel %vm199, %v1689, 0
    %1696 = vmatpush.bf16.msra.mxu0 0
    %1697 = vmatpush.bf16.msra.mxu0 0
    %1698 = vmatpush.bf16.msra.mxu0 0
    %1699 = vmatpush.bf16.msra.mxu0 0
    %1700 = vmatpush.bf16.msra.mxu0 0
    %1701 = vmatpush.bf16.msra.mxu0 0
    %1702 = vmatpush.bf16.msra.mxu0 0
    %1703 = vmatpush.bf16.msra.mxu0 %v1694
    %1704 = vmatmul.bf16.gmra.mxu0 %v1691
    %v1705 = vpop.f32.mrf.mxu0
    %v1706 = vadd.f32 0.0, %v1705
    %v1707 = vpop.f32.mrf.mxu0
    %1708 = vdwg.mxu0
    %v1709 = vadd.f32 %v1656, %v1706
    %v1710 = vsel %vm199, %v1709, 0.0
    %1711 = vadd.xlane.f32.xlu0 %v1710
    %v1712 = vpop.xlane.xlu0 %1711
    %v1713 = vmul.f32 %v1712, 0.0078125
    %v1714 = vmul.f32 %v1709, %v1709
    %v1715 = vsel %vm199, %v1714, 0.0
    %1716 = vadd.xlane.f32.xlu0 %v1715
    %v1717 = vpop.xlane.xlu0 %1716
    %v1718 = vmul.f32 %v1717, 0.0078125
    %v1719 = vmul.f32 %v1713, %v1713
    %v1720 = vsub.f32 %v1718, %v1719
    %v1721 = vmax.f32 %v1720, 0.0
    %v1722 = vld [vmem:[%s8] sm:$0xf]
    %v1723 = vadd.f32 %v1721, 1e-05
    %v1724 = vrsqrt.pop %v1723
    %v1725 = vmul.f32 %v1724, %v1723
    %v1726 = vmul.f32 %v1725, %v1724
    %v1727 = vmul.f32 0.5, %v1726
    %v1728 = vsub.f32 1.5, %v1727
    %v1729 = vmul.f32 %v1724, %v1728
    %vm1730 = vweird.f32 %v1723
    %vm1731 = vweird.f32 %v1724
    %vm1732 = vmor %vm1730, %vm1731
    %v1733 = vsel %vm1732, %v1724, %v1729
    %v1734 = vmul.f32 %v1722, %v1733
    %v1735 = vld [vmem:[%s9] sm:$0xf]
    %v1736 = vmul.f32 %v1713, %v1734
    %v1737 = vsub.f32 %v1735, %v1736
    %1739 = vset.pattern.permute.xlu0 0
    %1740 = vperm.xlu0 %1739, %v1734
    %v1741 = vpop.permute.xlu0 %1740
    %v1743 = vmul.f32 %v1709, %v1741
    %1745 = vset.pattern.permute.xlu0 0
    %1746 = vperm.xlu0 %1745, %v1737
    %v1747 = vpop.permute.xlu0 %1746
    %v1749 = vadd.f32 %v1743, %v1747
    %v1750 = vmax.f32 %v1749, 0.0
    %v1751 = vpack.c.bf16 %v1750, %v1750
    %v1752 = vld [vmem:[#allocation9] sm:$0xff]
    %v1753 = vld [vmem:[#allocation9 + $0x8] sm:$0xff]
    %v1754 = vld [vmem:[#allocation9 + $0x10] sm:$0xff]
    %v1755 = vld [vmem:[#allocation9 + $0x18] sm:$0xff]
    %v1756 = vld [vmem:[#allocation9 + $0x20] sm:$0xff]
    %v1757 = vld [vmem:[#allocation9 + $0x28] sm:$0xff]
    %v1758 = vld [vmem:[#allocation9 + $0x30] sm:$0xff]
    %v1759 = vld [vmem:[#allocation9 + $0x38] sm:$0xff]
    %v1760 = vld [vmem:[#allocation9 + $0x40] sm:$0xff]
    %v1761 = vld [vmem:[#allocation9 + $0x48] sm:$0xff]
    %v1762 = vld [vmem:[#allocation9 + $0x50] sm:$0xff]
    %v1763 = vld [vmem:[#allocation9 + $0x58] sm:$0xff]
    %v1764 = vld [vmem:[#allocation9 + $0x60] sm:$0xff]
    %v1765 = vld [vmem:[#allocation9 + $0x68] sm:$0xff]
    %v1766 = vld [vmem:[#allocation9 + $0x70] sm:$0xff]
    %v1767 = vld [vmem:[#allocation9 + $0x78] sm:$0xff]
    %v1768 = vld [vmem:[#allocation9 + $0x80] sm:$0xff]
    %v1769 = vld [vmem:[#allocation9 + $0x88] sm:$0xff]
    %v1770 = vld [vmem:[#allocation9 + $0x90] sm:$0xff]
    %v1771 = vld [vmem:[#allocation9 + $0x98] sm:$0xff]
    %v1772 = vld [vmem:[#allocation9 + $0xa0] sm:$0xff]
    %v1773 = vld [vmem:[#allocation9 + $0xa8] sm:$0xff]
    %v1774 = vld [vmem:[#allocation9 + $0xb0] sm:$0xff]
    %v1775 = vld [vmem:[#allocation9 + $0xb8] sm:$0xff]
    %v1776 = vld [vmem:[#allocation9 + $0xc0] sm:$0xff]
    %v1777 = vld [vmem:[#allocation9 + $0xc8] sm:$0xff]
    %v1778 = vld [vmem:[#allocation9 + $0xd0] sm:$0xff]
    %v1779 = vld [vmem:[#allocation9 + $0xd8] sm:$0xff]
    %v1780 = vld [vmem:[#allocation9 + $0xe0] sm:$0xff]
    %v1781 = vld [vmem:[#allocation9 + $0xe8] sm:$0xff]
    %v1782 = vld [vmem:[#allocation9 + $0xf0] sm:$0xff]
    %v1783 = vld [vmem:[#allocation9 + $0xf8] sm:$0xff]
    %v1816 = vunpack.c.l.b16 %v1752
    %v1817 = vunpack.c.h.b16 %v1752
    %v1818 = vunpack.c.l.b16 %v1753
    %v1819 = vunpack.c.h.b16 %v1753
    %v1820 = vunpack.c.l.b16 %v1754
    %v1821 = vunpack.c.h.b16 %v1754
    %v1822 = vunpack.c.l.b16 %v1755
    %v1823 = vunpack.c.h.b16 %v1755
    %v1824 = vunpack.c.l.b16 %v1756
    %v1825 = vunpack.c.h.b16 %v1756
    %v1826 = vunpack.c.l.b16 %v1757
    %v1827 = vunpack.c.h.b16 %v1757
    %v1828 = vunpack.c.l.b16 %v1758
    %v1829 = vunpack.c.h.b16 %v1758
    %v1830 = vunpack.c.l.b16 %v1759
    %v1831 = vunpack.c.h.b16 %v1759
    %v1832 = vunpack.c.l.b16 %v1760
    %v1833 = vunpack.c.h.b16 %v1760
    %v1834 = vunpack.c.l.b16 %v1761
    %v1835 = vunpack.c.h.b16 %v1761
    %v1836 = vunpack.c.l.b16 %v1762
    %v1837 = vunpack.c.h.b16 %v1762
    %v1838 = vunpack.c.l.b16 %v1763
    %v1839 = vunpack.c.h.b16 %v1763
    %v1840 = vunpack.c.l.b16 %v1764
    %v1841 = vunpack.c.h.b16 %v1764
    %v1842 = vunpack.c.l.b16 %v1765
    %v1843 = vunpack.c.h.b16 %v1765
    %v1844 = vunpack.c.l.b16 %v1766
    %v1845 = vunpack.c.h.b16 %v1766
    %v1846 = vunpack.c.l.b16 %v1767
    %v1847 = vunpack.c.h.b16 %v1767
    %v1848 = vunpack.c.l.b16 %v1768
    %v1849 = vunpack.c.h.b16 %v1768
    %v1850 = vunpack.c.l.b16 %v1769
    %v1851 = vunpack.c.h.b16 %v1769
    %v1852 = vunpack.c.l.b16 %v1770
    %v1853 = vunpack.c.h.b16 %v1770
    %v1854 = vunpack.c.l.b16 %v1771
    %v1855 = vunpack.c.h.b16 %v1771
    %v1856 = vunpack.c.l.b16 %v1772
    %v1857 = vunpack.c.h.b16 %v1772
    %v1858 = vunpack.c.l.b16 %v1773
    %v1859 = vunpack.c.h.b16 %v1773
    %v1860 = vunpack.c.l.b16 %v1774
    %v1861 = vunpack.c.h.b16 %v1774
    %v1862 = vunpack.c.l.b16 %v1775
    %v1863 = vunpack.c.h.b16 %v1775
    %v1864 = vunpack.c.l.b16 %v1776
    %v1865 = vunpack.c.h.b16 %v1776
    %v1866 = vunpack.c.l.b16 %v1777
    %v1867 = vunpack.c.h.b16 %v1777
    %v1868 = vunpack.c.l.b16 %v1778
    %v1869 = vunpack.c.h.b16 %v1778
    %v1870 = vunpack.c.l.b16 %v1779
    %v1871 = vunpack.c.h.b16 %v1779
    %v1872 = vunpack.c.l.b16 %v1780
    %v1873 = vunpack.c.h.b16 %v1780
    %v1874 = vunpack.c.l.b16 %v1781
    %v1875 = vunpack.c.h.b16 %v1781
    %v1876 = vunpack.c.l.b16 %v1782
    %v1877 = vunpack.c.h.b16 %v1782
    %v1878 = vunpack.c.l.b16 %v1783
    %v1879 = vunpack.c.h.b16 %v1783
    %v1880 = vpack.c.b16 %v1820, %v1816
    %v1881 = vpack.c.b16 %v1821, %v1817
    %v1882 = vpack.c.b16 %v1822, %v1818
    %v1883 = vpack.c.b16 %v1823, %v1819
    %v1884 = vpack.c.b16 %v1828, %v1824
    %v1885 = vpack.c.b16 %v1829, %v1825
    %v1886 = vpack.c.b16 %v1830, %v1826
    %v1887 = vpack.c.b16 %v1831, %v1827
    %v1888 = vpack.c.b16 %v1836, %v1832
    %v1889 = vpack.c.b16 %v1837, %v1833
    %v1890 = vpack.c.b16 %v1838, %v1834
    %v1891 = vpack.c.b16 %v1839, %v1835
    %v1892 = vpack.c.b16 %v1844, %v1840
    %v1893 = vpack.c.b16 %v1845, %v1841
    %v1894 = vpack.c.b16 %v1846, %v1842
    %v1895 = vpack.c.b16 %v1847, %v1843
    %v1896 = vpack.c.b16 %v1852, %v1848
    %v1897 = vpack.c.b16 %v1853, %v1849
    %v1898 = vpack.c.b16 %v1854, %v1850
    %v1899 = vpack.c.b16 %v1855, %v1851
    %v1900 = vpack.c.b16 %v1860, %v1856
    %v1901 = vpack.c.b16 %v1861, %v1857
    %v1902 = vpack.c.b16 %v1862, %v1858
    %v1903 = vpack.c.b16 %v1863, %v1859
    %v1904 = vpack.c.b16 %v1868, %v1864
    %v1905 = vpack.c.b16 %v1869, %v1865
    %v1906 = vpack.c.b16 %v1870, %v1866
    %v1907 = vpack.c.b16 %v1871, %v1867
    %v1908 = vpack.c.b16 %v1876, %v1872
    %v1909 = vpack.c.b16 %v1877, %v1873
    %v1910 = vpack.c.b16 %v1878, %v1874
    %v1911 = vpack.c.b16 %v1879, %v1875
    %1944 = vmatpush.bf16.msra.mxu0 %v1908
    %1945 = vmatpush.bf16.msra.mxu0 %v1904
    %1946 = vmatpush.bf16.msra.mxu0 %v1900
    %1947 = vmatpush.bf16.msra.mxu0 %v1896
    %1948 = vmatpush.bf16.msra.mxu0 %v1892
    %1949 = vmatpush.bf16.msra.mxu0 %v1888
    %1950 = vmatpush.bf16.msra.mxu0 %v1884
    %1951 = vmatpush.bf16.msra.mxu0 %v1880
    %1952 = vmatmul.bf16.gmra.mxu0 %v1751
    %v1953 = vpop.f32.mrf.mxu0
    %v1954 = vadd.f32 0.0, %v1953
    %v1955 = vpop.f32.mrf.mxu0
    %1956 = vdwg.mxu0
    %1957 = vmatpush.bf16.msra.mxu0 %v1909
    %1958 = vmatpush.bf16.msra.mxu0 %v1905
    %1959 = vmatpush.bf16.msra.mxu0 %v1901
    %1960 = vmatpush.bf16.msra.mxu0 %v1897
    %1961 = vmatpush.bf16.msra.mxu0 %v1893
    %1962 = vmatpush.bf16.msra.mxu0 %v1889
    %1963 = vmatpush.bf16.msra.mxu0 %v1885
    %1964 = vmatpush.bf16.msra.mxu0 %v1881
    %1965 = vmatmul.bf16.gmra.mxu0 %v1751
    %v1966 = vpop.f32.mrf.mxu0
    %v1967 = vadd.f32 0.0, %v1966
    %v1968 = vpop.f32.mrf.mxu0
    %1969 = vdwg.mxu0
    %1970 = vmatpush.bf16.msra.mxu0 %v1910
    %1971 = vmatpush.bf16.msra.mxu0 %v1906
    %1972 = vmatpush.bf16.msra.mxu0 %v1902
    %1973 = vmatpush.bf16.msra.mxu0 %v1898
    %1974 = vmatpush.bf16.msra.mxu0 %v1894
    %1975 = vmatpush.bf16.msra.mxu0 %v1890
    %1976 = vmatpush.bf16.msra.mxu0 %v1886
    %1977 = vmatpush.bf16.msra.mxu0 %v1882
    %1978 = vmatmul.bf16.gmra.mxu0 %v1751
    %v1979 = vpop.f32.mrf.mxu0
    %v1980 = vadd.f32 0.0, %v1979
    %v1981 = vpop.f32.mrf.mxu0
    %1982 = vdwg.mxu0
    %1983 = vmatpush.bf16.msra.mxu0 %v1911
    %1984 = vmatpush.bf16.msra.mxu0 %v1907
    %1985 = vmatpush.bf16.msra.mxu0 %v1903
    %1986 = vmatpush.bf16.msra.mxu0 %v1899
    %1987 = vmatpush.bf16.msra.mxu0 %v1895
    %1988 = vmatpush.bf16.msra.mxu0 %v1891
    %1989 = vmatpush.bf16.msra.mxu0 %v1887
    %1990 = vmatpush.bf16.msra.mxu0 %v1883
    %1991 = vmatmul.bf16.gmra.mxu0 %v1751
    %v1992 = vpop.f32.mrf.mxu0
    %v1993 = vadd.f32 0.0, %v1992
    %v1994 = vpop.f32.mrf.mxu0
    %1995 = vdwg.mxu0
    %v1996 = vld [vmem:[%s10] sm:$0x3]
    %v1997 = vpack.c.bf16 %v1954, %v1954
    %v1998 = vpack.c.bf16 %v1967, %v1967
    %v1999 = vpack.c.bf16 %v1980, %v1980
    %v2000 = vpack.c.bf16 %v1993, %v1993
    %s2001 = scalar_lea.vmem [#allocation9], 256
    %v2002 = vld [vmem:[%s2001] sm:$0xff]
    %v2003 = vld [vmem:[%s2001 + $0x8] sm:$0xff]
    %v2004 = vld [vmem:[%s2001 + $0x10] sm:$0xff]
    %v2005 = vld [vmem:[%s2001 + $0x18] sm:$0xff]
    %v2006 = vld [vmem:[%s2001 + $0x20] sm:$0xff]
    %v2007 = vld [vmem:[%s2001 + $0x28] sm:$0xff]
    %v2008 = vld [vmem:[%s2001 + $0x30] sm:$0xff]
    %v2009 = vld [vmem:[%s2001 + $0x38] sm:$0xff]
    %v2010 = vld [vmem:[%s2001 + $0x40] sm:$0xff]
    %v2011 = vld [vmem:[%s2001 + $0x48] sm:$0xff]
    %v2012 = vld [vmem:[%s2001 + $0x50] sm:$0xff]
    %v2013 = vld [vmem:[%s2001 + $0x58] sm:$0xff]
    %v2014 = vld [vmem:[%s2001 + $0x60] sm:$0xff]
    %v2015 = vld [vmem:[%s2001 + $0x68] sm:$0xff]
    %v2016 = vld [vmem:[%s2001 + $0x70] sm:$0xff]
    %v2017 = vld [vmem:[%s2001 + $0x78] sm:$0xff]
    %v2018 = vld [vmem:[%s2001 + $0x80] sm:$0xff]
    %v2019 = vld [vmem:[%s2001 + $0x88] sm:$0xff]
    %v2020 = vld [vmem:[%s2001 + $0x90] sm:$0xff]
    %v2021 = vld [vmem:[%s2001 + $0x98] sm:$0xff]
    %v2022 = vld [vmem:[%s2001 + $0xa0] sm:$0xff]
    %v2023 = vld [vmem:[%s2001 + $0xa8] sm:$0xff]
    %v2024 = vld [vmem:[%s2001 + $0xb0] sm:$0xff]
    %v2025 = vld [vmem:[%s2001 + $0xb8] sm:$0xff]
    %v2026 = vld [vmem:[%s2001 + $0xc0] sm:$0xff]
    %v2027 = vld [vmem:[%s2001 + $0xc8] sm:$0xff]
    %v2028 = vld [vmem:[%s2001 + $0xd0] sm:$0xff]
    %v2029 = vld [vmem:[%s2001 + $0xd8] sm:$0xff]
    %v2030 = vld [vmem:[%s2001 + $0xe0] sm:$0xff]
    %v2031 = vld [vmem:[%s2001 + $0xe8] sm:$0xff]
    %v2032 = vld [vmem:[%s2001 + $0xf0] sm:$0xff]
    %v2033 = vld [vmem:[%s2001 + $0xf8] sm:$0xff]
    %v2066 = vunpack.c.l.b16 %v2002
    %v2067 = vunpack.c.h.b16 %v2002
    %v2068 = vunpack.c.l.b16 %v2003
    %v2069 = vunpack.c.h.b16 %v2003
    %v2070 = vunpack.c.l.b16 %v2004
    %v2071 = vunpack.c.h.b16 %v2004
    %v2072 = vunpack.c.l.b16 %v2005
    %v2073 = vunpack.c.h.b16 %v2005
    %v2074 = vunpack.c.l.b16 %v2006
    %v2075 = vunpack.c.h.b16 %v2006
    %v2076 = vunpack.c.l.b16 %v2007
    %v2077 = vunpack.c.h.b16 %v2007
    %v2078 = vunpack.c.l.b16 %v2008
    %v2079 = vunpack.c.h.b16 %v2008
    %v2080 = vunpack.c.l.b16 %v2009
    %v2081 = vunpack.c.h.b16 %v2009
    %v2082 = vunpack.c.l.b16 %v2010
    %v2083 = vunpack.c.h.b16 %v2010
    %v2084 = vunpack.c.l.b16 %v2011
    %v2085 = vunpack.c.h.b16 %v2011
    %v2086 = vunpack.c.l.b16 %v2012
    %v2087 = vunpack.c.h.b16 %v2012
    %v2088 = vunpack.c.l.b16 %v2013
    %v2089 = vunpack.c.h.b16 %v2013
    %v2090 = vunpack.c.l.b16 %v2014
    %v2091 = vunpack.c.h.b16 %v2014
    %v2092 = vunpack.c.l.b16 %v2015
    %v2093 = vunpack.c.h.b16 %v2015
    %v2094 = vunpack.c.l.b16 %v2016
    %v2095 = vunpack.c.h.b16 %v2016
    %v2096 = vunpack.c.l.b16 %v2017
    %v2097 = vunpack.c.h.b16 %v2017
    %v2098 = vunpack.c.l.b16 %v2018
    %v2099 = vunpack.c.h.b16 %v2018
    %v2100 = vunpack.c.l.b16 %v2019
    %v2101 = vunpack.c.h.b16 %v2019
    %v2102 = vunpack.c.l.b16 %v2020
    %v2103 = vunpack.c.h.b16 %v2020
    %v2104 = vunpack.c.l.b16 %v2021
    %v2105 = vunpack.c.h.b16 %v2021
    %v2106 = vunpack.c.l.b16 %v2022
    %v2107 = vunpack.c.h.b16 %v2022
    %v2108 = vunpack.c.l.b16 %v2023
    %v2109 = vunpack.c.h.b16 %v2023
    %v2110 = vunpack.c.l.b16 %v2024
    %v2111 = vunpack.c.h.b16 %v2024
    %v2112 = vunpack.c.l.b16 %v2025
    %v2113 = vunpack.c.h.b16 %v2025
    %v2114 = vunpack.c.l.b16 %v2026
    %v2115 = vunpack.c.h.b16 %v2026
    %v2116 = vunpack.c.l.b16 %v2027
    %v2117 = vunpack.c.h.b16 %v2027
    %v2118 = vunpack.c.l.b16 %v2028
    %v2119 = vunpack.c.h.b16 %v2028
    %v2120 = vunpack.c.l.b16 %v2029
    %v2121 = vunpack.c.h.b16 %v2029
    %v2122 = vunpack.c.l.b16 %v2030
    %v2123 = vunpack.c.h.b16 %v2030
    %v2124 = vunpack.c.l.b16 %v2031
    %v2125 = vunpack.c.h.b16 %v2031
    %v2126 = vunpack.c.l.b16 %v2032
    %v2127 = vunpack.c.h.b16 %v2032
    %v2128 = vunpack.c.l.b16 %v2033
    %v2129 = vunpack.c.h.b16 %v2033
    %v2130 = vpack.c.b16 %v2070, %v2066
    %v2131 = vpack.c.b16 %v2071, %v2067
    %v2132 = vpack.c.b16 %v2072, %v2068
    %v2133 = vpack.c.b16 %v2073, %v2069
    %v2134 = vpack.c.b16 %v2078, %v2074
    %v2135 = vpack.c.b16 %v2079, %v2075
    %v2136 = vpack.c.b16 %v2080, %v2076
    %v2137 = vpack.c.b16 %v2081, %v2077
    %v2138 = vpack.c.b16 %v2086, %v2082
    %v2139 = vpack.c.b16 %v2087, %v2083
    %v2140 = vpack.c.b16 %v2088, %v2084
    %v2141 = vpack.c.b16 %v2089, %v2085
    %v2142 = vpack.c.b16 %v2094, %v2090
    %v2143 = vpack.c.b16 %v2095, %v2091
    %v2144 = vpack.c.b16 %v2096, %v2092
    %v2145 = vpack.c.b16 %v2097, %v2093
    %v2146 = vpack.c.b16 %v2102, %v2098
    %v2147 = vpack.c.b16 %v2103, %v2099
    %v2148 = vpack.c.b16 %v2104, %v2100
    %v2149 = vpack.c.b16 %v2105, %v2101
    %v2150 = vpack.c.b16 %v2110, %v2106
    %v2151 = vpack.c.b16 %v2111, %v2107
    %v2152 = vpack.c.b16 %v2112, %v2108
    %v2153 = vpack.c.b16 %v2113, %v2109
    %v2154 = vpack.c.b16 %v2118, %v2114
    %v2155 = vpack.c.b16 %v2119, %v2115
    %v2156 = vpack.c.b16 %v2120, %v2116
    %v2157 = vpack.c.b16 %v2121, %v2117
    %v2158 = vpack.c.b16 %v2126, %v2122
    %v2159 = vpack.c.b16 %v2127, %v2123
    %v2160 = vpack.c.b16 %v2128, %v2124
    %v2161 = vpack.c.b16 %v2129, %v2125
    %2194 = vmatpush.bf16.msra.mxu0 %v2158
    %2195 = vmatpush.bf16.msra.mxu0 %v2154
    %2196 = vmatpush.bf16.msra.mxu0 %v2150
    %2197 = vmatpush.bf16.msra.mxu0 %v2146
    %2198 = vmatpush.bf16.msra.mxu0 %v2142
    %2199 = vmatpush.bf16.msra.mxu0 %v2138
    %2200 = vmatpush.bf16.msra.mxu0 %v2134
    %2201 = vmatpush.bf16.msra.mxu0 %v2130
    %2202 = vmatmul.bf16.gmra.mxu0 %v1751
    %v2203 = vpop.f32.mrf.mxu0
    %v2204 = vadd.f32 0.0, %v2203
    %v2205 = vpop.f32.mrf.mxu0
    %2206 = vdwg.mxu0
    %2207 = vmatpush.bf16.msra.mxu0 %v2159
    %2208 = vmatpush.bf16.msra.mxu0 %v2155
    %2209 = vmatpush.bf16.msra.mxu0 %v2151
    %2210 = vmatpush.bf16.msra.mxu0 %v2147
    %2211 = vmatpush.bf16.msra.mxu0 %v2143
    %2212 = vmatpush.bf16.msra.mxu0 %v2139
    %2213 = vmatpush.bf16.msra.mxu0 %v2135
    %2214 = vmatpush.bf16.msra.mxu0 %v2131
    %2215 = vmatmul.bf16.gmra.mxu0 %v1751
    %v2216 = vpop.f32.mrf.mxu0
    %v2217 = vadd.f32 0.0, %v2216
    %v2218 = vpop.f32.mrf.mxu0
    %2219 = vdwg.mxu0
    %2220 = vmatpush.bf16.msra.mxu0 %v2160
    %2221 = vmatpush.bf16.msra.mxu0 %v2156
    %2222 = vmatpush.bf16.msra.mxu0 %v2152
    %2223 = vmatpush.bf16.msra.mxu0 %v2148
    %2224 = vmatpush.bf16.msra.mxu0 %v2144
    %2225 = vmatpush.bf16.msra.mxu0 %v2140
    %2226 = vmatpush.bf16.msra.mxu0 %v2136
    %2227 = vmatpush.bf16.msra.mxu0 %v2132
    %2228 = vmatmul.bf16.gmra.mxu0 %v1751
    %v2229 = vpop.f32.mrf.mxu0
    %v2230 = vadd.f32 0.0, %v2229
    %v2231 = vpop.f32.mrf.mxu0
    %2232 = vdwg.mxu0
    %2233 = vmatpush.bf16.msra.mxu0 %v2161
    %2234 = vmatpush.bf16.msra.mxu0 %v2157
    %2235 = vmatpush.bf16.msra.mxu0 %v2153
    %2236 = vmatpush.bf16.msra.mxu0 %v2149
    %2237 = vmatpush.bf16.msra.mxu0 %v2145
    %2238 = vmatpush.bf16.msra.mxu0 %v2141
    %2239 = vmatpush.bf16.msra.mxu0 %v2137
    %2240 = vmatpush.bf16.msra.mxu0 %v2133
    %2241 = vmatmul.bf16.gmra.mxu0 %v1751
    %v2242 = vpop.f32.mrf.mxu0
    %v2243 = vadd.f32 0.0, %v2242
    %v2244 = vpop.f32.mrf.mxu0
    %2245 = vdwg.mxu0
    %s2246 = scalar_lea.vmem %s10, 2
    %v2247 = vld [vmem:[%s2246] sm:$0x3]
    %v2248 = vpack.c.bf16 %v2204, %v2204
    %v2249 = vpack.c.bf16 %v2217, %v2217
    %v2250 = vpack.c.bf16 %v2230, %v2230
    %v2251 = vpack.c.bf16 %v2243, %v2243
    %vm2252 = vcmask 31744
    %v2254 = vsel %vm2252, %v2247, 0
    %v2257 = vsel %vm173, %v2248, 0
    %v2260 = vsel %vm173, %v2249, 0
    %v2263 = vsel %vm173, %v2250, 0
    %v2266 = vsel %vm173, %v2251, 0
    %2268 = vmatpush.bf16.msra.mxu0 0
    %2269 = vmatpush.bf16.msra.mxu0 0
    %2270 = vmatpush.bf16.msra.mxu0 0
    %2271 = vmatpush.bf16.msra.mxu0 0
    %2272 = vmatpush.bf16.msra.mxu0 0
    %2273 = vmatpush.bf16.msra.mxu0 0
    %2274 = vmatpush.bf16.msra.mxu0 0
    %2275 = vmatpush.bf16.msra.mxu0 %v2257
    %2276 = vmatmul.bf16.gmra.mxu0 %v2254
    %v2277 = vpop.f32.mrf.mxu0
    %v2278 = vadd.f32 0.0, %v2277
    %v2279 = vpop.f32.mrf.mxu0
    %2280 = vdwg.mxu0
    %2281 = vmatpush.bf16.msra.mxu0 0
    %2282 = vmatpush.bf16.msra.mxu0 0
    %2283 = vmatpush.bf16.msra.mxu0 0
    %2284 = vmatpush.bf16.msra.mxu0 0
    %2285 = vmatpush.bf16.msra.mxu0 0
    %2286 = vmatpush.bf16.msra.mxu0 0
    %2287 = vmatpush.bf16.msra.mxu0 0
    %2288 = vmatpush.bf16.msra.mxu0 %v2260
    %2289 = vmatmul.bf16.gmra.mxu0 %v2254
    %v2290 = vpop.f32.mrf.mxu0
    %v2291 = vadd.f32 0.0, %v2290
    %v2292 = vpop.f32.mrf.mxu0
    %2293 = vdwg.mxu0
    %2294 = vmatpush.bf16.msra.mxu0 0
    %2295 = vmatpush.bf16.msra.mxu0 0
    %2296 = vmatpush.bf16.msra.mxu0 0
    %2297 = vmatpush.bf16.msra.mxu0 0
    %2298 = vmatpush.bf16.msra.mxu0 0
    %2299 = vmatpush.bf16.msra.mxu0 0
    %2300 = vmatpush.bf16.msra.mxu0 0
    %2301 = vmatpush.bf16.msra.mxu0 %v2263
    %2302 = vmatmul.bf16.gmra.mxu0 %v2254
    %v2303 = vpop.f32.mrf.mxu0
    %v2304 = vadd.f32 0.0, %v2303
    %v2305 = vpop.f32.mrf.mxu0
    %2306 = vdwg.mxu0
    %2307 = vmatpush.bf16.msra.mxu0 0
    %2308 = vmatpush.bf16.msra.mxu0 0
    %2309 = vmatpush.bf16.msra.mxu0 0
    %2310 = vmatpush.bf16.msra.mxu0 0
    %2311 = vmatpush.bf16.msra.mxu0 0
    %2312 = vmatpush.bf16.msra.mxu0 0
    %2313 = vmatpush.bf16.msra.mxu0 0
    %2314 = vmatpush.bf16.msra.mxu0 %v2266
    %2315 = vmatmul.bf16.gmra.mxu0 %v2254
    %v2316 = vpop.f32.mrf.mxu0
    %v2317 = vadd.f32 0.0, %v2316
    %v2318 = vpop.f32.mrf.mxu0
    %2319 = vdwg.mxu0
    %v2321 = vsel %vm2252, %v1996, 0
    %v2324 = vsel %vm173, %v1997, 0
    %v2327 = vsel %vm173, %v1998, 0
    %v2330 = vsel %vm173, %v1999, 0
    %v2333 = vsel %vm173, %v2000, 0
    %2335 = vmatpush.bf16.msra.mxu0 0
    %2336 = vmatpush.bf16.msra.mxu0 0
    %2337 = vmatpush.bf16.msra.mxu0 0
    %2338 = vmatpush.bf16.msra.mxu0 0
    %2339 = vmatpush.bf16.msra.mxu0 0
    %2340 = vmatpush.bf16.msra.mxu0 0
    %2341 = vmatpush.bf16.msra.mxu0 0
    %2342 = vmatpush.bf16.msra.mxu0 %v2324
    %2343 = vmatmul.bf16.gmra.mxu0 %v2321
    %v2344 = vpop.f32.mrf.mxu0
    %v2345 = vadd.f32 %v2278, %v2344
    %v2346 = vpop.f32.mrf.mxu0
    %2347 = vdwg.mxu0
    %2348 = vmatpush.bf16.msra.mxu0 0
    %2349 = vmatpush.bf16.msra.mxu0 0
    %2350 = vmatpush.bf16.msra.mxu0 0
    %2351 = vmatpush.bf16.msra.mxu0 0
    %2352 = vmatpush.bf16.msra.mxu0 0
    %2353 = vmatpush.bf16.msra.mxu0 0
    %2354 = vmatpush.bf16.msra.mxu0 0
    %2355 = vmatpush.bf16.msra.mxu0 %v2327
    %2356 = vmatmul.bf16.gmra.mxu0 %v2321
    %v2357 = vpop.f32.mrf.mxu0
    %v2358 = vadd.f32 %v2291, %v2357
    %v2359 = vpop.f32.mrf.mxu0
    %2360 = vdwg.mxu0
    %2361 = vmatpush.bf16.msra.mxu0 0
    %2362 = vmatpush.bf16.msra.mxu0 0
    %2363 = vmatpush.bf16.msra.mxu0 0
    %2364 = vmatpush.bf16.msra.mxu0 0
    %2365 = vmatpush.bf16.msra.mxu0 0
    %2366 = vmatpush.bf16.msra.mxu0 0
    %2367 = vmatpush.bf16.msra.mxu0 0
    %2368 = vmatpush.bf16.msra.mxu0 %v2330
    %2369 = vmatmul.bf16.gmra.mxu0 %v2321
    %v2370 = vpop.f32.mrf.mxu0
    %v2371 = vadd.f32 %v2304, %v2370
    %v2372 = vpop.f32.mrf.mxu0
    %2373 = vdwg.mxu0
    %2374 = vmatpush.bf16.msra.mxu0 0
    %2375 = vmatpush.bf16.msra.mxu0 0
    %2376 = vmatpush.bf16.msra.mxu0 0
    %2377 = vmatpush.bf16.msra.mxu0 0
    %2378 = vmatpush.bf16.msra.mxu0 0
    %2379 = vmatpush.bf16.msra.mxu0 0
    %2380 = vmatpush.bf16.msra.mxu0 0
    %2381 = vmatpush.bf16.msra.mxu0 %v2333
    %2382 = vmatmul.bf16.gmra.mxu0 %v2321
    %v2383 = vpop.f32.mrf.mxu0
    %v2384 = vadd.f32 %v2317, %v2383
    %v2385 = vpop.f32.mrf.mxu0
    %2386 = vdwg.mxu0
    %s2387 = scalar_lea.vmem [#allocation9], 512
    %v2388 = vld [vmem:[%s2387] sm:$0xff]
    %v2389 = vld [vmem:[%s2387 + $0x8] sm:$0xff]
    %v2390 = vld [vmem:[%s2387 + $0x10] sm:$0xff]
    %v2391 = vld [vmem:[%s2387 + $0x18] sm:$0xff]
    %v2392 = vld [vmem:[%s2387 + $0x20] sm:$0xff]
    %v2393 = vld [vmem:[%s2387 + $0x28] sm:$0xff]
    %v2394 = vld [vmem:[%s2387 + $0x30] sm:$0xff]
    %v2395 = vld [vmem:[%s2387 + $0x38] sm:$0xff]
    %v2396 = vld [vmem:[%s2387 + $0x40] sm:$0xff]
    %v2397 = vld [vmem:[%s2387 + $0x48] sm:$0xff]
    %v2398 = vld [vmem:[%s2387 + $0x50] sm:$0xff]
    %v2399 = vld [vmem:[%s2387 + $0x58] sm:$0xff]
    %v2400 = vld [vmem:[%s2387 + $0x60] sm:$0xff]
    %v2401 = vld [vmem:[%s2387 + $0x68] sm:$0xff]
    %v2402 = vld [vmem:[%s2387 + $0x70] sm:$0xff]
    %v2403 = vld [vmem:[%s2387 + $0x78] sm:$0xff]
    %v2404 = vld [vmem:[%s2387 + $0x80] sm:$0xff]
    %v2405 = vld [vmem:[%s2387 + $0x88] sm:$0xff]
    %v2406 = vld [vmem:[%s2387 + $0x90] sm:$0xff]
    %v2407 = vld [vmem:[%s2387 + $0x98] sm:$0xff]
    %v2408 = vld [vmem:[%s2387 + $0xa0] sm:$0xff]
    %v2409 = vld [vmem:[%s2387 + $0xa8] sm:$0xff]
    %v2410 = vld [vmem:[%s2387 + $0xb0] sm:$0xff]
    %v2411 = vld [vmem:[%s2387 + $0xb8] sm:$0xff]
    %v2412 = vld [vmem:[%s2387 + $0xc0] sm:$0xff]
    %v2413 = vld [vmem:[%s2387 + $0xc8] sm:$0xff]
    %v2414 = vld [vmem:[%s2387 + $0xd0] sm:$0xff]
    %v2415 = vld [vmem:[%s2387 + $0xd8] sm:$0xff]
    %v2416 = vld [vmem:[%s2387 + $0xe0] sm:$0xff]
    %v2417 = vld [vmem:[%s2387 + $0xe8] sm:$0xff]
    %v2418 = vld [vmem:[%s2387 + $0xf0] sm:$0xff]
    %v2419 = vld [vmem:[%s2387 + $0xf8] sm:$0xff]
    %v2452 = vunpack.c.l.b16 %v2388
    %v2453 = vunpack.c.h.b16 %v2388
    %v2454 = vunpack.c.l.b16 %v2389
    %v2455 = vunpack.c.h.b16 %v2389
    %v2456 = vunpack.c.l.b16 %v2390
    %v2457 = vunpack.c.h.b16 %v2390
    %v2458 = vunpack.c.l.b16 %v2391
    %v2459 = vunpack.c.h.b16 %v2391
    %v2460 = vunpack.c.l.b16 %v2392
    %v2461 = vunpack.c.h.b16 %v2392
    %v2462 = vunpack.c.l.b16 %v2393
    %v2463 = vunpack.c.h.b16 %v2393
    %v2464 = vunpack.c.l.b16 %v2394
    %v2465 = vunpack.c.h.b16 %v2394
    %v2466 = vunpack.c.l.b16 %v2395
    %v2467 = vunpack.c.h.b16 %v2395
    %v2468 = vunpack.c.l.b16 %v2396
    %v2469 = vunpack.c.h.b16 %v2396
    %v2470 = vunpack.c.l.b16 %v2397
    %v2471 = vunpack.c.h.b16 %v2397
    %v2472 = vunpack.c.l.b16 %v2398
    %v2473 = vunpack.c.h.b16 %v2398
    %v2474 = vunpack.c.l.b16 %v2399
    %v2475 = vunpack.c.h.b16 %v2399
    %v2476 = vunpack.c.l.b16 %v2400
    %v2477 = vunpack.c.h.b16 %v2400
    %v2478 = vunpack.c.l.b16 %v2401
    %v2479 = vunpack.c.h.b16 %v2401
    %v2480 = vunpack.c.l.b16 %v2402
    %v2481 = vunpack.c.h.b16 %v2402
    %v2482 = vunpack.c.l.b16 %v2403
    %v2483 = vunpack.c.h.b16 %v2403
    %v2484 = vunpack.c.l.b16 %v2404
    %v2485 = vunpack.c.h.b16 %v2404
    %v2486 = vunpack.c.l.b16 %v2405
    %v2487 = vunpack.c.h.b16 %v2405
    %v2488 = vunpack.c.l.b16 %v2406
    %v2489 = vunpack.c.h.b16 %v2406
    %v2490 = vunpack.c.l.b16 %v2407
    %v2491 = vunpack.c.h.b16 %v2407
    %v2492 = vunpack.c.l.b16 %v2408
    %v2493 = vunpack.c.h.b16 %v2408
    %v2494 = vunpack.c.l.b16 %v2409
    %v2495 = vunpack.c.h.b16 %v2409
    %v2496 = vunpack.c.l.b16 %v2410
    %v2497 = vunpack.c.h.b16 %v2410
    %v2498 = vunpack.c.l.b16 %v2411
    %v2499 = vunpack.c.h.b16 %v2411
    %v2500 = vunpack.c.l.b16 %v2412
    %v2501 = vunpack.c.h.b16 %v2412
    %v2502 = vunpack.c.l.b16 %v2413
    %v2503 = vunpack.c.h.b16 %v2413
    %v2504 = vunpack.c.l.b16 %v2414
    %v2505 = vunpack.c.h.b16 %v2414
    %v2506 = vunpack.c.l.b16 %v2415
    %v2507 = vunpack.c.h.b16 %v2415
    %v2508 = vunpack.c.l.b16 %v2416
    %v2509 = vunpack.c.h.b16 %v2416
    %v2510 = vunpack.c.l.b16 %v2417
    %v2511 = vunpack.c.h.b16 %v2417
    %v2512 = vunpack.c.l.b16 %v2418
    %v2513 = vunpack.c.h.b16 %v2418
    %v2514 = vunpack.c.l.b16 %v2419
    %v2515 = vunpack.c.h.b16 %v2419
    %v2516 = vpack.c.b16 %v2456, %v2452
    %v2517 = vpack.c.b16 %v2457, %v2453
    %v2518 = vpack.c.b16 %v2458, %v2454
    %v2519 = vpack.c.b16 %v2459, %v2455
    %v2520 = vpack.c.b16 %v2464, %v2460
    %v2521 = vpack.c.b16 %v2465, %v2461
    %v2522 = vpack.c.b16 %v2466, %v2462
    %v2523 = vpack.c.b16 %v2467, %v2463
    %v2524 = vpack.c.b16 %v2472, %v2468
    %v2525 = vpack.c.b16 %v2473, %v2469
    %v2526 = vpack.c.b16 %v2474, %v2470
    %v2527 = vpack.c.b16 %v2475, %v2471
    %v2528 = vpack.c.b16 %v2480, %v2476
    %v2529 = vpack.c.b16 %v2481, %v2477
    %v2530 = vpack.c.b16 %v2482, %v2478
    %v2531 = vpack.c.b16 %v2483, %v2479
    %v2532 = vpack.c.b16 %v2488, %v2484
    %v2533 = vpack.c.b16 %v2489, %v2485
    %v2534 = vpack.c.b16 %v2490, %v2486
    %v2535 = vpack.c.b16 %v2491, %v2487
    %v2536 = vpack.c.b16 %v2496, %v2492
    %v2537 = vpack.c.b16 %v2497, %v2493
    %v2538 = vpack.c.b16 %v2498, %v2494
    %v2539 = vpack.c.b16 %v2499, %v2495
    %v2540 = vpack.c.b16 %v2504, %v2500
    %v2541 = vpack.c.b16 %v2505, %v2501
    %v2542 = vpack.c.b16 %v2506, %v2502
    %v2543 = vpack.c.b16 %v2507, %v2503
    %v2544 = vpack.c.b16 %v2512, %v2508
    %v2545 = vpack.c.b16 %v2513, %v2509
    %v2546 = vpack.c.b16 %v2514, %v2510
    %v2547 = vpack.c.b16 %v2515, %v2511
    %2580 = vmatpush.bf16.msra.mxu0 %v2544
    %2581 = vmatpush.bf16.msra.mxu0 %v2540
    %2582 = vmatpush.bf16.msra.mxu0 %v2536
    %2583 = vmatpush.bf16.msra.mxu0 %v2532
    %2584 = vmatpush.bf16.msra.mxu0 %v2528
    %2585 = vmatpush.bf16.msra.mxu0 %v2524
    %2586 = vmatpush.bf16.msra.mxu0 %v2520
    %2587 = vmatpush.bf16.msra.mxu0 %v2516
    %2588 = vmatmul.bf16.gmra.mxu0 %v1751
    %v2589 = vpop.f32.mrf.mxu0
    %v2590 = vadd.f32 0.0, %v2589
    %v2591 = vpop.f32.mrf.mxu0
    %2592 = vdwg.mxu0
    %2593 = vmatpush.bf16.msra.mxu0 %v2545
    %2594 = vmatpush.bf16.msra.mxu0 %v2541
    %2595 = vmatpush.bf16.msra.mxu0 %v2537
    %2596 = vmatpush.bf16.msra.mxu0 %v2533
    %2597 = vmatpush.bf16.msra.mxu0 %v2529
    %2598 = vmatpush.bf16.msra.mxu0 %v2525
    %2599 = vmatpush.bf16.msra.mxu0 %v2521
    %2600 = vmatpush.bf16.msra.mxu0 %v2517
    %2601 = vmatmul.bf16.gmra.mxu0 %v1751
    %v2602 = vpop.f32.mrf.mxu0
    %v2603 = vadd.f32 0.0, %v2602
    %v2604 = vpop.f32.mrf.mxu0
    %2605 = vdwg.mxu0
    %2606 = vmatpush.bf16.msra.mxu0 %v2546
    %2607 = vmatpush.bf16.msra.mxu0 %v2542
    %2608 = vmatpush.bf16.msra.mxu0 %v2538
    %2609 = vmatpush.bf16.msra.mxu0 %v2534
    %2610 = vmatpush.bf16.msra.mxu0 %v2530
    %2611 = vmatpush.bf16.msra.mxu0 %v2526
    %2612 = vmatpush.bf16.msra.mxu0 %v2522
    %2613 = vmatpush.bf16.msra.mxu0 %v2518
    %2614 = vmatmul.bf16.gmra.mxu0 %v1751
    %v2615 = vpop.f32.mrf.mxu0
    %v2616 = vadd.f32 0.0, %v2615
    %v2617 = vpop.f32.mrf.mxu0
    %2618 = vdwg.mxu0
    %2619 = vmatpush.bf16.msra.mxu0 %v2547
    %2620 = vmatpush.bf16.msra.mxu0 %v2543
    %2621 = vmatpush.bf16.msra.mxu0 %v2539
    %2622 = vmatpush.bf16.msra.mxu0 %v2535
    %2623 = vmatpush.bf16.msra.mxu0 %v2531
    %2624 = vmatpush.bf16.msra.mxu0 %v2527
    %2625 = vmatpush.bf16.msra.mxu0 %v2523
    %2626 = vmatpush.bf16.msra.mxu0 %v2519
    %2627 = vmatmul.bf16.gmra.mxu0 %v1751
    %v2628 = vpop.f32.mrf.mxu0
    %v2629 = vadd.f32 0.0, %v2628
    %v2630 = vpop.f32.mrf.mxu0
    %2631 = vdwg.mxu0
    %s2632 = scalar_lea.vmem %s10, 4
    %v2633 = vld [vmem:[%s2632] sm:$0x3]
    %v2634 = vpack.c.bf16 %v2590, %v2590
    %v2635 = vpack.c.bf16 %v2603, %v2603
    %v2636 = vpack.c.bf16 %v2616, %v2616
    %v2637 = vpack.c.bf16 %v2629, %v2629
    %v2639 = vsel %vm2252, %v2633, 0
    %v2642 = vsel %vm173, %v2634, 0
    %v2645 = vsel %vm173, %v2635, 0
    %v2648 = vsel %vm173, %v2636, 0
    %v2651 = vsel %vm173, %v2637, 0
    %2653 = vmatpush.bf16.msra.mxu0 0
    %2654 = vmatpush.bf16.msra.mxu0 0
    %2655 = vmatpush.bf16.msra.mxu0 0
    %2656 = vmatpush.bf16.msra.mxu0 0
    %2657 = vmatpush.bf16.msra.mxu0 0
    %2658 = vmatpush.bf16.msra.mxu0 0
    %2659 = vmatpush.bf16.msra.mxu0 0
    %2660 = vmatpush.bf16.msra.mxu0 %v2642
    %2661 = vmatmul.bf16.gmra.mxu0 %v2639
    %v2662 = vpop.f32.mrf.mxu0
    %v2663 = vadd.f32 0.0, %v2662
    %v2664 = vpop.f32.mrf.mxu0
    %2665 = vdwg.mxu0
    %2666 = vmatpush.bf16.msra.mxu0 0
    %2667 = vmatpush.bf16.msra.mxu0 0
    %2668 = vmatpush.bf16.msra.mxu0 0
    %2669 = vmatpush.bf16.msra.mxu0 0
    %2670 = vmatpush.bf16.msra.mxu0 0
    %2671 = vmatpush.bf16.msra.mxu0 0
    %2672 = vmatpush.bf16.msra.mxu0 0
    %2673 = vmatpush.bf16.msra.mxu0 %v2645
    %2674 = vmatmul.bf16.gmra.mxu0 %v2639
    %v2675 = vpop.f32.mrf.mxu0
    %v2676 = vadd.f32 0.0, %v2675
    %v2677 = vpop.f32.mrf.mxu0
    %2678 = vdwg.mxu0
    %2679 = vmatpush.bf16.msra.mxu0 0
    %2680 = vmatpush.bf16.msra.mxu0 0
    %2681 = vmatpush.bf16.msra.mxu0 0
    %2682 = vmatpush.bf16.msra.mxu0 0
    %2683 = vmatpush.bf16.msra.mxu0 0
    %2684 = vmatpush.bf16.msra.mxu0 0
    %2685 = vmatpush.bf16.msra.mxu0 0
    %2686 = vmatpush.bf16.msra.mxu0 %v2648
    %2687 = vmatmul.bf16.gmra.mxu0 %v2639
    %v2688 = vpop.f32.mrf.mxu0
    %v2689 = vadd.f32 0.0, %v2688
    %v2690 = vpop.f32.mrf.mxu0
    %2691 = vdwg.mxu0
    %2692 = vmatpush.bf16.msra.mxu0 0
    %2693 = vmatpush.bf16.msra.mxu0 0
    %2694 = vmatpush.bf16.msra.mxu0 0
    %2695 = vmatpush.bf16.msra.mxu0 0
    %2696 = vmatpush.bf16.msra.mxu0 0
    %2697 = vmatpush.bf16.msra.mxu0 0
    %2698 = vmatpush.bf16.msra.mxu0 0
    %2699 = vmatpush.bf16.msra.mxu0 %v2651
    %2700 = vmatmul.bf16.gmra.mxu0 %v2639
    %v2701 = vpop.f32.mrf.mxu0
    %v2702 = vadd.f32 0.0, %v2701
    %v2703 = vpop.f32.mrf.mxu0
    %2704 = vdwg.mxu0
    %v2705 = vadd.f32 %v2345, %v2663
    %v2706 = vadd.f32 %v2358, %v2676
    %v2707 = vadd.f32 %v2371, %v2689
    %v2708 = vadd.f32 %v2384, %v2702
    %s2709 = scalar_lea.vmem [#allocation9], 768
    %v2710 = vld [vmem:[%s2709] sm:$0xff]
    %v2711 = vld [vmem:[%s2709 + $0x8] sm:$0xff]
    %v2712 = vld [vmem:[%s2709 + $0x10] sm:$0xff]
    %v2713 = vld [vmem:[%s2709 + $0x18] sm:$0xff]
    %v2714 = vld [vmem:[%s2709 + $0x20] sm:$0xff]
    %v2715 = vld [vmem:[%s2709 + $0x28] sm:$0xff]
    %v2716 = vld [vmem:[%s2709 + $0x30] sm:$0xff]
    %v2717 = vld [vmem:[%s2709 + $0x38] sm:$0xff]
    %v2718 = vld [vmem:[%s2709 + $0x40] sm:$0xff]
    %v2719 = vld [vmem:[%s2709 + $0x48] sm:$0xff]
    %v2720 = vld [vmem:[%s2709 + $0x50] sm:$0xff]
    %v2721 = vld [vmem:[%s2709 + $0x58] sm:$0xff]
    %v2722 = vld [vmem:[%s2709 + $0x60] sm:$0xff]
    %v2723 = vld [vmem:[%s2709 + $0x68] sm:$0xff]
    %v2724 = vld [vmem:[%s2709 + $0x70] sm:$0xff]
    %v2725 = vld [vmem:[%s2709 + $0x78] sm:$0xff]
    %v2726 = vld [vmem:[%s2709 + $0x80] sm:$0xff]
    %v2727 = vld [vmem:[%s2709 + $0x88] sm:$0xff]
    %v2728 = vld [vmem:[%s2709 + $0x90] sm:$0xff]
    %v2729 = vld [vmem:[%s2709 + $0x98] sm:$0xff]
    %v2730 = vld [vmem:[%s2709 + $0xa0] sm:$0xff]
    %v2731 = vld [vmem:[%s2709 + $0xa8] sm:$0xff]
    %v2732 = vld [vmem:[%s2709 + $0xb0] sm:$0xff]
    %v2733 = vld [vmem:[%s2709 + $0xb8] sm:$0xff]
    %v2734 = vld [vmem:[%s2709 + $0xc0] sm:$0xff]
    %v2735 = vld [vmem:[%s2709 + $0xc8] sm:$0xff]
    %v2736 = vld [vmem:[%s2709 + $0xd0] sm:$0xff]
    %v2737 = vld [vmem:[%s2709 + $0xd8] sm:$0xff]
    %v2738 = vld [vmem:[%s2709 + $0xe0] sm:$0xff]
    %v2739 = vld [vmem:[%s2709 + $0xe8] sm:$0xff]
    %v2740 = vld [vmem:[%s2709 + $0xf0] sm:$0xff]
    %v2741 = vld [vmem:[%s2709 + $0xf8] sm:$0xff]
    %v2774 = vunpack.c.l.b16 %v2710
    %v2775 = vunpack.c.h.b16 %v2710
    %v2776 = vunpack.c.l.b16 %v2711
    %v2777 = vunpack.c.h.b16 %v2711
    %v2778 = vunpack.c.l.b16 %v2712
    %v2779 = vunpack.c.h.b16 %v2712
    %v2780 = vunpack.c.l.b16 %v2713
    %v2781 = vunpack.c.h.b16 %v2713
    %v2782 = vunpack.c.l.b16 %v2714
    %v2783 = vunpack.c.h.b16 %v2714
    %v2784 = vunpack.c.l.b16 %v2715
    %v2785 = vunpack.c.h.b16 %v2715
    %v2786 = vunpack.c.l.b16 %v2716
    %v2787 = vunpack.c.h.b16 %v2716
    %v2788 = vunpack.c.l.b16 %v2717
    %v2789 = vunpack.c.h.b16 %v2717
    %v2790 = vunpack.c.l.b16 %v2718
    %v2791 = vunpack.c.h.b16 %v2718
    %v2792 = vunpack.c.l.b16 %v2719
    %v2793 = vunpack.c.h.b16 %v2719
    %v2794 = vunpack.c.l.b16 %v2720
    %v2795 = vunpack.c.h.b16 %v2720
    %v2796 = vunpack.c.l.b16 %v2721
    %v2797 = vunpack.c.h.b16 %v2721
    %v2798 = vunpack.c.l.b16 %v2722
    %v2799 = vunpack.c.h.b16 %v2722
    %v2800 = vunpack.c.l.b16 %v2723
    %v2801 = vunpack.c.h.b16 %v2723
    %v2802 = vunpack.c.l.b16 %v2724
    %v2803 = vunpack.c.h.b16 %v2724
    %v2804 = vunpack.c.l.b16 %v2725
    %v2805 = vunpack.c.h.b16 %v2725
    %v2806 = vunpack.c.l.b16 %v2726
    %v2807 = vunpack.c.h.b16 %v2726
    %v2808 = vunpack.c.l.b16 %v2727
    %v2809 = vunpack.c.h.b16 %v2727
    %v2810 = vunpack.c.l.b16 %v2728
    %v2811 = vunpack.c.h.b16 %v2728
    %v2812 = vunpack.c.l.b16 %v2729
    %v2813 = vunpack.c.h.b16 %v2729
    %v2814 = vunpack.c.l.b16 %v2730
    %v2815 = vunpack.c.h.b16 %v2730
    %v2816 = vunpack.c.l.b16 %v2731
    %v2817 = vunpack.c.h.b16 %v2731
    %v2818 = vunpack.c.l.b16 %v2732
    %v2819 = vunpack.c.h.b16 %v2732
    %v2820 = vunpack.c.l.b16 %v2733
    %v2821 = vunpack.c.h.b16 %v2733
    %v2822 = vunpack.c.l.b16 %v2734
    %v2823 = vunpack.c.h.b16 %v2734
    %v2824 = vunpack.c.l.b16 %v2735
    %v2825 = vunpack.c.h.b16 %v2735
    %v2826 = vunpack.c.l.b16 %v2736
    %v2827 = vunpack.c.h.b16 %v2736
    %v2828 = vunpack.c.l.b16 %v2737
    %v2829 = vunpack.c.h.b16 %v2737
    %v2830 = vunpack.c.l.b16 %v2738
    %v2831 = vunpack.c.h.b16 %v2738
    %v2832 = vunpack.c.l.b16 %v2739
    %v2833 = vunpack.c.h.b16 %v2739
    %v2834 = vunpack.c.l.b16 %v2740
    %v2835 = vunpack.c.h.b16 %v2740
    %v2836 = vunpack.c.l.b16 %v2741
    %v2837 = vunpack.c.h.b16 %v2741
    %v2838 = vpack.c.b16 %v2778, %v2774
    %v2839 = vpack.c.b16 %v2779, %v2775
    %v2840 = vpack.c.b16 %v2780, %v2776
    %v2841 = vpack.c.b16 %v2781, %v2777
    %v2842 = vpack.c.b16 %v2786, %v2782
    %v2843 = vpack.c.b16 %v2787, %v2783
    %v2844 = vpack.c.b16 %v2788, %v2784
    %v2845 = vpack.c.b16 %v2789, %v2785
    %v2846 = vpack.c.b16 %v2794, %v2790
    %v2847 = vpack.c.b16 %v2795, %v2791
    %v2848 = vpack.c.b16 %v2796, %v2792
    %v2849 = vpack.c.b16 %v2797, %v2793
    %v2850 = vpack.c.b16 %v2802, %v2798
    %v2851 = vpack.c.b16 %v2803, %v2799
    %v2852 = vpack.c.b16 %v2804, %v2800
    %v2853 = vpack.c.b16 %v2805, %v2801
    %v2854 = vpack.c.b16 %v2810, %v2806
    %v2855 = vpack.c.b16 %v2811, %v2807
    %v2856 = vpack.c.b16 %v2812, %v2808
    %v2857 = vpack.c.b16 %v2813, %v2809
    %v2858 = vpack.c.b16 %v2818, %v2814
    %v2859 = vpack.c.b16 %v2819, %v2815
    %v2860 = vpack.c.b16 %v2820, %v2816
    %v2861 = vpack.c.b16 %v2821, %v2817
    %v2862 = vpack.c.b16 %v2826, %v2822
    %v2863 = vpack.c.b16 %v2827, %v2823
    %v2864 = vpack.c.b16 %v2828, %v2824
    %v2865 = vpack.c.b16 %v2829, %v2825
    %v2866 = vpack.c.b16 %v2834, %v2830
    %v2867 = vpack.c.b16 %v2835, %v2831
    %v2868 = vpack.c.b16 %v2836, %v2832
    %v2869 = vpack.c.b16 %v2837, %v2833
    %2902 = vmatpush.bf16.msra.mxu0 %v2866
    %2903 = vmatpush.bf16.msra.mxu0 %v2862
    %2904 = vmatpush.bf16.msra.mxu0 %v2858
    %2905 = vmatpush.bf16.msra.mxu0 %v2854
    %2906 = vmatpush.bf16.msra.mxu0 %v2850
    %2907 = vmatpush.bf16.msra.mxu0 %v2846
    %2908 = vmatpush.bf16.msra.mxu0 %v2842
    %2909 = vmatpush.bf16.msra.mxu0 %v2838
    %2910 = vmatmul.bf16.gmra.mxu0 %v1751
    %v2911 = vpop.f32.mrf.mxu0
    %v2912 = vadd.f32 0.0, %v2911
    %v2913 = vpop.f32.mrf.mxu0
    %2914 = vdwg.mxu0
    %2915 = vmatpush.bf16.msra.mxu0 %v2867
    %2916 = vmatpush.bf16.msra.mxu0 %v2863
    %2917 = vmatpush.bf16.msra.mxu0 %v2859
    %2918 = vmatpush.bf16.msra.mxu0 %v2855
    %2919 = vmatpush.bf16.msra.mxu0 %v2851
    %2920 = vmatpush.bf16.msra.mxu0 %v2847
    %2921 = vmatpush.bf16.msra.mxu0 %v2843
    %2922 = vmatpush.bf16.msra.mxu0 %v2839
    %2923 = vmatmul.bf16.gmra.mxu0 %v1751
    %v2924 = vpop.f32.mrf.mxu0
    %v2925 = vadd.f32 0.0, %v2924
    %v2926 = vpop.f32.mrf.mxu0
    %2927 = vdwg.mxu0
    %2928 = vmatpush.bf16.msra.mxu0 %v2868
    %2929 = vmatpush.bf16.msra.mxu0 %v2864
    %2930 = vmatpush.bf16.msra.mxu0 %v2860
    %2931 = vmatpush.bf16.msra.mxu0 %v2856
    %2932 = vmatpush.bf16.msra.mxu0 %v2852
    %2933 = vmatpush.bf16.msra.mxu0 %v2848
    %2934 = vmatpush.bf16.msra.mxu0 %v2844
    %2935 = vmatpush.bf16.msra.mxu0 %v2840
    %2936 = vmatmul.bf16.gmra.mxu0 %v1751
    %v2937 = vpop.f32.mrf.mxu0
    %v2938 = vadd.f32 0.0, %v2937
    %v2939 = vpop.f32.mrf.mxu0
    %2940 = vdwg.mxu0
    %2941 = vmatpush.bf16.msra.mxu0 %v2869
    %2942 = vmatpush.bf16.msra.mxu0 %v2865
    %2943 = vmatpush.bf16.msra.mxu0 %v2861
    %2944 = vmatpush.bf16.msra.mxu0 %v2857
    %2945 = vmatpush.bf16.msra.mxu0 %v2853
    %2946 = vmatpush.bf16.msra.mxu0 %v2849
    %2947 = vmatpush.bf16.msra.mxu0 %v2845
    %2948 = vmatpush.bf16.msra.mxu0 %v2841
    %2949 = vmatmul.bf16.gmra.mxu0 %v1751
    %v2950 = vpop.f32.mrf.mxu0
    %v2951 = vadd.f32 0.0, %v2950
    %v2952 = vpop.f32.mrf.mxu0
    %2953 = vdwg.mxu0
    %s2954 = scalar_lea.vmem %s10, 6
    %v2955 = vld [vmem:[%s2954] sm:$0x3]
    %v2956 = vpack.c.bf16 %v2912, %v2912
    %v2957 = vpack.c.bf16 %v2925, %v2925
    %v2958 = vpack.c.bf16 %v2938, %v2938
    %v2959 = vpack.c.bf16 %v2951, %v2951
    %v2961 = vsel %vm2252, %v2955, 0
    %v2964 = vsel %vm173, %v2956, 0
    %v2967 = vsel %vm173, %v2957, 0
    %v2970 = vsel %vm173, %v2958, 0
    %v2973 = vsel %vm173, %v2959, 0
    %2975 = vmatpush.bf16.msra.mxu0 0
    %2976 = vmatpush.bf16.msra.mxu0 0
    %2977 = vmatpush.bf16.msra.mxu0 0
    %2978 = vmatpush.bf16.msra.mxu0 0
    %2979 = vmatpush.bf16.msra.mxu0 0
    %2980 = vmatpush.bf16.msra.mxu0 0
    %2981 = vmatpush.bf16.msra.mxu0 0
    %2982 = vmatpush.bf16.msra.mxu0 %v2964
    %2983 = vmatmul.bf16.gmra.mxu0 %v2961
    %v2984 = vpop.f32.mrf.mxu0
    %v2985 = vadd.f32 0.0, %v2984
    %v2986 = vpop.f32.mrf.mxu0
    %2987 = vdwg.mxu0
    %2988 = vmatpush.bf16.msra.mxu0 0
    %2989 = vmatpush.bf16.msra.mxu0 0
    %2990 = vmatpush.bf16.msra.mxu0 0
    %2991 = vmatpush.bf16.msra.mxu0 0
    %2992 = vmatpush.bf16.msra.mxu0 0
    %2993 = vmatpush.bf16.msra.mxu0 0
    %2994 = vmatpush.bf16.msra.mxu0 0
    %2995 = vmatpush.bf16.msra.mxu0 %v2967
    %2996 = vmatmul.bf16.gmra.mxu0 %v2961
    %v2997 = vpop.f32.mrf.mxu0
    %v2998 = vadd.f32 0.0, %v2997
    %v2999 = vpop.f32.mrf.mxu0
    %3000 = vdwg.mxu0
    %3001 = vmatpush.bf16.msra.mxu0 0
    %3002 = vmatpush.bf16.msra.mxu0 0
    %3003 = vmatpush.bf16.msra.mxu0 0
    %3004 = vmatpush.bf16.msra.mxu0 0
    %3005 = vmatpush.bf16.msra.mxu0 0
    %3006 = vmatpush.bf16.msra.mxu0 0
    %3007 = vmatpush.bf16.msra.mxu0 0
    %3008 = vmatpush.bf16.msra.mxu0 %v2970
    %3009 = vmatmul.bf16.gmra.mxu0 %v2961
    %v3010 = vpop.f32.mrf.mxu0
    %v3011 = vadd.f32 0.0, %v3010
    %v3012 = vpop.f32.mrf.mxu0
    %3013 = vdwg.mxu0
    %3014 = vmatpush.bf16.msra.mxu0 0
    %3015 = vmatpush.bf16.msra.mxu0 0
    %3016 = vmatpush.bf16.msra.mxu0 0
    %3017 = vmatpush.bf16.msra.mxu0 0
    %3018 = vmatpush.bf16.msra.mxu0 0
    %3019 = vmatpush.bf16.msra.mxu0 0
    %3020 = vmatpush.bf16.msra.mxu0 0
    %3021 = vmatpush.bf16.msra.mxu0 %v2973
    %3022 = vmatmul.bf16.gmra.mxu0 %v2961
    %v3023 = vpop.f32.mrf.mxu0
    %v3024 = vadd.f32 0.0, %v3023
    %v3025 = vpop.f32.mrf.mxu0
    %3026 = vdwg.mxu0
    %v3027 = vadd.f32 %v2705, %v2985
    %v3028 = vadd.f32 %v2706, %v2998
    %v3029 = vadd.f32 %v2707, %v3011
    %v3030 = vadd.f32 %v2708, %v3024
    %s3031 = scalar_lea.vmem [#allocation9], 1024
    %v3032 = vld [vmem:[%s3031] sm:$0xff]
    %v3033 = vld [vmem:[%s3031 + $0x8] sm:$0xff]
    %v3034 = vld [vmem:[%s3031 + $0x10] sm:$0xff]
    %v3035 = vld [vmem:[%s3031 + $0x18] sm:$0xff]
    %v3036 = vld [vmem:[%s3031 + $0x20] sm:$0xff]
    %v3037 = vld [vmem:[%s3031 + $0x28] sm:$0xff]
    %v3038 = vld [vmem:[%s3031 + $0x30] sm:$0xff]
    %v3039 = vld [vmem:[%s3031 + $0x38] sm:$0xff]
    %v3040 = vld [vmem:[%s3031 + $0x40] sm:$0xff]
    %v3041 = vld [vmem:[%s3031 + $0x48] sm:$0xff]
    %v3042 = vld [vmem:[%s3031 + $0x50] sm:$0xff]
    %v3043 = vld [vmem:[%s3031 + $0x58] sm:$0xff]
    %v3044 = vld [vmem:[%s3031 + $0x60] sm:$0xff]
    %v3045 = vld [vmem:[%s3031 + $0x68] sm:$0xff]
    %v3046 = vld [vmem:[%s3031 + $0x70] sm:$0xff]
    %v3047 = vld [vmem:[%s3031 + $0x78] sm:$0xff]
    %v3048 = vld [vmem:[%s3031 + $0x80] sm:$0xff]
    %v3049 = vld [vmem:[%s3031 + $0x88] sm:$0xff]
    %v3050 = vld [vmem:[%s3031 + $0x90] sm:$0xff]
    %v3051 = vld [vmem:[%s3031 + $0x98] sm:$0xff]
    %v3052 = vld [vmem:[%s3031 + $0xa0] sm:$0xff]
    %v3053 = vld [vmem:[%s3031 + $0xa8] sm:$0xff]
    %v3054 = vld [vmem:[%s3031 + $0xb0] sm:$0xff]
    %v3055 = vld [vmem:[%s3031 + $0xb8] sm:$0xff]
    %v3056 = vld [vmem:[%s3031 + $0xc0] sm:$0xff]
    %v3057 = vld [vmem:[%s3031 + $0xc8] sm:$0xff]
    %v3058 = vld [vmem:[%s3031 + $0xd0] sm:$0xff]
    %v3059 = vld [vmem:[%s3031 + $0xd8] sm:$0xff]
    %v3060 = vld [vmem:[%s3031 + $0xe0] sm:$0xff]
    %v3061 = vld [vmem:[%s3031 + $0xe8] sm:$0xff]
    %v3062 = vld [vmem:[%s3031 + $0xf0] sm:$0xff]
    %v3063 = vld [vmem:[%s3031 + $0xf8] sm:$0xff]
    %v3096 = vunpack.c.l.b16 %v3032
    %v3097 = vunpack.c.h.b16 %v3032
    %v3098 = vunpack.c.l.b16 %v3033
    %v3099 = vunpack.c.h.b16 %v3033
    %v3100 = vunpack.c.l.b16 %v3034
    %v3101 = vunpack.c.h.b16 %v3034
    %v3102 = vunpack.c.l.b16 %v3035
    %v3103 = vunpack.c.h.b16 %v3035
    %v3104 = vunpack.c.l.b16 %v3036
    %v3105 = vunpack.c.h.b16 %v3036
    %v3106 = vunpack.c.l.b16 %v3037
    %v3107 = vunpack.c.h.b16 %v3037
    %v3108 = vunpack.c.l.b16 %v3038
    %v3109 = vunpack.c.h.b16 %v3038
    %v3110 = vunpack.c.l.b16 %v3039
    %v3111 = vunpack.c.h.b16 %v3039
    %v3112 = vunpack.c.l.b16 %v3040
    %v3113 = vunpack.c.h.b16 %v3040
    %v3114 = vunpack.c.l.b16 %v3041
    %v3115 = vunpack.c.h.b16 %v3041
    %v3116 = vunpack.c.l.b16 %v3042
    %v3117 = vunpack.c.h.b16 %v3042
    %v3118 = vunpack.c.l.b16 %v3043
    %v3119 = vunpack.c.h.b16 %v3043
    %v3120 = vunpack.c.l.b16 %v3044
    %v3121 = vunpack.c.h.b16 %v3044
    %v3122 = vunpack.c.l.b16 %v3045
    %v3123 = vunpack.c.h.b16 %v3045
    %v3124 = vunpack.c.l.b16 %v3046
    %v3125 = vunpack.c.h.b16 %v3046
    %v3126 = vunpack.c.l.b16 %v3047
    %v3127 = vunpack.c.h.b16 %v3047
    %v3128 = vunpack.c.l.b16 %v3048
    %v3129 = vunpack.c.h.b16 %v3048
    %v3130 = vunpack.c.l.b16 %v3049
    %v3131 = vunpack.c.h.b16 %v3049
    %v3132 = vunpack.c.l.b16 %v3050
    %v3133 = vunpack.c.h.b16 %v3050
    %v3134 = vunpack.c.l.b16 %v3051
    %v3135 = vunpack.c.h.b16 %v3051
    %v3136 = vunpack.c.l.b16 %v3052
    %v3137 = vunpack.c.h.b16 %v3052
    %v3138 = vunpack.c.l.b16 %v3053
    %v3139 = vunpack.c.h.b16 %v3053
    %v3140 = vunpack.c.l.b16 %v3054
    %v3141 = vunpack.c.h.b16 %v3054
    %v3142 = vunpack.c.l.b16 %v3055
    %v3143 = vunpack.c.h.b16 %v3055
    %v3144 = vunpack.c.l.b16 %v3056
    %v3145 = vunpack.c.h.b16 %v3056
    %v3146 = vunpack.c.l.b16 %v3057
    %v3147 = vunpack.c.h.b16 %v3057
    %v3148 = vunpack.c.l.b16 %v3058
    %v3149 = vunpack.c.h.b16 %v3058
    %v3150 = vunpack.c.l.b16 %v3059
    %v3151 = vunpack.c.h.b16 %v3059
    %v3152 = vunpack.c.l.b16 %v3060
    %v3153 = vunpack.c.h.b16 %v3060
    %v3154 = vunpack.c.l.b16 %v3061
    %v3155 = vunpack.c.h.b16 %v3061
    %v3156 = vunpack.c.l.b16 %v3062
    %v3157 = vunpack.c.h.b16 %v3062
    %v3158 = vunpack.c.l.b16 %v3063
    %v3159 = vunpack.c.h.b16 %v3063
    %v3160 = vpack.c.b16 %v3100, %v3096
    %v3161 = vpack.c.b16 %v3101, %v3097
    %v3162 = vpack.c.b16 %v3102, %v3098
    %v3163 = vpack.c.b16 %v3103, %v3099
    %v3164 = vpack.c.b16 %v3108, %v3104
    %v3165 = vpack.c.b16 %v3109, %v3105
    %v3166 = vpack.c.b16 %v3110, %v3106
    %v3167 = vpack.c.b16 %v3111, %v3107
    %v3168 = vpack.c.b16 %v3116, %v3112
    %v3169 = vpack.c.b16 %v3117, %v3113
    %v3170 = vpack.c.b16 %v3118, %v3114
    %v3171 = vpack.c.b16 %v3119, %v3115
    %v3172 = vpack.c.b16 %v3124, %v3120
    %v3173 = vpack.c.b16 %v3125, %v3121
    %v3174 = vpack.c.b16 %v3126, %v3122
    %v3175 = vpack.c.b16 %v3127, %v3123
    %v3176 = vpack.c.b16 %v3132, %v3128
    %v3177 = vpack.c.b16 %v3133, %v3129
    %v3178 = vpack.c.b16 %v3134, %v3130
    %v3179 = vpack.c.b16 %v3135, %v3131
    %v3180 = vpack.c.b16 %v3140, %v3136
    %v3181 = vpack.c.b16 %v3141, %v3137
    %v3182 = vpack.c.b16 %v3142, %v3138
    %v3183 = vpack.c.b16 %v3143, %v3139
    %v3184 = vpack.c.b16 %v3148, %v3144
    %v3185 = vpack.c.b16 %v3149, %v3145
    %v3186 = vpack.c.b16 %v3150, %v3146
    %v3187 = vpack.c.b16 %v3151, %v3147
    %v3188 = vpack.c.b16 %v3156, %v3152
    %v3189 = vpack.c.b16 %v3157, %v3153
    %v3190 = vpack.c.b16 %v3158, %v3154
    %v3191 = vpack.c.b16 %v3159, %v3155
    %3224 = vmatpush.bf16.msra.mxu0 %v3188
    %3225 = vmatpush.bf16.msra.mxu0 %v3184
    %3226 = vmatpush.bf16.msra.mxu0 %v3180
    %3227 = vmatpush.bf16.msra.mxu0 %v3176
    %3228 = vmatpush.bf16.msra.mxu0 %v3172
    %3229 = vmatpush.bf16.msra.mxu0 %v3168
    %3230 = vmatpush.bf16.msra.mxu0 %v3164
    %3231 = vmatpush.bf16.msra.mxu0 %v3160
    %3232 = vmatmul.bf16.gmra.mxu0 %v1751
    %v3233 = vpop.f32.mrf.mxu0
    %v3234 = vadd.f32 0.0, %v3233
    %v3235 = vpop.f32.mrf.mxu0
    %3236 = vdwg.mxu0
    %3237 = vmatpush.bf16.msra.mxu0 %v3189
    %3238 = vmatpush.bf16.msra.mxu0 %v3185
    %3239 = vmatpush.bf16.msra.mxu0 %v3181
    %3240 = vmatpush.bf16.msra.mxu0 %v3177
    %3241 = vmatpush.bf16.msra.mxu0 %v3173
    %3242 = vmatpush.bf16.msra.mxu0 %v3169
    %3243 = vmatpush.bf16.msra.mxu0 %v3165
    %3244 = vmatpush.bf16.msra.mxu0 %v3161
    %3245 = vmatmul.bf16.gmra.mxu0 %v1751
    %v3246 = vpop.f32.mrf.mxu0
    %v3247 = vadd.f32 0.0, %v3246
    %v3248 = vpop.f32.mrf.mxu0
    %3249 = vdwg.mxu0
    %3250 = vmatpush.bf16.msra.mxu0 %v3190
    %3251 = vmatpush.bf16.msra.mxu0 %v3186
    %3252 = vmatpush.bf16.msra.mxu0 %v3182
    %3253 = vmatpush.bf16.msra.mxu0 %v3178
    %3254 = vmatpush.bf16.msra.mxu0 %v3174
    %3255 = vmatpush.bf16.msra.mxu0 %v3170
    %3256 = vmatpush.bf16.msra.mxu0 %v3166
    %3257 = vmatpush.bf16.msra.mxu0 %v3162
    %3258 = vmatmul.bf16.gmra.mxu0 %v1751
    %v3259 = vpop.f32.mrf.mxu0
    %v3260 = vadd.f32 0.0, %v3259
    %v3261 = vpop.f32.mrf.mxu0
    %3262 = vdwg.mxu0
    %3263 = vmatpush.bf16.msra.mxu0 %v3191
    %3264 = vmatpush.bf16.msra.mxu0 %v3187
    %3265 = vmatpush.bf16.msra.mxu0 %v3183
    %3266 = vmatpush.bf16.msra.mxu0 %v3179
    %3267 = vmatpush.bf16.msra.mxu0 %v3175
    %3268 = vmatpush.bf16.msra.mxu0 %v3171
    %3269 = vmatpush.bf16.msra.mxu0 %v3167
    %3270 = vmatpush.bf16.msra.mxu0 %v3163
    %3271 = vmatmul.bf16.gmra.mxu0 %v1751
    %v3272 = vpop.f32.mrf.mxu0
    %v3273 = vadd.f32 0.0, %v3272
    %v3274 = vpop.f32.mrf.mxu0
    %3275 = vdwg.mxu0
    %s3276 = scalar_lea.vmem %s10, 8
    %v3277 = vld [vmem:[%s3276] sm:$0x3]
    %v3278 = vpack.c.bf16 %v3234, %v3234
    %v3279 = vpack.c.bf16 %v3247, %v3247
    %v3280 = vpack.c.bf16 %v3260, %v3260
    %v3281 = vpack.c.bf16 %v3273, %v3273
    %v3283 = vsel %vm2252, %v3277, 0
    %v3286 = vsel %vm173, %v3278, 0
    %v3289 = vsel %vm173, %v3279, 0
    %v3292 = vsel %vm173, %v3280, 0
    %v3295 = vsel %vm173, %v3281, 0
    %3297 = vmatpush.bf16.msra.mxu0 0
    %3298 = vmatpush.bf16.msra.mxu0 0
    %3299 = vmatpush.bf16.msra.mxu0 0
    %3300 = vmatpush.bf16.msra.mxu0 0
    %3301 = vmatpush.bf16.msra.mxu0 0
    %3302 = vmatpush.bf16.msra.mxu0 0
    %3303 = vmatpush.bf16.msra.mxu0 0
    %3304 = vmatpush.bf16.msra.mxu0 %v3286
    %3305 = vmatmul.bf16.gmra.mxu0 %v3283
    %v3306 = vpop.f32.mrf.mxu0
    %v3307 = vadd.f32 0.0, %v3306
    %v3308 = vpop.f32.mrf.mxu0
    %3309 = vdwg.mxu0
    %3310 = vmatpush.bf16.msra.mxu0 0
    %3311 = vmatpush.bf16.msra.mxu0 0
    %3312 = vmatpush.bf16.msra.mxu0 0
    %3313 = vmatpush.bf16.msra.mxu0 0
    %3314 = vmatpush.bf16.msra.mxu0 0
    %3315 = vmatpush.bf16.msra.mxu0 0
    %3316 = vmatpush.bf16.msra.mxu0 0
    %3317 = vmatpush.bf16.msra.mxu0 %v3289
    %3318 = vmatmul.bf16.gmra.mxu0 %v3283
    %v3319 = vpop.f32.mrf.mxu0
    %v3320 = vadd.f32 0.0, %v3319
    %v3321 = vpop.f32.mrf.mxu0
    %3322 = vdwg.mxu0
    %3323 = vmatpush.bf16.msra.mxu0 0
    %3324 = vmatpush.bf16.msra.mxu0 0
    %3325 = vmatpush.bf16.msra.mxu0 0
    %3326 = vmatpush.bf16.msra.mxu0 0
    %3327 = vmatpush.bf16.msra.mxu0 0
    %3328 = vmatpush.bf16.msra.mxu0 0
    %3329 = vmatpush.bf16.msra.mxu0 0
    %3330 = vmatpush.bf16.msra.mxu0 %v3292
    %3331 = vmatmul.bf16.gmra.mxu0 %v3283
    %v3332 = vpop.f32.mrf.mxu0
    %v3333 = vadd.f32 0.0, %v3332
    %v3334 = vpop.f32.mrf.mxu0
    %3335 = vdwg.mxu0
    %3336 = vmatpush.bf16.msra.mxu0 0
    %3337 = vmatpush.bf16.msra.mxu0 0
    %3338 = vmatpush.bf16.msra.mxu0 0
    %3339 = vmatpush.bf16.msra.mxu0 0
    %3340 = vmatpush.bf16.msra.mxu0 0
    %3341 = vmatpush.bf16.msra.mxu0 0
    %3342 = vmatpush.bf16.msra.mxu0 0
    %3343 = vmatpush.bf16.msra.mxu0 %v3295
    %3344 = vmatmul.bf16.gmra.mxu0 %v3283
    %v3345 = vpop.f32.mrf.mxu0
    %v3346 = vadd.f32 0.0, %v3345
    %v3347 = vpop.f32.mrf.mxu0
    %3348 = vdwg.mxu0
    %v3349 = vadd.f32 %v3027, %v3307
    %v3350 = vadd.f32 %v3028, %v3320
    %v3351 = vadd.f32 %v3029, %v3333
    %v3352 = vadd.f32 %v3030, %v3346
    %s3353 = scalar_lea.vmem [#allocation9], 1280
    %v3354 = vld [vmem:[%s3353] sm:$0xff]
    %v3355 = vld [vmem:[%s3353 + $0x8] sm:$0xff]
    %v3356 = vld [vmem:[%s3353 + $0x10] sm:$0xff]
    %v3357 = vld [vmem:[%s3353 + $0x18] sm:$0xff]
    %v3358 = vld [vmem:[%s3353 + $0x20] sm:$0xff]
    %v3359 = vld [vmem:[%s3353 + $0x28] sm:$0xff]
    %v3360 = vld [vmem:[%s3353 + $0x30] sm:$0xff]
    %v3361 = vld [vmem:[%s3353 + $0x38] sm:$0xff]
    %v3362 = vld [vmem:[%s3353 + $0x40] sm:$0xff]
    %v3363 = vld [vmem:[%s3353 + $0x48] sm:$0xff]
    %v3364 = vld [vmem:[%s3353 + $0x50] sm:$0xff]
    %v3365 = vld [vmem:[%s3353 + $0x58] sm:$0xff]
    %v3366 = vld [vmem:[%s3353 + $0x60] sm:$0xff]
    %v3367 = vld [vmem:[%s3353 + $0x68] sm:$0xff]
    %v3368 = vld [vmem:[%s3353 + $0x70] sm:$0xff]
    %v3369 = vld [vmem:[%s3353 + $0x78] sm:$0xff]
    %v3370 = vld [vmem:[%s3353 + $0x80] sm:$0xff]
    %v3371 = vld [vmem:[%s3353 + $0x88] sm:$0xff]
    %v3372 = vld [vmem:[%s3353 + $0x90] sm:$0xff]
    %v3373 = vld [vmem:[%s3353 + $0x98] sm:$0xff]
    %v3374 = vld [vmem:[%s3353 + $0xa0] sm:$0xff]
    %v3375 = vld [vmem:[%s3353 + $0xa8] sm:$0xff]
    %v3376 = vld [vmem:[%s3353 + $0xb0] sm:$0xff]
    %v3377 = vld [vmem:[%s3353 + $0xb8] sm:$0xff]
    %v3378 = vld [vmem:[%s3353 + $0xc0] sm:$0xff]
    %v3379 = vld [vmem:[%s3353 + $0xc8] sm:$0xff]
    %v3380 = vld [vmem:[%s3353 + $0xd0] sm:$0xff]
    %v3381 = vld [vmem:[%s3353 + $0xd8] sm:$0xff]
    %v3382 = vld [vmem:[%s3353 + $0xe0] sm:$0xff]
    %v3383 = vld [vmem:[%s3353 + $0xe8] sm:$0xff]
    %v3384 = vld [vmem:[%s3353 + $0xf0] sm:$0xff]
    %v3385 = vld [vmem:[%s3353 + $0xf8] sm:$0xff]
    %v3418 = vunpack.c.l.b16 %v3354
    %v3419 = vunpack.c.h.b16 %v3354
    %v3420 = vunpack.c.l.b16 %v3355
    %v3421 = vunpack.c.h.b16 %v3355
    %v3422 = vunpack.c.l.b16 %v3356
    %v3423 = vunpack.c.h.b16 %v3356
    %v3424 = vunpack.c.l.b16 %v3357
    %v3425 = vunpack.c.h.b16 %v3357
    %v3426 = vunpack.c.l.b16 %v3358
    %v3427 = vunpack.c.h.b16 %v3358
    %v3428 = vunpack.c.l.b16 %v3359
    %v3429 = vunpack.c.h.b16 %v3359
    %v3430 = vunpack.c.l.b16 %v3360
    %v3431 = vunpack.c.h.b16 %v3360
    %v3432 = vunpack.c.l.b16 %v3361
    %v3433 = vunpack.c.h.b16 %v3361
    %v3434 = vunpack.c.l.b16 %v3362
    %v3435 = vunpack.c.h.b16 %v3362
    %v3436 = vunpack.c.l.b16 %v3363
    %v3437 = vunpack.c.h.b16 %v3363
    %v3438 = vunpack.c.l.b16 %v3364
    %v3439 = vunpack.c.h.b16 %v3364
    %v3440 = vunpack.c.l.b16 %v3365
    %v3441 = vunpack.c.h.b16 %v3365
    %v3442 = vunpack.c.l.b16 %v3366
    %v3443 = vunpack.c.h.b16 %v3366
    %v3444 = vunpack.c.l.b16 %v3367
    %v3445 = vunpack.c.h.b16 %v3367
    %v3446 = vunpack.c.l.b16 %v3368
    %v3447 = vunpack.c.h.b16 %v3368
    %v3448 = vunpack.c.l.b16 %v3369
    %v3449 = vunpack.c.h.b16 %v3369
    %v3450 = vunpack.c.l.b16 %v3370
    %v3451 = vunpack.c.h.b16 %v3370
    %v3452 = vunpack.c.l.b16 %v3371
    %v3453 = vunpack.c.h.b16 %v3371
    %v3454 = vunpack.c.l.b16 %v3372
    %v3455 = vunpack.c.h.b16 %v3372
    %v3456 = vunpack.c.l.b16 %v3373
    %v3457 = vunpack.c.h.b16 %v3373
    %v3458 = vunpack.c.l.b16 %v3374
    %v3459 = vunpack.c.h.b16 %v3374
    %v3460 = vunpack.c.l.b16 %v3375
    %v3461 = vunpack.c.h.b16 %v3375
    %v3462 = vunpack.c.l.b16 %v3376
    %v3463 = vunpack.c.h.b16 %v3376
    %v3464 = vunpack.c.l.b16 %v3377
    %v3465 = vunpack.c.h.b16 %v3377
    %v3466 = vunpack.c.l.b16 %v3378
    %v3467 = vunpack.c.h.b16 %v3378
    %v3468 = vunpack.c.l.b16 %v3379
    %v3469 = vunpack.c.h.b16 %v3379
    %v3470 = vunpack.c.l.b16 %v3380
    %v3471 = vunpack.c.h.b16 %v3380
    %v3472 = vunpack.c.l.b16 %v3381
    %v3473 = vunpack.c.h.b16 %v3381
    %v3474 = vunpack.c.l.b16 %v3382
    %v3475 = vunpack.c.h.b16 %v3382
    %v3476 = vunpack.c.l.b16 %v3383
    %v3477 = vunpack.c.h.b16 %v3383
    %v3478 = vunpack.c.l.b16 %v3384
    %v3479 = vunpack.c.h.b16 %v3384
    %v3480 = vunpack.c.l.b16 %v3385
    %v3481 = vunpack.c.h.b16 %v3385
    %v3482 = vpack.c.b16 %v3422, %v3418
    %v3483 = vpack.c.b16 %v3423, %v3419
    %v3484 = vpack.c.b16 %v3424, %v3420
    %v3485 = vpack.c.b16 %v3425, %v3421
    %v3486 = vpack.c.b16 %v3430, %v3426
    %v3487 = vpack.c.b16 %v3431, %v3427
    %v3488 = vpack.c.b16 %v3432, %v3428
    %v3489 = vpack.c.b16 %v3433, %v3429
    %v3490 = vpack.c.b16 %v3438, %v3434
    %v3491 = vpack.c.b16 %v3439, %v3435
    %v3492 = vpack.c.b16 %v3440, %v3436
    %v3493 = vpack.c.b16 %v3441, %v3437
    %v3494 = vpack.c.b16 %v3446, %v3442
    %v3495 = vpack.c.b16 %v3447, %v3443
    %v3496 = vpack.c.b16 %v3448, %v3444
    %v3497 = vpack.c.b16 %v3449, %v3445
    %v3498 = vpack.c.b16 %v3454, %v3450
    %v3499 = vpack.c.b16 %v3455, %v3451
    %v3500 = vpack.c.b16 %v3456, %v3452
    %v3501 = vpack.c.b16 %v3457, %v3453
    %v3502 = vpack.c.b16 %v3462, %v3458
    %v3503 = vpack.c.b16 %v3463, %v3459
    %v3504 = vpack.c.b16 %v3464, %v3460
    %v3505 = vpack.c.b16 %v3465, %v3461
    %v3506 = vpack.c.b16 %v3470, %v3466
    %v3507 = vpack.c.b16 %v3471, %v3467
    %v3508 = vpack.c.b16 %v3472, %v3468
    %v3509 = vpack.c.b16 %v3473, %v3469
    %v3510 = vpack.c.b16 %v3478, %v3474
    %v3511 = vpack.c.b16 %v3479, %v3475
    %v3512 = vpack.c.b16 %v3480, %v3476
    %v3513 = vpack.c.b16 %v3481, %v3477
    %3546 = vmatpush.bf16.msra.mxu0 %v3510
    %3547 = vmatpush.bf16.msra.mxu0 %v3506
    %3548 = vmatpush.bf16.msra.mxu0 %v3502
    %3549 = vmatpush.bf16.msra.mxu0 %v3498
    %3550 = vmatpush.bf16.msra.mxu0 %v3494
    %3551 = vmatpush.bf16.msra.mxu0 %v3490
    %3552 = vmatpush.bf16.msra.mxu0 %v3486
    %3553 = vmatpush.bf16.msra.mxu0 %v3482
    %3554 = vmatmul.bf16.gmra.mxu0 %v1751
    %v3555 = vpop.f32.mrf.mxu0
    %v3556 = vadd.f32 0.0, %v3555
    %v3557 = vpop.f32.mrf.mxu0
    %3558 = vdwg.mxu0
    %3559 = vmatpush.bf16.msra.mxu0 %v3511
    %3560 = vmatpush.bf16.msra.mxu0 %v3507
    %3561 = vmatpush.bf16.msra.mxu0 %v3503
    %3562 = vmatpush.bf16.msra.mxu0 %v3499
    %3563 = vmatpush.bf16.msra.mxu0 %v3495
    %3564 = vmatpush.bf16.msra.mxu0 %v3491
    %3565 = vmatpush.bf16.msra.mxu0 %v3487
    %3566 = vmatpush.bf16.msra.mxu0 %v3483
    %3567 = vmatmul.bf16.gmra.mxu0 %v1751
    %v3568 = vpop.f32.mrf.mxu0
    %v3569 = vadd.f32 0.0, %v3568
    %v3570 = vpop.f32.mrf.mxu0
    %3571 = vdwg.mxu0
    %3572 = vmatpush.bf16.msra.mxu0 %v3512
    %3573 = vmatpush.bf16.msra.mxu0 %v3508
    %3574 = vmatpush.bf16.msra.mxu0 %v3504
    %3575 = vmatpush.bf16.msra.mxu0 %v3500
    %3576 = vmatpush.bf16.msra.mxu0 %v3496
    %3577 = vmatpush.bf16.msra.mxu0 %v3492
    %3578 = vmatpush.bf16.msra.mxu0 %v3488
    %3579 = vmatpush.bf16.msra.mxu0 %v3484
    %3580 = vmatmul.bf16.gmra.mxu0 %v1751
    %v3581 = vpop.f32.mrf.mxu0
    %v3582 = vadd.f32 0.0, %v3581
    %v3583 = vpop.f32.mrf.mxu0
    %3584 = vdwg.mxu0
    %3585 = vmatpush.bf16.msra.mxu0 %v3513
    %3586 = vmatpush.bf16.msra.mxu0 %v3509
    %3587 = vmatpush.bf16.msra.mxu0 %v3505
    %3588 = vmatpush.bf16.msra.mxu0 %v3501
    %3589 = vmatpush.bf16.msra.mxu0 %v3497
    %3590 = vmatpush.bf16.msra.mxu0 %v3493
    %3591 = vmatpush.bf16.msra.mxu0 %v3489
    %3592 = vmatpush.bf16.msra.mxu0 %v3485
    %3593 = vmatmul.bf16.gmra.mxu0 %v1751
    %v3594 = vpop.f32.mrf.mxu0
    %v3595 = vadd.f32 0.0, %v3594
    %v3596 = vpop.f32.mrf.mxu0
    %3597 = vdwg.mxu0
    %s3598 = scalar_lea.vmem %s10, 10
    %v3599 = vld [vmem:[%s3598] sm:$0x3]
    %v3600 = vpack.c.bf16 %v3556, %v3556
    %v3601 = vpack.c.bf16 %v3569, %v3569
    %v3602 = vpack.c.bf16 %v3582, %v3582
    %v3603 = vpack.c.bf16 %v3595, %v3595
    %v3605 = vsel %vm2252, %v3599, 0
    %v3608 = vsel %vm173, %v3600, 0
    %v3611 = vsel %vm173, %v3601, 0
    %v3614 = vsel %vm173, %v3602, 0
    %v3617 = vsel %vm173, %v3603, 0
    %3619 = vmatpush.bf16.msra.mxu0 0
    %3620 = vmatpush.bf16.msra.mxu0 0
    %3621 = vmatpush.bf16.msra.mxu0 0
    %3622 = vmatpush.bf16.msra.mxu0 0
    %3623 = vmatpush.bf16.msra.mxu0 0
    %3624 = vmatpush.bf16.msra.mxu0 0
    %3625 = vmatpush.bf16.msra.mxu0 0
    %3626 = vmatpush.bf16.msra.mxu0 %v3608
    %3627 = vmatmul.bf16.gmra.mxu0 %v3605
    %v3628 = vpop.f32.mrf.mxu0
    %v3629 = vadd.f32 0.0, %v3628
    %v3630 = vpop.f32.mrf.mxu0
    %3631 = vdwg.mxu0
    %3632 = vmatpush.bf16.msra.mxu0 0
    %3633 = vmatpush.bf16.msra.mxu0 0
    %3634 = vmatpush.bf16.msra.mxu0 0
    %3635 = vmatpush.bf16.msra.mxu0 0
    %3636 = vmatpush.bf16.msra.mxu0 0
    %3637 = vmatpush.bf16.msra.mxu0 0
    %3638 = vmatpush.bf16.msra.mxu0 0
    %3639 = vmatpush.bf16.msra.mxu0 %v3611
    %3640 = vmatmul.bf16.gmra.mxu0 %v3605
    %v3641 = vpop.f32.mrf.mxu0
    %v3642 = vadd.f32 0.0, %v3641
    %v3643 = vpop.f32.mrf.mxu0
    %3644 = vdwg.mxu0
    %3645 = vmatpush.bf16.msra.mxu0 0
    %3646 = vmatpush.bf16.msra.mxu0 0
    %3647 = vmatpush.bf16.msra.mxu0 0
    %3648 = vmatpush.bf16.msra.mxu0 0
    %3649 = vmatpush.bf16.msra.mxu0 0
    %3650 = vmatpush.bf16.msra.mxu0 0
    %3651 = vmatpush.bf16.msra.mxu0 0
    %3652 = vmatpush.bf16.msra.mxu0 %v3614
    %3653 = vmatmul.bf16.gmra.mxu0 %v3605
    %v3654 = vpop.f32.mrf.mxu0
    %v3655 = vadd.f32 0.0, %v3654
    %v3656 = vpop.f32.mrf.mxu0
    %3657 = vdwg.mxu0
    %3658 = vmatpush.bf16.msra.mxu0 0
    %3659 = vmatpush.bf16.msra.mxu0 0
    %3660 = vmatpush.bf16.msra.mxu0 0
    %3661 = vmatpush.bf16.msra.mxu0 0
    %3662 = vmatpush.bf16.msra.mxu0 0
    %3663 = vmatpush.bf16.msra.mxu0 0
    %3664 = vmatpush.bf16.msra.mxu0 0
    %3665 = vmatpush.bf16.msra.mxu0 %v3617
    %3666 = vmatmul.bf16.gmra.mxu0 %v3605
    %v3667 = vpop.f32.mrf.mxu0
    %v3668 = vadd.f32 0.0, %v3667
    %v3669 = vpop.f32.mrf.mxu0
    %3670 = vdwg.mxu0
    %v3671 = vadd.f32 %v3349, %v3629
    %v3672 = vadd.f32 %v3350, %v3642
    %v3673 = vadd.f32 %v3351, %v3655
    %v3674 = vadd.f32 %v3352, %v3668
    %s3675 = scalar_lea.vmem [#allocation9], 1536
    %v3676 = vld [vmem:[%s3675] sm:$0xff]
    %v3677 = vld [vmem:[%s3675 + $0x8] sm:$0xff]
    %v3678 = vld [vmem:[%s3675 + $0x10] sm:$0xff]
    %v3679 = vld [vmem:[%s3675 + $0x18] sm:$0xff]
    %v3680 = vld [vmem:[%s3675 + $0x20] sm:$0xff]
    %v3681 = vld [vmem:[%s3675 + $0x28] sm:$0xff]
    %v3682 = vld [vmem:[%s3675 + $0x30] sm:$0xff]
    %v3683 = vld [vmem:[%s3675 + $0x38] sm:$0xff]
    %v3684 = vld [vmem:[%s3675 + $0x40] sm:$0xff]
    %v3685 = vld [vmem:[%s3675 + $0x48] sm:$0xff]
    %v3686 = vld [vmem:[%s3675 + $0x50] sm:$0xff]
    %v3687 = vld [vmem:[%s3675 + $0x58] sm:$0xff]
    %v3688 = vld [vmem:[%s3675 + $0x60] sm:$0xff]
    %v3689 = vld [vmem:[%s3675 + $0x68] sm:$0xff]
    %v3690 = vld [vmem:[%s3675 + $0x70] sm:$0xff]
    %v3691 = vld [vmem:[%s3675 + $0x78] sm:$0xff]
    %v3692 = vld [vmem:[%s3675 + $0x80] sm:$0xff]
    %v3693 = vld [vmem:[%s3675 + $0x88] sm:$0xff]
    %v3694 = vld [vmem:[%s3675 + $0x90] sm:$0xff]
    %v3695 = vld [vmem:[%s3675 + $0x98] sm:$0xff]
    %v3696 = vld [vmem:[%s3675 + $0xa0] sm:$0xff]
    %v3697 = vld [vmem:[%s3675 + $0xa8] sm:$0xff]
    %v3698 = vld [vmem:[%s3675 + $0xb0] sm:$0xff]
    %v3699 = vld [vmem:[%s3675 + $0xb8] sm:$0xff]
    %v3700 = vld [vmem:[%s3675 + $0xc0] sm:$0xff]
    %v3701 = vld [vmem:[%s3675 + $0xc8] sm:$0xff]
    %v3702 = vld [vmem:[%s3675 + $0xd0] sm:$0xff]
    %v3703 = vld [vmem:[%s3675 + $0xd8] sm:$0xff]
    %v3704 = vld [vmem:[%s3675 + $0xe0] sm:$0xff]
    %v3705 = vld [vmem:[%s3675 + $0xe8] sm:$0xff]
    %v3706 = vld [vmem:[%s3675 + $0xf0] sm:$0xff]
    %v3707 = vld [vmem:[%s3675 + $0xf8] sm:$0xff]
    %v3740 = vunpack.c.l.b16 %v3676
    %v3741 = vunpack.c.h.b16 %v3676
    %v3742 = vunpack.c.l.b16 %v3677
    %v3743 = vunpack.c.h.b16 %v3677
    %v3744 = vunpack.c.l.b16 %v3678
    %v3745 = vunpack.c.h.b16 %v3678
    %v3746 = vunpack.c.l.b16 %v3679
    %v3747 = vunpack.c.h.b16 %v3679
    %v3748 = vunpack.c.l.b16 %v3680
    %v3749 = vunpack.c.h.b16 %v3680
    %v3750 = vunpack.c.l.b16 %v3681
    %v3751 = vunpack.c.h.b16 %v3681
    %v3752 = vunpack.c.l.b16 %v3682
    %v3753 = vunpack.c.h.b16 %v3682
    %v3754 = vunpack.c.l.b16 %v3683
    %v3755 = vunpack.c.h.b16 %v3683
    %v3756 = vunpack.c.l.b16 %v3684
    %v3757 = vunpack.c.h.b16 %v3684
    %v3758 = vunpack.c.l.b16 %v3685
    %v3759 = vunpack.c.h.b16 %v3685
    %v3760 = vunpack.c.l.b16 %v3686
    %v3761 = vunpack.c.h.b16 %v3686
    %v3762 = vunpack.c.l.b16 %v3687
    %v3763 = vunpack.c.h.b16 %v3687
    %v3764 = vunpack.c.l.b16 %v3688
    %v3765 = vunpack.c.h.b16 %v3688
    %v3766 = vunpack.c.l.b16 %v3689
    %v3767 = vunpack.c.h.b16 %v3689
    %v3768 = vunpack.c.l.b16 %v3690
    %v3769 = vunpack.c.h.b16 %v3690
    %v3770 = vunpack.c.l.b16 %v3691
    %v3771 = vunpack.c.h.b16 %v3691
    %v3772 = vunpack.c.l.b16 %v3692
    %v3773 = vunpack.c.h.b16 %v3692
    %v3774 = vunpack.c.l.b16 %v3693
    %v3775 = vunpack.c.h.b16 %v3693
    %v3776 = vunpack.c.l.b16 %v3694
    %v3777 = vunpack.c.h.b16 %v3694
    %v3778 = vunpack.c.l.b16 %v3695
    %v3779 = vunpack.c.h.b16 %v3695
    %v3780 = vunpack.c.l.b16 %v3696
    %v3781 = vunpack.c.h.b16 %v3696
    %v3782 = vunpack.c.l.b16 %v3697
    %v3783 = vunpack.c.h.b16 %v3697
    %v3784 = vunpack.c.l.b16 %v3698
    %v3785 = vunpack.c.h.b16 %v3698
    %v3786 = vunpack.c.l.b16 %v3699
    %v3787 = vunpack.c.h.b16 %v3699
    %v3788 = vunpack.c.l.b16 %v3700
    %v3789 = vunpack.c.h.b16 %v3700
    %v3790 = vunpack.c.l.b16 %v3701
    %v3791 = vunpack.c.h.b16 %v3701
    %v3792 = vunpack.c.l.b16 %v3702
    %v3793 = vunpack.c.h.b16 %v3702
    %v3794 = vunpack.c.l.b16 %v3703
    %v3795 = vunpack.c.h.b16 %v3703
    %v3796 = vunpack.c.l.b16 %v3704
    %v3797 = vunpack.c.h.b16 %v3704
    %v3798 = vunpack.c.l.b16 %v3705
    %v3799 = vunpack.c.h.b16 %v3705
    %v3800 = vunpack.c.l.b16 %v3706
    %v3801 = vunpack.c.h.b16 %v3706
    %v3802 = vunpack.c.l.b16 %v3707
    %v3803 = vunpack.c.h.b16 %v3707
    %v3804 = vpack.c.b16 %v3744, %v3740
    %v3805 = vpack.c.b16 %v3745, %v3741
    %v3806 = vpack.c.b16 %v3746, %v3742
    %v3807 = vpack.c.b16 %v3747, %v3743
    %v3808 = vpack.c.b16 %v3752, %v3748
    %v3809 = vpack.c.b16 %v3753, %v3749
    %v3810 = vpack.c.b16 %v3754, %v3750
    %v3811 = vpack.c.b16 %v3755, %v3751
    %v3812 = vpack.c.b16 %v3760, %v3756
    %v3813 = vpack.c.b16 %v3761, %v3757
    %v3814 = vpack.c.b16 %v3762, %v3758
    %v3815 = vpack.c.b16 %v3763, %v3759
    %v3816 = vpack.c.b16 %v3768, %v3764
    %v3817 = vpack.c.b16 %v3769, %v3765
    %v3818 = vpack.c.b16 %v3770, %v3766
    %v3819 = vpack.c.b16 %v3771, %v3767
    %v3820 = vpack.c.b16 %v3776, %v3772
    %v3821 = vpack.c.b16 %v3777, %v3773
    %v3822 = vpack.c.b16 %v3778, %v3774
    %v3823 = vpack.c.b16 %v3779, %v3775
    %v3824 = vpack.c.b16 %v3784, %v3780
    %v3825 = vpack.c.b16 %v3785, %v3781
    %v3826 = vpack.c.b16 %v3786, %v3782
    %v3827 = vpack.c.b16 %v3787, %v3783
    %v3828 = vpack.c.b16 %v3792, %v3788
    %v3829 = vpack.c.b16 %v3793, %v3789
    %v3830 = vpack.c.b16 %v3794, %v3790
    %v3831 = vpack.c.b16 %v3795, %v3791
    %v3832 = vpack.c.b16 %v3800, %v3796
    %v3833 = vpack.c.b16 %v3801, %v3797
    %v3834 = vpack.c.b16 %v3802, %v3798
    %v3835 = vpack.c.b16 %v3803, %v3799
    %3868 = vmatpush.bf16.msra.mxu0 %v3832
    %3869 = vmatpush.bf16.msra.mxu0 %v3828
    %3870 = vmatpush.bf16.msra.mxu0 %v3824
    %3871 = vmatpush.bf16.msra.mxu0 %v3820
    %3872 = vmatpush.bf16.msra.mxu0 %v3816
    %3873 = vmatpush.bf16.msra.mxu0 %v3812
    %3874 = vmatpush.bf16.msra.mxu0 %v3808
    %3875 = vmatpush.bf16.msra.mxu0 %v3804
    %3876 = vmatmul.bf16.gmra.mxu0 %v1751
    %v3877 = vpop.f32.mrf.mxu0
    %v3878 = vadd.f32 0.0, %v3877
    %v3879 = vpop.f32.mrf.mxu0
    %3880 = vdwg.mxu0
    %3881 = vmatpush.bf16.msra.mxu0 %v3833
    %3882 = vmatpush.bf16.msra.mxu0 %v3829
    %3883 = vmatpush.bf16.msra.mxu0 %v3825
    %3884 = vmatpush.bf16.msra.mxu0 %v3821
    %3885 = vmatpush.bf16.msra.mxu0 %v3817
    %3886 = vmatpush.bf16.msra.mxu0 %v3813
    %3887 = vmatpush.bf16.msra.mxu0 %v3809
    %3888 = vmatpush.bf16.msra.mxu0 %v3805
    %3889 = vmatmul.bf16.gmra.mxu0 %v1751
    %v3890 = vpop.f32.mrf.mxu0
    %v3891 = vadd.f32 0.0, %v3890
    %v3892 = vpop.f32.mrf.mxu0
    %3893 = vdwg.mxu0
    %3894 = vmatpush.bf16.msra.mxu0 %v3834
    %3895 = vmatpush.bf16.msra.mxu0 %v3830
    %3896 = vmatpush.bf16.msra.mxu0 %v3826
    %3897 = vmatpush.bf16.msra.mxu0 %v3822
    %3898 = vmatpush.bf16.msra.mxu0 %v3818
    %3899 = vmatpush.bf16.msra.mxu0 %v3814
    %3900 = vmatpush.bf16.msra.mxu0 %v3810
    %3901 = vmatpush.bf16.msra.mxu0 %v3806
    %3902 = vmatmul.bf16.gmra.mxu0 %v1751
    %v3903 = vpop.f32.mrf.mxu0
    %v3904 = vadd.f32 0.0, %v3903
    %v3905 = vpop.f32.mrf.mxu0
    %3906 = vdwg.mxu0
    %3907 = vmatpush.bf16.msra.mxu0 %v3835
    %3908 = vmatpush.bf16.msra.mxu0 %v3831
    %3909 = vmatpush.bf16.msra.mxu0 %v3827
    %3910 = vmatpush.bf16.msra.mxu0 %v3823
    %3911 = vmatpush.bf16.msra.mxu0 %v3819
    %3912 = vmatpush.bf16.msra.mxu0 %v3815
    %3913 = vmatpush.bf16.msra.mxu0 %v3811
    %3914 = vmatpush.bf16.msra.mxu0 %v3807
    %3915 = vmatmul.bf16.gmra.mxu0 %v1751
    %v3916 = vpop.f32.mrf.mxu0
    %v3917 = vadd.f32 0.0, %v3916
    %v3918 = vpop.f32.mrf.mxu0
    %3919 = vdwg.mxu0
    %s3920 = scalar_lea.vmem %s10, 12
    %v3921 = vld [vmem:[%s3920] sm:$0x3]
    %v3922 = vpack.c.bf16 %v3878, %v3878
    %v3923 = vpack.c.bf16 %v3891, %v3891
    %v3924 = vpack.c.bf16 %v3904, %v3904
    %v3925 = vpack.c.bf16 %v3917, %v3917
    %v3927 = vsel %vm2252, %v3921, 0
    %v3930 = vsel %vm173, %v3922, 0
    %v3933 = vsel %vm173, %v3923, 0
    %v3936 = vsel %vm173, %v3924, 0
    %v3939 = vsel %vm173, %v3925, 0
    %3941 = vmatpush.bf16.msra.mxu0 0
    %3942 = vmatpush.bf16.msra.mxu0 0
    %3943 = vmatpush.bf16.msra.mxu0 0
    %3944 = vmatpush.bf16.msra.mxu0 0
    %3945 = vmatpush.bf16.msra.mxu0 0
    %3946 = vmatpush.bf16.msra.mxu0 0
    %3947 = vmatpush.bf16.msra.mxu0 0
    %3948 = vmatpush.bf16.msra.mxu0 %v3930
    %3949 = vmatmul.bf16.gmra.mxu0 %v3927
    %v3950 = vpop.f32.mrf.mxu0
    %v3951 = vadd.f32 0.0, %v3950
    %v3952 = vpop.f32.mrf.mxu0
    %3953 = vdwg.mxu0
    %3954 = vmatpush.bf16.msra.mxu0 0
    %3955 = vmatpush.bf16.msra.mxu0 0
    %3956 = vmatpush.bf16.msra.mxu0 0
    %3957 = vmatpush.bf16.msra.mxu0 0
    %3958 = vmatpush.bf16.msra.mxu0 0
    %3959 = vmatpush.bf16.msra.mxu0 0
    %3960 = vmatpush.bf16.msra.mxu0 0
    %3961 = vmatpush.bf16.msra.mxu0 %v3933
    %3962 = vmatmul.bf16.gmra.mxu0 %v3927
    %v3963 = vpop.f32.mrf.mxu0
    %v3964 = vadd.f32 0.0, %v3963
    %v3965 = vpop.f32.mrf.mxu0
    %3966 = vdwg.mxu0
    %3967 = vmatpush.bf16.msra.mxu0 0
    %3968 = vmatpush.bf16.msra.mxu0 0
    %3969 = vmatpush.bf16.msra.mxu0 0
    %3970 = vmatpush.bf16.msra.mxu0 0
    %3971 = vmatpush.bf16.msra.mxu0 0
    %3972 = vmatpush.bf16.msra.mxu0 0
    %3973 = vmatpush.bf16.msra.mxu0 0
    %3974 = vmatpush.bf16.msra.mxu0 %v3936
    %3975 = vmatmul.bf16.gmra.mxu0 %v3927
    %v3976 = vpop.f32.mrf.mxu0
    %v3977 = vadd.f32 0.0, %v3976
    %v3978 = vpop.f32.mrf.mxu0
    %3979 = vdwg.mxu0
    %3980 = vmatpush.bf16.msra.mxu0 0
    %3981 = vmatpush.bf16.msra.mxu0 0
    %3982 = vmatpush.bf16.msra.mxu0 0
    %3983 = vmatpush.bf16.msra.mxu0 0
    %3984 = vmatpush.bf16.msra.mxu0 0
    %3985 = vmatpush.bf16.msra.mxu0 0
    %3986 = vmatpush.bf16.msra.mxu0 0
    %3987 = vmatpush.bf16.msra.mxu0 %v3939
    %3988 = vmatmul.bf16.gmra.mxu0 %v3927
    %v3989 = vpop.f32.mrf.mxu0
    %v3990 = vadd.f32 0.0, %v3989
    %v3991 = vpop.f32.mrf.mxu0
    %3992 = vdwg.mxu0
    %v3993 = vadd.f32 %v3671, %v3951
    %v3994 = vadd.f32 %v3672, %v3964
    %v3995 = vadd.f32 %v3673, %v3977
    %v3996 = vadd.f32 %v3674, %v3990
    %s3997 = scalar_lea.vmem [#allocation9], 1792
    %v3998 = vld [vmem:[%s3997] sm:$0xff]
    %v3999 = vld [vmem:[%s3997 + $0x8] sm:$0xff]
    %v4000 = vld [vmem:[%s3997 + $0x10] sm:$0xff]
    %v4001 = vld [vmem:[%s3997 + $0x18] sm:$0xff]
    %v4002 = vld [vmem:[%s3997 + $0x20] sm:$0xff]
    %v4003 = vld [vmem:[%s3997 + $0x28] sm:$0xff]
    %v4004 = vld [vmem:[%s3997 + $0x30] sm:$0xff]
    %v4005 = vld [vmem:[%s3997 + $0x38] sm:$0xff]
    %v4006 = vld [vmem:[%s3997 + $0x40] sm:$0xff]
    %v4007 = vld [vmem:[%s3997 + $0x48] sm:$0xff]
    %v4008 = vld [vmem:[%s3997 + $0x50] sm:$0xff]
    %v4009 = vld [vmem:[%s3997 + $0x58] sm:$0xff]
    %v4010 = vld [vmem:[%s3997 + $0x60] sm:$0xff]
    %v4011 = vld [vmem:[%s3997 + $0x68] sm:$0xff]
    %v4012 = vld [vmem:[%s3997 + $0x70] sm:$0xff]
    %v4013 = vld [vmem:[%s3997 + $0x78] sm:$0xff]
    %v4014 = vld [vmem:[%s3997 + $0x80] sm:$0xff]
    %v4015 = vld [vmem:[%s3997 + $0x88] sm:$0xff]
    %v4016 = vld [vmem:[%s3997 + $0x90] sm:$0xff]
    %v4017 = vld [vmem:[%s3997 + $0x98] sm:$0xff]
    %v4018 = vld [vmem:[%s3997 + $0xa0] sm:$0xff]
    %v4019 = vld [vmem:[%s3997 + $0xa8] sm:$0xff]
    %v4020 = vld [vmem:[%s3997 + $0xb0] sm:$0xff]
    %v4021 = vld [vmem:[%s3997 + $0xb8] sm:$0xff]
    %v4022 = vld [vmem:[%s3997 + $0xc0] sm:$0xff]
    %v4023 = vld [vmem:[%s3997 + $0xc8] sm:$0xff]
    %v4024 = vld [vmem:[%s3997 + $0xd0] sm:$0xff]
    %v4025 = vld [vmem:[%s3997 + $0xd8] sm:$0xff]
    %v4026 = vld [vmem:[%s3997 + $0xe0] sm:$0xff]
    %v4027 = vld [vmem:[%s3997 + $0xe8] sm:$0xff]
    %v4028 = vld [vmem:[%s3997 + $0xf0] sm:$0xff]
    %v4029 = vld [vmem:[%s3997 + $0xf8] sm:$0xff]
    %v4062 = vunpack.c.l.b16 %v3998
    %v4063 = vunpack.c.h.b16 %v3998
    %v4064 = vunpack.c.l.b16 %v3999
    %v4065 = vunpack.c.h.b16 %v3999
    %v4066 = vunpack.c.l.b16 %v4000
    %v4067 = vunpack.c.h.b16 %v4000
    %v4068 = vunpack.c.l.b16 %v4001
    %v4069 = vunpack.c.h.b16 %v4001
    %v4070 = vunpack.c.l.b16 %v4002
    %v4071 = vunpack.c.h.b16 %v4002
    %v4072 = vunpack.c.l.b16 %v4003
    %v4073 = vunpack.c.h.b16 %v4003
    %v4074 = vunpack.c.l.b16 %v4004
    %v4075 = vunpack.c.h.b16 %v4004
    %v4076 = vunpack.c.l.b16 %v4005
    %v4077 = vunpack.c.h.b16 %v4005
    %v4078 = vunpack.c.l.b16 %v4006
    %v4079 = vunpack.c.h.b16 %v4006
    %v4080 = vunpack.c.l.b16 %v4007
    %v4081 = vunpack.c.h.b16 %v4007
    %v4082 = vunpack.c.l.b16 %v4008
    %v4083 = vunpack.c.h.b16 %v4008
    %v4084 = vunpack.c.l.b16 %v4009
    %v4085 = vunpack.c.h.b16 %v4009
    %v4086 = vunpack.c.l.b16 %v4010
    %v4087 = vunpack.c.h.b16 %v4010
    %v4088 = vunpack.c.l.b16 %v4011
    %v4089 = vunpack.c.h.b16 %v4011
    %v4090 = vunpack.c.l.b16 %v4012
    %v4091 = vunpack.c.h.b16 %v4012
    %v4092 = vunpack.c.l.b16 %v4013
    %v4093 = vunpack.c.h.b16 %v4013
    %v4094 = vunpack.c.l.b16 %v4014
    %v4095 = vunpack.c.h.b16 %v4014
    %v4096 = vunpack.c.l.b16 %v4015
    %v4097 = vunpack.c.h.b16 %v4015
    %v4098 = vunpack.c.l.b16 %v4016
    %v4099 = vunpack.c.h.b16 %v4016
    %v4100 = vunpack.c.l.b16 %v4017
    %v4101 = vunpack.c.h.b16 %v4017
    %v4102 = vunpack.c.l.b16 %v4018
    %v4103 = vunpack.c.h.b16 %v4018
    %v4104 = vunpack.c.l.b16 %v4019
    %v4105 = vunpack.c.h.b16 %v4019
    %v4106 = vunpack.c.l.b16 %v4020
    %v4107 = vunpack.c.h.b16 %v4020
    %v4108 = vunpack.c.l.b16 %v4021
    %v4109 = vunpack.c.h.b16 %v4021
    %v4110 = vunpack.c.l.b16 %v4022
    %v4111 = vunpack.c.h.b16 %v4022
    %v4112 = vunpack.c.l.b16 %v4023
    %v4113 = vunpack.c.h.b16 %v4023
    %v4114 = vunpack.c.l.b16 %v4024
    %v4115 = vunpack.c.h.b16 %v4024
    %v4116 = vunpack.c.l.b16 %v4025
    %v4117 = vunpack.c.h.b16 %v4025
    %v4118 = vunpack.c.l.b16 %v4026
    %v4119 = vunpack.c.h.b16 %v4026
    %v4120 = vunpack.c.l.b16 %v4027
    %v4121 = vunpack.c.h.b16 %v4027
    %v4122 = vunpack.c.l.b16 %v4028
    %v4123 = vunpack.c.h.b16 %v4028
    %v4124 = vunpack.c.l.b16 %v4029
    %v4125 = vunpack.c.h.b16 %v4029
    %v4126 = vpack.c.b16 %v4066, %v4062
    %v4127 = vpack.c.b16 %v4067, %v4063
    %v4128 = vpack.c.b16 %v4068, %v4064
    %v4129 = vpack.c.b16 %v4069, %v4065
    %v4130 = vpack.c.b16 %v4074, %v4070
    %v4131 = vpack.c.b16 %v4075, %v4071
    %v4132 = vpack.c.b16 %v4076, %v4072
    %v4133 = vpack.c.b16 %v4077, %v4073
    %v4134 = vpack.c.b16 %v4082, %v4078
    %v4135 = vpack.c.b16 %v4083, %v4079
    %v4136 = vpack.c.b16 %v4084, %v4080
    %v4137 = vpack.c.b16 %v4085, %v4081
    %v4138 = vpack.c.b16 %v4090, %v4086
    %v4139 = vpack.c.b16 %v4091, %v4087
    %v4140 = vpack.c.b16 %v4092, %v4088
    %v4141 = vpack.c.b16 %v4093, %v4089
    %v4142 = vpack.c.b16 %v4098, %v4094
    %v4143 = vpack.c.b16 %v4099, %v4095
    %v4144 = vpack.c.b16 %v4100, %v4096
    %v4145 = vpack.c.b16 %v4101, %v4097
    %v4146 = vpack.c.b16 %v4106, %v4102
    %v4147 = vpack.c.b16 %v4107, %v4103
    %v4148 = vpack.c.b16 %v4108, %v4104
    %v4149 = vpack.c.b16 %v4109, %v4105
    %v4150 = vpack.c.b16 %v4114, %v4110
    %v4151 = vpack.c.b16 %v4115, %v4111
    %v4152 = vpack.c.b16 %v4116, %v4112
    %v4153 = vpack.c.b16 %v4117, %v4113
    %v4154 = vpack.c.b16 %v4122, %v4118
    %v4155 = vpack.c.b16 %v4123, %v4119
    %v4156 = vpack.c.b16 %v4124, %v4120
    %v4157 = vpack.c.b16 %v4125, %v4121
    %4190 = vmatpush.bf16.msra.mxu0 %v4154
    %4191 = vmatpush.bf16.msra.mxu0 %v4150
    %4192 = vmatpush.bf16.msra.mxu0 %v4146
    %4193 = vmatpush.bf16.msra.mxu0 %v4142
    %4194 = vmatpush.bf16.msra.mxu0 %v4138
    %4195 = vmatpush.bf16.msra.mxu0 %v4134
    %4196 = vmatpush.bf16.msra.mxu0 %v4130
    %4197 = vmatpush.bf16.msra.mxu0 %v4126
    %4198 = vmatmul.bf16.gmra.mxu0 %v1751
    %v4199 = vpop.f32.mrf.mxu0
    %v4200 = vadd.f32 0.0, %v4199
    %v4201 = vpop.f32.mrf.mxu0
    %4202 = vdwg.mxu0
    %4203 = vmatpush.bf16.msra.mxu0 %v4155
    %4204 = vmatpush.bf16.msra.mxu0 %v4151
    %4205 = vmatpush.bf16.msra.mxu0 %v4147
    %4206 = vmatpush.bf16.msra.mxu0 %v4143
    %4207 = vmatpush.bf16.msra.mxu0 %v4139
    %4208 = vmatpush.bf16.msra.mxu0 %v4135
    %4209 = vmatpush.bf16.msra.mxu0 %v4131
    %4210 = vmatpush.bf16.msra.mxu0 %v4127
    %4211 = vmatmul.bf16.gmra.mxu0 %v1751
    %v4212 = vpop.f32.mrf.mxu0
    %v4213 = vadd.f32 0.0, %v4212
    %v4214 = vpop.f32.mrf.mxu0
    %4215 = vdwg.mxu0
    %4216 = vmatpush.bf16.msra.mxu0 %v4156
    %4217 = vmatpush.bf16.msra.mxu0 %v4152
    %4218 = vmatpush.bf16.msra.mxu0 %v4148
    %4219 = vmatpush.bf16.msra.mxu0 %v4144
    %4220 = vmatpush.bf16.msra.mxu0 %v4140
    %4221 = vmatpush.bf16.msra.mxu0 %v4136
    %4222 = vmatpush.bf16.msra.mxu0 %v4132
    %4223 = vmatpush.bf16.msra.mxu0 %v4128
    %4224 = vmatmul.bf16.gmra.mxu0 %v1751
    %v4225 = vpop.f32.mrf.mxu0
    %v4226 = vadd.f32 0.0, %v4225
    %v4227 = vpop.f32.mrf.mxu0
    %4228 = vdwg.mxu0
    %4229 = vmatpush.bf16.msra.mxu0 %v4157
    %4230 = vmatpush.bf16.msra.mxu0 %v4153
    %4231 = vmatpush.bf16.msra.mxu0 %v4149
    %4232 = vmatpush.bf16.msra.mxu0 %v4145
    %4233 = vmatpush.bf16.msra.mxu0 %v4141
    %4234 = vmatpush.bf16.msra.mxu0 %v4137
    %4235 = vmatpush.bf16.msra.mxu0 %v4133
    %4236 = vmatpush.bf16.msra.mxu0 %v4129
    %4237 = vmatmul.bf16.gmra.mxu0 %v1751
    %v4238 = vpop.f32.mrf.mxu0
    %v4239 = vadd.f32 0.0, %v4238
    %v4240 = vpop.f32.mrf.mxu0
    %4241 = vdwg.mxu0
    %s4242 = scalar_lea.vmem %s10, 14
    %v4243 = vld [vmem:[%s4242] sm:$0x3]
    %v4244 = vpack.c.bf16 %v4200, %v4200
    %v4245 = vpack.c.bf16 %v4213, %v4213
    %v4246 = vpack.c.bf16 %v4226, %v4226
    %v4247 = vpack.c.bf16 %v4239, %v4239
    %v4249 = vsel %vm2252, %v4243, 0
    %v4252 = vsel %vm173, %v4244, 0
    %v4255 = vsel %vm173, %v4245, 0
    %v4258 = vsel %vm173, %v4246, 0
    %v4261 = vsel %vm173, %v4247, 0
    %4263 = vmatpush.bf16.msra.mxu0 0
    %4264 = vmatpush.bf16.msra.mxu0 0
    %4265 = vmatpush.bf16.msra.mxu0 0
    %4266 = vmatpush.bf16.msra.mxu0 0
    %4267 = vmatpush.bf16.msra.mxu0 0
    %4268 = vmatpush.bf16.msra.mxu0 0
    %4269 = vmatpush.bf16.msra.mxu0 0
    %4270 = vmatpush.bf16.msra.mxu0 %v4252
    %4271 = vmatmul.bf16.gmra.mxu0 %v4249
    %v4272 = vpop.f32.mrf.mxu0
    %v4273 = vadd.f32 0.0, %v4272
    %v4274 = vpop.f32.mrf.mxu0
    %4275 = vdwg.mxu0
    %4276 = vmatpush.bf16.msra.mxu0 0
    %4277 = vmatpush.bf16.msra.mxu0 0
    %4278 = vmatpush.bf16.msra.mxu0 0
    %4279 = vmatpush.bf16.msra.mxu0 0
    %4280 = vmatpush.bf16.msra.mxu0 0
    %4281 = vmatpush.bf16.msra.mxu0 0
    %4282 = vmatpush.bf16.msra.mxu0 0
    %4283 = vmatpush.bf16.msra.mxu0 %v4255
    %4284 = vmatmul.bf16.gmra.mxu0 %v4249
    %v4285 = vpop.f32.mrf.mxu0
    %v4286 = vadd.f32 0.0, %v4285
    %v4287 = vpop.f32.mrf.mxu0
    %4288 = vdwg.mxu0
    %4289 = vmatpush.bf16.msra.mxu0 0
    %4290 = vmatpush.bf16.msra.mxu0 0
    %4291 = vmatpush.bf16.msra.mxu0 0
    %4292 = vmatpush.bf16.msra.mxu0 0
    %4293 = vmatpush.bf16.msra.mxu0 0
    %4294 = vmatpush.bf16.msra.mxu0 0
    %4295 = vmatpush.bf16.msra.mxu0 0
    %4296 = vmatpush.bf16.msra.mxu0 %v4258
    %4297 = vmatmul.bf16.gmra.mxu0 %v4249
    %v4298 = vpop.f32.mrf.mxu0
    %v4299 = vadd.f32 0.0, %v4298
    %v4300 = vpop.f32.mrf.mxu0
    %4301 = vdwg.mxu0
    %4302 = vmatpush.bf16.msra.mxu0 0
    %4303 = vmatpush.bf16.msra.mxu0 0
    %4304 = vmatpush.bf16.msra.mxu0 0
    %4305 = vmatpush.bf16.msra.mxu0 0
    %4306 = vmatpush.bf16.msra.mxu0 0
    %4307 = vmatpush.bf16.msra.mxu0 0
    %4308 = vmatpush.bf16.msra.mxu0 0
    %4309 = vmatpush.bf16.msra.mxu0 %v4261
    %4310 = vmatmul.bf16.gmra.mxu0 %v4249
    %v4311 = vpop.f32.mrf.mxu0
    %v4312 = vadd.f32 0.0, %v4311
    %v4313 = vpop.f32.mrf.mxu0
    %4314 = vdwg.mxu0
    %v4315 = vadd.f32 %v3993, %v4273
    %v4316 = vadd.f32 %v3994, %v4286
    %v4317 = vadd.f32 %v3995, %v4299
    %v4318 = vadd.f32 %v3996, %v4312
    %s4319 = scalar_lea.vmem [#allocation9], 2048
    %v4320 = vld [vmem:[%s4319] sm:$0xff]
    %v4321 = vld [vmem:[%s4319 + $0x8] sm:$0xff]
    %v4322 = vld [vmem:[%s4319 + $0x10] sm:$0xff]
    %v4323 = vld [vmem:[%s4319 + $0x18] sm:$0xff]
    %v4324 = vld [vmem:[%s4319 + $0x20] sm:$0xff]
    %v4325 = vld [vmem:[%s4319 + $0x28] sm:$0xff]
    %v4326 = vld [vmem:[%s4319 + $0x30] sm:$0xff]
    %v4327 = vld [vmem:[%s4319 + $0x38] sm:$0xff]
    %v4328 = vld [vmem:[%s4319 + $0x40] sm:$0xff]
    %v4329 = vld [vmem:[%s4319 + $0x48] sm:$0xff]
    %v4330 = vld [vmem:[%s4319 + $0x50] sm:$0xff]
    %v4331 = vld [vmem:[%s4319 + $0x58] sm:$0xff]
    %v4332 = vld [vmem:[%s4319 + $0x60] sm:$0xff]
    %v4333 = vld [vmem:[%s4319 + $0x68] sm:$0xff]
    %v4334 = vld [vmem:[%s4319 + $0x70] sm:$0xff]
    %v4335 = vld [vmem:[%s4319 + $0x78] sm:$0xff]
    %v4336 = vld [vmem:[%s4319 + $0x80] sm:$0xff]
    %v4337 = vld [vmem:[%s4319 + $0x88] sm:$0xff]
    %v4338 = vld [vmem:[%s4319 + $0x90] sm:$0xff]
    %v4339 = vld [vmem:[%s4319 + $0x98] sm:$0xff]
    %v4340 = vld [vmem:[%s4319 + $0xa0] sm:$0xff]
    %v4341 = vld [vmem:[%s4319 + $0xa8] sm:$0xff]
    %v4342 = vld [vmem:[%s4319 + $0xb0] sm:$0xff]
    %v4343 = vld [vmem:[%s4319 + $0xb8] sm:$0xff]
    %v4344 = vld [vmem:[%s4319 + $0xc0] sm:$0xff]
    %v4345 = vld [vmem:[%s4319 + $0xc8] sm:$0xff]
    %v4346 = vld [vmem:[%s4319 + $0xd0] sm:$0xff]
    %v4347 = vld [vmem:[%s4319 + $0xd8] sm:$0xff]
    %v4348 = vld [vmem:[%s4319 + $0xe0] sm:$0xff]
    %v4349 = vld [vmem:[%s4319 + $0xe8] sm:$0xff]
    %v4350 = vld [vmem:[%s4319 + $0xf0] sm:$0xff]
    %v4351 = vld [vmem:[%s4319 + $0xf8] sm:$0xff]
    %v4384 = vunpack.c.l.b16 %v4320
    %v4385 = vunpack.c.h.b16 %v4320
    %v4386 = vunpack.c.l.b16 %v4321
    %v4387 = vunpack.c.h.b16 %v4321
    %v4388 = vunpack.c.l.b16 %v4322
    %v4389 = vunpack.c.h.b16 %v4322
    %v4390 = vunpack.c.l.b16 %v4323
    %v4391 = vunpack.c.h.b16 %v4323
    %v4392 = vunpack.c.l.b16 %v4324
    %v4393 = vunpack.c.h.b16 %v4324
    %v4394 = vunpack.c.l.b16 %v4325
    %v4395 = vunpack.c.h.b16 %v4325
    %v4396 = vunpack.c.l.b16 %v4326
    %v4397 = vunpack.c.h.b16 %v4326
    %v4398 = vunpack.c.l.b16 %v4327
    %v4399 = vunpack.c.h.b16 %v4327
    %v4400 = vunpack.c.l.b16 %v4328
    %v4401 = vunpack.c.h.b16 %v4328
    %v4402 = vunpack.c.l.b16 %v4329
    %v4403 = vunpack.c.h.b16 %v4329
    %v4404 = vunpack.c.l.b16 %v4330
    %v4405 = vunpack.c.h.b16 %v4330
    %v4406 = vunpack.c.l.b16 %v4331
    %v4407 = vunpack.c.h.b16 %v4331
    %v4408 = vunpack.c.l.b16 %v4332
    %v4409 = vunpack.c.h.b16 %v4332
    %v4410 = vunpack.c.l.b16 %v4333
    %v4411 = vunpack.c.h.b16 %v4333
    %v4412 = vunpack.c.l.b16 %v4334
    %v4413 = vunpack.c.h.b16 %v4334
    %v4414 = vunpack.c.l.b16 %v4335
    %v4415 = vunpack.c.h.b16 %v4335
    %v4416 = vunpack.c.l.b16 %v4336
    %v4417 = vunpack.c.h.b16 %v4336
    %v4418 = vunpack.c.l.b16 %v4337
    %v4419 = vunpack.c.h.b16 %v4337
    %v4420 = vunpack.c.l.b16 %v4338
    %v4421 = vunpack.c.h.b16 %v4338
    %v4422 = vunpack.c.l.b16 %v4339
    %v4423 = vunpack.c.h.b16 %v4339
    %v4424 = vunpack.c.l.b16 %v4340
    %v4425 = vunpack.c.h.b16 %v4340
    %v4426 = vunpack.c.l.b16 %v4341
    %v4427 = vunpack.c.h.b16 %v4341
    %v4428 = vunpack.c.l.b16 %v4342
    %v4429 = vunpack.c.h.b16 %v4342
    %v4430 = vunpack.c.l.b16 %v4343
    %v4431 = vunpack.c.h.b16 %v4343
    %v4432 = vunpack.c.l.b16 %v4344
    %v4433 = vunpack.c.h.b16 %v4344
    %v4434 = vunpack.c.l.b16 %v4345
    %v4435 = vunpack.c.h.b16 %v4345
    %v4436 = vunpack.c.l.b16 %v4346
    %v4437 = vunpack.c.h.b16 %v4346
    %v4438 = vunpack.c.l.b16 %v4347
    %v4439 = vunpack.c.h.b16 %v4347
    %v4440 = vunpack.c.l.b16 %v4348
    %v4441 = vunpack.c.h.b16 %v4348
    %v4442 = vunpack.c.l.b16 %v4349
    %v4443 = vunpack.c.h.b16 %v4349
    %v4444 = vunpack.c.l.b16 %v4350
    %v4445 = vunpack.c.h.b16 %v4350
    %v4446 = vunpack.c.l.b16 %v4351
    %v4447 = vunpack.c.h.b16 %v4351
    %v4448 = vpack.c.b16 %v4388, %v4384
    %v4449 = vpack.c.b16 %v4389, %v4385
    %v4450 = vpack.c.b16 %v4390, %v4386
    %v4451 = vpack.c.b16 %v4391, %v4387
    %v4452 = vpack.c.b16 %v4396, %v4392
    %v4453 = vpack.c.b16 %v4397, %v4393
    %v4454 = vpack.c.b16 %v4398, %v4394
    %v4455 = vpack.c.b16 %v4399, %v4395
    %v4456 = vpack.c.b16 %v4404, %v4400
    %v4457 = vpack.c.b16 %v4405, %v4401
    %v4458 = vpack.c.b16 %v4406, %v4402
    %v4459 = vpack.c.b16 %v4407, %v4403
    %v4460 = vpack.c.b16 %v4412, %v4408
    %v4461 = vpack.c.b16 %v4413, %v4409
    %v4462 = vpack.c.b16 %v4414, %v4410
    %v4463 = vpack.c.b16 %v4415, %v4411
    %v4464 = vpack.c.b16 %v4420, %v4416
    %v4465 = vpack.c.b16 %v4421, %v4417
    %v4466 = vpack.c.b16 %v4422, %v4418
    %v4467 = vpack.c.b16 %v4423, %v4419
    %v4468 = vpack.c.b16 %v4428, %v4424
    %v4469 = vpack.c.b16 %v4429, %v4425
    %v4470 = vpack.c.b16 %v4430, %v4426
    %v4471 = vpack.c.b16 %v4431, %v4427
    %v4472 = vpack.c.b16 %v4436, %v4432
    %v4473 = vpack.c.b16 %v4437, %v4433
    %v4474 = vpack.c.b16 %v4438, %v4434
    %v4475 = vpack.c.b16 %v4439, %v4435
    %v4476 = vpack.c.b16 %v4444, %v4440
    %v4477 = vpack.c.b16 %v4445, %v4441
    %v4478 = vpack.c.b16 %v4446, %v4442
    %v4479 = vpack.c.b16 %v4447, %v4443
    %4512 = vmatpush.bf16.msra.mxu0 %v4476
    %4513 = vmatpush.bf16.msra.mxu0 %v4472
    %4514 = vmatpush.bf16.msra.mxu0 %v4468
    %4515 = vmatpush.bf16.msra.mxu0 %v4464
    %4516 = vmatpush.bf16.msra.mxu0 %v4460
    %4517 = vmatpush.bf16.msra.mxu0 %v4456
    %4518 = vmatpush.bf16.msra.mxu0 %v4452
    %4519 = vmatpush.bf16.msra.mxu0 %v4448
    %4520 = vmatmul.bf16.gmra.mxu0 %v1751
    %v4521 = vpop.f32.mrf.mxu0
    %v4522 = vadd.f32 0.0, %v4521
    %v4523 = vpop.f32.mrf.mxu0
    %4524 = vdwg.mxu0
    %4525 = vmatpush.bf16.msra.mxu0 %v4477
    %4526 = vmatpush.bf16.msra.mxu0 %v4473
    %4527 = vmatpush.bf16.msra.mxu0 %v4469
    %4528 = vmatpush.bf16.msra.mxu0 %v4465
    %4529 = vmatpush.bf16.msra.mxu0 %v4461
    %4530 = vmatpush.bf16.msra.mxu0 %v4457
    %4531 = vmatpush.bf16.msra.mxu0 %v4453
    %4532 = vmatpush.bf16.msra.mxu0 %v4449
    %4533 = vmatmul.bf16.gmra.mxu0 %v1751
    %v4534 = vpop.f32.mrf.mxu0
    %v4535 = vadd.f32 0.0, %v4534
    %v4536 = vpop.f32.mrf.mxu0
    %4537 = vdwg.mxu0
    %4538 = vmatpush.bf16.msra.mxu0 %v4478
    %4539 = vmatpush.bf16.msra.mxu0 %v4474
    %4540 = vmatpush.bf16.msra.mxu0 %v4470
    %4541 = vmatpush.bf16.msra.mxu0 %v4466
    %4542 = vmatpush.bf16.msra.mxu0 %v4462
    %4543 = vmatpush.bf16.msra.mxu0 %v4458
    %4544 = vmatpush.bf16.msra.mxu0 %v4454
    %4545 = vmatpush.bf16.msra.mxu0 %v4450
    %4546 = vmatmul.bf16.gmra.mxu0 %v1751
    %v4547 = vpop.f32.mrf.mxu0
    %v4548 = vadd.f32 0.0, %v4547
    %v4549 = vpop.f32.mrf.mxu0
    %4550 = vdwg.mxu0
    %4551 = vmatpush.bf16.msra.mxu0 %v4479
    %4552 = vmatpush.bf16.msra.mxu0 %v4475
    %4553 = vmatpush.bf16.msra.mxu0 %v4471
    %4554 = vmatpush.bf16.msra.mxu0 %v4467
    %4555 = vmatpush.bf16.msra.mxu0 %v4463
    %4556 = vmatpush.bf16.msra.mxu0 %v4459
    %4557 = vmatpush.bf16.msra.mxu0 %v4455
    %4558 = vmatpush.bf16.msra.mxu0 %v4451
    %4559 = vmatmul.bf16.gmra.mxu0 %v1751
    %v4560 = vpop.f32.mrf.mxu0
    %v4561 = vadd.f32 0.0, %v4560
    %v4562 = vpop.f32.mrf.mxu0
    %4563 = vdwg.mxu0
    %s4564 = scalar_lea.vmem %s10, 16
    %v4565 = vld [vmem:[%s4564] sm:$0x3]
    %v4566 = vpack.c.bf16 %v4522, %v4522
    %v4567 = vpack.c.bf16 %v4535, %v4535
    %v4568 = vpack.c.bf16 %v4548, %v4548
    %v4569 = vpack.c.bf16 %v4561, %v4561
    %v4571 = vsel %vm2252, %v4565, 0
    %v4574 = vsel %vm173, %v4566, 0
    %v4577 = vsel %vm173, %v4567, 0
    %v4580 = vsel %vm173, %v4568, 0
    %v4583 = vsel %vm173, %v4569, 0
    %4585 = vmatpush.bf16.msra.mxu0 0
    %4586 = vmatpush.bf16.msra.mxu0 0
    %4587 = vmatpush.bf16.msra.mxu0 0
    %4588 = vmatpush.bf16.msra.mxu0 0
    %4589 = vmatpush.bf16.msra.mxu0 0
    %4590 = vmatpush.bf16.msra.mxu0 0
    %4591 = vmatpush.bf16.msra.mxu0 0
    %4592 = vmatpush.bf16.msra.mxu0 %v4574
    %4593 = vmatmul.bf16.gmra.mxu0 %v4571
    %v4594 = vpop.f32.mrf.mxu0
    %v4595 = vadd.f32 0.0, %v4594
    %v4596 = vpop.f32.mrf.mxu0
    %4597 = vdwg.mxu0
    %4598 = vmatpush.bf16.msra.mxu0 0
    %4599 = vmatpush.bf16.msra.mxu0 0
    %4600 = vmatpush.bf16.msra.mxu0 0
    %4601 = vmatpush.bf16.msra.mxu0 0
    %4602 = vmatpush.bf16.msra.mxu0 0
    %4603 = vmatpush.bf16.msra.mxu0 0
    %4604 = vmatpush.bf16.msra.mxu0 0
    %4605 = vmatpush.bf16.msra.mxu0 %v4577
    %4606 = vmatmul.bf16.gmra.mxu0 %v4571
    %v4607 = vpop.f32.mrf.mxu0
    %v4608 = vadd.f32 0.0, %v4607
    %v4609 = vpop.f32.mrf.mxu0
    %4610 = vdwg.mxu0
    %4611 = vmatpush.bf16.msra.mxu0 0
    %4612 = vmatpush.bf16.msra.mxu0 0
    %4613 = vmatpush.bf16.msra.mxu0 0
    %4614 = vmatpush.bf16.msra.mxu0 0
    %4615 = vmatpush.bf16.msra.mxu0 0
    %4616 = vmatpush.bf16.msra.mxu0 0
    %4617 = vmatpush.bf16.msra.mxu0 0
    %4618 = vmatpush.bf16.msra.mxu0 %v4580
    %4619 = vmatmul.bf16.gmra.mxu0 %v4571
    %v4620 = vpop.f32.mrf.mxu0
    %v4621 = vadd.f32 0.0, %v4620
    %v4622 = vpop.f32.mrf.mxu0
    %4623 = vdwg.mxu0
    %4624 = vmatpush.bf16.msra.mxu0 0
    %4625 = vmatpush.bf16.msra.mxu0 0
    %4626 = vmatpush.bf16.msra.mxu0 0
    %4627 = vmatpush.bf16.msra.mxu0 0
    %4628 = vmatpush.bf16.msra.mxu0 0
    %4629 = vmatpush.bf16.msra.mxu0 0
    %4630 = vmatpush.bf16.msra.mxu0 0
    %4631 = vmatpush.bf16.msra.mxu0 %v4583
    %4632 = vmatmul.bf16.gmra.mxu0 %v4571
    %v4633 = vpop.f32.mrf.mxu0
    %v4634 = vadd.f32 0.0, %v4633
    %v4635 = vpop.f32.mrf.mxu0
    %4636 = vdwg.mxu0
    %v4637 = vadd.f32 %v4315, %v4595
    %v4638 = vadd.f32 %v4316, %v4608
    %v4639 = vadd.f32 %v4317, %v4621
    %v4640 = vadd.f32 %v4318, %v4634
    %s4641 = scalar_lea.vmem [#allocation9], 2304
    %v4642 = vld [vmem:[%s4641] sm:$0xff]
    %v4643 = vld [vmem:[%s4641 + $0x8] sm:$0xff]
    %v4644 = vld [vmem:[%s4641 + $0x10] sm:$0xff]
    %v4645 = vld [vmem:[%s4641 + $0x18] sm:$0xff]
    %v4646 = vld [vmem:[%s4641 + $0x20] sm:$0xff]
    %v4647 = vld [vmem:[%s4641 + $0x28] sm:$0xff]
    %v4648 = vld [vmem:[%s4641 + $0x30] sm:$0xff]
    %v4649 = vld [vmem:[%s4641 + $0x38] sm:$0xff]
    %v4650 = vld [vmem:[%s4641 + $0x40] sm:$0xff]
    %v4651 = vld [vmem:[%s4641 + $0x48] sm:$0xff]
    %v4652 = vld [vmem:[%s4641 + $0x50] sm:$0xff]
    %v4653 = vld [vmem:[%s4641 + $0x58] sm:$0xff]
    %v4654 = vld [vmem:[%s4641 + $0x60] sm:$0xff]
    %v4655 = vld [vmem:[%s4641 + $0x68] sm:$0xff]
    %v4656 = vld [vmem:[%s4641 + $0x70] sm:$0xff]
    %v4657 = vld [vmem:[%s4641 + $0x78] sm:$0xff]
    %v4658 = vld [vmem:[%s4641 + $0x80] sm:$0xff]
    %v4659 = vld [vmem:[%s4641 + $0x88] sm:$0xff]
    %v4660 = vld [vmem:[%s4641 + $0x90] sm:$0xff]
    %v4661 = vld [vmem:[%s4641 + $0x98] sm:$0xff]
    %v4662 = vld [vmem:[%s4641 + $0xa0] sm:$0xff]
    %v4663 = vld [vmem:[%s4641 + $0xa8] sm:$0xff]
    %v4664 = vld [vmem:[%s4641 + $0xb0] sm:$0xff]
    %v4665 = vld [vmem:[%s4641 + $0xb8] sm:$0xff]
    %v4666 = vld [vmem:[%s4641 + $0xc0] sm:$0xff]
    %v4667 = vld [vmem:[%s4641 + $0xc8] sm:$0xff]
    %v4668 = vld [vmem:[%s4641 + $0xd0] sm:$0xff]
    %v4669 = vld [vmem:[%s4641 + $0xd8] sm:$0xff]
    %v4670 = vld [vmem:[%s4641 + $0xe0] sm:$0xff]
    %v4671 = vld [vmem:[%s4641 + $0xe8] sm:$0xff]
    %v4672 = vld [vmem:[%s4641 + $0xf0] sm:$0xff]
    %v4673 = vld [vmem:[%s4641 + $0xf8] sm:$0xff]
    %v4706 = vunpack.c.l.b16 %v4642
    %v4707 = vunpack.c.h.b16 %v4642
    %v4708 = vunpack.c.l.b16 %v4643
    %v4709 = vunpack.c.h.b16 %v4643
    %v4710 = vunpack.c.l.b16 %v4644
    %v4711 = vunpack.c.h.b16 %v4644
    %v4712 = vunpack.c.l.b16 %v4645
    %v4713 = vunpack.c.h.b16 %v4645
    %v4714 = vunpack.c.l.b16 %v4646
    %v4715 = vunpack.c.h.b16 %v4646
    %v4716 = vunpack.c.l.b16 %v4647
    %v4717 = vunpack.c.h.b16 %v4647
    %v4718 = vunpack.c.l.b16 %v4648
    %v4719 = vunpack.c.h.b16 %v4648
    %v4720 = vunpack.c.l.b16 %v4649
    %v4721 = vunpack.c.h.b16 %v4649
    %v4722 = vunpack.c.l.b16 %v4650
    %v4723 = vunpack.c.h.b16 %v4650
    %v4724 = vunpack.c.l.b16 %v4651
    %v4725 = vunpack.c.h.b16 %v4651
    %v4726 = vunpack.c.l.b16 %v4652
    %v4727 = vunpack.c.h.b16 %v4652
    %v4728 = vunpack.c.l.b16 %v4653
    %v4729 = vunpack.c.h.b16 %v4653
    %v4730 = vunpack.c.l.b16 %v4654
    %v4731 = vunpack.c.h.b16 %v4654
    %v4732 = vunpack.c.l.b16 %v4655
    %v4733 = vunpack.c.h.b16 %v4655
    %v4734 = vunpack.c.l.b16 %v4656
    %v4735 = vunpack.c.h.b16 %v4656
    %v4736 = vunpack.c.l.b16 %v4657
    %v4737 = vunpack.c.h.b16 %v4657
    %v4738 = vunpack.c.l.b16 %v4658
    %v4739 = vunpack.c.h.b16 %v4658
    %v4740 = vunpack.c.l.b16 %v4659
    %v4741 = vunpack.c.h.b16 %v4659
    %v4742 = vunpack.c.l.b16 %v4660
    %v4743 = vunpack.c.h.b16 %v4660
    %v4744 = vunpack.c.l.b16 %v4661
    %v4745 = vunpack.c.h.b16 %v4661
    %v4746 = vunpack.c.l.b16 %v4662
    %v4747 = vunpack.c.h.b16 %v4662
    %v4748 = vunpack.c.l.b16 %v4663
    %v4749 = vunpack.c.h.b16 %v4663
    %v4750 = vunpack.c.l.b16 %v4664
    %v4751 = vunpack.c.h.b16 %v4664
    %v4752 = vunpack.c.l.b16 %v4665
    %v4753 = vunpack.c.h.b16 %v4665
    %v4754 = vunpack.c.l.b16 %v4666
    %v4755 = vunpack.c.h.b16 %v4666
    %v4756 = vunpack.c.l.b16 %v4667
    %v4757 = vunpack.c.h.b16 %v4667
    %v4758 = vunpack.c.l.b16 %v4668
    %v4759 = vunpack.c.h.b16 %v4668
    %v4760 = vunpack.c.l.b16 %v4669
    %v4761 = vunpack.c.h.b16 %v4669
    %v4762 = vunpack.c.l.b16 %v4670
    %v4763 = vunpack.c.h.b16 %v4670
    %v4764 = vunpack.c.l.b16 %v4671
    %v4765 = vunpack.c.h.b16 %v4671
    %v4766 = vunpack.c.l.b16 %v4672
    %v4767 = vunpack.c.h.b16 %v4672
    %v4768 = vunpack.c.l.b16 %v4673
    %v4769 = vunpack.c.h.b16 %v4673
    %v4770 = vpack.c.b16 %v4710, %v4706
    %v4771 = vpack.c.b16 %v4711, %v4707
    %v4772 = vpack.c.b16 %v4712, %v4708
    %v4773 = vpack.c.b16 %v4713, %v4709
    %v4774 = vpack.c.b16 %v4718, %v4714
    %v4775 = vpack.c.b16 %v4719, %v4715
    %v4776 = vpack.c.b16 %v4720, %v4716
    %v4777 = vpack.c.b16 %v4721, %v4717
    %v4778 = vpack.c.b16 %v4726, %v4722
    %v4779 = vpack.c.b16 %v4727, %v4723
    %v4780 = vpack.c.b16 %v4728, %v4724
    %v4781 = vpack.c.b16 %v4729, %v4725
    %v4782 = vpack.c.b16 %v4734, %v4730
    %v4783 = vpack.c.b16 %v4735, %v4731
    %v4784 = vpack.c.b16 %v4736, %v4732
    %v4785 = vpack.c.b16 %v4737, %v4733
    %v4786 = vpack.c.b16 %v4742, %v4738
    %v4787 = vpack.c.b16 %v4743, %v4739
    %v4788 = vpack.c.b16 %v4744, %v4740
    %v4789 = vpack.c.b16 %v4745, %v4741
    %v4790 = vpack.c.b16 %v4750, %v4746
    %v4791 = vpack.c.b16 %v4751, %v4747
    %v4792 = vpack.c.b16 %v4752, %v4748
    %v4793 = vpack.c.b16 %v4753, %v4749
    %v4794 = vpack.c.b16 %v4758, %v4754
    %v4795 = vpack.c.b16 %v4759, %v4755
    %v4796 = vpack.c.b16 %v4760, %v4756
    %v4797 = vpack.c.b16 %v4761, %v4757
    %v4798 = vpack.c.b16 %v4766, %v4762
    %v4799 = vpack.c.b16 %v4767, %v4763
    %v4800 = vpack.c.b16 %v4768, %v4764
    %v4801 = vpack.c.b16 %v4769, %v4765
    %4834 = vmatpush.bf16.msra.mxu0 %v4798
    %4835 = vmatpush.bf16.msra.mxu0 %v4794
    %4836 = vmatpush.bf16.msra.mxu0 %v4790
    %4837 = vmatpush.bf16.msra.mxu0 %v4786
    %4838 = vmatpush.bf16.msra.mxu0 %v4782
    %4839 = vmatpush.bf16.msra.mxu0 %v4778
    %4840 = vmatpush.bf16.msra.mxu0 %v4774
    %4841 = vmatpush.bf16.msra.mxu0 %v4770
    %4842 = vmatmul.bf16.gmra.mxu0 %v1751
    %v4843 = vpop.f32.mrf.mxu0
    %v4844 = vadd.f32 0.0, %v4843
    %v4845 = vpop.f32.mrf.mxu0
    %4846 = vdwg.mxu0
    %4847 = vmatpush.bf16.msra.mxu0 %v4799
    %4848 = vmatpush.bf16.msra.mxu0 %v4795
    %4849 = vmatpush.bf16.msra.mxu0 %v4791
    %4850 = vmatpush.bf16.msra.mxu0 %v4787
    %4851 = vmatpush.bf16.msra.mxu0 %v4783
    %4852 = vmatpush.bf16.msra.mxu0 %v4779
    %4853 = vmatpush.bf16.msra.mxu0 %v4775
    %4854 = vmatpush.bf16.msra.mxu0 %v4771
    %4855 = vmatmul.bf16.gmra.mxu0 %v1751
    %v4856 = vpop.f32.mrf.mxu0
    %v4857 = vadd.f32 0.0, %v4856
    %v4858 = vpop.f32.mrf.mxu0
    %4859 = vdwg.mxu0
    %4860 = vmatpush.bf16.msra.mxu0 %v4800
    %4861 = vmatpush.bf16.msra.mxu0 %v4796
    %4862 = vmatpush.bf16.msra.mxu0 %v4792
    %4863 = vmatpush.bf16.msra.mxu0 %v4788
    %4864 = vmatpush.bf16.msra.mxu0 %v4784
    %4865 = vmatpush.bf16.msra.mxu0 %v4780
    %4866 = vmatpush.bf16.msra.mxu0 %v4776
    %4867 = vmatpush.bf16.msra.mxu0 %v4772
    %4868 = vmatmul.bf16.gmra.mxu0 %v1751
    %v4869 = vpop.f32.mrf.mxu0
    %v4870 = vadd.f32 0.0, %v4869
    %v4871 = vpop.f32.mrf.mxu0
    %4872 = vdwg.mxu0
    %4873 = vmatpush.bf16.msra.mxu0 %v4801
    %4874 = vmatpush.bf16.msra.mxu0 %v4797
    %4875 = vmatpush.bf16.msra.mxu0 %v4793
    %4876 = vmatpush.bf16.msra.mxu0 %v4789
    %4877 = vmatpush.bf16.msra.mxu0 %v4785
    %4878 = vmatpush.bf16.msra.mxu0 %v4781
    %4879 = vmatpush.bf16.msra.mxu0 %v4777
    %4880 = vmatpush.bf16.msra.mxu0 %v4773
    %4881 = vmatmul.bf16.gmra.mxu0 %v1751
    %v4882 = vpop.f32.mrf.mxu0
    %v4883 = vadd.f32 0.0, %v4882
    %v4884 = vpop.f32.mrf.mxu0
    %4885 = vdwg.mxu0
    %s4886 = scalar_lea.vmem %s10, 18
    %v4887 = vld [vmem:[%s4886] sm:$0x3]
    %v4888 = vpack.c.bf16 %v4844, %v4844
    %v4889 = vpack.c.bf16 %v4857, %v4857
    %v4890 = vpack.c.bf16 %v4870, %v4870
    %v4891 = vpack.c.bf16 %v4883, %v4883
    %v4893 = vsel %vm2252, %v4887, 0
    %v4896 = vsel %vm173, %v4888, 0
    %v4899 = vsel %vm173, %v4889, 0
    %v4902 = vsel %vm173, %v4890, 0
    %v4905 = vsel %vm173, %v4891, 0
    %4907 = vmatpush.bf16.msra.mxu0 0
    %4908 = vmatpush.bf16.msra.mxu0 0
    %4909 = vmatpush.bf16.msra.mxu0 0
    %4910 = vmatpush.bf16.msra.mxu0 0
    %4911 = vmatpush.bf16.msra.mxu0 0
    %4912 = vmatpush.bf16.msra.mxu0 0
    %4913 = vmatpush.bf16.msra.mxu0 0
    %4914 = vmatpush.bf16.msra.mxu0 %v4896
    %4915 = vmatmul.bf16.gmra.mxu0 %v4893
    %v4916 = vpop.f32.mrf.mxu0
    %v4917 = vadd.f32 0.0, %v4916
    %v4918 = vpop.f32.mrf.mxu0
    %4919 = vdwg.mxu0
    %4920 = vmatpush.bf16.msra.mxu0 0
    %4921 = vmatpush.bf16.msra.mxu0 0
    %4922 = vmatpush.bf16.msra.mxu0 0
    %4923 = vmatpush.bf16.msra.mxu0 0
    %4924 = vmatpush.bf16.msra.mxu0 0
    %4925 = vmatpush.bf16.msra.mxu0 0
    %4926 = vmatpush.bf16.msra.mxu0 0
    %4927 = vmatpush.bf16.msra.mxu0 %v4899
    %4928 = vmatmul.bf16.gmra.mxu0 %v4893
    %v4929 = vpop.f32.mrf.mxu0
    %v4930 = vadd.f32 0.0, %v4929
    %v4931 = vpop.f32.mrf.mxu0
    %4932 = vdwg.mxu0
    %4933 = vmatpush.bf16.msra.mxu0 0
    %4934 = vmatpush.bf16.msra.mxu0 0
    %4935 = vmatpush.bf16.msra.mxu0 0
    %4936 = vmatpush.bf16.msra.mxu0 0
    %4937 = vmatpush.bf16.msra.mxu0 0
    %4938 = vmatpush.bf16.msra.mxu0 0
    %4939 = vmatpush.bf16.msra.mxu0 0
    %4940 = vmatpush.bf16.msra.mxu0 %v4902
    %4941 = vmatmul.bf16.gmra.mxu0 %v4893
    %v4942 = vpop.f32.mrf.mxu0
    %v4943 = vadd.f32 0.0, %v4942
    %v4944 = vpop.f32.mrf.mxu0
    %4945 = vdwg.mxu0
    %4946 = vmatpush.bf16.msra.mxu0 0
    %4947 = vmatpush.bf16.msra.mxu0 0
    %4948 = vmatpush.bf16.msra.mxu0 0
    %4949 = vmatpush.bf16.msra.mxu0 0
    %4950 = vmatpush.bf16.msra.mxu0 0
    %4951 = vmatpush.bf16.msra.mxu0 0
    %4952 = vmatpush.bf16.msra.mxu0 0
    %4953 = vmatpush.bf16.msra.mxu0 %v4905
    %4954 = vmatmul.bf16.gmra.mxu0 %v4893
    %v4955 = vpop.f32.mrf.mxu0
    %v4956 = vadd.f32 0.0, %v4955
    %v4957 = vpop.f32.mrf.mxu0
    %4958 = vdwg.mxu0
    %v4959 = vadd.f32 %v4637, %v4917
    %v4960 = vadd.f32 %v4638, %v4930
    %v4961 = vadd.f32 %v4639, %v4943
    %v4962 = vadd.f32 %v4640, %v4956
    %s4963 = scalar_lea.vmem [#allocation9], 2560
    %v4964 = vld [vmem:[%s4963] sm:$0xff]
    %v4965 = vld [vmem:[%s4963 + $0x8] sm:$0xff]
    %v4966 = vld [vmem:[%s4963 + $0x10] sm:$0xff]
    %v4967 = vld [vmem:[%s4963 + $0x18] sm:$0xff]
    %v4968 = vld [vmem:[%s4963 + $0x20] sm:$0xff]
    %v4969 = vld [vmem:[%s4963 + $0x28] sm:$0xff]
    %v4970 = vld [vmem:[%s4963 + $0x30] sm:$0xff]
    %v4971 = vld [vmem:[%s4963 + $0x38] sm:$0xff]
    %v4972 = vld [vmem:[%s4963 + $0x40] sm:$0xff]
    %v4973 = vld [vmem:[%s4963 + $0x48] sm:$0xff]
    %v4974 = vld [vmem:[%s4963 + $0x50] sm:$0xff]
    %v4975 = vld [vmem:[%s4963 + $0x58] sm:$0xff]
    %v4976 = vld [vmem:[%s4963 + $0x60] sm:$0xff]
    %v4977 = vld [vmem:[%s4963 + $0x68] sm:$0xff]
    %v4978 = vld [vmem:[%s4963 + $0x70] sm:$0xff]
    %v4979 = vld [vmem:[%s4963 + $0x78] sm:$0xff]
    %v4980 = vld [vmem:[%s4963 + $0x80] sm:$0xff]
    %v4981 = vld [vmem:[%s4963 + $0x88] sm:$0xff]
    %v4982 = vld [vmem:[%s4963 + $0x90] sm:$0xff]
    %v4983 = vld [vmem:[%s4963 + $0x98] sm:$0xff]
    %v4984 = vld [vmem:[%s4963 + $0xa0] sm:$0xff]
    %v4985 = vld [vmem:[%s4963 + $0xa8] sm:$0xff]
    %v4986 = vld [vmem:[%s4963 + $0xb0] sm:$0xff]
    %v4987 = vld [vmem:[%s4963 + $0xb8] sm:$0xff]
    %v4988 = vld [vmem:[%s4963 + $0xc0] sm:$0xff]
    %v4989 = vld [vmem:[%s4963 + $0xc8] sm:$0xff]
    %v4990 = vld [vmem:[%s4963 + $0xd0] sm:$0xff]
    %v4991 = vld [vmem:[%s4963 + $0xd8] sm:$0xff]
    %v4992 = vld [vmem:[%s4963 + $0xe0] sm:$0xff]
    %v4993 = vld [vmem:[%s4963 + $0xe8] sm:$0xff]
    %v4994 = vld [vmem:[%s4963 + $0xf0] sm:$0xff]
    %v4995 = vld [vmem:[%s4963 + $0xf8] sm:$0xff]
    %v5028 = vunpack.c.l.b16 %v4964
    %v5029 = vunpack.c.h.b16 %v4964
    %v5030 = vunpack.c.l.b16 %v4965
    %v5031 = vunpack.c.h.b16 %v4965
    %v5032 = vunpack.c.l.b16 %v4966
    %v5033 = vunpack.c.h.b16 %v4966
    %v5034 = vunpack.c.l.b16 %v4967
    %v5035 = vunpack.c.h.b16 %v4967
    %v5036 = vunpack.c.l.b16 %v4968
    %v5037 = vunpack.c.h.b16 %v4968
    %v5038 = vunpack.c.l.b16 %v4969
    %v5039 = vunpack.c.h.b16 %v4969
    %v5040 = vunpack.c.l.b16 %v4970
    %v5041 = vunpack.c.h.b16 %v4970
    %v5042 = vunpack.c.l.b16 %v4971
    %v5043 = vunpack.c.h.b16 %v4971
    %v5044 = vunpack.c.l.b16 %v4972
    %v5045 = vunpack.c.h.b16 %v4972
    %v5046 = vunpack.c.l.b16 %v4973
    %v5047 = vunpack.c.h.b16 %v4973
    %v5048 = vunpack.c.l.b16 %v4974
    %v5049 = vunpack.c.h.b16 %v4974
    %v5050 = vunpack.c.l.b16 %v4975
    %v5051 = vunpack.c.h.b16 %v4975
    %v5052 = vunpack.c.l.b16 %v4976
    %v5053 = vunpack.c.h.b16 %v4976
    %v5054 = vunpack.c.l.b16 %v4977
    %v5055 = vunpack.c.h.b16 %v4977
    %v5056 = vunpack.c.l.b16 %v4978
    %v5057 = vunpack.c.h.b16 %v4978
    %v5058 = vunpack.c.l.b16 %v4979
    %v5059 = vunpack.c.h.b16 %v4979
    %v5060 = vunpack.c.l.b16 %v4980
    %v5061 = vunpack.c.h.b16 %v4980
    %v5062 = vunpack.c.l.b16 %v4981
    %v5063 = vunpack.c.h.b16 %v4981
    %v5064 = vunpack.c.l.b16 %v4982
    %v5065 = vunpack.c.h.b16 %v4982
    %v5066 = vunpack.c.l.b16 %v4983
    %v5067 = vunpack.c.h.b16 %v4983
    %v5068 = vunpack.c.l.b16 %v4984
    %v5069 = vunpack.c.h.b16 %v4984
    %v5070 = vunpack.c.l.b16 %v4985
    %v5071 = vunpack.c.h.b16 %v4985
    %v5072 = vunpack.c.l.b16 %v4986
    %v5073 = vunpack.c.h.b16 %v4986
    %v5074 = vunpack.c.l.b16 %v4987
    %v5075 = vunpack.c.h.b16 %v4987
    %v5076 = vunpack.c.l.b16 %v4988
    %v5077 = vunpack.c.h.b16 %v4988
    %v5078 = vunpack.c.l.b16 %v4989
    %v5079 = vunpack.c.h.b16 %v4989
    %v5080 = vunpack.c.l.b16 %v4990
    %v5081 = vunpack.c.h.b16 %v4990
    %v5082 = vunpack.c.l.b16 %v4991
    %v5083 = vunpack.c.h.b16 %v4991
    %v5084 = vunpack.c.l.b16 %v4992
    %v5085 = vunpack.c.h.b16 %v4992
    %v5086 = vunpack.c.l.b16 %v4993
    %v5087 = vunpack.c.h.b16 %v4993
    %v5088 = vunpack.c.l.b16 %v4994
    %v5089 = vunpack.c.h.b16 %v4994
    %v5090 = vunpack.c.l.b16 %v4995
    %v5091 = vunpack.c.h.b16 %v4995
    %v5092 = vpack.c.b16 %v5032, %v5028
    %v5093 = vpack.c.b16 %v5033, %v5029
    %v5094 = vpack.c.b16 %v5034, %v5030
    %v5095 = vpack.c.b16 %v5035, %v5031
    %v5096 = vpack.c.b16 %v5040, %v5036
    %v5097 = vpack.c.b16 %v5041, %v5037
    %v5098 = vpack.c.b16 %v5042, %v5038
    %v5099 = vpack.c.b16 %v5043, %v5039
    %v5100 = vpack.c.b16 %v5048, %v5044
    %v5101 = vpack.c.b16 %v5049, %v5045
    %v5102 = vpack.c.b16 %v5050, %v5046
    %v5103 = vpack.c.b16 %v5051, %v5047
    %v5104 = vpack.c.b16 %v5056, %v5052
    %v5105 = vpack.c.b16 %v5057, %v5053
    %v5106 = vpack.c.b16 %v5058, %v5054
    %v5107 = vpack.c.b16 %v5059, %v5055
    %v5108 = vpack.c.b16 %v5064, %v5060
    %v5109 = vpack.c.b16 %v5065, %v5061
    %v5110 = vpack.c.b16 %v5066, %v5062
    %v5111 = vpack.c.b16 %v5067, %v5063
    %v5112 = vpack.c.b16 %v5072, %v5068
    %v5113 = vpack.c.b16 %v5073, %v5069
    %v5114 = vpack.c.b16 %v5074, %v5070
    %v5115 = vpack.c.b16 %v5075, %v5071
    %v5116 = vpack.c.b16 %v5080, %v5076
    %v5117 = vpack.c.b16 %v5081, %v5077
    %v5118 = vpack.c.b16 %v5082, %v5078
    %v5119 = vpack.c.b16 %v5083, %v5079
    %v5120 = vpack.c.b16 %v5088, %v5084
    %v5121 = vpack.c.b16 %v5089, %v5085
    %v5122 = vpack.c.b16 %v5090, %v5086
    %v5123 = vpack.c.b16 %v5091, %v5087
    %5156 = vmatpush.bf16.msra.mxu0 %v5120
    %5157 = vmatpush.bf16.msra.mxu0 %v5116
    %5158 = vmatpush.bf16.msra.mxu0 %v5112
    %5159 = vmatpush.bf16.msra.mxu0 %v5108
    %5160 = vmatpush.bf16.msra.mxu0 %v5104
    %5161 = vmatpush.bf16.msra.mxu0 %v5100
    %5162 = vmatpush.bf16.msra.mxu0 %v5096
    %5163 = vmatpush.bf16.msra.mxu0 %v5092
    %5164 = vmatmul.bf16.gmra.mxu0 %v1751
    %v5165 = vpop.f32.mrf.mxu0
    %v5166 = vadd.f32 0.0, %v5165
    %v5167 = vpop.f32.mrf.mxu0
    %5168 = vdwg.mxu0
    %5169 = vmatpush.bf16.msra.mxu0 %v5121
    %5170 = vmatpush.bf16.msra.mxu0 %v5117
    %5171 = vmatpush.bf16.msra.mxu0 %v5113
    %5172 = vmatpush.bf16.msra.mxu0 %v5109
    %5173 = vmatpush.bf16.msra.mxu0 %v5105
    %5174 = vmatpush.bf16.msra.mxu0 %v5101
    %5175 = vmatpush.bf16.msra.mxu0 %v5097
    %5176 = vmatpush.bf16.msra.mxu0 %v5093
    %5177 = vmatmul.bf16.gmra.mxu0 %v1751
    %v5178 = vpop.f32.mrf.mxu0
    %v5179 = vadd.f32 0.0, %v5178
    %v5180 = vpop.f32.mrf.mxu0
    %5181 = vdwg.mxu0
    %5182 = vmatpush.bf16.msra.mxu0 %v5122
    %5183 = vmatpush.bf16.msra.mxu0 %v5118
    %5184 = vmatpush.bf16.msra.mxu0 %v5114
    %5185 = vmatpush.bf16.msra.mxu0 %v5110
    %5186 = vmatpush.bf16.msra.mxu0 %v5106
    %5187 = vmatpush.bf16.msra.mxu0 %v5102
    %5188 = vmatpush.bf16.msra.mxu0 %v5098
    %5189 = vmatpush.bf16.msra.mxu0 %v5094
    %5190 = vmatmul.bf16.gmra.mxu0 %v1751
    %v5191 = vpop.f32.mrf.mxu0
    %v5192 = vadd.f32 0.0, %v5191
    %v5193 = vpop.f32.mrf.mxu0
    %5194 = vdwg.mxu0
    %5195 = vmatpush.bf16.msra.mxu0 %v5123
    %5196 = vmatpush.bf16.msra.mxu0 %v5119
    %5197 = vmatpush.bf16.msra.mxu0 %v5115
    %5198 = vmatpush.bf16.msra.mxu0 %v5111
    %5199 = vmatpush.bf16.msra.mxu0 %v5107
    %5200 = vmatpush.bf16.msra.mxu0 %v5103
    %5201 = vmatpush.bf16.msra.mxu0 %v5099
    %5202 = vmatpush.bf16.msra.mxu0 %v5095
    %5203 = vmatmul.bf16.gmra.mxu0 %v1751
    %v5204 = vpop.f32.mrf.mxu0
    %v5205 = vadd.f32 0.0, %v5204
    %v5206 = vpop.f32.mrf.mxu0
    %5207 = vdwg.mxu0
    %s5208 = scalar_lea.vmem %s10, 20
    %v5209 = vld [vmem:[%s5208] sm:$0x3]
    %v5210 = vpack.c.bf16 %v5166, %v5166
    %v5211 = vpack.c.bf16 %v5179, %v5179
    %v5212 = vpack.c.bf16 %v5192, %v5192
    %v5213 = vpack.c.bf16 %v5205, %v5205
    %v5215 = vsel %vm2252, %v5209, 0
    %v5218 = vsel %vm173, %v5210, 0
    %v5221 = vsel %vm173, %v5211, 0
    %v5224 = vsel %vm173, %v5212, 0
    %v5227 = vsel %vm173, %v5213, 0
    %5229 = vmatpush.bf16.msra.mxu0 0
    %5230 = vmatpush.bf16.msra.mxu0 0
    %5231 = vmatpush.bf16.msra.mxu0 0
    %5232 = vmatpush.bf16.msra.mxu0 0
    %5233 = vmatpush.bf16.msra.mxu0 0
    %5234 = vmatpush.bf16.msra.mxu0 0
    %5235 = vmatpush.bf16.msra.mxu0 0
    %5236 = vmatpush.bf16.msra.mxu0 %v5218
    %5237 = vmatmul.bf16.gmra.mxu0 %v5215
    %v5238 = vpop.f32.mrf.mxu0
    %v5239 = vadd.f32 0.0, %v5238
    %v5240 = vpop.f32.mrf.mxu0
    %5241 = vdwg.mxu0
    %5242 = vmatpush.bf16.msra.mxu0 0
    %5243 = vmatpush.bf16.msra.mxu0 0
    %5244 = vmatpush.bf16.msra.mxu0 0
    %5245 = vmatpush.bf16.msra.mxu0 0
    %5246 = vmatpush.bf16.msra.mxu0 0
    %5247 = vmatpush.bf16.msra.mxu0 0
    %5248 = vmatpush.bf16.msra.mxu0 0
    %5249 = vmatpush.bf16.msra.mxu0 %v5221
    %5250 = vmatmul.bf16.gmra.mxu0 %v5215
    %v5251 = vpop.f32.mrf.mxu0
    %v5252 = vadd.f32 0.0, %v5251
    %v5253 = vpop.f32.mrf.mxu0
    %5254 = vdwg.mxu0
    %5255 = vmatpush.bf16.msra.mxu0 0
    %5256 = vmatpush.bf16.msra.mxu0 0
    %5257 = vmatpush.bf16.msra.mxu0 0
    %5258 = vmatpush.bf16.msra.mxu0 0
    %5259 = vmatpush.bf16.msra.mxu0 0
    %5260 = vmatpush.bf16.msra.mxu0 0
    %5261 = vmatpush.bf16.msra.mxu0 0
    %5262 = vmatpush.bf16.msra.mxu0 %v5224
    %5263 = vmatmul.bf16.gmra.mxu0 %v5215
    %v5264 = vpop.f32.mrf.mxu0
    %v5265 = vadd.f32 0.0, %v5264
    %v5266 = vpop.f32.mrf.mxu0
    %5267 = vdwg.mxu0
    %5268 = vmatpush.bf16.msra.mxu0 0
    %5269 = vmatpush.bf16.msra.mxu0 0
    %5270 = vmatpush.bf16.msra.mxu0 0
    %5271 = vmatpush.bf16.msra.mxu0 0
    %5272 = vmatpush.bf16.msra.mxu0 0
    %5273 = vmatpush.bf16.msra.mxu0 0
    %5274 = vmatpush.bf16.msra.mxu0 0
    %5275 = vmatpush.bf16.msra.mxu0 %v5227
    %5276 = vmatmul.bf16.gmra.mxu0 %v5215
    %v5277 = vpop.f32.mrf.mxu0
    %v5278 = vadd.f32 0.0, %v5277
    %v5279 = vpop.f32.mrf.mxu0
    %5280 = vdwg.mxu0
    %v5281 = vadd.f32 %v4959, %v5239
    %v5282 = vadd.f32 %v4960, %v5252
    %v5283 = vadd.f32 %v4961, %v5265
    %v5284 = vadd.f32 %v4962, %v5278
    %s5285 = scalar_lea.vmem [#allocation9], 2816
    %v5286 = vld [vmem:[%s5285] sm:$0xff]
    %v5287 = vld [vmem:[%s5285 + $0x8] sm:$0xff]
    %v5288 = vld [vmem:[%s5285 + $0x10] sm:$0xff]
    %v5289 = vld [vmem:[%s5285 + $0x18] sm:$0xff]
    %v5290 = vld [vmem:[%s5285 + $0x20] sm:$0xff]
    %v5291 = vld [vmem:[%s5285 + $0x28] sm:$0xff]
    %v5292 = vld [vmem:[%s5285 + $0x30] sm:$0xff]
    %v5293 = vld [vmem:[%s5285 + $0x38] sm:$0xff]
    %v5294 = vld [vmem:[%s5285 + $0x40] sm:$0xff]
    %v5295 = vld [vmem:[%s5285 + $0x48] sm:$0xff]
    %v5296 = vld [vmem:[%s5285 + $0x50] sm:$0xff]
    %v5297 = vld [vmem:[%s5285 + $0x58] sm:$0xff]
    %v5298 = vld [vmem:[%s5285 + $0x60] sm:$0xff]
    %v5299 = vld [vmem:[%s5285 + $0x68] sm:$0xff]
    %v5300 = vld [vmem:[%s5285 + $0x70] sm:$0xff]
    %v5301 = vld [vmem:[%s5285 + $0x78] sm:$0xff]
    %v5302 = vld [vmem:[%s5285 + $0x80] sm:$0xff]
    %v5303 = vld [vmem:[%s5285 + $0x88] sm:$0xff]
    %v5304 = vld [vmem:[%s5285 + $0x90] sm:$0xff]
    %v5305 = vld [vmem:[%s5285 + $0x98] sm:$0xff]
    %v5306 = vld [vmem:[%s5285 + $0xa0] sm:$0xff]
    %v5307 = vld [vmem:[%s5285 + $0xa8] sm:$0xff]
    %v5308 = vld [vmem:[%s5285 + $0xb0] sm:$0xff]
    %v5309 = vld [vmem:[%s5285 + $0xb8] sm:$0xff]
    %v5310 = vld [vmem:[%s5285 + $0xc0] sm:$0xff]
    %v5311 = vld [vmem:[%s5285 + $0xc8] sm:$0xff]
    %v5312 = vld [vmem:[%s5285 + $0xd0] sm:$0xff]
    %v5313 = vld [vmem:[%s5285 + $0xd8] sm:$0xff]
    %v5314 = vld [vmem:[%s5285 + $0xe0] sm:$0xff]
    %v5315 = vld [vmem:[%s5285 + $0xe8] sm:$0xff]
    %v5316 = vld [vmem:[%s5285 + $0xf0] sm:$0xff]
    %v5317 = vld [vmem:[%s5285 + $0xf8] sm:$0xff]
    %v5350 = vunpack.c.l.b16 %v5286
    %v5351 = vunpack.c.h.b16 %v5286
    %v5352 = vunpack.c.l.b16 %v5287
    %v5353 = vunpack.c.h.b16 %v5287
    %v5354 = vunpack.c.l.b16 %v5288
    %v5355 = vunpack.c.h.b16 %v5288
    %v5356 = vunpack.c.l.b16 %v5289
    %v5357 = vunpack.c.h.b16 %v5289
    %v5358 = vunpack.c.l.b16 %v5290
    %v5359 = vunpack.c.h.b16 %v5290
    %v5360 = vunpack.c.l.b16 %v5291
    %v5361 = vunpack.c.h.b16 %v5291
    %v5362 = vunpack.c.l.b16 %v5292
    %v5363 = vunpack.c.h.b16 %v5292
    %v5364 = vunpack.c.l.b16 %v5293
    %v5365 = vunpack.c.h.b16 %v5293
    %v5366 = vunpack.c.l.b16 %v5294
    %v5367 = vunpack.c.h.b16 %v5294
    %v5368 = vunpack.c.l.b16 %v5295
    %v5369 = vunpack.c.h.b16 %v5295
    %v5370 = vunpack.c.l.b16 %v5296
    %v5371 = vunpack.c.h.b16 %v5296
    %v5372 = vunpack.c.l.b16 %v5297
    %v5373 = vunpack.c.h.b16 %v5297
    %v5374 = vunpack.c.l.b16 %v5298
    %v5375 = vunpack.c.h.b16 %v5298
    %v5376 = vunpack.c.l.b16 %v5299
    %v5377 = vunpack.c.h.b16 %v5299
    %v5378 = vunpack.c.l.b16 %v5300
    %v5379 = vunpack.c.h.b16 %v5300
    %v5380 = vunpack.c.l.b16 %v5301
    %v5381 = vunpack.c.h.b16 %v5301
    %v5382 = vunpack.c.l.b16 %v5302
    %v5383 = vunpack.c.h.b16 %v5302
    %v5384 = vunpack.c.l.b16 %v5303
    %v5385 = vunpack.c.h.b16 %v5303
    %v5386 = vunpack.c.l.b16 %v5304
    %v5387 = vunpack.c.h.b16 %v5304
    %v5388 = vunpack.c.l.b16 %v5305
    %v5389 = vunpack.c.h.b16 %v5305
    %v5390 = vunpack.c.l.b16 %v5306
    %v5391 = vunpack.c.h.b16 %v5306
    %v5392 = vunpack.c.l.b16 %v5307
    %v5393 = vunpack.c.h.b16 %v5307
    %v5394 = vunpack.c.l.b16 %v5308
    %v5395 = vunpack.c.h.b16 %v5308
    %v5396 = vunpack.c.l.b16 %v5309
    %v5397 = vunpack.c.h.b16 %v5309
    %v5398 = vunpack.c.l.b16 %v5310
    %v5399 = vunpack.c.h.b16 %v5310
    %v5400 = vunpack.c.l.b16 %v5311
    %v5401 = vunpack.c.h.b16 %v5311
    %v5402 = vunpack.c.l.b16 %v5312
    %v5403 = vunpack.c.h.b16 %v5312
    %v5404 = vunpack.c.l.b16 %v5313
    %v5405 = vunpack.c.h.b16 %v5313
    %v5406 = vunpack.c.l.b16 %v5314
    %v5407 = vunpack.c.h.b16 %v5314
    %v5408 = vunpack.c.l.b16 %v5315
    %v5409 = vunpack.c.h.b16 %v5315
    %v5410 = vunpack.c.l.b16 %v5316
    %v5411 = vunpack.c.h.b16 %v5316
    %v5412 = vunpack.c.l.b16 %v5317
    %v5413 = vunpack.c.h.b16 %v5317
    %v5414 = vpack.c.b16 %v5354, %v5350
    %v5415 = vpack.c.b16 %v5355, %v5351
    %v5416 = vpack.c.b16 %v5356, %v5352
    %v5417 = vpack.c.b16 %v5357, %v5353
    %v5418 = vpack.c.b16 %v5362, %v5358
    %v5419 = vpack.c.b16 %v5363, %v5359
    %v5420 = vpack.c.b16 %v5364, %v5360
    %v5421 = vpack.c.b16 %v5365, %v5361
    %v5422 = vpack.c.b16 %v5370, %v5366
    %v5423 = vpack.c.b16 %v5371, %v5367
    %v5424 = vpack.c.b16 %v5372, %v5368
    %v5425 = vpack.c.b16 %v5373, %v5369
    %v5426 = vpack.c.b16 %v5378, %v5374
    %v5427 = vpack.c.b16 %v5379, %v5375
    %v5428 = vpack.c.b16 %v5380, %v5376
    %v5429 = vpack.c.b16 %v5381, %v5377
    %v5430 = vpack.c.b16 %v5386, %v5382
    %v5431 = vpack.c.b16 %v5387, %v5383
    %v5432 = vpack.c.b16 %v5388, %v5384
    %v5433 = vpack.c.b16 %v5389, %v5385
    %v5434 = vpack.c.b16 %v5394, %v5390
    %v5435 = vpack.c.b16 %v5395, %v5391
    %v5436 = vpack.c.b16 %v5396, %v5392
    %v5437 = vpack.c.b16 %v5397, %v5393
    %v5438 = vpack.c.b16 %v5402, %v5398
    %v5439 = vpack.c.b16 %v5403, %v5399
    %v5440 = vpack.c.b16 %v5404, %v5400
    %v5441 = vpack.c.b16 %v5405, %v5401
    %v5442 = vpack.c.b16 %v5410, %v5406
    %v5443 = vpack.c.b16 %v5411, %v5407
    %v5444 = vpack.c.b16 %v5412, %v5408
    %v5445 = vpack.c.b16 %v5413, %v5409
    %5478 = vmatpush.bf16.msra.mxu0 %v5442
    %5479 = vmatpush.bf16.msra.mxu0 %v5438
    %5480 = vmatpush.bf16.msra.mxu0 %v5434
    %5481 = vmatpush.bf16.msra.mxu0 %v5430
    %5482 = vmatpush.bf16.msra.mxu0 %v5426
    %5483 = vmatpush.bf16.msra.mxu0 %v5422
    %5484 = vmatpush.bf16.msra.mxu0 %v5418
    %5485 = vmatpush.bf16.msra.mxu0 %v5414
    %5486 = vmatmul.bf16.gmra.mxu0 %v1751
    %v5487 = vpop.f32.mrf.mxu0
    %v5488 = vadd.f32 0.0, %v5487
    %v5489 = vpop.f32.mrf.mxu0
    %5490 = vdwg.mxu0
    %5491 = vmatpush.bf16.msra.mxu0 %v5443
    %5492 = vmatpush.bf16.msra.mxu0 %v5439
    %5493 = vmatpush.bf16.msra.mxu0 %v5435
    %5494 = vmatpush.bf16.msra.mxu0 %v5431
    %5495 = vmatpush.bf16.msra.mxu0 %v5427
    %5496 = vmatpush.bf16.msra.mxu0 %v5423
    %5497 = vmatpush.bf16.msra.mxu0 %v5419
    %5498 = vmatpush.bf16.msra.mxu0 %v5415
    %5499 = vmatmul.bf16.gmra.mxu0 %v1751
    %v5500 = vpop.f32.mrf.mxu0
    %v5501 = vadd.f32 0.0, %v5500
    %v5502 = vpop.f32.mrf.mxu0
    %5503 = vdwg.mxu0
    %5504 = vmatpush.bf16.msra.mxu0 %v5444
    %5505 = vmatpush.bf16.msra.mxu0 %v5440
    %5506 = vmatpush.bf16.msra.mxu0 %v5436
    %5507 = vmatpush.bf16.msra.mxu0 %v5432
    %5508 = vmatpush.bf16.msra.mxu0 %v5428
    %5509 = vmatpush.bf16.msra.mxu0 %v5424
    %5510 = vmatpush.bf16.msra.mxu0 %v5420
    %5511 = vmatpush.bf16.msra.mxu0 %v5416
    %5512 = vmatmul.bf16.gmra.mxu0 %v1751
    %v5513 = vpop.f32.mrf.mxu0
    %v5514 = vadd.f32 0.0, %v5513
    %v5515 = vpop.f32.mrf.mxu0
    %5516 = vdwg.mxu0
    %5517 = vmatpush.bf16.msra.mxu0 %v5445
    %5518 = vmatpush.bf16.msra.mxu0 %v5441
    %5519 = vmatpush.bf16.msra.mxu0 %v5437
    %5520 = vmatpush.bf16.msra.mxu0 %v5433
    %5521 = vmatpush.bf16.msra.mxu0 %v5429
    %5522 = vmatpush.bf16.msra.mxu0 %v5425
    %5523 = vmatpush.bf16.msra.mxu0 %v5421
    %5524 = vmatpush.bf16.msra.mxu0 %v5417
    %5525 = vmatmul.bf16.gmra.mxu0 %v1751
    %v5526 = vpop.f32.mrf.mxu0
    %v5527 = vadd.f32 0.0, %v5526
    %v5528 = vpop.f32.mrf.mxu0
    %5529 = vdwg.mxu0
    %s5530 = scalar_lea.vmem %s10, 22
    %v5531 = vld [vmem:[%s5530] sm:$0x3]
    %v5532 = vpack.c.bf16 %v5488, %v5488
    %v5533 = vpack.c.bf16 %v5501, %v5501
    %v5534 = vpack.c.bf16 %v5514, %v5514
    %v5535 = vpack.c.bf16 %v5527, %v5527
    %v5537 = vsel %vm2252, %v5531, 0
    %v5540 = vsel %vm173, %v5532, 0
    %v5543 = vsel %vm173, %v5533, 0
    %v5546 = vsel %vm173, %v5534, 0
    %v5549 = vsel %vm173, %v5535, 0
    %5551 = vmatpush.bf16.msra.mxu0 0
    %5552 = vmatpush.bf16.msra.mxu0 0
    %5553 = vmatpush.bf16.msra.mxu0 0
    %5554 = vmatpush.bf16.msra.mxu0 0
    %5555 = vmatpush.bf16.msra.mxu0 0
    %5556 = vmatpush.bf16.msra.mxu0 0
    %5557 = vmatpush.bf16.msra.mxu0 0
    %5558 = vmatpush.bf16.msra.mxu0 %v5540
    %5559 = vmatmul.bf16.gmra.mxu0 %v5537
    %v5560 = vpop.f32.mrf.mxu0
    %v5561 = vadd.f32 0.0, %v5560
    %v5562 = vpop.f32.mrf.mxu0
    %5563 = vdwg.mxu0
    %5564 = vmatpush.bf16.msra.mxu0 0
    %5565 = vmatpush.bf16.msra.mxu0 0
    %5566 = vmatpush.bf16.msra.mxu0 0
    %5567 = vmatpush.bf16.msra.mxu0 0
    %5568 = vmatpush.bf16.msra.mxu0 0
    %5569 = vmatpush.bf16.msra.mxu0 0
    %5570 = vmatpush.bf16.msra.mxu0 0
    %5571 = vmatpush.bf16.msra.mxu0 %v5543
    %5572 = vmatmul.bf16.gmra.mxu0 %v5537
    %v5573 = vpop.f32.mrf.mxu0
    %v5574 = vadd.f32 0.0, %v5573
    %v5575 = vpop.f32.mrf.mxu0
    %5576 = vdwg.mxu0
    %5577 = vmatpush.bf16.msra.mxu0 0
    %5578 = vmatpush.bf16.msra.mxu0 0
    %5579 = vmatpush.bf16.msra.mxu0 0
    %5580 = vmatpush.bf16.msra.mxu0 0
    %5581 = vmatpush.bf16.msra.mxu0 0
    %5582 = vmatpush.bf16.msra.mxu0 0
    %5583 = vmatpush.bf16.msra.mxu0 0
    %5584 = vmatpush.bf16.msra.mxu0 %v5546
    %5585 = vmatmul.bf16.gmra.mxu0 %v5537
    %v5586 = vpop.f32.mrf.mxu0
    %v5587 = vadd.f32 0.0, %v5586
    %v5588 = vpop.f32.mrf.mxu0
    %5589 = vdwg.mxu0
    %5590 = vmatpush.bf16.msra.mxu0 0
    %5591 = vmatpush.bf16.msra.mxu0 0
    %5592 = vmatpush.bf16.msra.mxu0 0
    %5593 = vmatpush.bf16.msra.mxu0 0
    %5594 = vmatpush.bf16.msra.mxu0 0
    %5595 = vmatpush.bf16.msra.mxu0 0
    %5596 = vmatpush.bf16.msra.mxu0 0
    %5597 = vmatpush.bf16.msra.mxu0 %v5549
    %5598 = vmatmul.bf16.gmra.mxu0 %v5537
    %v5599 = vpop.f32.mrf.mxu0
    %v5600 = vadd.f32 0.0, %v5599
    %v5601 = vpop.f32.mrf.mxu0
    %5602 = vdwg.mxu0
    %v5603 = vadd.f32 %v5281, %v5561
    %v5604 = vadd.f32 %v5282, %v5574
    %v5605 = vadd.f32 %v5283, %v5587
    %v5606 = vadd.f32 %v5284, %v5600
    %s5607 = scalar_lea.vmem [#allocation9], 3072
    %v5608 = vld [vmem:[%s5607] sm:$0xff]
    %v5609 = vld [vmem:[%s5607 + $0x8] sm:$0xff]
    %v5610 = vld [vmem:[%s5607 + $0x10] sm:$0xff]
    %v5611 = vld [vmem:[%s5607 + $0x18] sm:$0xff]
    %v5612 = vld [vmem:[%s5607 + $0x20] sm:$0xff]
    %v5613 = vld [vmem:[%s5607 + $0x28] sm:$0xff]
    %v5614 = vld [vmem:[%s5607 + $0x30] sm:$0xff]
    %v5615 = vld [vmem:[%s5607 + $0x38] sm:$0xff]
    %v5616 = vld [vmem:[%s5607 + $0x40] sm:$0xff]
    %v5617 = vld [vmem:[%s5607 + $0x48] sm:$0xff]
    %v5618 = vld [vmem:[%s5607 + $0x50] sm:$0xff]
    %v5619 = vld [vmem:[%s5607 + $0x58] sm:$0xff]
    %v5620 = vld [vmem:[%s5607 + $0x60] sm:$0xff]
    %v5621 = vld [vmem:[%s5607 + $0x68] sm:$0xff]
    %v5622 = vld [vmem:[%s5607 + $0x70] sm:$0xff]
    %v5623 = vld [vmem:[%s5607 + $0x78] sm:$0xff]
    %v5624 = vld [vmem:[%s5607 + $0x80] sm:$0xff]
    %v5625 = vld [vmem:[%s5607 + $0x88] sm:$0xff]
    %v5626 = vld [vmem:[%s5607 + $0x90] sm:$0xff]
    %v5627 = vld [vmem:[%s5607 + $0x98] sm:$0xff]
    %v5628 = vld [vmem:[%s5607 + $0xa0] sm:$0xff]
    %v5629 = vld [vmem:[%s5607 + $0xa8] sm:$0xff]
    %v5630 = vld [vmem:[%s5607 + $0xb0] sm:$0xff]
    %v5631 = vld [vmem:[%s5607 + $0xb8] sm:$0xff]
    %v5632 = vld [vmem:[%s5607 + $0xc0] sm:$0xff]
    %v5633 = vld [vmem:[%s5607 + $0xc8] sm:$0xff]
    %v5634 = vld [vmem:[%s5607 + $0xd0] sm:$0xff]
    %v5635 = vld [vmem:[%s5607 + $0xd8] sm:$0xff]
    %v5636 = vld [vmem:[%s5607 + $0xe0] sm:$0xff]
    %v5637 = vld [vmem:[%s5607 + $0xe8] sm:$0xff]
    %v5638 = vld [vmem:[%s5607 + $0xf0] sm:$0xff]
    %v5639 = vld [vmem:[%s5607 + $0xf8] sm:$0xff]
    %v5672 = vunpack.c.l.b16 %v5608
    %v5673 = vunpack.c.h.b16 %v5608
    %v5674 = vunpack.c.l.b16 %v5609
    %v5675 = vunpack.c.h.b16 %v5609
    %v5676 = vunpack.c.l.b16 %v5610
    %v5677 = vunpack.c.h.b16 %v5610
    %v5678 = vunpack.c.l.b16 %v5611
    %v5679 = vunpack.c.h.b16 %v5611
    %v5680 = vunpack.c.l.b16 %v5612
    %v5681 = vunpack.c.h.b16 %v5612
    %v5682 = vunpack.c.l.b16 %v5613
    %v5683 = vunpack.c.h.b16 %v5613
    %v5684 = vunpack.c.l.b16 %v5614
    %v5685 = vunpack.c.h.b16 %v5614
    %v5686 = vunpack.c.l.b16 %v5615
    %v5687 = vunpack.c.h.b16 %v5615
    %v5688 = vunpack.c.l.b16 %v5616
    %v5689 = vunpack.c.h.b16 %v5616
    %v5690 = vunpack.c.l.b16 %v5617
    %v5691 = vunpack.c.h.b16 %v5617
    %v5692 = vunpack.c.l.b16 %v5618
    %v5693 = vunpack.c.h.b16 %v5618
    %v5694 = vunpack.c.l.b16 %v5619
    %v5695 = vunpack.c.h.b16 %v5619
    %v5696 = vunpack.c.l.b16 %v5620
    %v5697 = vunpack.c.h.b16 %v5620
    %v5698 = vunpack.c.l.b16 %v5621
    %v5699 = vunpack.c.h.b16 %v5621
    %v5700 = vunpack.c.l.b16 %v5622
    %v5701 = vunpack.c.h.b16 %v5622
    %v5702 = vunpack.c.l.b16 %v5623
    %v5703 = vunpack.c.h.b16 %v5623
    %v5704 = vunpack.c.l.b16 %v5624
    %v5705 = vunpack.c.h.b16 %v5624
    %v5706 = vunpack.c.l.b16 %v5625
    %v5707 = vunpack.c.h.b16 %v5625
    %v5708 = vunpack.c.l.b16 %v5626
    %v5709 = vunpack.c.h.b16 %v5626
    %v5710 = vunpack.c.l.b16 %v5627
    %v5711 = vunpack.c.h.b16 %v5627
    %v5712 = vunpack.c.l.b16 %v5628
    %v5713 = vunpack.c.h.b16 %v5628
    %v5714 = vunpack.c.l.b16 %v5629
    %v5715 = vunpack.c.h.b16 %v5629
    %v5716 = vunpack.c.l.b16 %v5630
    %v5717 = vunpack.c.h.b16 %v5630
    %v5718 = vunpack.c.l.b16 %v5631
    %v5719 = vunpack.c.h.b16 %v5631
    %v5720 = vunpack.c.l.b16 %v5632
    %v5721 = vunpack.c.h.b16 %v5632
    %v5722 = vunpack.c.l.b16 %v5633
    %v5723 = vunpack.c.h.b16 %v5633
    %v5724 = vunpack.c.l.b16 %v5634
    %v5725 = vunpack.c.h.b16 %v5634
    %v5726 = vunpack.c.l.b16 %v5635
    %v5727 = vunpack.c.h.b16 %v5635
    %v5728 = vunpack.c.l.b16 %v5636
    %v5729 = vunpack.c.h.b16 %v5636
    %v5730 = vunpack.c.l.b16 %v5637
    %v5731 = vunpack.c.h.b16 %v5637
    %v5732 = vunpack.c.l.b16 %v5638
    %v5733 = vunpack.c.h.b16 %v5638
    %v5734 = vunpack.c.l.b16 %v5639
    %v5735 = vunpack.c.h.b16 %v5639
    %v5736 = vpack.c.b16 %v5676, %v5672
    %v5737 = vpack.c.b16 %v5677, %v5673
    %v5738 = vpack.c.b16 %v5678, %v5674
    %v5739 = vpack.c.b16 %v5679, %v5675
    %v5740 = vpack.c.b16 %v5684, %v5680
    %v5741 = vpack.c.b16 %v5685, %v5681
    %v5742 = vpack.c.b16 %v5686, %v5682
    %v5743 = vpack.c.b16 %v5687, %v5683
    %v5744 = vpack.c.b16 %v5692, %v5688
    %v5745 = vpack.c.b16 %v5693, %v5689
    %v5746 = vpack.c.b16 %v5694, %v5690
    %v5747 = vpack.c.b16 %v5695, %v5691
    %v5748 = vpack.c.b16 %v5700, %v5696
    %v5749 = vpack.c.b16 %v5701, %v5697
    %v5750 = vpack.c.b16 %v5702, %v5698
    %v5751 = vpack.c.b16 %v5703, %v5699
    %v5752 = vpack.c.b16 %v5708, %v5704
    %v5753 = vpack.c.b16 %v5709, %v5705
    %v5754 = vpack.c.b16 %v5710, %v5706
    %v5755 = vpack.c.b16 %v5711, %v5707
    %v5756 = vpack.c.b16 %v5716, %v5712
    %v5757 = vpack.c.b16 %v5717, %v5713
    %v5758 = vpack.c.b16 %v5718, %v5714
    %v5759 = vpack.c.b16 %v5719, %v5715
    %v5760 = vpack.c.b16 %v5724, %v5720
    %v5761 = vpack.c.b16 %v5725, %v5721
    %v5762 = vpack.c.b16 %v5726, %v5722
    %v5763 = vpack.c.b16 %v5727, %v5723
    %v5764 = vpack.c.b16 %v5732, %v5728
    %v5765 = vpack.c.b16 %v5733, %v5729
    %v5766 = vpack.c.b16 %v5734, %v5730
    %v5767 = vpack.c.b16 %v5735, %v5731
    %5800 = vmatpush.bf16.msra.mxu0 %v5764
    %5801 = vmatpush.bf16.msra.mxu0 %v5760
    %5802 = vmatpush.bf16.msra.mxu0 %v5756
    %5803 = vmatpush.bf16.msra.mxu0 %v5752
    %5804 = vmatpush.bf16.msra.mxu0 %v5748
    %5805 = vmatpush.bf16.msra.mxu0 %v5744
    %5806 = vmatpush.bf16.msra.mxu0 %v5740
    %5807 = vmatpush.bf16.msra.mxu0 %v5736
    %5808 = vmatmul.bf16.gmra.mxu0 %v1751
    %v5809 = vpop.f32.mrf.mxu0
    %v5810 = vadd.f32 0.0, %v5809
    %v5811 = vpop.f32.mrf.mxu0
    %5812 = vdwg.mxu0
    %5813 = vmatpush.bf16.msra.mxu0 %v5765
    %5814 = vmatpush.bf16.msra.mxu0 %v5761
    %5815 = vmatpush.bf16.msra.mxu0 %v5757
    %5816 = vmatpush.bf16.msra.mxu0 %v5753
    %5817 = vmatpush.bf16.msra.mxu0 %v5749
    %5818 = vmatpush.bf16.msra.mxu0 %v5745
    %5819 = vmatpush.bf16.msra.mxu0 %v5741
    %5820 = vmatpush.bf16.msra.mxu0 %v5737
    %5821 = vmatmul.bf16.gmra.mxu0 %v1751
    %v5822 = vpop.f32.mrf.mxu0
    %v5823 = vadd.f32 0.0, %v5822
    %v5824 = vpop.f32.mrf.mxu0
    %5825 = vdwg.mxu0
    %5826 = vmatpush.bf16.msra.mxu0 %v5766
    %5827 = vmatpush.bf16.msra.mxu0 %v5762
    %5828 = vmatpush.bf16.msra.mxu0 %v5758
    %5829 = vmatpush.bf16.msra.mxu0 %v5754
    %5830 = vmatpush.bf16.msra.mxu0 %v5750
    %5831 = vmatpush.bf16.msra.mxu0 %v5746
    %5832 = vmatpush.bf16.msra.mxu0 %v5742
    %5833 = vmatpush.bf16.msra.mxu0 %v5738
    %5834 = vmatmul.bf16.gmra.mxu0 %v1751
    %v5835 = vpop.f32.mrf.mxu0
    %v5836 = vadd.f32 0.0, %v5835
    %v5837 = vpop.f32.mrf.mxu0
    %5838 = vdwg.mxu0
    %5839 = vmatpush.bf16.msra.mxu0 %v5767
    %5840 = vmatpush.bf16.msra.mxu0 %v5763
    %5841 = vmatpush.bf16.msra.mxu0 %v5759
    %5842 = vmatpush.bf16.msra.mxu0 %v5755
    %5843 = vmatpush.bf16.msra.mxu0 %v5751
    %5844 = vmatpush.bf16.msra.mxu0 %v5747
    %5845 = vmatpush.bf16.msra.mxu0 %v5743
    %5846 = vmatpush.bf16.msra.mxu0 %v5739
    %5847 = vmatmul.bf16.gmra.mxu0 %v1751
    %v5848 = vpop.f32.mrf.mxu0
    %v5849 = vadd.f32 0.0, %v5848
    %v5850 = vpop.f32.mrf.mxu0
    %5851 = vdwg.mxu0
    %s5852 = scalar_lea.vmem %s10, 24
    %v5853 = vld [vmem:[%s5852] sm:$0x3]
    %v5854 = vpack.c.bf16 %v5810, %v5810
    %v5855 = vpack.c.bf16 %v5823, %v5823
    %v5856 = vpack.c.bf16 %v5836, %v5836
    %v5857 = vpack.c.bf16 %v5849, %v5849
    %v5859 = vsel %vm2252, %v5853, 0
    %v5862 = vsel %vm173, %v5854, 0
    %v5865 = vsel %vm173, %v5855, 0
    %v5868 = vsel %vm173, %v5856, 0
    %v5871 = vsel %vm173, %v5857, 0
    %5873 = vmatpush.bf16.msra.mxu0 0
    %5874 = vmatpush.bf16.msra.mxu0 0
    %5875 = vmatpush.bf16.msra.mxu0 0
    %5876 = vmatpush.bf16.msra.mxu0 0
    %5877 = vmatpush.bf16.msra.mxu0 0
    %5878 = vmatpush.bf16.msra.mxu0 0
    %5879 = vmatpush.bf16.msra.mxu0 0
    %5880 = vmatpush.bf16.msra.mxu0 %v5862
    %5881 = vmatmul.bf16.gmra.mxu0 %v5859
    %v5882 = vpop.f32.mrf.mxu0
    %v5883 = vadd.f32 0.0, %v5882
    %v5884 = vpop.f32.mrf.mxu0
    %5885 = vdwg.mxu0
    %5886 = vmatpush.bf16.msra.mxu0 0
    %5887 = vmatpush.bf16.msra.mxu0 0
    %5888 = vmatpush.bf16.msra.mxu0 0
    %5889 = vmatpush.bf16.msra.mxu0 0
    %5890 = vmatpush.bf16.msra.mxu0 0
    %5891 = vmatpush.bf16.msra.mxu0 0
    %5892 = vmatpush.bf16.msra.mxu0 0
    %5893 = vmatpush.bf16.msra.mxu0 %v5865
    %5894 = vmatmul.bf16.gmra.mxu0 %v5859
    %v5895 = vpop.f32.mrf.mxu0
    %v5896 = vadd.f32 0.0, %v5895
    %v5897 = vpop.f32.mrf.mxu0
    %5898 = vdwg.mxu0
    %5899 = vmatpush.bf16.msra.mxu0 0
    %5900 = vmatpush.bf16.msra.mxu0 0
    %5901 = vmatpush.bf16.msra.mxu0 0
    %5902 = vmatpush.bf16.msra.mxu0 0
    %5903 = vmatpush.bf16.msra.mxu0 0
    %5904 = vmatpush.bf16.msra.mxu0 0
    %5905 = vmatpush.bf16.msra.mxu0 0
    %5906 = vmatpush.bf16.msra.mxu0 %v5868
    %5907 = vmatmul.bf16.gmra.mxu0 %v5859
    %v5908 = vpop.f32.mrf.mxu0
    %v5909 = vadd.f32 0.0, %v5908
    %v5910 = vpop.f32.mrf.mxu0
    %5911 = vdwg.mxu0
    %5912 = vmatpush.bf16.msra.mxu0 0
    %5913 = vmatpush.bf16.msra.mxu0 0
    %5914 = vmatpush.bf16.msra.mxu0 0
    %5915 = vmatpush.bf16.msra.mxu0 0
    %5916 = vmatpush.bf16.msra.mxu0 0
    %5917 = vmatpush.bf16.msra.mxu0 0
    %5918 = vmatpush.bf16.msra.mxu0 0
    %5919 = vmatpush.bf16.msra.mxu0 %v5871
    %5920 = vmatmul.bf16.gmra.mxu0 %v5859
    %v5921 = vpop.f32.mrf.mxu0
    %v5922 = vadd.f32 0.0, %v5921
    %v5923 = vpop.f32.mrf.mxu0
    %5924 = vdwg.mxu0
    %v5925 = vadd.f32 %v5603, %v5883
    %v5926 = vadd.f32 %v5604, %v5896
    %v5927 = vadd.f32 %v5605, %v5909
    %v5928 = vadd.f32 %v5606, %v5922
    %s5929 = scalar_lea.vmem [#allocation9], 3328
    %v5930 = vld [vmem:[%s5929] sm:$0xff]
    %v5931 = vld [vmem:[%s5929 + $0x8] sm:$0xff]
    %v5932 = vld [vmem:[%s5929 + $0x10] sm:$0xff]
    %v5933 = vld [vmem:[%s5929 + $0x18] sm:$0xff]
    %v5934 = vld [vmem:[%s5929 + $0x20] sm:$0xff]
    %v5935 = vld [vmem:[%s5929 + $0x28] sm:$0xff]
    %v5936 = vld [vmem:[%s5929 + $0x30] sm:$0xff]
    %v5937 = vld [vmem:[%s5929 + $0x38] sm:$0xff]
    %v5938 = vld [vmem:[%s5929 + $0x40] sm:$0xff]
    %v5939 = vld [vmem:[%s5929 + $0x48] sm:$0xff]
    %v5940 = vld [vmem:[%s5929 + $0x50] sm:$0xff]
    %v5941 = vld [vmem:[%s5929 + $0x58] sm:$0xff]
    %v5942 = vld [vmem:[%s5929 + $0x60] sm:$0xff]
    %v5943 = vld [vmem:[%s5929 + $0x68] sm:$0xff]
    %v5944 = vld [vmem:[%s5929 + $0x70] sm:$0xff]
    %v5945 = vld [vmem:[%s5929 + $0x78] sm:$0xff]
    %v5946 = vld [vmem:[%s5929 + $0x80] sm:$0xff]
    %v5947 = vld [vmem:[%s5929 + $0x88] sm:$0xff]
    %v5948 = vld [vmem:[%s5929 + $0x90] sm:$0xff]
    %v5949 = vld [vmem:[%s5929 + $0x98] sm:$0xff]
    %v5950 = vld [vmem:[%s5929 + $0xa0] sm:$0xff]
    %v5951 = vld [vmem:[%s5929 + $0xa8] sm:$0xff]
    %v5952 = vld [vmem:[%s5929 + $0xb0] sm:$0xff]
    %v5953 = vld [vmem:[%s5929 + $0xb8] sm:$0xff]
    %v5954 = vld [vmem:[%s5929 + $0xc0] sm:$0xff]
    %v5955 = vld [vmem:[%s5929 + $0xc8] sm:$0xff]
    %v5956 = vld [vmem:[%s5929 + $0xd0] sm:$0xff]
    %v5957 = vld [vmem:[%s5929 + $0xd8] sm:$0xff]
    %v5958 = vld [vmem:[%s5929 + $0xe0] sm:$0xff]
    %v5959 = vld [vmem:[%s5929 + $0xe8] sm:$0xff]
    %v5960 = vld [vmem:[%s5929 + $0xf0] sm:$0xff]
    %v5961 = vld [vmem:[%s5929 + $0xf8] sm:$0xff]
    %v5994 = vunpack.c.l.b16 %v5930
    %v5995 = vunpack.c.h.b16 %v5930
    %v5996 = vunpack.c.l.b16 %v5931
    %v5997 = vunpack.c.h.b16 %v5931
    %v5998 = vunpack.c.l.b16 %v5932
    %v5999 = vunpack.c.h.b16 %v5932
    %v6000 = vunpack.c.l.b16 %v5933
    %v6001 = vunpack.c.h.b16 %v5933
    %v6002 = vunpack.c.l.b16 %v5934
    %v6003 = vunpack.c.h.b16 %v5934
    %v6004 = vunpack.c.l.b16 %v5935
    %v6005 = vunpack.c.h.b16 %v5935
    %v6006 = vunpack.c.l.b16 %v5936
    %v6007 = vunpack.c.h.b16 %v5936
    %v6008 = vunpack.c.l.b16 %v5937
    %v6009 = vunpack.c.h.b16 %v5937
    %v6010 = vunpack.c.l.b16 %v5938
    %v6011 = vunpack.c.h.b16 %v5938
    %v6012 = vunpack.c.l.b16 %v5939
    %v6013 = vunpack.c.h.b16 %v5939
    %v6014 = vunpack.c.l.b16 %v5940
    %v6015 = vunpack.c.h.b16 %v5940
    %v6016 = vunpack.c.l.b16 %v5941
    %v6017 = vunpack.c.h.b16 %v5941
    %v6018 = vunpack.c.l.b16 %v5942
    %v6019 = vunpack.c.h.b16 %v5942
    %v6020 = vunpack.c.l.b16 %v5943
    %v6021 = vunpack.c.h.b16 %v5943
    %v6022 = vunpack.c.l.b16 %v5944
    %v6023 = vunpack.c.h.b16 %v5944
    %v6024 = vunpack.c.l.b16 %v5945
    %v6025 = vunpack.c.h.b16 %v5945
    %v6026 = vunpack.c.l.b16 %v5946
    %v6027 = vunpack.c.h.b16 %v5946
    %v6028 = vunpack.c.l.b16 %v5947
    %v6029 = vunpack.c.h.b16 %v5947
    %v6030 = vunpack.c.l.b16 %v5948
    %v6031 = vunpack.c.h.b16 %v5948
    %v6032 = vunpack.c.l.b16 %v5949
    %v6033 = vunpack.c.h.b16 %v5949
    %v6034 = vunpack.c.l.b16 %v5950
    %v6035 = vunpack.c.h.b16 %v5950
    %v6036 = vunpack.c.l.b16 %v5951
    %v6037 = vunpack.c.h.b16 %v5951
    %v6038 = vunpack.c.l.b16 %v5952
    %v6039 = vunpack.c.h.b16 %v5952
    %v6040 = vunpack.c.l.b16 %v5953
    %v6041 = vunpack.c.h.b16 %v5953
    %v6042 = vunpack.c.l.b16 %v5954
    %v6043 = vunpack.c.h.b16 %v5954
    %v6044 = vunpack.c.l.b16 %v5955
    %v6045 = vunpack.c.h.b16 %v5955
    %v6046 = vunpack.c.l.b16 %v5956
    %v6047 = vunpack.c.h.b16 %v5956
    %v6048 = vunpack.c.l.b16 %v5957
    %v6049 = vunpack.c.h.b16 %v5957
    %v6050 = vunpack.c.l.b16 %v5958
    %v6051 = vunpack.c.h.b16 %v5958
    %v6052 = vunpack.c.l.b16 %v5959
    %v6053 = vunpack.c.h.b16 %v5959
    %v6054 = vunpack.c.l.b16 %v5960
    %v6055 = vunpack.c.h.b16 %v5960
    %v6056 = vunpack.c.l.b16 %v5961
    %v6057 = vunpack.c.h.b16 %v5961
    %v6058 = vpack.c.b16 %v5998, %v5994
    %v6059 = vpack.c.b16 %v5999, %v5995
    %v6060 = vpack.c.b16 %v6000, %v5996
    %v6061 = vpack.c.b16 %v6001, %v5997
    %v6062 = vpack.c.b16 %v6006, %v6002
    %v6063 = vpack.c.b16 %v6007, %v6003
    %v6064 = vpack.c.b16 %v6008, %v6004
    %v6065 = vpack.c.b16 %v6009, %v6005
    %v6066 = vpack.c.b16 %v6014, %v6010
    %v6067 = vpack.c.b16 %v6015, %v6011
    %v6068 = vpack.c.b16 %v6016, %v6012
    %v6069 = vpack.c.b16 %v6017, %v6013
    %v6070 = vpack.c.b16 %v6022, %v6018
    %v6071 = vpack.c.b16 %v6023, %v6019
    %v6072 = vpack.c.b16 %v6024, %v6020
    %v6073 = vpack.c.b16 %v6025, %v6021
    %v6074 = vpack.c.b16 %v6030, %v6026
    %v6075 = vpack.c.b16 %v6031, %v6027
    %v6076 = vpack.c.b16 %v6032, %v6028
    %v6077 = vpack.c.b16 %v6033, %v6029
    %v6078 = vpack.c.b16 %v6038, %v6034
    %v6079 = vpack.c.b16 %v6039, %v6035
    %v6080 = vpack.c.b16 %v6040, %v6036
    %v6081 = vpack.c.b16 %v6041, %v6037
    %v6082 = vpack.c.b16 %v6046, %v6042
    %v6083 = vpack.c.b16 %v6047, %v6043
    %v6084 = vpack.c.b16 %v6048, %v6044
    %v6085 = vpack.c.b16 %v6049, %v6045
    %v6086 = vpack.c.b16 %v6054, %v6050
    %v6087 = vpack.c.b16 %v6055, %v6051
    %v6088 = vpack.c.b16 %v6056, %v6052
    %v6089 = vpack.c.b16 %v6057, %v6053
    %6122 = vmatpush.bf16.msra.mxu0 %v6086
    %6123 = vmatpush.bf16.msra.mxu0 %v6082
    %6124 = vmatpush.bf16.msra.mxu0 %v6078
    %6125 = vmatpush.bf16.msra.mxu0 %v6074
    %6126 = vmatpush.bf16.msra.mxu0 %v6070
    %6127 = vmatpush.bf16.msra.mxu0 %v6066
    %6128 = vmatpush.bf16.msra.mxu0 %v6062
    %6129 = vmatpush.bf16.msra.mxu0 %v6058
    %6130 = vmatmul.bf16.gmra.mxu0 %v1751
    %v6131 = vpop.f32.mrf.mxu0
    %v6132 = vadd.f32 0.0, %v6131
    %v6133 = vpop.f32.mrf.mxu0
    %6134 = vdwg.mxu0
    %6135 = vmatpush.bf16.msra.mxu0 %v6087
    %6136 = vmatpush.bf16.msra.mxu0 %v6083
    %6137 = vmatpush.bf16.msra.mxu0 %v6079
    %6138 = vmatpush.bf16.msra.mxu0 %v6075
    %6139 = vmatpush.bf16.msra.mxu0 %v6071
    %6140 = vmatpush.bf16.msra.mxu0 %v6067
    %6141 = vmatpush.bf16.msra.mxu0 %v6063
    %6142 = vmatpush.bf16.msra.mxu0 %v6059
    %6143 = vmatmul.bf16.gmra.mxu0 %v1751
    %v6144 = vpop.f32.mrf.mxu0
    %v6145 = vadd.f32 0.0, %v6144
    %v6146 = vpop.f32.mrf.mxu0
    %6147 = vdwg.mxu0
    %6148 = vmatpush.bf16.msra.mxu0 %v6088
    %6149 = vmatpush.bf16.msra.mxu0 %v6084
    %6150 = vmatpush.bf16.msra.mxu0 %v6080
    %6151 = vmatpush.bf16.msra.mxu0 %v6076
    %6152 = vmatpush.bf16.msra.mxu0 %v6072
    %6153 = vmatpush.bf16.msra.mxu0 %v6068
    %6154 = vmatpush.bf16.msra.mxu0 %v6064
    %6155 = vmatpush.bf16.msra.mxu0 %v6060
    %6156 = vmatmul.bf16.gmra.mxu0 %v1751
    %v6157 = vpop.f32.mrf.mxu0
    %v6158 = vadd.f32 0.0, %v6157
    %v6159 = vpop.f32.mrf.mxu0
    %6160 = vdwg.mxu0
    %6161 = vmatpush.bf16.msra.mxu0 %v6089
    %6162 = vmatpush.bf16.msra.mxu0 %v6085
    %6163 = vmatpush.bf16.msra.mxu0 %v6081
    %6164 = vmatpush.bf16.msra.mxu0 %v6077
    %6165 = vmatpush.bf16.msra.mxu0 %v6073
    %6166 = vmatpush.bf16.msra.mxu0 %v6069
    %6167 = vmatpush.bf16.msra.mxu0 %v6065
    %6168 = vmatpush.bf16.msra.mxu0 %v6061
    %6169 = vmatmul.bf16.gmra.mxu0 %v1751
    %v6170 = vpop.f32.mrf.mxu0
    %v6171 = vadd.f32 0.0, %v6170
    %v6172 = vpop.f32.mrf.mxu0
    %6173 = vdwg.mxu0
    %s6174 = scalar_lea.vmem %s10, 26
    %v6175 = vld [vmem:[%s6174] sm:$0x3]
    %v6176 = vpack.c.bf16 %v6132, %v6132
    %v6177 = vpack.c.bf16 %v6145, %v6145
    %v6178 = vpack.c.bf16 %v6158, %v6158
    %v6179 = vpack.c.bf16 %v6171, %v6171
    %v6181 = vsel %vm2252, %v6175, 0
    %v6184 = vsel %vm173, %v6176, 0
    %v6187 = vsel %vm173, %v6177, 0
    %v6190 = vsel %vm173, %v6178, 0
    %v6193 = vsel %vm173, %v6179, 0
    %6195 = vmatpush.bf16.msra.mxu0 0
    %6196 = vmatpush.bf16.msra.mxu0 0
    %6197 = vmatpush.bf16.msra.mxu0 0
    %6198 = vmatpush.bf16.msra.mxu0 0
    %6199 = vmatpush.bf16.msra.mxu0 0
    %6200 = vmatpush.bf16.msra.mxu0 0
    %6201 = vmatpush.bf16.msra.mxu0 0
    %6202 = vmatpush.bf16.msra.mxu0 %v6184
    %6203 = vmatmul.bf16.gmra.mxu0 %v6181
    %v6204 = vpop.f32.mrf.mxu0
    %v6205 = vadd.f32 0.0, %v6204
    %v6206 = vpop.f32.mrf.mxu0
    %6207 = vdwg.mxu0
    %6208 = vmatpush.bf16.msra.mxu0 0
    %6209 = vmatpush.bf16.msra.mxu0 0
    %6210 = vmatpush.bf16.msra.mxu0 0
    %6211 = vmatpush.bf16.msra.mxu0 0
    %6212 = vmatpush.bf16.msra.mxu0 0
    %6213 = vmatpush.bf16.msra.mxu0 0
    %6214 = vmatpush.bf16.msra.mxu0 0
    %6215 = vmatpush.bf16.msra.mxu0 %v6187
    %6216 = vmatmul.bf16.gmra.mxu0 %v6181
    %v6217 = vpop.f32.mrf.mxu0
    %v6218 = vadd.f32 0.0, %v6217
    %v6219 = vpop.f32.mrf.mxu0
    %6220 = vdwg.mxu0
    %6221 = vmatpush.bf16.msra.mxu0 0
    %6222 = vmatpush.bf16.msra.mxu0 0
    %6223 = vmatpush.bf16.msra.mxu0 0
    %6224 = vmatpush.bf16.msra.mxu0 0
    %6225 = vmatpush.bf16.msra.mxu0 0
    %6226 = vmatpush.bf16.msra.mxu0 0
    %6227 = vmatpush.bf16.msra.mxu0 0
    %6228 = vmatpush.bf16.msra.mxu0 %v6190
    %6229 = vmatmul.bf16.gmra.mxu0 %v6181
    %v6230 = vpop.f32.mrf.mxu0
    %v6231 = vadd.f32 0.0, %v6230
    %v6232 = vpop.f32.mrf.mxu0
    %6233 = vdwg.mxu0
    %6234 = vmatpush.bf16.msra.mxu0 0
    %6235 = vmatpush.bf16.msra.mxu0 0
    %6236 = vmatpush.bf16.msra.mxu0 0
    %6237 = vmatpush.bf16.msra.mxu0 0
    %6238 = vmatpush.bf16.msra.mxu0 0
    %6239 = vmatpush.bf16.msra.mxu0 0
    %6240 = vmatpush.bf16.msra.mxu0 0
    %6241 = vmatpush.bf16.msra.mxu0 %v6193
    %6242 = vmatmul.bf16.gmra.mxu0 %v6181
    %v6243 = vpop.f32.mrf.mxu0
    %v6244 = vadd.f32 0.0, %v6243
    %v6245 = vpop.f32.mrf.mxu0
    %6246 = vdwg.mxu0
    %v6247 = vadd.f32 %v5925, %v6205
    %v6248 = vadd.f32 %v5926, %v6218
    %v6249 = vadd.f32 %v5927, %v6231
    %v6250 = vadd.f32 %v5928, %v6244
    %s6251 = scalar_lea.vmem [#allocation9], 3584
    %v6252 = vld [vmem:[%s6251] sm:$0xff]
    %v6253 = vld [vmem:[%s6251 + $0x8] sm:$0xff]
    %v6254 = vld [vmem:[%s6251 + $0x10] sm:$0xff]
    %v6255 = vld [vmem:[%s6251 + $0x18] sm:$0xff]
    %v6256 = vld [vmem:[%s6251 + $0x20] sm:$0xff]
    %v6257 = vld [vmem:[%s6251 + $0x28] sm:$0xff]
    %v6258 = vld [vmem:[%s6251 + $0x30] sm:$0xff]
    %v6259 = vld [vmem:[%s6251 + $0x38] sm:$0xff]
    %v6260 = vld [vmem:[%s6251 + $0x40] sm:$0xff]
    %v6261 = vld [vmem:[%s6251 + $0x48] sm:$0xff]
    %v6262 = vld [vmem:[%s6251 + $0x50] sm:$0xff]
    %v6263 = vld [vmem:[%s6251 + $0x58] sm:$0xff]
    %v6264 = vld [vmem:[%s6251 + $0x60] sm:$0xff]
    %v6265 = vld [vmem:[%s6251 + $0x68] sm:$0xff]
    %v6266 = vld [vmem:[%s6251 + $0x70] sm:$0xff]
    %v6267 = vld [vmem:[%s6251 + $0x78] sm:$0xff]
    %v6268 = vld [vmem:[%s6251 + $0x80] sm:$0xff]
    %v6269 = vld [vmem:[%s6251 + $0x88] sm:$0xff]
    %v6270 = vld [vmem:[%s6251 + $0x90] sm:$0xff]
    %v6271 = vld [vmem:[%s6251 + $0x98] sm:$0xff]
    %v6272 = vld [vmem:[%s6251 + $0xa0] sm:$0xff]
    %v6273 = vld [vmem:[%s6251 + $0xa8] sm:$0xff]
    %v6274 = vld [vmem:[%s6251 + $0xb0] sm:$0xff]
    %v6275 = vld [vmem:[%s6251 + $0xb8] sm:$0xff]
    %v6276 = vld [vmem:[%s6251 + $0xc0] sm:$0xff]
    %v6277 = vld [vmem:[%s6251 + $0xc8] sm:$0xff]
    %v6278 = vld [vmem:[%s6251 + $0xd0] sm:$0xff]
    %v6279 = vld [vmem:[%s6251 + $0xd8] sm:$0xff]
    %v6280 = vld [vmem:[%s6251 + $0xe0] sm:$0xff]
    %v6281 = vld [vmem:[%s6251 + $0xe8] sm:$0xff]
    %v6282 = vld [vmem:[%s6251 + $0xf0] sm:$0xff]
    %v6283 = vld [vmem:[%s6251 + $0xf8] sm:$0xff]
    %v6316 = vunpack.c.l.b16 %v6252
    %v6317 = vunpack.c.h.b16 %v6252
    %v6318 = vunpack.c.l.b16 %v6253
    %v6319 = vunpack.c.h.b16 %v6253
    %v6320 = vunpack.c.l.b16 %v6254
    %v6321 = vunpack.c.h.b16 %v6254
    %v6322 = vunpack.c.l.b16 %v6255
    %v6323 = vunpack.c.h.b16 %v6255
    %v6324 = vunpack.c.l.b16 %v6256
    %v6325 = vunpack.c.h.b16 %v6256
    %v6326 = vunpack.c.l.b16 %v6257
    %v6327 = vunpack.c.h.b16 %v6257
    %v6328 = vunpack.c.l.b16 %v6258
    %v6329 = vunpack.c.h.b16 %v6258
    %v6330 = vunpack.c.l.b16 %v6259
    %v6331 = vunpack.c.h.b16 %v6259
    %v6332 = vunpack.c.l.b16 %v6260
    %v6333 = vunpack.c.h.b16 %v6260
    %v6334 = vunpack.c.l.b16 %v6261
    %v6335 = vunpack.c.h.b16 %v6261
    %v6336 = vunpack.c.l.b16 %v6262
    %v6337 = vunpack.c.h.b16 %v6262
    %v6338 = vunpack.c.l.b16 %v6263
    %v6339 = vunpack.c.h.b16 %v6263
    %v6340 = vunpack.c.l.b16 %v6264
    %v6341 = vunpack.c.h.b16 %v6264
    %v6342 = vunpack.c.l.b16 %v6265
    %v6343 = vunpack.c.h.b16 %v6265
    %v6344 = vunpack.c.l.b16 %v6266
    %v6345 = vunpack.c.h.b16 %v6266
    %v6346 = vunpack.c.l.b16 %v6267
    %v6347 = vunpack.c.h.b16 %v6267
    %v6348 = vunpack.c.l.b16 %v6268
    %v6349 = vunpack.c.h.b16 %v6268
    %v6350 = vunpack.c.l.b16 %v6269
    %v6351 = vunpack.c.h.b16 %v6269
    %v6352 = vunpack.c.l.b16 %v6270
    %v6353 = vunpack.c.h.b16 %v6270
    %v6354 = vunpack.c.l.b16 %v6271
    %v6355 = vunpack.c.h.b16 %v6271
    %v6356 = vunpack.c.l.b16 %v6272
    %v6357 = vunpack.c.h.b16 %v6272
    %v6358 = vunpack.c.l.b16 %v6273
    %v6359 = vunpack.c.h.b16 %v6273
    %v6360 = vunpack.c.l.b16 %v6274
    %v6361 = vunpack.c.h.b16 %v6274
    %v6362 = vunpack.c.l.b16 %v6275
    %v6363 = vunpack.c.h.b16 %v6275
    %v6364 = vunpack.c.l.b16 %v6276
    %v6365 = vunpack.c.h.b16 %v6276
    %v6366 = vunpack.c.l.b16 %v6277
    %v6367 = vunpack.c.h.b16 %v6277
    %v6368 = vunpack.c.l.b16 %v6278
    %v6369 = vunpack.c.h.b16 %v6278
    %v6370 = vunpack.c.l.b16 %v6279
    %v6371 = vunpack.c.h.b16 %v6279
    %v6372 = vunpack.c.l.b16 %v6280
    %v6373 = vunpack.c.h.b16 %v6280
    %v6374 = vunpack.c.l.b16 %v6281
    %v6375 = vunpack.c.h.b16 %v6281
    %v6376 = vunpack.c.l.b16 %v6282
    %v6377 = vunpack.c.h.b16 %v6282
    %v6378 = vunpack.c.l.b16 %v6283
    %v6379 = vunpack.c.h.b16 %v6283
    %v6380 = vpack.c.b16 %v6320, %v6316
    %v6381 = vpack.c.b16 %v6321, %v6317
    %v6382 = vpack.c.b16 %v6322, %v6318
    %v6383 = vpack.c.b16 %v6323, %v6319
    %v6384 = vpack.c.b16 %v6328, %v6324
    %v6385 = vpack.c.b16 %v6329, %v6325
    %v6386 = vpack.c.b16 %v6330, %v6326
    %v6387 = vpack.c.b16 %v6331, %v6327
    %v6388 = vpack.c.b16 %v6336, %v6332
    %v6389 = vpack.c.b16 %v6337, %v6333
    %v6390 = vpack.c.b16 %v6338, %v6334
    %v6391 = vpack.c.b16 %v6339, %v6335
    %v6392 = vpack.c.b16 %v6344, %v6340
    %v6393 = vpack.c.b16 %v6345, %v6341
    %v6394 = vpack.c.b16 %v6346, %v6342
    %v6395 = vpack.c.b16 %v6347, %v6343
    %v6396 = vpack.c.b16 %v6352, %v6348
    %v6397 = vpack.c.b16 %v6353, %v6349
    %v6398 = vpack.c.b16 %v6354, %v6350
    %v6399 = vpack.c.b16 %v6355, %v6351
    %v6400 = vpack.c.b16 %v6360, %v6356
    %v6401 = vpack.c.b16 %v6361, %v6357
    %v6402 = vpack.c.b16 %v6362, %v6358
    %v6403 = vpack.c.b16 %v6363, %v6359
    %v6404 = vpack.c.b16 %v6368, %v6364
    %v6405 = vpack.c.b16 %v6369, %v6365
    %v6406 = vpack.c.b16 %v6370, %v6366
    %v6407 = vpack.c.b16 %v6371, %v6367
    %v6408 = vpack.c.b16 %v6376, %v6372
    %v6409 = vpack.c.b16 %v6377, %v6373
    %v6410 = vpack.c.b16 %v6378, %v6374
    %v6411 = vpack.c.b16 %v6379, %v6375
    %6444 = vmatpush.bf16.msra.mxu0 %v6408
    %6445 = vmatpush.bf16.msra.mxu0 %v6404
    %6446 = vmatpush.bf16.msra.mxu0 %v6400
    %6447 = vmatpush.bf16.msra.mxu0 %v6396
    %6448 = vmatpush.bf16.msra.mxu0 %v6392
    %6449 = vmatpush.bf16.msra.mxu0 %v6388
    %6450 = vmatpush.bf16.msra.mxu0 %v6384
    %6451 = vmatpush.bf16.msra.mxu0 %v6380
    %6452 = vmatmul.bf16.gmra.mxu0 %v1751
    %v6453 = vpop.f32.mrf.mxu0
    %v6454 = vadd.f32 0.0, %v6453
    %v6455 = vpop.f32.mrf.mxu0
    %6456 = vdwg.mxu0
    %6457 = vmatpush.bf16.msra.mxu0 %v6409
    %6458 = vmatpush.bf16.msra.mxu0 %v6405
    %6459 = vmatpush.bf16.msra.mxu0 %v6401
    %6460 = vmatpush.bf16.msra.mxu0 %v6397
    %6461 = vmatpush.bf16.msra.mxu0 %v6393
    %6462 = vmatpush.bf16.msra.mxu0 %v6389
    %6463 = vmatpush.bf16.msra.mxu0 %v6385
    %6464 = vmatpush.bf16.msra.mxu0 %v6381
    %6465 = vmatmul.bf16.gmra.mxu0 %v1751
    %v6466 = vpop.f32.mrf.mxu0
    %v6467 = vadd.f32 0.0, %v6466
    %v6468 = vpop.f32.mrf.mxu0
    %6469 = vdwg.mxu0
    %6470 = vmatpush.bf16.msra.mxu0 %v6410
    %6471 = vmatpush.bf16.msra.mxu0 %v6406
    %6472 = vmatpush.bf16.msra.mxu0 %v6402
    %6473 = vmatpush.bf16.msra.mxu0 %v6398
    %6474 = vmatpush.bf16.msra.mxu0 %v6394
    %6475 = vmatpush.bf16.msra.mxu0 %v6390
    %6476 = vmatpush.bf16.msra.mxu0 %v6386
    %6477 = vmatpush.bf16.msra.mxu0 %v6382
    %6478 = vmatmul.bf16.gmra.mxu0 %v1751
    %v6479 = vpop.f32.mrf.mxu0
    %v6480 = vadd.f32 0.0, %v6479
    %v6481 = vpop.f32.mrf.mxu0
    %6482 = vdwg.mxu0
    %6483 = vmatpush.bf16.msra.mxu0 %v6411
    %6484 = vmatpush.bf16.msra.mxu0 %v6407
    %6485 = vmatpush.bf16.msra.mxu0 %v6403
    %6486 = vmatpush.bf16.msra.mxu0 %v6399
    %6487 = vmatpush.bf16.msra.mxu0 %v6395
    %6488 = vmatpush.bf16.msra.mxu0 %v6391
    %6489 = vmatpush.bf16.msra.mxu0 %v6387
    %6490 = vmatpush.bf16.msra.mxu0 %v6383
    %6491 = vmatmul.bf16.gmra.mxu0 %v1751
    %v6492 = vpop.f32.mrf.mxu0
    %v6493 = vadd.f32 0.0, %v6492
    %v6494 = vpop.f32.mrf.mxu0
    %6495 = vdwg.mxu0
    %s6496 = scalar_lea.vmem %s10, 28
    %v6497 = vld [vmem:[%s6496] sm:$0x3]
    %v6498 = vpack.c.bf16 %v6454, %v6454
    %v6499 = vpack.c.bf16 %v6467, %v6467
    %v6500 = vpack.c.bf16 %v6480, %v6480
    %v6501 = vpack.c.bf16 %v6493, %v6493
    %v6503 = vsel %vm2252, %v6497, 0
    %v6506 = vsel %vm173, %v6498, 0
    %v6509 = vsel %vm173, %v6499, 0
    %v6512 = vsel %vm173, %v6500, 0
    %v6515 = vsel %vm173, %v6501, 0
    %6517 = vmatpush.bf16.msra.mxu0 0
    %6518 = vmatpush.bf16.msra.mxu0 0
    %6519 = vmatpush.bf16.msra.mxu0 0
    %6520 = vmatpush.bf16.msra.mxu0 0
    %6521 = vmatpush.bf16.msra.mxu0 0
    %6522 = vmatpush.bf16.msra.mxu0 0
    %6523 = vmatpush.bf16.msra.mxu0 0
    %6524 = vmatpush.bf16.msra.mxu0 %v6506
    %6525 = vmatmul.bf16.gmra.mxu0 %v6503
    %v6526 = vpop.f32.mrf.mxu0
    %v6527 = vadd.f32 0.0, %v6526
    %v6528 = vpop.f32.mrf.mxu0
    %6529 = vdwg.mxu0
    %6530 = vmatpush.bf16.msra.mxu0 0
    %6531 = vmatpush.bf16.msra.mxu0 0
    %6532 = vmatpush.bf16.msra.mxu0 0
    %6533 = vmatpush.bf16.msra.mxu0 0
    %6534 = vmatpush.bf16.msra.mxu0 0
    %6535 = vmatpush.bf16.msra.mxu0 0
    %6536 = vmatpush.bf16.msra.mxu0 0
    %6537 = vmatpush.bf16.msra.mxu0 %v6509
    %6538 = vmatmul.bf16.gmra.mxu0 %v6503
    %v6539 = vpop.f32.mrf.mxu0
    %v6540 = vadd.f32 0.0, %v6539
    %v6541 = vpop.f32.mrf.mxu0
    %6542 = vdwg.mxu0
    %6543 = vmatpush.bf16.msra.mxu0 0
    %6544 = vmatpush.bf16.msra.mxu0 0
    %6545 = vmatpush.bf16.msra.mxu0 0
    %6546 = vmatpush.bf16.msra.mxu0 0
    %6547 = vmatpush.bf16.msra.mxu0 0
    %6548 = vmatpush.bf16.msra.mxu0 0
    %6549 = vmatpush.bf16.msra.mxu0 0
    %6550 = vmatpush.bf16.msra.mxu0 %v6512
    %6551 = vmatmul.bf16.gmra.mxu0 %v6503
    %v6552 = vpop.f32.mrf.mxu0
    %v6553 = vadd.f32 0.0, %v6552
    %v6554 = vpop.f32.mrf.mxu0
    %6555 = vdwg.mxu0
    %6556 = vmatpush.bf16.msra.mxu0 0
    %6557 = vmatpush.bf16.msra.mxu0 0
    %6558 = vmatpush.bf16.msra.mxu0 0
    %6559 = vmatpush.bf16.msra.mxu0 0
    %6560 = vmatpush.bf16.msra.mxu0 0
    %6561 = vmatpush.bf16.msra.mxu0 0
    %6562 = vmatpush.bf16.msra.mxu0 0
    %6563 = vmatpush.bf16.msra.mxu0 %v6515
    %6564 = vmatmul.bf16.gmra.mxu0 %v6503
    %v6565 = vpop.f32.mrf.mxu0
    %v6566 = vadd.f32 0.0, %v6565
    %v6567 = vpop.f32.mrf.mxu0
    %6568 = vdwg.mxu0
    %v6569 = vadd.f32 %v6247, %v6527
    %v6570 = vadd.f32 %v6248, %v6540
    %v6571 = vadd.f32 %v6249, %v6553
    %v6572 = vadd.f32 %v6250, %v6566
    %s6573 = scalar_lea.vmem [#allocation9], 3840
    %v6574 = vld [vmem:[%s6573] sm:$0xff]
    %v6575 = vld [vmem:[%s6573 + $0x8] sm:$0xff]
    %v6576 = vld [vmem:[%s6573 + $0x10] sm:$0xff]
    %v6577 = vld [vmem:[%s6573 + $0x18] sm:$0xff]
    %v6578 = vld [vmem:[%s6573 + $0x20] sm:$0xff]
    %v6579 = vld [vmem:[%s6573 + $0x28] sm:$0xff]
    %v6580 = vld [vmem:[%s6573 + $0x30] sm:$0xff]
    %v6581 = vld [vmem:[%s6573 + $0x38] sm:$0xff]
    %v6582 = vld [vmem:[%s6573 + $0x40] sm:$0xff]
    %v6583 = vld [vmem:[%s6573 + $0x48] sm:$0xff]
    %v6584 = vld [vmem:[%s6573 + $0x50] sm:$0xff]
    %v6585 = vld [vmem:[%s6573 + $0x58] sm:$0xff]
    %v6586 = vld [vmem:[%s6573 + $0x60] sm:$0xff]
    %v6587 = vld [vmem:[%s6573 + $0x68] sm:$0xff]
    %v6588 = vld [vmem:[%s6573 + $0x70] sm:$0xff]
    %v6589 = vld [vmem:[%s6573 + $0x78] sm:$0xff]
    %v6590 = vld [vmem:[%s6573 + $0x80] sm:$0xff]
    %v6591 = vld [vmem:[%s6573 + $0x88] sm:$0xff]
    %v6592 = vld [vmem:[%s6573 + $0x90] sm:$0xff]
    %v6593 = vld [vmem:[%s6573 + $0x98] sm:$0xff]
    %v6594 = vld [vmem:[%s6573 + $0xa0] sm:$0xff]
    %v6595 = vld [vmem:[%s6573 + $0xa8] sm:$0xff]
    %v6596 = vld [vmem:[%s6573 + $0xb0] sm:$0xff]
    %v6597 = vld [vmem:[%s6573 + $0xb8] sm:$0xff]
    %v6598 = vld [vmem:[%s6573 + $0xc0] sm:$0xff]
    %v6599 = vld [vmem:[%s6573 + $0xc8] sm:$0xff]
    %v6600 = vld [vmem:[%s6573 + $0xd0] sm:$0xff]
    %v6601 = vld [vmem:[%s6573 + $0xd8] sm:$0xff]
    %v6602 = vld [vmem:[%s6573 + $0xe0] sm:$0xff]
    %v6603 = vld [vmem:[%s6573 + $0xe8] sm:$0xff]
    %v6604 = vld [vmem:[%s6573 + $0xf0] sm:$0xff]
    %v6605 = vld [vmem:[%s6573 + $0xf8] sm:$0xff]
    %v6638 = vunpack.c.l.b16 %v6574
    %v6639 = vunpack.c.h.b16 %v6574
    %v6640 = vunpack.c.l.b16 %v6575
    %v6641 = vunpack.c.h.b16 %v6575
    %v6642 = vunpack.c.l.b16 %v6576
    %v6643 = vunpack.c.h.b16 %v6576
    %v6644 = vunpack.c.l.b16 %v6577
    %v6645 = vunpack.c.h.b16 %v6577
    %v6646 = vunpack.c.l.b16 %v6578
    %v6647 = vunpack.c.h.b16 %v6578
    %v6648 = vunpack.c.l.b16 %v6579
    %v6649 = vunpack.c.h.b16 %v6579
    %v6650 = vunpack.c.l.b16 %v6580
    %v6651 = vunpack.c.h.b16 %v6580
    %v6652 = vunpack.c.l.b16 %v6581
    %v6653 = vunpack.c.h.b16 %v6581
    %v6654 = vunpack.c.l.b16 %v6582
    %v6655 = vunpack.c.h.b16 %v6582
    %v6656 = vunpack.c.l.b16 %v6583
    %v6657 = vunpack.c.h.b16 %v6583
    %v6658 = vunpack.c.l.b16 %v6584
    %v6659 = vunpack.c.h.b16 %v6584
    %v6660 = vunpack.c.l.b16 %v6585
    %v6661 = vunpack.c.h.b16 %v6585
    %v6662 = vunpack.c.l.b16 %v6586
    %v6663 = vunpack.c.h.b16 %v6586
    %v6664 = vunpack.c.l.b16 %v6587
    %v6665 = vunpack.c.h.b16 %v6587
    %v6666 = vunpack.c.l.b16 %v6588
    %v6667 = vunpack.c.h.b16 %v6588
    %v6668 = vunpack.c.l.b16 %v6589
    %v6669 = vunpack.c.h.b16 %v6589
    %v6670 = vunpack.c.l.b16 %v6590
    %v6671 = vunpack.c.h.b16 %v6590
    %v6672 = vunpack.c.l.b16 %v6591
    %v6673 = vunpack.c.h.b16 %v6591
    %v6674 = vunpack.c.l.b16 %v6592
    %v6675 = vunpack.c.h.b16 %v6592
    %v6676 = vunpack.c.l.b16 %v6593
    %v6677 = vunpack.c.h.b16 %v6593
    %v6678 = vunpack.c.l.b16 %v6594
    %v6679 = vunpack.c.h.b16 %v6594
    %v6680 = vunpack.c.l.b16 %v6595
    %v6681 = vunpack.c.h.b16 %v6595
    %v6682 = vunpack.c.l.b16 %v6596
    %v6683 = vunpack.c.h.b16 %v6596
    %v6684 = vunpack.c.l.b16 %v6597
    %v6685 = vunpack.c.h.b16 %v6597
    %v6686 = vunpack.c.l.b16 %v6598
    %v6687 = vunpack.c.h.b16 %v6598
    %v6688 = vunpack.c.l.b16 %v6599
    %v6689 = vunpack.c.h.b16 %v6599
    %v6690 = vunpack.c.l.b16 %v6600
    %v6691 = vunpack.c.h.b16 %v6600
    %v6692 = vunpack.c.l.b16 %v6601
    %v6693 = vunpack.c.h.b16 %v6601
    %v6694 = vunpack.c.l.b16 %v6602
    %v6695 = vunpack.c.h.b16 %v6602
    %v6696 = vunpack.c.l.b16 %v6603
    %v6697 = vunpack.c.h.b16 %v6603
    %v6698 = vunpack.c.l.b16 %v6604
    %v6699 = vunpack.c.h.b16 %v6604
    %v6700 = vunpack.c.l.b16 %v6605
    %v6701 = vunpack.c.h.b16 %v6605
    %v6702 = vpack.c.b16 %v6642, %v6638
    %v6703 = vpack.c.b16 %v6643, %v6639
    %v6704 = vpack.c.b16 %v6644, %v6640
    %v6705 = vpack.c.b16 %v6645, %v6641
    %v6706 = vpack.c.b16 %v6650, %v6646
    %v6707 = vpack.c.b16 %v6651, %v6647
    %v6708 = vpack.c.b16 %v6652, %v6648
    %v6709 = vpack.c.b16 %v6653, %v6649
    %v6710 = vpack.c.b16 %v6658, %v6654
    %v6711 = vpack.c.b16 %v6659, %v6655
    %v6712 = vpack.c.b16 %v6660, %v6656
    %v6713 = vpack.c.b16 %v6661, %v6657
    %v6714 = vpack.c.b16 %v6666, %v6662
    %v6715 = vpack.c.b16 %v6667, %v6663
    %v6716 = vpack.c.b16 %v6668, %v6664
    %v6717 = vpack.c.b16 %v6669, %v6665
    %v6718 = vpack.c.b16 %v6674, %v6670
    %v6719 = vpack.c.b16 %v6675, %v6671
    %v6720 = vpack.c.b16 %v6676, %v6672
    %v6721 = vpack.c.b16 %v6677, %v6673
    %v6722 = vpack.c.b16 %v6682, %v6678
    %v6723 = vpack.c.b16 %v6683, %v6679
    %v6724 = vpack.c.b16 %v6684, %v6680
    %v6725 = vpack.c.b16 %v6685, %v6681
    %v6726 = vpack.c.b16 %v6690, %v6686
    %v6727 = vpack.c.b16 %v6691, %v6687
    %v6728 = vpack.c.b16 %v6692, %v6688
    %v6729 = vpack.c.b16 %v6693, %v6689
    %v6730 = vpack.c.b16 %v6698, %v6694
    %v6731 = vpack.c.b16 %v6699, %v6695
    %v6732 = vpack.c.b16 %v6700, %v6696
    %v6733 = vpack.c.b16 %v6701, %v6697
    %6766 = vmatpush.bf16.msra.mxu0 %v6730
    %6767 = vmatpush.bf16.msra.mxu0 %v6726
    %6768 = vmatpush.bf16.msra.mxu0 %v6722
    %6769 = vmatpush.bf16.msra.mxu0 %v6718
    %6770 = vmatpush.bf16.msra.mxu0 %v6714
    %6771 = vmatpush.bf16.msra.mxu0 %v6710
    %6772 = vmatpush.bf16.msra.mxu0 %v6706
    %6773 = vmatpush.bf16.msra.mxu0 %v6702
    %6774 = vmatmul.bf16.gmra.mxu0 %v1751
    %v6775 = vpop.f32.mrf.mxu0
    %v6776 = vadd.f32 0.0, %v6775
    %v6777 = vpop.f32.mrf.mxu0
    %6778 = vdwg.mxu0
    %6779 = vmatpush.bf16.msra.mxu0 %v6731
    %6780 = vmatpush.bf16.msra.mxu0 %v6727
    %6781 = vmatpush.bf16.msra.mxu0 %v6723
    %6782 = vmatpush.bf16.msra.mxu0 %v6719
    %6783 = vmatpush.bf16.msra.mxu0 %v6715
    %6784 = vmatpush.bf16.msra.mxu0 %v6711
    %6785 = vmatpush.bf16.msra.mxu0 %v6707
    %6786 = vmatpush.bf16.msra.mxu0 %v6703
    %6787 = vmatmul.bf16.gmra.mxu0 %v1751
    %v6788 = vpop.f32.mrf.mxu0
    %v6789 = vadd.f32 0.0, %v6788
    %v6790 = vpop.f32.mrf.mxu0
    %6791 = vdwg.mxu0
    %6792 = vmatpush.bf16.msra.mxu0 %v6732
    %6793 = vmatpush.bf16.msra.mxu0 %v6728
    %6794 = vmatpush.bf16.msra.mxu0 %v6724
    %6795 = vmatpush.bf16.msra.mxu0 %v6720
    %6796 = vmatpush.bf16.msra.mxu0 %v6716
    %6797 = vmatpush.bf16.msra.mxu0 %v6712
    %6798 = vmatpush.bf16.msra.mxu0 %v6708
    %6799 = vmatpush.bf16.msra.mxu0 %v6704
    %6800 = vmatmul.bf16.gmra.mxu0 %v1751
    %v6801 = vpop.f32.mrf.mxu0
    %v6802 = vadd.f32 0.0, %v6801
    %v6803 = vpop.f32.mrf.mxu0
    %6804 = vdwg.mxu0
    %6805 = vmatpush.bf16.msra.mxu0 %v6733
    %6806 = vmatpush.bf16.msra.mxu0 %v6729
    %6807 = vmatpush.bf16.msra.mxu0 %v6725
    %6808 = vmatpush.bf16.msra.mxu0 %v6721
    %6809 = vmatpush.bf16.msra.mxu0 %v6717
    %6810 = vmatpush.bf16.msra.mxu0 %v6713
    %6811 = vmatpush.bf16.msra.mxu0 %v6709
    %6812 = vmatpush.bf16.msra.mxu0 %v6705
    %6813 = vmatmul.bf16.gmra.mxu0 %v1751
    %v6814 = vpop.f32.mrf.mxu0
    %v6815 = vadd.f32 0.0, %v6814
    %v6816 = vpop.f32.mrf.mxu0
    %6817 = vdwg.mxu0
    %s6818 = scalar_lea.vmem %s10, 30
    %v6819 = vld [vmem:[%s6818] sm:$0x3]
    %v6820 = vpack.c.bf16 %v6776, %v6776
    %v6821 = vpack.c.bf16 %v6789, %v6789
    %v6822 = vpack.c.bf16 %v6802, %v6802
    %v6823 = vpack.c.bf16 %v6815, %v6815
    %v6825 = vsel %vm2252, %v6819, 0
    %v6828 = vsel %vm173, %v6820, 0
    %v6831 = vsel %vm173, %v6821, 0
    %v6834 = vsel %vm173, %v6822, 0
    %v6837 = vsel %vm173, %v6823, 0
    %6839 = vmatpush.bf16.msra.mxu0 0
    %6840 = vmatpush.bf16.msra.mxu0 0
    %6841 = vmatpush.bf16.msra.mxu0 0
    %6842 = vmatpush.bf16.msra.mxu0 0
    %6843 = vmatpush.bf16.msra.mxu0 0
    %6844 = vmatpush.bf16.msra.mxu0 0
    %6845 = vmatpush.bf16.msra.mxu0 0
    %6846 = vmatpush.bf16.msra.mxu0 %v6828
    %6847 = vmatmul.bf16.gmra.mxu0 %v6825
    %v6848 = vpop.f32.mrf.mxu0
    %v6849 = vadd.f32 0.0, %v6848
    %v6850 = vpop.f32.mrf.mxu0
    %6851 = vdwg.mxu0
    %6852 = vmatpush.bf16.msra.mxu0 0
    %6853 = vmatpush.bf16.msra.mxu0 0
    %6854 = vmatpush.bf16.msra.mxu0 0
    %6855 = vmatpush.bf16.msra.mxu0 0
    %6856 = vmatpush.bf16.msra.mxu0 0
    %6857 = vmatpush.bf16.msra.mxu0 0
    %6858 = vmatpush.bf16.msra.mxu0 0
    %6859 = vmatpush.bf16.msra.mxu0 %v6831
    %6860 = vmatmul.bf16.gmra.mxu0 %v6825
    %v6861 = vpop.f32.mrf.mxu0
    %v6862 = vadd.f32 0.0, %v6861
    %v6863 = vpop.f32.mrf.mxu0
    %6864 = vdwg.mxu0
    %6865 = vmatpush.bf16.msra.mxu0 0
    %6866 = vmatpush.bf16.msra.mxu0 0
    %6867 = vmatpush.bf16.msra.mxu0 0
    %6868 = vmatpush.bf16.msra.mxu0 0
    %6869 = vmatpush.bf16.msra.mxu0 0
    %6870 = vmatpush.bf16.msra.mxu0 0
    %6871 = vmatpush.bf16.msra.mxu0 0
    %6872 = vmatpush.bf16.msra.mxu0 %v6834
    %6873 = vmatmul.bf16.gmra.mxu0 %v6825
    %v6874 = vpop.f32.mrf.mxu0
    %v6875 = vadd.f32 0.0, %v6874
    %v6876 = vpop.f32.mrf.mxu0
    %6877 = vdwg.mxu0
    %6878 = vmatpush.bf16.msra.mxu0 0
    %6879 = vmatpush.bf16.msra.mxu0 0
    %6880 = vmatpush.bf16.msra.mxu0 0
    %6881 = vmatpush.bf16.msra.mxu0 0
    %6882 = vmatpush.bf16.msra.mxu0 0
    %6883 = vmatpush.bf16.msra.mxu0 0
    %6884 = vmatpush.bf16.msra.mxu0 0
    %6885 = vmatpush.bf16.msra.mxu0 %v6837
    %6886 = vmatmul.bf16.gmra.mxu0 %v6825
    %v6887 = vpop.f32.mrf.mxu0
    %v6888 = vadd.f32 0.0, %v6887
    %v6889 = vpop.f32.mrf.mxu0
    %6890 = vdwg.mxu0
    %v6891 = vadd.f32 %v6569, %v6849
    %v6892 = vadd.f32 %v6570, %v6862
    %v6893 = vadd.f32 %v6571, %v6875
    %v6894 = vadd.f32 %v6572, %v6888
    %vm6895 = vcmask 1042432
    %v6896 = vsel %vm6895, %v6891, 0.0
    %v6897 = vsel %vm6895, %v6892, 0.0
    %v6898 = vadd.f32 %v6896, %v6897
    %v6899 = vsel %vm6895, %v6893, 0.0
    %v6900 = vadd.f32 %v6898, %v6899
    %v6901 = vsel %vm6895, %v6894, 0.0
    %v6902 = vadd.f32 %v6900, %v6901
    %6903 = vadd.xlane.f32.xlu0 %v6902
    %v6904 = vpop.xlane.xlu0 %6903
    %v6905 = vmul.f32 %v6904, 0.001953125
    %v6906 = vmul.f32 %v6891, %v6891
    %v6907 = vmul.f32 %v6892, %v6892
    %v6908 = vmul.f32 %v6893, %v6893
    %v6909 = vmul.f32 %v6894, %v6894
    %v6910 = vsel %vm6895, %v6906, 0.0
    %v6911 = vsel %vm6895, %v6907, 0.0
    %v6912 = vadd.f32 %v6910, %v6911
    %v6913 = vsel %vm6895, %v6908, 0.0
    %v6914 = vadd.f32 %v6912, %v6913
    %v6915 = vsel %vm6895, %v6909, 0.0
    %v6916 = vadd.f32 %v6914, %v6915
    %6917 = vadd.xlane.f32.xlu0 %v6916
    %v6918 = vpop.xlane.xlu0 %6917
    %v6919 = vmul.f32 %v6918, 0.001953125
    %v6920 = vmul.f32 %v6905, %v6905
    %v6921 = vsub.f32 %v6919, %v6920
    %v6922 = vmax.f32 %v6921, 0.0
    %v6923 = vld [vmem:[%s12] sm:$0x7]
    %v6924 = vadd.f32 %v6922, 1e-05
    %v6925 = vrsqrt.pop %v6924
    %v6926 = vmul.f32 %v6925, %v6924
    %v6927 = vmul.f32 %v6926, %v6925
    %v6928 = vmul.f32 0.5, %v6927
    %v6929 = vsub.f32 1.5, %v6928
    %v6930 = vmul.f32 %v6925, %v6929
    %vm6931 = vweird.f32 %v6924
    %vm6932 = vweird.f32 %v6925
    %vm6933 = vmor %vm6931, %vm6932
    %v6934 = vsel %vm6933, %v6925, %v6930
    %v6935 = vmul.f32 %v6923, %v6934
    %v6936 = vld [vmem:[%s13] sm:$0x7]
    %v6937 = vmul.f32 %v6905, %v6935
    %v6938 = vsub.f32 %v6936, %v6937
    %6940 = vset.pattern.permute.xlu0 0
    %6941 = vperm.xlu0 %6940, %v6935
    %v6942 = vpop.permute.xlu0 %6941
    %v6944 = vmul.f32 %v6891, %v6942
    %v6945 = vmul.f32 %v6892, %v6942
    %v6946 = vmul.f32 %v6893, %v6942
    %v6947 = vmul.f32 %v6894, %v6942
    %6949 = vset.pattern.permute.xlu0 0
    %6950 = vperm.xlu0 %6949, %v6938
    %v6951 = vpop.permute.xlu0 %6950
    %v6953 = vadd.f32 %v6944, %v6951
    %v6954 = vadd.f32 %v6945, %v6951
    %v6955 = vadd.f32 %v6946, %v6951
    %v6956 = vadd.f32 %v6947, %v6951
    %v6957 = vmax.f32 %v6953, 0.0
    %v6958 = vmax.f32 %v6954, 0.0
    %v6959 = vmax.f32 %v6955, 0.0
    %v6960 = vmax.f32 %v6956, 0.0
    %v6961 = vxor.u32 %v6957, 2147483648
    %v6962 = vxor.u32 %v6958, 2147483648
    %v6963 = vxor.u32 %v6959, 2147483648
    %v6964 = vxor.u32 %v6960, 2147483648
    %v6965 = vmul.f32 %v6961, 1.442695
    %v6966 = vpow.pop %v6965
    %v6967 = vmul.f32 %v6962, 1.442695
    %v6968 = vpow.pop %v6967
    %v6969 = vmul.f32 %v6963, 1.442695
    %v6970 = vpow.pop %v6969
    %v6971 = vmul.f32 %v6964, 1.442695
    %v6972 = vpow.pop %v6971
    %v6973 = vadd.f32 %v6966, 1.0
    %v6974 = vadd.f32 %v6968, 1.0
    %v6975 = vadd.f32 %v6970, 1.0
    %v6976 = vadd.f32 %v6972, 1.0
    %v6977 = vrcp.pop %v6973
    %v6978 = vmul.f32 %v6973, %v6977
    %v6979 = vsub.f32 1.0, %v6978
    %v6980 = vmul.f32 %v6977, %v6979
    %v6981 = vadd.f32 %v6977, %v6980
    %vm6982 = vweird.f32 %v6973
    %vm6983 = vweird.f32 %v6977
    %vm6984 = vmor %vm6982, %vm6983
    %v6985 = vsel %vm6984, %v6977, %v6981
    %v6986 = vand.u32 2147483647, %v6973
    %vm6987 = vcmp.eq.f32.partialorder %v6986, 8.507059e+37
    %v6988 = vand.u32 %v6973, 2147483648
    %v6989 = vor.u32 1.1754944e-38, %v6988
    %v6990 = vsel %vm6987, %v6989, %v6985
    %v6991 = vmul.f32 1.0, %v6990
    %v6992 = vrcp.pop %v6974
    %v6993 = vmul.f32 %v6974, %v6992
    %v6994 = vsub.f32 1.0, %v6993
    %v6995 = vmul.f32 %v6992, %v6994
    %v6996 = vadd.f32 %v6992, %v6995
    %vm6997 = vweird.f32 %v6974
    %vm6998 = vweird.f32 %v6992
    %vm6999 = vmor %vm6997, %vm6998
    %v7000 = vsel %vm6999, %v6992, %v6996
    %v7001 = vand.u32 2147483647, %v6974
    %vm7002 = vcmp.eq.f32.partialorder %v7001, 8.507059e+37
    %v7003 = vand.u32 %v6974, 2147483648
    %v7004 = vor.u32 1.1754944e-38, %v7003
    %v7005 = vsel %vm7002, %v7004, %v7000
    %v7006 = vmul.f32 1.0, %v7005
    %v7007 = vrcp.pop %v6975
    %v7008 = vmul.f32 %v6975, %v7007
    %v7009 = vsub.f32 1.0, %v7008
    %v7010 = vmul.f32 %v7007, %v7009
    %v7011 = vadd.f32 %v7007, %v7010
    %vm7012 = vweird.f32 %v6975
    %vm7013 = vweird.f32 %v7007
    %vm7014 = vmor %vm7012, %vm7013
    %v7015 = vsel %vm7014, %v7007, %v7011
    %v7016 = vand.u32 2147483647, %v6975
    %vm7017 = vcmp.eq.f32.partialorder %v7016, 8.507059e+37
    %v7018 = vand.u32 %v6975, 2147483648
    %v7019 = vor.u32 1.1754944e-38, %v7018
    %v7020 = vsel %vm7017, %v7019, %v7015
    %v7021 = vmul.f32 1.0, %v7020
    %v7022 = vrcp.pop %v6976
    %v7023 = vmul.f32 %v6976, %v7022
    %v7024 = vsub.f32 1.0, %v7023
    %v7025 = vmul.f32 %v7022, %v7024
    %v7026 = vadd.f32 %v7022, %v7025
    %vm7027 = vweird.f32 %v6976
    %vm7028 = vweird.f32 %v7022
    %vm7029 = vmor %vm7027, %vm7028
    %v7030 = vsel %vm7029, %v7022, %v7026
    %v7031 = vand.u32 2147483647, %v6976
    %vm7032 = vcmp.eq.f32.partialorder %v7031, 8.507059e+37
    %v7033 = vand.u32 %v6976, 2147483648
    %v7034 = vor.u32 1.1754944e-38, %v7033
    %v7035 = vsel %vm7032, %v7034, %v7030
    %v7036 = vmul.f32 1.0, %v7035
    %v7041 = vrot.slane %v7006, 4
    %v7042 = vrot.slane %v7036, 4
    %v7043 = vsel %vm199, %v6991, %v7041
    %v7044 = vsel %vm199, %v7021, %v7042
    %7047 = vst [vmem:[%s14] sm:$0x77] %v7043
    %7048 = vst [vmem:[%s14 + $0x8] sm:$0x77] %v7044
    // Predicated region
    $region78: #{cnn_decoder_forward.1} parent=1 // pred_check
      _
    $region79: #{cnn_decoder_forward.1} parent=1 // pred_check_branch
      %7050 = sbr.rel (0) target = $region81
    $region80: #{cnn_decoder_forward.1} parent=1 // pred_region
      _
    $region81: #{cnn_decoder_forward.1} parent=1 // pred_fallthru
      _
    // Predicated region
    $region82: #{cnn_decoder_forward.1} parent=1 // pred_check
      _
    $region83: #{cnn_decoder_forward.1} parent=1 // pred_check_branch
      %7052 = sbr.rel (0) target = $region85
    $region84: #{cnn_decoder_forward.1} parent=1 // pred_region
      _
    $region85: #{cnn_decoder_forward.1} parent=1 // pred_fallthru
      _
    %7053 = vsyncpa [#allocation3], 1
    %7054 = vsyncpa [#allocation5], 1
    %7055 = vsyncpa [#allocation8], 1

</llo_original>
